<compile_context>
chip_gen: v7x
topology: tpu7x:2x2x1
jax: 0.10.0
libtpu: 0.0.40
codegen_flags: <defaults>
</compile_context>

<pallas_src>
import functools

import jax
import jax.numpy as jnp
from jax import lax
from jax.experimental import pallas as pl
from jax.experimental.pallas import tpu as pltpu


_VMEM_LIMIT = 32 * 1024 * 1024    # safe on v5e/v6e (128 MiB) and v7x (64 MiB)
_TILE_BUDGET = 8 * 1024 * 1024    # target working set per fused grid step


def _pick_row_tile(H, W, Ci, F, in_itemsize, need_even):
    """Largest row tile dividing H, even if a 2x skip is fused, within budget."""
    # rough per-row bytes: double-buffered input rows + f32 p_ext/p_pad/acc rows
    per_row = 2 * W * Ci * in_itemsize + 4 * (W + 2) * F * 4
    max_rows = int(max(1, _TILE_BUDGET // max(per_row, 1)))
    max_rows = min(max_rows, H, 128)
    step = 2 if need_even else 1
    best = None
    t = step
    while t <= max_rows:
        if H % t == 0:
            best = t
        t += step
    if best is None:
        # need_even implies H is even (enforced by the wrapper), so 2 divides H.
        best = 2 if need_even else 1
    return best


# ----------------------------------------------------------------------------
# Fused per-level kernel: 1x1 conv (+ upsampled skip) + 3x3 conv, row-tiled
# with a 1-row halo, intermediate P kept in VMEM.
# ----------------------------------------------------------------------------
def _make_level_kernel(has_skip, emit_p, compute_dtype):
    def kernel(*refs):
        if has_skip:
            (x_ref, xt_ref, xb_ref, s_ref, st_ref, sb_ref,
             w1_ref, b1_ref, w3_ref, b3_ref) = refs[:10]
            out_refs = refs[10:]
        else:
            (x_ref, xt_ref, xb_ref,
             w1_ref, b1_ref, w3_ref, b3_ref) = refs[:7]
            out_refs = refs[7:]
        if emit_p:
            p_ref, o_ref = out_refs
        else:
            (o_ref,) = out_refs

        i = pl.program_id(1)
        nrow = pl.num_programs(1)
        th, W, F = o_ref.shape[1], o_ref.shape[2], o_ref.shape[3]

        w1 = w1_ref[...]                               # (Ci, F) compute dtype
        b1 = b1_ref[...].astype(jnp.float32)           # (1, F)
        b3 = b3_ref[...].astype(jnp.float32)           # (1, F)

        def one_by_one(xr):
            # xr: (R, W, Ci) -> (R, W, F), f32 accumulation, + bias.
            acc = lax.dot_general(xr, w1, (((2,), (0,)), ((), ())),
                                  preferred_element_type=jnp.float32)
            return acc + b1

        # 1x1 conv on the main rows and on the 1-row halos (real P rows of the
        # neighbouring tiles; re-computed here so the 3x3 never round-trips P
        # through HBM).
        pm = one_by_one(x_ref[0])                      # (th, W, F)
        pt = one_by_one(xt_ref[0])                     # (1,  W, F)
        pb = one_by_one(xb_ref[0])                     # (1,  W, F)

        if has_skip:
            # Fused nearest-2x upsample of the half-res skip, done in VMEM in
            # the skip's storage dtype; the add accumulates in f32.
            s_up = jnp.repeat(jnp.repeat(s_ref[0], 2, axis=0), 2, axis=1)
            pm = pm + s_up.astype(jnp.float32)
            pt = pt + jnp.repeat(st_ref[0], 2, axis=1).astype(jnp.float32)
            pb = pb + jnp.repeat(sb_ref[0], 2, axis=1).astype(jnp.float32)

        # Zero the halos at the true image boundary (the 3x3's pad=1 rows).
        pt = pt * (i > 0).astype(jnp.float32)
        pb = pb * (i < nrow - 1).astype(jnp.float32)

        if emit_p:
            p_ref[0] = pm.astype(p_ref.dtype)

        # 3x3 conv, stride 1, pad 1, on the VMEM-resident P tile: zero-pad W in
        # VMEM and accumulate 9 per-tap K=C matmuls (no (H,W,9C) im2col buffer).
        p_ext = jnp.concatenate([pt, pm, pb], axis=0)       # (th+2, W,   F) f32
        zc = jnp.zeros((th + 2, 1, F), jnp.float32)
        p_pad = jnp.concatenate([zc, p_ext, zc], axis=1)    # (th+2, W+2, F) f32
        p_c = p_pad.astype(compute_dtype)                   # MXU operands

        acc = None
        for dy in range(3):
            for dx in range(3):
                tap = p_c[dy:dy + th, dx:dx + W, :]          # (th, W, F)
                part = lax.dot_general(tap, w3_ref[dy * 3 + dx],
                                       (((2,), (0,)), ((), ())),
                                       preferred_element_type=jnp.float32)
                acc = part if acc is None else acc + part
        o_ref[0] = (acc + b3).astype(o_ref.dtype)

    return kernel


def fused_level(x_nhwc, w1, b1, w3, b3, skip_nhwc=None, *, emit_p=True,
                compute_dtype=jnp.bfloat16, out_dtype=jnp.float32):
    """One FPN level: P = conv1x1(x)+b (+ up2(skip)),  out = conv3x3(P)+b.

    Returns (P, out) when emit_p else out.  P is stored in compute_dtype,
    out in out_dtype (f32 module outputs).
    """
    B, H, W, Ci = x_nhwc.shape
    F = w1.shape[1]
    has_skip = skip_nhwc is not None

    x = x_nhwc.astype(compute_dtype)
    w1c = w1.astype(compute_dtype)
    b1f = b1.reshape(1, F).astype(jnp.float32)
    w3c = w3.reshape(9, F, F).astype(compute_dtype)
    b3f = b3.reshape(1, F).astype(jnp.float32)

    th = _pick_row_tile(H, W, Ci, F, jnp.dtype(compute_dtype).itemsize, has_skip)
    grid = (B, H // th)

    x_spec = pl.BlockSpec((1, th, W, Ci), lambda b, i: (b, i, 0, 0))
    xt_spec = pl.BlockSpec(
        (1, 1, W, Ci), lambda b, i: (b, jnp.maximum(i * th - 1, 0), 0, 0))
    xb_spec = pl.BlockSpec(
        (1, 1, W, Ci), lambda b, i: (b, jnp.minimum(i * th + th, H - 1), 0, 0))
    w1_spec = pl.BlockSpec((Ci, F), lambda b, i: (0, 0))
    b1_spec = pl.BlockSpec((1, F), lambda b, i: (0, 0))
    w3_spec = pl.BlockSpec((9, F, F), lambda b, i: (0, 0, 0))
    b3_spec = pl.BlockSpec((1, F), lambda b, i: (0, 0))
    o_spec = pl.BlockSpec((1, th, W, F), lambda b, i: (b, i, 0, 0))

    in_specs = [x_spec, xt_spec, xb_spec]
    args = [x, x, x]

    if has_skip:
        assert H % 2 == 0 and W % 2 == 0, "skip level needs even H, W"
        assert skip_nhwc.shape == (B, H // 2, W // 2, F), "skip must be half-res"
        assert th % 2 == 0
        s = skip_nhwc.astype(compute_dtype)
        hs, Hs = th // 2, H // 2
        s_spec = pl.BlockSpec((1, hs, W // 2, F), lambda b, i: (b, i, 0, 0))
        st_spec = pl.BlockSpec(
            (1, 1, W // 2, F), lambda b, i: (b, jnp.maximum(i * hs - 1, 0), 0, 0))
        sb_spec = pl.BlockSpec(
            (1, 1, W // 2, F), lambda b, i: (b, jnp.minimum(i * hs + hs, Hs - 1), 0, 0))
        in_specs += [s_spec, st_spec, sb_spec]
        args += [s, s, s]

    in_specs += [w1_spec, b1_spec, w3_spec, b3_spec]
    args += [w1c, b1f, w3c, b3f]

    if emit_p:
        out_specs = [pl.BlockSpec((1, th, W, F), lambda b, i: (b, i, 0, 0)), o_spec]
        out_shape = (jax.ShapeDtypeStruct((B, H, W, F), compute_dtype),
                     jax.ShapeDtypeStruct((B, H, W, F), out_dtype))
    else:
        out_specs = o_spec
        out_shape = jax.ShapeDtypeStruct((B, H, W, F), out_dtype)

    kernel = _make_level_kernel(has_skip, emit_p, compute_dtype)
    return pl.pallas_call(
        kernel,
        out_shape=out_shape,
        grid=grid,
        in_specs=in_specs,
        out_specs=out_specs,
        compiler_params=pltpu.CompilerParams(
            dimension_semantics=("parallel", "parallel"),
            vmem_limit_bytes=_VMEM_LIMIT),
    )(*args)


# ----------------------------------------------------------------------------
# Decoder (matches torch Decoder.forward semantics)
# ----------------------------------------------------------------------------
def init_decoder_params(key, C3_size, C4_size, C5_size, feature_size):
    ks = jax.random.split(key, 12)
    sc = 0.05
    w1 = lambda k, ci, co: sc * jax.random.normal(k, (ci, co), jnp.float32)
    w3 = lambda k, ci, co: sc * jax.random.normal(k, (9, ci, co), jnp.float32)
    bias = lambda k, co: sc * jax.random.normal(k, (co,), jnp.float32)
    F = feature_size
    return {
        "p5_1_w": w1(ks[0], C5_size, F), "p5_1_b": bias(ks[1], F),
        "p5_2_w": w3(ks[2], F, F),       "p5_2_b": bias(ks[3], F),
        "p4_1_w": w1(ks[4], C4_size, F), "p4_1_b": bias(ks[5], F),
        "p4_2_w": w3(ks[6], F, F),       "p4_2_b": bias(ks[7], F),
        "p3_1_w": w1(ks[8], C3_size, F), "p3_1_b": bias(ks[9], F),
        "p3_2_w": w3(ks[10], F, F),      "p3_2_b": bias(ks[11], F),
    }


def decoder_forward(params, C3_nchw, C4_nchw, C5_nchw, *,
                    compute_dtype=jnp.bfloat16):
    # NCHW -> NHWC (see TODO(synk) at top about folding these into the kernels)
    c3 = jnp.transpose(C3_nchw, (0, 2, 3, 1))
    c4 = jnp.transpose(C4_nchw, (0, 2, 3, 1))
    c5 = jnp.transpose(C5_nchw, (0, 2, 3, 1))

    # P5: fused 1x1 + 3x3; the pre-3x3 intermediate feeds P4's skip.
    p5_pre, p5_out = fused_level(
        c5, params["p5_1_w"], params["p5_1_b"], params["p5_2_w"], params["p5_2_b"],
        emit_p=True, compute_dtype=compute_dtype)

    # P4: fused 1x1 + up2(P5) skip + 3x3; intermediate feeds P3's skip.
    p4_pre, p4_out = fused_level(
        c4, params["p4_1_w"], params["p4_1_b"], params["p4_2_w"], params["p4_2_b"],
        skip_nhwc=p5_pre, emit_p=True, compute_dtype=compute_dtype)

    # P3: fused 1x1 + up2(P4) skip + 3x3; intermediate not needed downstream.
    p3_out = fused_level(
        c3, params["p3_1_w"], params["p3_1_b"], params["p3_2_w"], params["p3_2_b"],
        skip_nhwc=p4_pre, emit_p=False, compute_dtype=compute_dtype)

    to_nchw = lambda t: jnp.transpose(t, (0, 3, 1, 2))
    return [to_nchw(p3_out), to_nchw(p4_out), to_nchw(p5_out)]


# ----------------------------------------------------------------------------
# Pure-JAX reference (lax.conv) used as the correctness check
# ----------------------------------------------------------------------------
def _ref_conv(x_nhwc, w_hwio, b, pad):
    dn = lax.conv_dimension_numbers(x_nhwc.shape, w_hwio.shape,
                                    ("NHWC", "HWIO", "NHWC"))
    y = lax.conv_general_dilated(x_nhwc, w_hwio, (1, 1),
                                 [(pad, pad), (pad, pad)], dimension_numbers=dn)
    return y + b.reshape(1, 1, 1, -1)


def _ref_up2(x_nhwc):
    return jnp.repeat(jnp.repeat(x_nhwc, 2, axis=1), 2, axis=2)


def decoder_forward_ref(params, C3_nchw, C4_nchw, C5_nchw):
    c3 = jnp.transpose(C3_nchw, (0, 2, 3, 1))
    c4 = jnp.transpose(C4_nchw, (0, 2, 3, 1))
    c5 = jnp.transpose(C5_nchw, (0, 2, 3, 1))

    w1 = lambda w: w.reshape(1, 1, *w.shape)
    w3 = lambda w: w.reshape(3, 3, w.shape[1], w.shape[2])

    p5 = _ref_conv(c5, w1(params["p5_1_w"]), params["p5_1_b"], 0)
    p5_out = _ref_conv(p5, w3(params["p5_2_w"]), params["p5_2_b"], 1)
    p4 = _ref_conv(c4, w1(params["p4_1_w"]), params["p4_1_b"], 0) + _ref_up2(p5)
    p4_out = _ref_conv(p4, w3(params["p4_2_w"]), params["p4_2_b"], 1)
    p3 = _ref_conv(c3, w1(params["p3_1_w"]), params["p3_1_b"], 0) + _ref_up2(p4)
    p3_out = _ref_conv(p3, w3(params["p3_2_w"]), params["p3_2_b"], 1)
    to_nchw = lambda t: jnp.transpose(t, (0, 3, 1, 2))
    return [to_nchw(p3_out), to_nchw(p4_out), to_nchw(p5_out)]


# ----------------------------------------------------------------------------
if __name__ == "__main__":
    B = 2
    C3_size, C4_size, C5_size = 32, 64, 128
    feature_size = 128      # lane-dense (multiple of 128); real P2PNet uses 256
    H3 = W3 = 16            # C4: 8x8, C5: 4x4 (FPN pyramid)

    key = jax.random.PRNGKey(0)
    k1, k2, k3, kp = jax.random.split(key, 4)
    C3 = jax.random.normal(k1, (B, C3_size, H3, W3), jnp.float32)
    C4 = jax.random.normal(k2, (B, C4_size, H3 // 2, W3 // 2), jnp.float32)
    C5 = jax.random.normal(k3, (B, C5_size, H3 // 4, W3 // 4), jnp.float32)

    params = init_decoder_params(kp, C3_size, C4_size, C5_size, feature_size)
    refs = decoder_forward_ref(params, C3, C4, C5)

    # f32 path (matches the torch module's numerics).
    outs_f32 = jax.jit(functools.partial(
        decoder_forward, compute_dtype=jnp.float32))(params, C3, C4, C5)
    outs_f32 = [jax.block_until_ready(o) for o in outs_f32]
    for o, r in zip(outs_f32, refs):
        assert o.shape == r.shape
        assert jnp.allclose(o, r, atol=1e-3, rtol=1e-3), "f32 mismatch vs ref"

    # Default bf16 MXU path: bf16 operands + bf16 intermediates/skips in HBM,
    # f32 accumulation and elementwise epilogue, f32 final outputs.
    outs_bf16 = jax.jit(decoder_forward)(params, C3, C4, C5)
    outs_bf16 = [jax.block_until_ready(o) for o in outs_bf16]
    for o, r in zip(outs_bf16, refs):
        assert o.shape == r.shape
        assert jnp.allclose(o, r, atol=8e-2, rtol=8e-2), "bf16 mismatch vs ref"

    print("KERNEL_OK")
</pallas_src>

<mosaic_0001>
module attributes {stable_mosaic.version = 11 : i64} {
  func.func @kernel(%arg0: i32, %arg1: i32, %arg2: memref<1x16x16x32xf32, #tpu.memory_space<vmem>>, %arg3: memref<1x1x16x32xf32, #tpu.memory_space<vmem>>, %arg4: memref<1x1x16x32xf32, #tpu.memory_space<vmem>>, %arg5: memref<1x8x8x128xf32, #tpu.memory_space<vmem>>, %arg6: memref<1x1x8x128xf32, #tpu.memory_space<vmem>>, %arg7: memref<1x1x8x128xf32, #tpu.memory_space<vmem>>, %arg8: memref<32x128xf32, #tpu.memory_space<vmem>>, %arg9: memref<1x128xf32, #tpu.memory_space<vmem>>, %arg10: memref<9x128x128xf32, #tpu.memory_space<vmem>>, %arg11: memref<1x128xf32, #tpu.memory_space<vmem>>, %arg12: memref<1x16x16x128xf32, #tpu.memory_space<vmem>>) attributes {dimension_semantics = [#tpu.dimension_semantics<parallel>, #tpu.dimension_semantics<parallel>], iteration_bounds = array<i64: 2, 1>, scalar_prefetch = 0 : i64, scratch_operands = 0 : i64, tpu.core_type = #tpu.core_type<tc>, window_params = [{transform_indices = @transform_0, window_bounds = array<i64: 1, 16, 16, 32>}, {transform_indices = @transform_1, window_bounds = array<i64: 1, 1, 16, 32>}, {transform_indices = @transform_2, window_bounds = array<i64: 1, 1, 16, 32>}, {transform_indices = @transform_3, window_bounds = array<i64: 1, 8, 8, 128>}, {transform_indices = @transform_4, window_bounds = array<i64: 1, 1, 8, 128>}, {transform_indices = @transform_5, window_bounds = array<i64: 1, 1, 8, 128>}, {pipeline_mode = #tpu.pipeline_mode<synchronous>, transform_indices = @transform_6, window_bounds = array<i64: 32, 128>}, {pipeline_mode = #tpu.pipeline_mode<synchronous>, transform_indices = @transform_7, window_bounds = array<i64: 1, 128>}, {pipeline_mode = #tpu.pipeline_mode<synchronous>, transform_indices = @transform_8, window_bounds = array<i64: 9, 128, 128>}, {pipeline_mode = #tpu.pipeline_mode<synchronous>, transform_indices = @transform_9, window_bounds = array<i64: 1, 128>}, {transform_indices = @transform_10, window_bounds = array<i64: 1, 16, 16, 128>}]} {
    %c0 = arith.constant 0 : index
    %c0_0 = arith.constant 0 : index
    %0 = vector.load %arg8[%c0, %c0_0] : memref<32x128xf32, #tpu.memory_space<vmem>>, vector<32x128xf32>
    %c0_1 = arith.constant 0 : index
    %c0_2 = arith.constant 0 : index
    %1 = vector.load %arg9[%c0_1, %c0_2] : memref<1x128xf32, #tpu.memory_space<vmem>>, vector<1x128xf32>
    %c0_3 = arith.constant 0 : index
    %c0_4 = arith.constant 0 : index
    %2 = vector.load %arg11[%c0_3, %c0_4] : memref<1x128xf32, #tpu.memory_space<vmem>>, vector<1x128xf32>
    %c0_5 = arith.constant 0 : index
    %c0_6 = arith.constant 0 : index
    %c0_7 = arith.constant 0 : index
    %c0_8 = arith.constant 0 : index
    %3 = vector.load %arg2[%c0_5, %c0_6, %c0_7, %c0_8] : memref<1x16x16x32xf32, #tpu.memory_space<vmem>>, vector<1x16x16x32xf32>
    %4 = vector.shape_cast %3 : vector<1x16x16x32xf32> to vector<16x16x32xf32>
    %cst = arith.constant dense<0.000000e+00> : vector<16x16x128xf32>
    %5 = tpu.matmul %4, %0, %cst {dimension_numbers = #tpu.dot_dimension_numbers<[2], [0], [0, 1], [1], [0, 0, 0, 1, 1, 1], [], []>} : vector<16x16x32xf32>, vector<32x128xf32>, vector<16x16x128xf32> -> vector<16x16x128xf32>
    %6 = vector.shape_cast %1 : vector<1x128xf32> to vector<1x1x128xf32>
    %7 = vector.broadcast %6 : vector<1x1x128xf32> to vector<16x16x128xf32>
    %8 = arith.addf %5, %7 : vector<16x16x128xf32>
    %c0_9 = arith.constant 0 : index
    %c0_10 = arith.constant 0 : index
    %c0_11 = arith.constant 0 : index
    %c0_12 = arith.constant 0 : index
    %9 = vector.load %arg3[%c0_9, %c0_10, %c0_11, %c0_12] : memref<1x1x16x32xf32, #tpu.memory_space<vmem>>, vector<1x1x16x32xf32>
    %10 = vector.shape_cast %9 : vector<1x1x16x32xf32> to vector<1x16x32xf32>
    %cst_13 = arith.constant dense<0.000000e+00> : vector<1x16x128xf32>
    %11 = tpu.matmul %10, %0, %cst_13 {dimension_numbers = #tpu.dot_dimension_numbers<[2], [0], [0, 1], [1], [0, 0, 0, 1, 1, 1], [], []>} : vector<1x16x32xf32>, vector<32x128xf32>, vector<1x16x128xf32> -> vector<1x16x128xf32>
    %12 = vector.shape_cast %1 : vector<1x128xf32> to vector<1x1x128xf32>
    %13 = vector.broadcast %12 : vector<1x1x128xf32> to vector<1x16x128xf32>
    %14 = arith.addf %11, %13 : vector<1x16x128xf32>
    %c0_14 = arith.constant 0 : index
    %c0_15 = arith.constant 0 : index
    %c0_16 = arith.constant 0 : index
    %c0_17 = arith.constant 0 : index
    %15 = vector.load %arg4[%c0_14, %c0_15, %c0_16, %c0_17] : memref<1x1x16x32xf32, #tpu.memory_space<vmem>>, vector<1x1x16x32xf32>
    %16 = vector.shape_cast %15 : vector<1x1x16x32xf32> to vector<1x16x32xf32>
    %cst_18 = arith.constant dense<0.000000e+00> : vector<1x16x128xf32>
    %17 = tpu.matmul %16, %0, %cst_18 {dimension_numbers = #tpu.dot_dimension_numbers<[2], [0], [0, 1], [1], [0, 0, 0, 1, 1, 1], [], []>} : vector<1x16x32xf32>, vector<32x128xf32>, vector<1x16x128xf32> -> vector<1x16x128xf32>
    %18 = vector.shape_cast %1 : vector<1x128xf32> to vector<1x1x128xf32>
    %19 = vector.broadcast %18 : vector<1x1x128xf32> to vector<1x16x128xf32>
    %20 = arith.addf %17, %19 : vector<1x16x128xf32>
    %c0_19 = arith.constant 0 : index
    %c0_20 = arith.constant 0 : index
    %c0_21 = arith.constant 0 : index
    %c0_22 = arith.constant 0 : index
    %21 = vector.load %arg5[%c0_19, %c0_20, %c0_21, %c0_22] : memref<1x8x8x128xf32, #tpu.memory_space<vmem>>, vector<1x8x8x128xf32>
    %22 = vector.shape_cast %21 : vector<1x8x8x128xf32> to vector<8x8x128xf32>
    %23 = vector.shape_cast %22 : vector<8x8x128xf32> to vector<8x1x8x128xf32>
    %24 = vector.broadcast %23 : vector<8x1x8x128xf32> to vector<8x2x8x128xf32>
    %25 = vector.shape_cast %24 : vector<8x2x8x128xf32> to vector<16x8x128xf32>
    %26 = vector.shape_cast %25 : vector<16x8x128xf32> to vector<16x8x1x128xf32>
    %27 = vector.broadcast %26 : vector<16x8x1x128xf32> to vector<16x8x2x128xf32>
    %28 = vector.shape_cast %27 : vector<16x8x2x128xf32> to vector<16x16x128xf32>
    %29 = arith.addf %8, %28 : vector<16x16x128xf32>
    %c0_23 = arith.constant 0 : index
    %c0_24 = arith.constant 0 : index
    %c0_25 = arith.constant 0 : index
    %c0_26 = arith.constant 0 : index
    %30 = vector.load %arg6[%c0_23, %c0_24, %c0_25, %c0_26] : memref<1x1x8x128xf32, #tpu.memory_space<vmem>>, vector<1x1x8x128xf32>
    %31 = vector.shape_cast %30 : vector<1x1x8x128xf32> to vector<1x8x128xf32>
    %32 = vector.shape_cast %31 : vector<1x8x128xf32> to vector<1x8x1x128xf32>
    %33 = vector.broadcast %32 : vector<1x8x1x128xf32> to vector<1x8x2x128xf32>
    %34 = vector.shape_cast %33 : vector<1x8x2x128xf32> to vector<1x16x128xf32>
    %35 = arith.addf %14, %34 : vector<1x16x128xf32>
    %c0_27 = arith.constant 0 : index
    %c0_28 = arith.constant 0 : index
    %c0_29 = arith.constant 0 : index
    %c0_30 = arith.constant 0 : index
    %36 = vector.load %arg7[%c0_27, %c0_28, %c0_29, %c0_30] : memref<1x1x8x128xf32, #tpu.memory_space<vmem>>, vector<1x1x8x128xf32>
    %37 = vector.shape_cast %36 : vector<1x1x8x128xf32> to vector<1x8x128xf32>
    %38 = vector.shape_cast %37 : vector<1x8x128xf32> to vector<1x8x1x128xf32>
    %39 = vector.broadcast %38 : vector<1x8x1x128xf32> to vector<1x8x2x128xf32>
    %40 = vector.shape_cast %39 : vector<1x8x2x128xf32> to vector<1x16x128xf32>
    %41 = arith.addf %20, %40 : vector<1x16x128xf32>
    %c0_i32 = arith.constant 0 : i32
    %42 = arith.cmpi sgt, %arg1, %c0_i32 : i32
    %43 = arith.extui %42 : i1 to i32
    %44 = arith.sitofp %43 : i32 to f32
    %45 = vector.broadcast %44 : f32 to vector<1x16x128xf32>
    %46 = arith.mulf %35, %45 : vector<1x16x128xf32>
    %c0_i32_31 = arith.constant 0 : i32
    %47 = arith.cmpi slt, %arg1, %c0_i32_31 : i32
    %48 = arith.extui %47 : i1 to i32
    %49 = arith.sitofp %48 : i32 to f32
    %50 = vector.broadcast %49 : f32 to vector<1x16x128xf32>
    %51 = arith.mulf %41, %50 : vector<1x16x128xf32>
    %52 = tpu.concatenate %46, %29, %51 in 0 : vector<1x16x128xf32>, vector<16x16x128xf32>, vector<1x16x128xf32> -> vector<18x16x128xf32>
    %cst_32 = arith.constant 0.000000e+00 : f32
    %53 = vector.broadcast %cst_32 : f32 to vector<18x1x128xf32>
    %54 = tpu.concatenate %53, %52, %53 in 1 : vector<18x1x128xf32>, vector<18x16x128xf32>, vector<18x1x128xf32> -> vector<18x18x128xf32>
    %55 = vector.extract_strided_slice %54 {offsets = [0, 0, 0], sizes = [16, 16, 128], strides = [1, 1, 1]} : vector<18x18x128xf32> to vector<16x16x128xf32>
    %c0_33 = arith.constant 0 : index
    %c0_34 = arith.constant 0 : index
    %c0_35 = arith.constant 0 : index
    %56 = vector.load %arg10[%c0_33, %c0_34, %c0_35] : memref<9x128x128xf32, #tpu.memory_space<vmem>>, vector<1x128x128xf32>
    %57 = vector.shape_cast %56 : vector<1x128x128xf32> to vector<128x128xf32>
    %cst_36 = arith.constant dense<0.000000e+00> : vector<16x16x128xf32>
    %58 = tpu.matmul %55, %57, %cst_36 {dimension_numbers = #tpu.dot_dimension_numbers<[2], [0], [0, 1], [1], [0, 0, 0, 1, 1, 1], [], []>} : vector<16x16x128xf32>, vector<128x128xf32>, vector<16x16x128xf32> -> vector<16x16x128xf32>
    %59 = vector.extract_strided_slice %54 {offsets = [0, 1, 0], sizes = [16, 16, 128], strides = [1, 1, 1]} : vector<18x18x128xf32> to vector<16x16x128xf32>
    %c1 = arith.constant 1 : index
    %c0_37 = arith.constant 0 : index
    %c0_38 = arith.constant 0 : index
    %60 = vector.load %arg10[%c1, %c0_37, %c0_38] : memref<9x128x128xf32, #tpu.memory_space<vmem>>, vector<1x128x128xf32>
    %61 = vector.shape_cast %60 : vector<1x128x128xf32> to vector<128x128xf32>
    %cst_39 = arith.constant dense<0.000000e+00> : vector<16x16x128xf32>
    %62 = tpu.matmul %59, %61, %cst_39 {dimension_numbers = #tpu.dot_dimension_numbers<[2], [0], [0, 1], [1], [0, 0, 0, 1, 1, 1], [], []>} : vector<16x16x128xf32>, vector<128x128xf32>, vector<16x16x128xf32> -> vector<16x16x128xf32>
    %63 = arith.addf %58, %62 : vector<16x16x128xf32>
    %64 = vector.extract_strided_slice %54 {offsets = [0, 2, 0], sizes = [16, 16, 128], strides = [1, 1, 1]} : vector<18x18x128xf32> to vector<16x16x128xf32>
    %c2 = arith.constant 2 : index
    %c0_40 = arith.constant 0 : index
    %c0_41 = arith.constant 0 : index
    %65 = vector.load %arg10[%c2, %c0_40, %c0_41] : memref<9x128x128xf32, #tpu.memory_space<vmem>>, vector<1x128x128xf32>
    %66 = vector.shape_cast %65 : vector<1x128x128xf32> to vector<128x128xf32>
    %cst_42 = arith.constant dense<0.000000e+00> : vector<16x16x128xf32>
    %67 = tpu.matmul %64, %66, %cst_42 {dimension_numbers = #tpu.dot_dimension_numbers<[2], [0], [0, 1], [1], [0, 0, 0, 1, 1, 1], [], []>} : vector<16x16x128xf32>, vector<128x128xf32>, vector<16x16x128xf32> -> vector<16x16x128xf32>
    %68 = arith.addf %63, %67 : vector<16x16x128xf32>
    %69 = vector.extract_strided_slice %54 {offsets = [1, 0, 0], sizes = [16, 16, 128], strides = [1, 1, 1]} : vector<18x18x128xf32> to vector<16x16x128xf32>
    %c3 = arith.constant 3 : index
    %c0_43 = arith.constant 0 : index
    %c0_44 = arith.constant 0 : index
    %70 = vector.load %arg10[%c3, %c0_43, %c0_44] : memref<9x128x128xf32, #tpu.memory_space<vmem>>, vector<1x128x128xf32>
    %71 = vector.shape_cast %70 : vector<1x128x128xf32> to vector<128x128xf32>
    %cst_45 = arith.constant dense<0.000000e+00> : vector<16x16x128xf32>
    %72 = tpu.matmul %69, %71, %cst_45 {dimension_numbers = #tpu.dot_dimension_numbers<[2], [0], [0, 1], [1], [0, 0, 0, 1, 1, 1], [], []>} : vector<16x16x128xf32>, vector<128x128xf32>, vector<16x16x128xf32> -> vector<16x16x128xf32>
    %73 = arith.addf %68, %72 : vector<16x16x128xf32>
    %74 = vector.extract_strided_slice %54 {offsets = [1, 1, 0], sizes = [16, 16, 128], strides = [1, 1, 1]} : vector<18x18x128xf32> to vector<16x16x128xf32>
    %c4 = arith.constant 4 : index
    %c0_46 = arith.constant 0 : index
    %c0_47 = arith.constant 0 : index
    %75 = vector.load %arg10[%c4, %c0_46, %c0_47] : memref<9x128x128xf32, #tpu.memory_space<vmem>>, vector<1x128x128xf32>
    %76 = vector.shape_cast %75 : vector<1x128x128xf32> to vector<128x128xf32>
    %cst_48 = arith.constant dense<0.000000e+00> : vector<16x16x128xf32>
    %77 = tpu.matmul %74, %76, %cst_48 {dimension_numbers = #tpu.dot_dimension_numbers<[2], [0], [0, 1], [1], [0, 0, 0, 1, 1, 1], [], []>} : vector<16x16x128xf32>, vector<128x128xf32>, vector<16x16x128xf32> -> vector<16x16x128xf32>
    %78 = arith.addf %73, %77 : vector<16x16x128xf32>
    %79 = vector.extract_strided_slice %54 {offsets = [1, 2, 0], sizes = [16, 16, 128], strides = [1, 1, 1]} : vector<18x18x128xf32> to vector<16x16x128xf32>
    %c5 = arith.constant 5 : index
    %c0_49 = arith.constant 0 : index
    %c0_50 = arith.constant 0 : index
    %80 = vector.load %arg10[%c5, %c0_49, %c0_50] : memref<9x128x128xf32, #tpu.memory_space<vmem>>, vector<1x128x128xf32>
    %81 = vector.shape_cast %80 : vector<1x128x128xf32> to vector<128x128xf32>
    %cst_51 = arith.constant dense<0.000000e+00> : vector<16x16x128xf32>
    %82 = tpu.matmul %79, %81, %cst_51 {dimension_numbers = #tpu.dot_dimension_numbers<[2], [0], [0, 1], [1], [0, 0, 0, 1, 1, 1], [], []>} : vector<16x16x128xf32>, vector<128x128xf32>, vector<16x16x128xf32> -> vector<16x16x128xf32>
    %83 = arith.addf %78, %82 : vector<16x16x128xf32>
    %84 = vector.extract_strided_slice %54 {offsets = [2, 0, 0], sizes = [16, 16, 128], strides = [1, 1, 1]} : vector<18x18x128xf32> to vector<16x16x128xf32>
    %c6 = arith.constant 6 : index
    %c0_52 = arith.constant 0 : index
    %c0_53 = arith.constant 0 : index
    %85 = vector.load %arg10[%c6, %c0_52, %c0_53] : memref<9x128x128xf32, #tpu.memory_space<vmem>>, vector<1x128x128xf32>
    %86 = vector.shape_cast %85 : vector<1x128x128xf32> to vector<128x128xf32>
    %cst_54 = arith.constant dense<0.000000e+00> : vector<16x16x128xf32>
    %87 = tpu.matmul %84, %86, %cst_54 {dimension_numbers = #tpu.dot_dimension_numbers<[2], [0], [0, 1], [1], [0, 0, 0, 1, 1, 1], [], []>} : vector<16x16x128xf32>, vector<128x128xf32>, vector<16x16x128xf32> -> vector<16x16x128xf32>
    %88 = arith.addf %83, %87 : vector<16x16x128xf32>
    %89 = vector.extract_strided_slice %54 {offsets = [2, 1, 0], sizes = [16, 16, 128], strides = [1, 1, 1]} : vector<18x18x128xf32> to vector<16x16x128xf32>
    %c7 = arith.constant 7 : index
    %c0_55 = arith.constant 0 : index
    %c0_56 = arith.constant 0 : index
    %90 = vector.load %arg10[%c7, %c0_55, %c0_56] : memref<9x128x128xf32, #tpu.memory_space<vmem>>, vector<1x128x128xf32>
    %91 = vector.shape_cast %90 : vector<1x128x128xf32> to vector<128x128xf32>
    %cst_57 = arith.constant dense<0.000000e+00> : vector<16x16x128xf32>
    %92 = tpu.matmul %89, %91, %cst_57 {dimension_numbers = #tpu.dot_dimension_numbers<[2], [0], [0, 1], [1], [0, 0, 0, 1, 1, 1], [], []>} : vector<16x16x128xf32>, vector<128x128xf32>, vector<16x16x128xf32> -> vector<16x16x128xf32>
    %93 = arith.addf %88, %92 : vector<16x16x128xf32>
    %94 = vector.extract_strided_slice %54 {offsets = [2, 2, 0], sizes = [16, 16, 128], strides = [1, 1, 1]} : vector<18x18x128xf32> to vector<16x16x128xf32>
    %c8 = arith.constant 8 : index
    %c0_58 = arith.constant 0 : index
    %c0_59 = arith.constant 0 : index
    %95 = vector.load %arg10[%c8, %c0_58, %c0_59] : memref<9x128x128xf32, #tpu.memory_space<vmem>>, vector<1x128x128xf32>
    %96 = vector.shape_cast %95 : vector<1x128x128xf32> to vector<128x128xf32>
    %cst_60 = arith.constant dense<0.000000e+00> : vector<16x16x128xf32>
    %97 = tpu.matmul %94, %96, %cst_60 {dimension_numbers = #tpu.dot_dimension_numbers<[2], [0], [0, 1], [1], [0, 0, 0, 1, 1, 1], [], []>} : vector<16x16x128xf32>, vector<128x128xf32>, vector<16x16x128xf32> -> vector<16x16x128xf32>
    %98 = arith.addf %93, %97 : vector<16x16x128xf32>
    %99 = vector.shape_cast %2 : vector<1x128xf32> to vector<1x1x128xf32>
    %100 = vector.broadcast %99 : vector<1x1x128xf32> to vector<16x16x128xf32>
    %101 = arith.addf %98, %100 : vector<16x16x128xf32>
    %c0_61 = arith.constant 0 : index
    %c0_62 = arith.constant 0 : index
    %c0_63 = arith.constant 0 : index
    %c0_64 = arith.constant 0 : index
    %102 = vector.load %arg12[%c0_61, %c0_62, %c0_63, %c0_64] : memref<1x16x16x128xf32, #tpu.memory_space<vmem>>, vector<1x16x16x128xf32>
    %103 = vector.shape_cast %102 : vector<1x16x16x128xf32> to vector<16x16x128xf32>
    %104 = vector.shape_cast %101 : vector<16x16x128xf32> to vector<1x16x16x128xf32>
    tpu.vector_store %arg12[%c0_61, %c0_62, %c0_63, %c0_64], %104 {strides = array<i32>} : memref<1x16x16x128xf32, #tpu.memory_space<vmem>>, vector<1x16x16x128xf32>,
    return
  }
  func.func @transform_0(%arg0: i32, %arg1: i32) -> (i32, i32, i32, i32) {
    %c0_i32 = arith.constant 0 : i32
    %c0_i32_0 = arith.constant 0 : i32
    %c0_i32_1 = arith.constant 0 : i32
    return %arg0, %arg1, %c0_i32, %c0_i32_0 : i32, i32, i32, i32
  }
  func.func @transform_1(%arg0: i32, %arg1: i32) -> (i32, i32, i32, i32) {
    %c16_i32 = arith.constant 16 : i32
    %0 = arith.muli %arg1, %c16_i32 : i32
    %c1_i32 = arith.constant 1 : i32
    %1 = arith.subi %0, %c1_i32 : i32
    %c0_i32 = arith.constant 0 : i32
    %2 = arith.maxsi %1, %c0_i32 : i32
    %c0_i32_0 = arith.constant 0 : i32
    %c0_i32_1 = arith.constant 0 : i32
    %c0_i32_2 = arith.constant 0 : i32
    return %arg0, %2, %c0_i32_0, %c0_i32_1 : i32, i32, i32, i32
  }
  func.func @transform_2(%arg0: i32, %arg1: i32) -> (i32, i32, i32, i32) {
    %c16_i32 = arith.constant 16 : i32
    %0 = arith.muli %arg1, %c16_i32 : i32
    %c16_i32_0 = arith.constant 16 : i32
    %1 = arith.addi %0, %c16_i32_0 : i32
    %c15_i32 = arith.constant 15 : i32
    %2 = arith.minsi %1, %c15_i32 : i32
    %c0_i32 = arith.constant 0 : i32
    %c0_i32_1 = arith.constant 0 : i32
    %c0_i32_2 = arith.constant 0 : i32
    return %arg0, %2, %c0_i32, %c0_i32_1 : i32, i32, i32, i32
  }
  func.func @transform_3(%arg0: i32, %arg1: i32) -> (i32, i32, i32, i32) {
    %c0_i32 = arith.constant 0 : i32
    %c0_i32_0 = arith.constant 0 : i32
    %c0_i32_1 = arith.constant 0 : i32
    return %arg0, %arg1, %c0_i32, %c0_i32_0 : i32, i32, i32, i32
  }
  func.func @transform_4(%arg0: i32, %arg1: i32) -> (i32, i32, i32, i32) {
    %c8_i32 = arith.constant 8 : i32
    %0 = arith.muli %arg1, %c8_i32 : i32
    %c1_i32 = arith.constant 1 : i32
    %1 = arith.subi %0, %c1_i32 : i32
    %c0_i32 = arith.constant 0 : i32
    %2 = arith.maxsi %1, %c0_i32 : i32
    %c0_i32_0 = arith.constant 0 : i32
    %c0_i32_1 = arith.constant 0 : i32
    %c0_i32_2 = arith.constant 0 : i32
    return %arg0, %2, %c0_i32_0, %c0_i32_1 : i32, i32, i32, i32
  }
  func.func @transform_5(%arg0: i32, %arg1: i32) -> (i32, i32, i32, i32) {
    %c8_i32 = arith.constant 8 : i32
    %0 = arith.muli %arg1, %c8_i32 : i32
    %c8_i32_0 = arith.constant 8 : i32
    %1 = arith.addi %0, %c8_i32_0 : i32
    %c7_i32 = arith.constant 7 : i32
    %2 = arith.minsi %1, %c7_i32 : i32
    %c0_i32 = arith.constant 0 : i32
    %c0_i32_1 = arith.constant 0 : i32
    %c0_i32_2 = arith.constant 0 : i32
    return %arg0, %2, %c0_i32, %c0_i32_1 : i32, i32, i32, i32
  }
  func.func @transform_6(%arg0: i32, %arg1: i32) -> (i32, i32) {
    %c0_i32 = arith.constant 0 : i32
    %c0_i32_0 = arith.constant 0 : i32
    %c0_i32_1 = arith.constant 0 : i32
    return %c0_i32, %c0_i32_0 : i32, i32
  }
  func.func @transform_7(%arg0: i32, %arg1: i32) -> (i32, i32) {
    %c0_i32 = arith.constant 0 : i32
    %c0_i32_0 = arith.constant 0 : i32
    %c0_i32_1 = arith.constant 0 : i32
    return %c0_i32, %c0_i32_0 : i32, i32
  }
  func.func @transform_8(%arg0: i32, %arg1: i32) -> (i32, i32, i32) {
    %c0_i32 = arith.constant 0 : i32
    %c0_i32_0 = arith.constant 0 : i32
    %c0_i32_1 = arith.constant 0 : i32
    %c0_i32_2 = arith.constant 0 : i32
    return %c0_i32, %c0_i32_0, %c0_i32_1 : i32, i32, i32
  }
  func.func @transform_9(%arg0: i32, %arg1: i32) -> (i32, i32) {
    %c0_i32 = arith.constant 0 : i32
    %c0_i32_0 = arith.constant 0 : i32
    %c0_i32_1 = arith.constant 0 : i32
    return %c0_i32, %c0_i32_0 : i32, i32
  }
  func.func @transform_10(%arg0: i32, %arg1: i32) -> (i32, i32, i32, i32) {
    %c0_i32 = arith.constant 0 : i32
    %c0_i32_0 = arith.constant 0 : i32
    %c0_i32_1 = arith.constant 0 : i32
    return %arg0, %arg1, %c0_i32, %c0_i32_0 : i32, i32, i32, i32
  }
}

module attributes {stable_mosaic.version = 11 : i64} {
  func.func @kernel(%arg0: i32, %arg1: i32, %arg2: memref<1x4x4x128xf32, #tpu.memory_space<vmem>>, %arg3: memref<1x1x4x128xf32, #tpu.memory_space<vmem>>, %arg4: memref<1x1x4x128xf32, #tpu.memory_space<vmem>>, %arg5: memref<128x128xf32, #tpu.memory_space<vmem>>, %arg6: memref<1x128xf32, #tpu.memory_space<vmem>>, %arg7: memref<9x128x128xf32, #tpu.memory_space<vmem>>, %arg8: memref<1x128xf32, #tpu.memory_space<vmem>>, %arg9: memref<1x4x4x128xf32, #tpu.memory_space<vmem>>, %arg10: memref<1x4x4x128xf32, #tpu.memory_space<vmem>>) attributes {dimension_semantics = [#tpu.dimension_semantics<parallel>, #tpu.dimension_semantics<parallel>], iteration_bounds = array<i64: 2, 1>, scalar_prefetch = 0 : i64, scratch_operands = 0 : i64, tpu.core_type = #tpu.core_type<tc>, window_params = [{transform_indices = @transform_0, window_bounds = array<i64: 1, 4, 4, 128>}, {transform_indices = @transform_1, window_bounds = array<i64: 1, 1, 4, 128>}, {transform_indices = @transform_2, window_bounds = array<i64: 1, 1, 4, 128>}, {pipeline_mode = #tpu.pipeline_mode<synchronous>, transform_indices = @transform_3, window_bounds = array<i64: 128, 128>}, {pipeline_mode = #tpu.pipeline_mode<synchronous>, transform_indices = @transform_4, window_bounds = array<i64: 1, 128>}, {pipeline_mode = #tpu.pipeline_mode<synchronous>, transform_indices = @transform_5, window_bounds = array<i64: 9, 128, 128>}, {pipeline_mode = #tpu.pipeline_mode<synchronous>, transform_indices = @transform_6, window_bounds = array<i64: 1, 128>}, {transform_indices = @transform_7, window_bounds = array<i64: 1, 4, 4, 128>}, {transform_indices = @transform_8, window_bounds = array<i64: 1, 4, 4, 128>}]} {
    %c0 = arith.constant 0 : index
    %c0_0 = arith.constant 0 : index
    %0 = vector.load %arg5[%c0, %c0_0] : memref<128x128xf32, #tpu.memory_space<vmem>>, vector<128x128xf32>
    %c0_1 = arith.constant 0 : index
    %c0_2 = arith.constant 0 : index
    %1 = vector.load %arg6[%c0_1, %c0_2] : memref<1x128xf32, #tpu.memory_space<vmem>>, vector<1x128xf32>
    %c0_3 = arith.constant 0 : index
    %c0_4 = arith.constant 0 : index
    %2 = vector.load %arg8[%c0_3, %c0_4] : memref<1x128xf32, #tpu.memory_space<vmem>>, vector<1x128xf32>
    %c0_5 = arith.constant 0 : index
    %c0_6 = arith.constant 0 : index
    %c0_7 = arith.constant 0 : index
    %c0_8 = arith.constant 0 : index
    %3 = vector.load %arg2[%c0_5, %c0_6, %c0_7, %c0_8] : memref<1x4x4x128xf32, #tpu.memory_space<vmem>>, vector<1x4x4x128xf32>
    %4 = vector.shape_cast %3 : vector<1x4x4x128xf32> to vector<4x4x128xf32>
    %cst = arith.constant dense<0.000000e+00> : vector<4x4x128xf32>
    %5 = tpu.matmul %4, %0, %cst {dimension_numbers = #tpu.dot_dimension_numbers<[2], [0], [0, 1], [1], [0, 0, 0, 1, 1, 1], [], []>} : vector<4x4x128xf32>, vector<128x128xf32>, vector<4x4x128xf32> -> vector<4x4x128xf32>
    %6 = vector.shape_cast %1 : vector<1x128xf32> to vector<1x1x128xf32>
    %7 = vector.broadcast %6 : vector<1x1x128xf32> to vector<4x4x128xf32>
    %8 = arith.addf %5, %7 : vector<4x4x128xf32>
    %c0_9 = arith.constant 0 : index
    %c0_10 = arith.constant 0 : index
    %c0_11 = arith.constant 0 : index
    %c0_12 = arith.constant 0 : index
    %9 = vector.load %arg3[%c0_9, %c0_10, %c0_11, %c0_12] : memref<1x1x4x128xf32, #tpu.memory_space<vmem>>, vector<1x1x4x128xf32>
    %10 = vector.shape_cast %9 : vector<1x1x4x128xf32> to vector<1x4x128xf32>
    %cst_13 = arith.constant dense<0.000000e+00> : vector<1x4x128xf32>
    %11 = tpu.matmul %10, %0, %cst_13 {dimension_numbers = #tpu.dot_dimension_numbers<[2], [0], [0, 1], [1], [0, 0, 0, 1, 1, 1], [], []>} : vector<1x4x128xf32>, vector<128x128xf32>, vector<1x4x128xf32> -> vector<1x4x128xf32>
    %12 = vector.shape_cast %1 : vector<1x128xf32> to vector<1x1x128xf32>
    %13 = vector.broadcast %12 : vector<1x1x128xf32> to vector<1x4x128xf32>
    %14 = arith.addf %11, %13 : vector<1x4x128xf32>
    %c0_14 = arith.constant 0 : index
    %c0_15 = arith.constant 0 : index
    %c0_16 = arith.constant 0 : index
    %c0_17 = arith.constant 0 : index
    %15 = vector.load %arg4[%c0_14, %c0_15, %c0_16, %c0_17] : memref<1x1x4x128xf32, #tpu.memory_space<vmem>>, vector<1x1x4x128xf32>
    %16 = vector.shape_cast %15 : vector<1x1x4x128xf32> to vector<1x4x128xf32>
    %cst_18 = arith.constant dense<0.000000e+00> : vector<1x4x128xf32>
    %17 = tpu.matmul %16, %0, %cst_18 {dimension_numbers = #tpu.dot_dimension_numbers<[2], [0], [0, 1], [1], [0, 0, 0, 1, 1, 1], [], []>} : vector<1x4x128xf32>, vector<128x128xf32>, vector<1x4x128xf32> -> vector<1x4x128xf32>
    %18 = vector.shape_cast %1 : vector<1x128xf32> to vector<1x1x128xf32>
    %19 = vector.broadcast %18 : vector<1x1x128xf32> to vector<1x4x128xf32>
    %20 = arith.addf %17, %19 : vector<1x4x128xf32>
    %c0_i32 = arith.constant 0 : i32
    %21 = arith.cmpi sgt, %arg1, %c0_i32 : i32
    %22 = arith.extui %21 : i1 to i32
    %23 = arith.sitofp %22 : i32 to f32
    %24 = vector.broadcast %23 : f32 to vector<1x4x128xf32>
    %25 = arith.mulf %14, %24 : vector<1x4x128xf32>
    %c0_i32_19 = arith.constant 0 : i32
    %26 = arith.cmpi slt, %arg1, %c0_i32_19 : i32
    %27 = arith.extui %26 : i1 to i32
    %28 = arith.sitofp %27 : i32 to f32
    %29 = vector.broadcast %28 : f32 to vector<1x4x128xf32>
    %30 = arith.mulf %20, %29 : vector<1x4x128xf32>
    %c0_20 = arith.constant 0 : index
    %c0_21 = arith.constant 0 : index
    %c0_22 = arith.constant 0 : index
    %c0_23 = arith.constant 0 : index
    %31 = vector.load %arg9[%c0_20, %c0_21, %c0_22, %c0_23] : memref<1x4x4x128xf32, #tpu.memory_space<vmem>>, vector<1x4x4x128xf32>
    %32 = vector.shape_cast %31 : vector<1x4x4x128xf32> to vector<4x4x128xf32>
    %33 = vector.shape_cast %8 : vector<4x4x128xf32> to vector<1x4x4x128xf32>
    tpu.vector_store %arg9[%c0_20, %c0_21, %c0_22, %c0_23], %33 {strides = array<i32>} : memref<1x4x4x128xf32, #tpu.memory_space<vmem>>, vector<1x4x4x128xf32>,
    %34 = tpu.concatenate %25, %8, %30 in 0 : vector<1x4x128xf32>, vector<4x4x128xf32>, vector<1x4x128xf32> -> vector<6x4x128xf32>
    %cst_24 = arith.constant 0.000000e+00 : f32
    %35 = vector.broadcast %cst_24 : f32 to vector<6x1x128xf32>
    %36 = tpu.concatenate %35, %34, %35 in 1 : vector<6x1x128xf32>, vector<6x4x128xf32>, vector<6x1x128xf32> -> vector<6x6x128xf32>
    %37 = vector.extract_strided_slice %36 {offsets = [0, 0, 0], sizes = [4, 4, 128], strides = [1, 1, 1]} : vector<6x6x128xf32> to vector<4x4x128xf32>
    %c0_25 = arith.constant 0 : index
    %c0_26 = arith.constant 0 : index
    %c0_27 = arith.constant 0 : index
    %38 = vector.load %arg7[%c0_25, %c0_26, %c0_27] : memref<9x128x128xf32, #tpu.memory_space<vmem>>, vector<1x128x128xf32>
    %39 = vector.shape_cast %38 : vector<1x128x128xf32> to vector<128x128xf32>
    %cst_28 = arith.constant dense<0.000000e+00> : vector<4x4x128xf32>
    %40 = tpu.matmul %37, %39, %cst_28 {dimension_numbers = #tpu.dot_dimension_numbers<[2], [0], [0, 1], [1], [0, 0, 0, 1, 1, 1], [], []>} : vector<4x4x128xf32>, vector<128x128xf32>, vector<4x4x128xf32> -> vector<4x4x128xf32>
    %41 = vector.extract_strided_slice %36 {offsets = [0, 1, 0], sizes = [4, 4, 128], strides = [1, 1, 1]} : vector<6x6x128xf32> to vector<4x4x128xf32>
    %c1 = arith.constant 1 : index
    %c0_29 = arith.constant 0 : index
    %c0_30 = arith.constant 0 : index
    %42 = vector.load %arg7[%c1, %c0_29, %c0_30] : memref<9x128x128xf32, #tpu.memory_space<vmem>>, vector<1x128x128xf32>
    %43 = vector.shape_cast %42 : vector<1x128x128xf32> to vector<128x128xf32>
    %cst_31 = arith.constant dense<0.000000e+00> : vector<4x4x128xf32>
    %44 = tpu.matmul %41, %43, %cst_31 {dimension_numbers = #tpu.dot_dimension_numbers<[2], [0], [0, 1], [1], [0, 0, 0, 1, 1, 1], [], []>} : vector<4x4x128xf32>, vector<128x128xf32>, vector<4x4x128xf32> -> vector<4x4x128xf32>
    %45 = arith.addf %40, %44 : vector<4x4x128xf32>
    %46 = vector.extract_strided_slice %36 {offsets = [0, 2, 0], sizes = [4, 4, 128], strides = [1, 1, 1]} : vector<6x6x128xf32> to vector<4x4x128xf32>
    %c2 = arith.constant 2 : index
    %c0_32 = arith.constant 0 : index
    %c0_33 = arith.constant 0 : index
    %47 = vector.load %arg7[%c2, %c0_32, %c0_33] : memref<9x128x128xf32, #tpu.memory_space<vmem>>, vector<1x128x128xf32>
    %48 = vector.shape_cast %47 : vector<1x128x128xf32> to vector<128x128xf32>
    %cst_34 = arith.constant dense<0.000000e+00> : vector<4x4x128xf32>
    %49 = tpu.matmul %46, %48, %cst_34 {dimension_numbers = #tpu.dot_dimension_numbers<[2], [0], [0, 1], [1], [0, 0, 0, 1, 1, 1], [], []>} : vector<4x4x128xf32>, vector<128x128xf32>, vector<4x4x128xf32> -> vector<4x4x128xf32>
    %50 = arith.addf %45, %49 : vector<4x4x128xf32>
    %51 = vector.extract_strided_slice %36 {offsets = [1, 0, 0], sizes = [4, 4, 128], strides = [1, 1, 1]} : vector<6x6x128xf32> to vector<4x4x128xf32>
    %c3 = arith.constant 3 : index
    %c0_35 = arith.constant 0 : index
    %c0_36 = arith.constant 0 : index
    %52 = vector.load %arg7[%c3, %c0_35, %c0_36] : memref<9x128x128xf32, #tpu.memory_space<vmem>>, vector<1x128x128xf32>
    %53 = vector.shape_cast %52 : vector<1x128x128xf32> to vector<128x128xf32>
    %cst_37 = arith.constant dense<0.000000e+00> : vector<4x4x128xf32>
    %54 = tpu.matmul %51, %53, %cst_37 {dimension_numbers = #tpu.dot_dimension_numbers<[2], [0], [0, 1], [1], [0, 0, 0, 1, 1, 1], [], []>} : vector<4x4x128xf32>, vector<128x128xf32>, vector<4x4x128xf32> -> vector<4x4x128xf32>
    %55 = arith.addf %50, %54 : vector<4x4x128xf32>
    %56 = vector.extract_strided_slice %36 {offsets = [1, 1, 0], sizes = [4, 4, 128], strides = [1, 1, 1]} : vector<6x6x128xf32> to vector<4x4x128xf32>
    %c4 = arith.constant 4 : index
    %c0_38 = arith.constant 0 : index
    %c0_39 = arith.constant 0 : index
    %57 = vector.load %arg7[%c4, %c0_38, %c0_39] : memref<9x128x128xf32, #tpu.memory_space<vmem>>, vector<1x128x128xf32>
    %58 = vector.shape_cast %57 : vector<1x128x128xf32> to vector<128x128xf32>
    %cst_40 = arith.constant dense<0.000000e+00> : vector<4x4x128xf32>
    %59 = tpu.matmul %56, %58, %cst_40 {dimension_numbers = #tpu.dot_dimension_numbers<[2], [0], [0, 1], [1], [0, 0, 0, 1, 1, 1], [], []>} : vector<4x4x128xf32>, vector<128x128xf32>, vector<4x4x128xf32> -> vector<4x4x128xf32>
    %60 = arith.addf %55, %59 : vector<4x4x128xf32>
    %61 = vector.extract_strided_slice %36 {offsets = [1, 2, 0], sizes = [4, 4, 128], strides = [1, 1, 1]} : vector<6x6x128xf32> to vector<4x4x128xf32>
    %c5 = arith.constant 5 : index
    %c0_41 = arith.constant 0 : index
    %c0_42 = arith.constant 0 : index
    %62 = vector.load %arg7[%c5, %c0_41, %c0_42] : memref<9x128x128xf32, #tpu.memory_space<vmem>>, vector<1x128x128xf32>
    %63 = vector.shape_cast %62 : vector<1x128x128xf32> to vector<128x128xf32>
    %cst_43 = arith.constant dense<0.000000e+00> : vector<4x4x128xf32>
    %64 = tpu.matmul %61, %63, %cst_43 {dimension_numbers = #tpu.dot_dimension_numbers<[2], [0], [0, 1], [1], [0, 0, 0, 1, 1, 1], [], []>} : vector<4x4x128xf32>, vector<128x128xf32>, vector<4x4x128xf32> -> vector<4x4x128xf32>
    %65 = arith.addf %60, %64 : vector<4x4x128xf32>
    %66 = vector.extract_strided_slice %36 {offsets = [2, 0, 0], sizes = [4, 4, 128], strides = [1, 1, 1]} : vector<6x6x128xf32> to vector<4x4x128xf32>
    %c6 = arith.constant 6 : index
    %c0_44 = arith.constant 0 : index
    %c0_45 = arith.constant 0 : index
    %67 = vector.load %arg7[%c6, %c0_44, %c0_45] : memref<9x128x128xf32, #tpu.memory_space<vmem>>, vector<1x128x128xf32>
    %68 = vector.shape_cast %67 : vector<1x128x128xf32> to vector<128x128xf32>
    %cst_46 = arith.constant dense<0.000000e+00> : vector<4x4x128xf32>
    %69 = tpu.matmul %66, %68, %cst_46 {dimension_numbers = #tpu.dot_dimension_numbers<[2], [0], [0, 1], [1], [0, 0, 0, 1, 1, 1], [], []>} : vector<4x4x128xf32>, vector<128x128xf32>, vector<4x4x128xf32> -> vector<4x4x128xf32>
    %70 = arith.addf %65, %69 : vector<4x4x128xf32>
    %71 = vector.extract_strided_slice %36 {offsets = [2, 1, 0], sizes = [4, 4, 128], strides = [1, 1, 1]} : vector<6x6x128xf32> to vector<4x4x128xf32>
    %c7 = arith.constant 7 : index
    %c0_47 = arith.constant 0 : index
    %c0_48 = arith.constant 0 : index
    %72 = vector.load %arg7[%c7, %c0_47, %c0_48] : memref<9x128x128xf32, #tpu.memory_space<vmem>>, vector<1x128x128xf32>
    %73 = vector.shape_cast %72 : vector<1x128x128xf32> to vector<128x128xf32>
    %cst_49 = arith.constant dense<0.000000e+00> : vector<4x4x128xf32>
    %74 = tpu.matmul %71, %73, %cst_49 {dimension_numbers = #tpu.dot_dimension_numbers<[2], [0], [0, 1], [1], [0, 0, 0, 1, 1, 1], [], []>} : vector<4x4x128xf32>, vector<128x128xf32>, vector<4x4x128xf32> -> vector<4x4x128xf32>
    %75 = arith.addf %70, %74 : vector<4x4x128xf32>
    %76 = vector.extract_strided_slice %36 {offsets = [2, 2, 0], sizes = [4, 4, 128], strides = [1, 1, 1]} : vector<6x6x128xf32> to vector<4x4x128xf32>
    %c8 = arith.constant 8 : index
    %c0_50 = arith.constant 0 : index
    %c0_51 = arith.constant 0 : index
    %77 = vector.load %arg7[%c8, %c0_50, %c0_51] : memref<9x128x128xf32, #tpu.memory_space<vmem>>, vector<1x128x128xf32>
    %78 = vector.shape_cast %77 : vector<1x128x128xf32> to vector<128x128xf32>
    %cst_52 = arith.constant dense<0.000000e+00> : vector<4x4x128xf32>
    %79 = tpu.matmul %76, %78, %cst_52 {dimension_numbers = #tpu.dot_dimension_numbers<[2], [0], [0, 1], [1], [0, 0, 0, 1, 1, 1], [], []>} : vector<4x4x128xf32>, vector<128x128xf32>, vector<4x4x128xf32> -> vector<4x4x128xf32>
    %80 = arith.addf %75, %79 : vector<4x4x128xf32>
    %81 = vector.shape_cast %2 : vector<1x128xf32> to vector<1x1x128xf32>
    %82 = vector.broadcast %81 : vector<1x1x128xf32> to vector<4x4x128xf32>
    %83 = arith.addf %80, %82 : vector<4x4x128xf32>
    %c0_53 = arith.constant 0 : index
    %c0_54 = arith.constant 0 : index
    %c0_55 = arith.constant 0 : index
    %c0_56 = arith.constant 0 : index
    %84 = vector.load %arg10[%c0_53, %c0_54, %c0_55, %c0_56] : memref<1x4x4x128xf32, #tpu.memory_space<vmem>>, vector<1x4x4x128xf32>
    %85 = vector.shape_cast %84 : vector<1x4x4x128xf32> to vector<4x4x128xf32>
    %86 = vector.shape_cast %83 : vector<4x4x128xf32> to vector<1x4x4x128xf32>
    tpu.vector_store %arg10[%c0_53, %c0_54, %c0_55, %c0_56], %86 {strides = array<i32>} : memref<1x4x4x128xf32, #tpu.memory_space<vmem>>, vector<1x4x4x128xf32>,
    return
  }
  func.func @transform_0(%arg0: i32, %arg1: i32) -> (i32, i32, i32, i32) {
    %c0_i32 = arith.constant 0 : i32
    %c0_i32_0 = arith.constant 0 : i32
    %c0_i32_1 = arith.constant 0 : i32
    return %arg0, %arg1, %c0_i32, %c0_i32_0 : i32, i32, i32, i32
  }
  func.func @transform_1(%arg0: i32, %arg1: i32) -> (i32, i32, i32, i32) {
    %c4_i32 = arith.constant 4 : i32
    %0 = arith.muli %arg1, %c4_i32 : i32
    %c1_i32 = arith.constant 1 : i32
    %1 = arith.subi %0, %c1_i32 : i32
    %c0_i32 = arith.constant 0 : i32
    %2 = arith.maxsi %1, %c0_i32 : i32
    %c0_i32_0 = arith.constant 0 : i32
    %c0_i32_1 = arith.constant 0 : i32
    %c0_i32_2 = arith.constant 0 : i32
    return %arg0, %2, %c0_i32_0, %c0_i32_1 : i32, i32, i32, i32
  }
  func.func @transform_2(%arg0: i32, %arg1: i32) -> (i32, i32, i32, i32) {
    %c4_i32 = arith.constant 4 : i32
    %0 = arith.muli %arg1, %c4_i32 : i32
    %c4_i32_0 = arith.constant 4 : i32
    %1 = arith.addi %0, %c4_i32_0 : i32
    %c3_i32 = arith.constant 3 : i32
    %2 = arith.minsi %1, %c3_i32 : i32
    %c0_i32 = arith.constant 0 : i32
    %c0_i32_1 = arith.constant 0 : i32
    %c0_i32_2 = arith.constant 0 : i32
    return %arg0, %2, %c0_i32, %c0_i32_1 : i32, i32, i32, i32
  }
  func.func @transform_3(%arg0: i32, %arg1: i32) -> (i32, i32) {
    %c0_i32 = arith.constant 0 : i32
    %c0_i32_0 = arith.constant 0 : i32
    %c0_i32_1 = arith.constant 0 : i32
    return %c0_i32, %c0_i32_0 : i32, i32
  }
  func.func @transform_4(%arg0: i32, %arg1: i32) -> (i32, i32) {
    %c0_i32 = arith.constant 0 : i32
    %c0_i32_0 = arith.constant 0 : i32
    %c0_i32_1 = arith.constant 0 : i32
    return %c0_i32, %c0_i32_0 : i32, i32
  }
  func.func @transform_5(%arg0: i32, %arg1: i32) -> (i32, i32, i32) {
    %c0_i32 = arith.constant 0 : i32
    %c0_i32_0 = arith.constant 0 : i32
    %c0_i32_1 = arith.constant 0 : i32
    %c0_i32_2 = arith.constant 0 : i32
    return %c0_i32, %c0_i32_0, %c0_i32_1 : i32, i32, i32
  }
  func.func @transform_6(%arg0: i32, %arg1: i32) -> (i32, i32) {
    %c0_i32 = arith.constant 0 : i32
    %c0_i32_0 = arith.constant 0 : i32
    %c0_i32_1 = arith.constant 0 : i32
    return %c0_i32, %c0_i32_0 : i32, i32
  }
  func.func @transform_7(%arg0: i32, %arg1: i32) -> (i32, i32, i32, i32) {
    %c0_i32 = arith.constant 0 : i32
    %c0_i32_0 = arith.constant 0 : i32
    %c0_i32_1 = arith.constant 0 : i32
    return %arg0, %arg1, %c0_i32, %c0_i32_0 : i32, i32, i32, i32
  }
  func.func @transform_8(%arg0: i32, %arg1: i32) -> (i32, i32, i32, i32) {
    %c0_i32 = arith.constant 0 : i32
    %c0_i32_0 = arith.constant 0 : i32
    %c0_i32_1 = arith.constant 0 : i32
    return %arg0, %arg1, %c0_i32, %c0_i32_0 : i32, i32, i32, i32
  }
}

module attributes {stable_mosaic.version = 11 : i64} {
  func.func @kernel(%arg0: i32, %arg1: i32, %arg2: memref<1x8x8x64xf32, #tpu.memory_space<vmem>>, %arg3: memref<1x1x8x64xf32, #tpu.memory_space<vmem>>, %arg4: memref<1x1x8x64xf32, #tpu.memory_space<vmem>>, %arg5: memref<1x4x4x128xf32, #tpu.memory_space<vmem>>, %arg6: memref<1x1x4x128xf32, #tpu.memory_space<vmem>>, %arg7: memref<1x1x4x128xf32, #tpu.memory_space<vmem>>, %arg8: memref<64x128xf32, #tpu.memory_space<vmem>>, %arg9: memref<1x128xf32, #tpu.memory_space<vmem>>, %arg10: memref<9x128x128xf32, #tpu.memory_space<vmem>>, %arg11: memref<1x128xf32, #tpu.memory_space<vmem>>, %arg12: memref<1x8x8x128xf32, #tpu.memory_space<vmem>>, %arg13: memref<1x8x8x128xf32, #tpu.memory_space<vmem>>) attributes {dimension_semantics = [#tpu.dimension_semantics<parallel>, #tpu.dimension_semantics<parallel>], iteration_bounds = array<i64: 2, 1>, scalar_prefetch = 0 : i64, scratch_operands = 0 : i64, tpu.core_type = #tpu.core_type<tc>, window_params = [{transform_indices = @transform_0, window_bounds = array<i64: 1, 8, 8, 64>}, {transform_indices = @transform_1, window_bounds = array<i64: 1, 1, 8, 64>}, {transform_indices = @transform_2, window_bounds = array<i64: 1, 1, 8, 64>}, {transform_indices = @transform_3, window_bounds = array<i64: 1, 4, 4, 128>}, {transform_indices = @transform_4, window_bounds = array<i64: 1, 1, 4, 128>}, {transform_indices = @transform_5, window_bounds = array<i64: 1, 1, 4, 128>}, {pipeline_mode = #tpu.pipeline_mode<synchronous>, transform_indices = @transform_6, window_bounds = array<i64: 64, 128>}, {pipeline_mode = #tpu.pipeline_mode<synchronous>, transform_indices = @transform_7, window_bounds = array<i64: 1, 128>}, {pipeline_mode = #tpu.pipeline_mode<synchronous>, transform_indices = @transform_8, window_bounds = array<i64: 9, 128, 128>}, {pipeline_mode = #tpu.pipeline_mode<synchronous>, transform_indices = @transform_9, window_bounds = array<i64: 1, 128>}, {transform_indices = @transform_10, window_bounds = array<i64: 1, 8, 8, 128>}, {transform_indices = @transform_11, window_bounds = array<i64: 1, 8, 8, 128>}]} {
    %c0 = arith.constant 0 : index
    %c0_0 = arith.constant 0 : index
    %0 = vector.load %arg8[%c0, %c0_0] : memref<64x128xf32, #tpu.memory_space<vmem>>, vector<64x128xf32>
    %c0_1 = arith.constant 0 : index
    %c0_2 = arith.constant 0 : index
    %1 = vector.load %arg9[%c0_1, %c0_2] : memref<1x128xf32, #tpu.memory_space<vmem>>, vector<1x128xf32>
    %c0_3 = arith.constant 0 : index
    %c0_4 = arith.constant 0 : index
    %2 = vector.load %arg11[%c0_3, %c0_4] : memref<1x128xf32, #tpu.memory_space<vmem>>, vector<1x128xf32>
    %c0_5 = arith.constant 0 : index
    %c0_6 = arith.constant 0 : index
    %c0_7 = arith.constant 0 : index
    %c0_8 = arith.constant 0 : index
    %3 = vector.load %arg2[%c0_5, %c0_6, %c0_7, %c0_8] : memref<1x8x8x64xf32, #tpu.memory_space<vmem>>, vector<1x8x8x64xf32>
    %4 = vector.shape_cast %3 : vector<1x8x8x64xf32> to vector<8x8x64xf32>
    %cst = arith.constant dense<0.000000e+00> : vector<8x8x128xf32>
    %5 = tpu.matmul %4, %0, %cst {dimension_numbers = #tpu.dot_dimension_numbers<[2], [0], [0, 1], [1], [0, 0, 0, 1, 1, 1], [], []>} : vector<8x8x64xf32>, vector<64x128xf32>, vector<8x8x128xf32> -> vector<8x8x128xf32>
    %6 = vector.shape_cast %1 : vector<1x128xf32> to vector<1x1x128xf32>
    %7 = vector.broadcast %6 : vector<1x1x128xf32> to vector<8x8x128xf32>
    %8 = arith.addf %5, %7 : vector<8x8x128xf32>
    %c0_9 = arith.constant 0 : index
    %c0_10 = arith.constant 0 : index
    %c0_11 = arith.constant 0 : index
    %c0_12 = arith.constant 0 : index
    %9 = vector.load %arg3[%c0_9, %c0_10, %c0_11, %c0_12] : memref<1x1x8x64xf32, #tpu.memory_space<vmem>>, vector<1x1x8x64xf32>
    %10 = vector.shape_cast %9 : vector<1x1x8x64xf32> to vector<1x8x64xf32>
    %cst_13 = arith.constant dense<0.000000e+00> : vector<1x8x128xf32>
    %11 = tpu.matmul %10, %0, %cst_13 {dimension_numbers = #tpu.dot_dimension_numbers<[2], [0], [0, 1], [1], [0, 0, 0, 1, 1, 1], [], []>} : vector<1x8x64xf32>, vector<64x128xf32>, vector<1x8x128xf32> -> vector<1x8x128xf32>
    %12 = vector.shape_cast %1 : vector<1x128xf32> to vector<1x1x128xf32>
    %13 = vector.broadcast %12 : vector<1x1x128xf32> to vector<1x8x128xf32>
    %14 = arith.addf %11, %13 : vector<1x8x128xf32>
    %c0_14 = arith.constant 0 : index
    %c0_15 = arith.constant 0 : index
    %c0_16 = arith.constant 0 : index
    %c0_17 = arith.constant 0 : index
    %15 = vector.load %arg4[%c0_14, %c0_15, %c0_16, %c0_17] : memref<1x1x8x64xf32, #tpu.memory_space<vmem>>, vector<1x1x8x64xf32>
    %16 = vector.shape_cast %15 : vector<1x1x8x64xf32> to vector<1x8x64xf32>
    %cst_18 = arith.constant dense<0.000000e+00> : vector<1x8x128xf32>
    %17 = tpu.matmul %16, %0, %cst_18 {dimension_numbers = #tpu.dot_dimension_numbers<[2], [0], [0, 1], [1], [0, 0, 0, 1, 1, 1], [], []>} : vector<1x8x64xf32>, vector<64x128xf32>, vector<1x8x128xf32> -> vector<1x8x128xf32>
    %18 = vector.shape_cast %1 : vector<1x128xf32> to vector<1x1x128xf32>
    %19 = vector.broadcast %18 : vector<1x1x128xf32> to vector<1x8x128xf32>
    %20 = arith.addf %17, %19 : vector<1x8x128xf32>
    %c0_19 = arith.constant 0 : index
    %c0_20 = arith.constant 0 : index
    %c0_21 = arith.constant 0 : index
    %c0_22 = arith.constant 0 : index
    %21 = vector.load %arg5[%c0_19, %c0_20, %c0_21, %c0_22] : memref<1x4x4x128xf32, #tpu.memory_space<vmem>>, vector<1x4x4x128xf32>
    %22 = vector.shape_cast %21 : vector<1x4x4x128xf32> to vector<4x4x128xf32>
    %23 = vector.shape_cast %22 : vector<4x4x128xf32> to vector<4x1x4x128xf32>
    %24 = vector.broadcast %23 : vector<4x1x4x128xf32> to vector<4x2x4x128xf32>
    %25 = vector.shape_cast %24 : vector<4x2x4x128xf32> to vector<8x4x128xf32>
    %26 = vector.shape_cast %25 : vector<8x4x128xf32> to vector<8x4x1x128xf32>
    %27 = vector.broadcast %26 : vector<8x4x1x128xf32> to vector<8x4x2x128xf32>
    %28 = vector.shape_cast %27 : vector<8x4x2x128xf32> to vector<8x8x128xf32>
    %29 = arith.addf %8, %28 : vector<8x8x128xf32>
    %c0_23 = arith.constant 0 : index
    %c0_24 = arith.constant 0 : index
    %c0_25 = arith.constant 0 : index
    %c0_26 = arith.constant 0 : index
    %30 = vector.load %arg6[%c0_23, %c0_24, %c0_25, %c0_26] : memref<1x1x4x128xf32, #tpu.memory_space<vmem>>, vector<1x1x4x128xf32>
    %31 = vector.shape_cast %30 : vector<1x1x4x128xf32> to vector<1x4x128xf32>
    %32 = vector.shape_cast %31 : vector<1x4x128xf32> to vector<1x4x1x128xf32>
    %33 = vector.broadcast %32 : vector<1x4x1x128xf32> to vector<1x4x2x128xf32>
    %34 = vector.shape_cast %33 : vector<1x4x2x128xf32> to vector<1x8x128xf32>
    %35 = arith.addf %14, %34 : vector<1x8x128xf32>
    %c0_27 = arith.constant 0 : index
    %c0_28 = arith.constant 0 : index
    %c0_29 = arith.constant 0 : index
    %c0_30 = arith.constant 0 : index
    %36 = vector.load %arg7[%c0_27, %c0_28, %c0_29, %c0_30] : memref<1x1x4x128xf32, #tpu.memory_space<vmem>>, vector<1x1x4x128xf32>
    %37 = vector.shape_cast %36 : vector<1x1x4x128xf32> to vector<1x4x128xf32>
    %38 = vector.shape_cast %37 : vector<1x4x128xf32> to vector<1x4x1x128xf32>
    %39 = vector.broadcast %38 : vector<1x4x1x128xf32> to vector<1x4x2x128xf32>
    %40 = vector.shape_cast %39 : vector<1x4x2x128xf32> to vector<1x8x128xf32>
    %41 = arith.addf %20, %40 : vector<1x8x128xf32>
    %c0_i32 = arith.constant 0 : i32
    %42 = arith.cmpi sgt, %arg1, %c0_i32 : i32
    %43 = arith.extui %42 : i1 to i32
    %44 = arith.sitofp %43 : i32 to f32
    %45 = vector.broadcast %44 : f32 to vector<1x8x128xf32>
    %46 = arith.mulf %35, %45 : vector<1x8x128xf32>
    %c0_i32_31 = arith.constant 0 : i32
    %47 = arith.cmpi slt, %arg1, %c0_i32_31 : i32
    %48 = arith.extui %47 : i1 to i32
    %49 = arith.sitofp %48 : i32 to f32
    %50 = vector.broadcast %49 : f32 to vector<1x8x128xf32>
    %51 = arith.mulf %41, %50 : vector<1x8x128xf32>
    %c0_32 = arith.constant 0 : index
    %c0_33 = arith.constant 0 : index
    %c0_34 = arith.constant 0 : index
    %c0_35 = arith.constant 0 : index
    %52 = vector.load %arg12[%c0_32, %c0_33, %c0_34, %c0_35] : memref<1x8x8x128xf32, #tpu.memory_space<vmem>>, vector<1x8x8x128xf32>
    %53 = vector.shape_cast %52 : vector<1x8x8x128xf32> to vector<8x8x128xf32>
    %54 = vector.shape_cast %29 : vector<8x8x128xf32> to vector<1x8x8x128xf32>
    tpu.vector_store %arg12[%c0_32, %c0_33, %c0_34, %c0_35], %54 {strides = array<i32>} : memref<1x8x8x128xf32, #tpu.memory_space<vmem>>, vector<1x8x8x128xf32>,
    %55 = tpu.concatenate %46, %29, %51 in 0 : vector<1x8x128xf32>, vector<8x8x128xf32>, vector<1x8x128xf32> -> vector<10x8x128xf32>
    %cst_36 = arith.constant 0.000000e+00 : f32
    %56 = vector.broadcast %cst_36 : f32 to vector<10x1x128xf32>
    %57 = tpu.concatenate %56, %55, %56 in 1 : vector<10x1x128xf32>, vector<10x8x128xf32>, vector<10x1x128xf32> -> vector<10x10x128xf32>
    %58 = vector.extract_strided_slice %57 {offsets = [0, 0, 0], sizes = [8, 8, 128], strides = [1, 1, 1]} : vector<10x10x128xf32> to vector<8x8x128xf32>
    %c0_37 = arith.constant 0 : index
    %c0_38 = arith.constant 0 : index
    %c0_39 = arith.constant 0 : index
    %59 = vector.load %arg10[%c0_37, %c0_38, %c0_39] : memref<9x128x128xf32, #tpu.memory_space<vmem>>, vector<1x128x128xf32>
    %60 = vector.shape_cast %59 : vector<1x128x128xf32> to vector<128x128xf32>
    %cst_40 = arith.constant dense<0.000000e+00> : vector<8x8x128xf32>
    %61 = tpu.matmul %58, %60, %cst_40 {dimension_numbers = #tpu.dot_dimension_numbers<[2], [0], [0, 1], [1], [0, 0, 0, 1, 1, 1], [], []>} : vector<8x8x128xf32>, vector<128x128xf32>, vector<8x8x128xf32> -> vector<8x8x128xf32>
    %62 = vector.extract_strided_slice %57 {offsets = [0, 1, 0], sizes = [8, 8, 128], strides = [1, 1, 1]} : vector<10x10x128xf32> to vector<8x8x128xf32>
    %c1 = arith.constant 1 : index
    %c0_41 = arith.constant 0 : index
    %c0_42 = arith.constant 0 : index
    %63 = vector.load %arg10[%c1, %c0_41, %c0_42] : memref<9x128x128xf32, #tpu.memory_space<vmem>>, vector<1x128x128xf32>
    %64 = vector.shape_cast %63 : vector<1x128x128xf32> to vector<128x128xf32>
    %cst_43 = arith.constant dense<0.000000e+00> : vector<8x8x128xf32>
    %65 = tpu.matmul %62, %64, %cst_43 {dimension_numbers = #tpu.dot_dimension_numbers<[2], [0], [0, 1], [1], [0, 0, 0, 1, 1, 1], [], []>} : vector<8x8x128xf32>, vector<128x128xf32>, vector<8x8x128xf32> -> vector<8x8x128xf32>
    %66 = arith.addf %61, %65 : vector<8x8x128xf32>
    %67 = vector.extract_strided_slice %57 {offsets = [0, 2, 0], sizes = [8, 8, 128], strides = [1, 1, 1]} : vector<10x10x128xf32> to vector<8x8x128xf32>
    %c2 = arith.constant 2 : index
    %c0_44 = arith.constant 0 : index
    %c0_45 = arith.constant 0 : index
    %68 = vector.load %arg10[%c2, %c0_44, %c0_45] : memref<9x128x128xf32, #tpu.memory_space<vmem>>, vector<1x128x128xf32>
    %69 = vector.shape_cast %68 : vector<1x128x128xf32> to vector<128x128xf32>
    %cst_46 = arith.constant dense<0.000000e+00> : vector<8x8x128xf32>
    %70 = tpu.matmul %67, %69, %cst_46 {dimension_numbers = #tpu.dot_dimension_numbers<[2], [0], [0, 1], [1], [0, 0, 0, 1, 1, 1], [], []>} : vector<8x8x128xf32>, vector<128x128xf32>, vector<8x8x128xf32> -> vector<8x8x128xf32>
    %71 = arith.addf %66, %70 : vector<8x8x128xf32>
    %72 = vector.extract_strided_slice %57 {offsets = [1, 0, 0], sizes = [8, 8, 128], strides = [1, 1, 1]} : vector<10x10x128xf32> to vector<8x8x128xf32>
    %c3 = arith.constant 3 : index
    %c0_47 = arith.constant 0 : index
    %c0_48 = arith.constant 0 : index
    %73 = vector.load %arg10[%c3, %c0_47, %c0_48] : memref<9x128x128xf32, #tpu.memory_space<vmem>>, vector<1x128x128xf32>
    %74 = vector.shape_cast %73 : vector<1x128x128xf32> to vector<128x128xf32>
    %cst_49 = arith.constant dense<0.000000e+00> : vector<8x8x128xf32>
    %75 = tpu.matmul %72, %74, %cst_49 {dimension_numbers = #tpu.dot_dimension_numbers<[2], [0], [0, 1], [1], [0, 0, 0, 1, 1, 1], [], []>} : vector<8x8x128xf32>, vector<128x128xf32>, vector<8x8x128xf32> -> vector<8x8x128xf32>
    %76 = arith.addf %71, %75 : vector<8x8x128xf32>
    %77 = vector.extract_strided_slice %57 {offsets = [1, 1, 0], sizes = [8, 8, 128], strides = [1, 1, 1]} : vector<10x10x128xf32> to vector<8x8x128xf32>
    %c4 = arith.constant 4 : index
    %c0_50 = arith.constant 0 : index
    %c0_51 = arith.constant 0 : index
    %78 = vector.load %arg10[%c4, %c0_50, %c0_51] : memref<9x128x128xf32, #tpu.memory_space<vmem>>, vector<1x128x128xf32>
    %79 = vector.shape_cast %78 : vector<1x128x128xf32> to vector<128x128xf32>
    %cst_52 = arith.constant dense<0.000000e+00> : vector<8x8x128xf32>
    %80 = tpu.matmul %77, %79, %cst_52 {dimension_numbers = #tpu.dot_dimension_numbers<[2], [0], [0, 1], [1], [0, 0, 0, 1, 1, 1], [], []>} : vector<8x8x128xf32>, vector<128x128xf32>, vector<8x8x128xf32> -> vector<8x8x128xf32>
    %81 = arith.addf %76, %80 : vector<8x8x128xf32>
    %82 = vector.extract_strided_slice %57 {offsets = [1, 2, 0], sizes = [8, 8, 128], strides = [1, 1, 1]} : vector<10x10x128xf32> to vector<8x8x128xf32>
    %c5 = arith.constant 5 : index
    %c0_53 = arith.constant 0 : index
    %c0_54 = arith.constant 0 : index
    %83 = vector.load %arg10[%c5, %c0_53, %c0_54] : memref<9x128x128xf32, #tpu.memory_space<vmem>>, vector<1x128x128xf32>
    %84 = vector.shape_cast %83 : vector<1x128x128xf32> to vector<128x128xf32>
    %cst_55 = arith.constant dense<0.000000e+00> : vector<8x8x128xf32>
    %85 = tpu.matmul %82, %84, %cst_55 {dimension_numbers = #tpu.dot_dimension_numbers<[2], [0], [0, 1], [1], [0, 0, 0, 1, 1, 1], [], []>} : vector<8x8x128xf32>, vector<128x128xf32>, vector<8x8x128xf32> -> vector<8x8x128xf32>
    %86 = arith.addf %81, %85 : vector<8x8x128xf32>
    %87 = vector.extract_strided_slice %57 {offsets = [2, 0, 0], sizes = [8, 8, 128], strides = [1, 1, 1]} : vector<10x10x128xf32> to vector<8x8x128xf32>
    %c6 = arith.constant 6 : index
    %c0_56 = arith.constant 0 : index
    %c0_57 = arith.constant 0 : index
    %88 = vector.load %arg10[%c6, %c0_56, %c0_57] : memref<9x128x128xf32, #tpu.memory_space<vmem>>, vector<1x128x128xf32>
    %89 = vector.shape_cast %88 : vector<1x128x128xf32> to vector<128x128xf32>
    %cst_58 = arith.constant dense<0.000000e+00> : vector<8x8x128xf32>
    %90 = tpu.matmul %87, %89, %cst_58 {dimension_numbers = #tpu.dot_dimension_numbers<[2], [0], [0, 1], [1], [0, 0, 0, 1, 1, 1], [], []>} : vector<8x8x128xf32>, vector<128x128xf32>, vector<8x8x128xf32> -> vector<8x8x128xf32>
    %91 = arith.addf %86, %90 : vector<8x8x128xf32>
    %92 = vector.extract_strided_slice %57 {offsets = [2, 1, 0], sizes = [8, 8, 128], strides = [1, 1, 1]} : vector<10x10x128xf32> to vector<8x8x128xf32>
    %c7 = arith.constant 7 : index
    %c0_59 = arith.constant 0 : index
    %c0_60 = arith.constant 0 : index
    %93 = vector.load %arg10[%c7, %c0_59, %c0_60] : memref<9x128x128xf32, #tpu.memory_space<vmem>>, vector<1x128x128xf32>
    %94 = vector.shape_cast %93 : vector<1x128x128xf32> to vector<128x128xf32>
    %cst_61 = arith.constant dense<0.000000e+00> : vector<8x8x128xf32>
    %95 = tpu.matmul %92, %94, %cst_61 {dimension_numbers = #tpu.dot_dimension_numbers<[2], [0], [0, 1], [1], [0, 0, 0, 1, 1, 1], [], []>} : vector<8x8x128xf32>, vector<128x128xf32>, vector<8x8x128xf32> -> vector<8x8x128xf32>
    %96 = arith.addf %91, %95 : vector<8x8x128xf32>
    %97 = vector.extract_strided_slice %57 {offsets = [2, 2, 0], sizes = [8, 8, 128], strides = [1, 1, 1]} : vector<10x10x128xf32> to vector<8x8x128xf32>
    %c8 = arith.constant 8 : index
    %c0_62 = arith.constant 0 : index
    %c0_63 = arith.constant 0 : index
    %98 = vector.load %arg10[%c8, %c0_62, %c0_63] : memref<9x128x128xf32, #tpu.memory_space<vmem>>, vector<1x128x128xf32>
    %99 = vector.shape_cast %98 : vector<1x128x128xf32> to vector<128x128xf32>
    %cst_64 = arith.constant dense<0.000000e+00> : vector<8x8x128xf32>
    %100 = tpu.matmul %97, %99, %cst_64 {dimension_numbers = #tpu.dot_dimension_numbers<[2], [0], [0, 1], [1], [0, 0, 0, 1, 1, 1], [], []>} : vector<8x8x128xf32>, vector<128x128xf32>, vector<8x8x128xf32> -> vector<8x8x128xf32>
    %101 = arith.addf %96, %100 : vector<8x8x128xf32>
    %102 = vector.shape_cast %2 : vector<1x128xf32> to vector<1x1x128xf32>
    %103 = vector.broadcast %102 : vector<1x1x128xf32> to vector<8x8x128xf32>
    %104 = arith.addf %101, %103 : vector<8x8x128xf32>
    %c0_65 = arith.constant 0 : index
    %c0_66 = arith.constant 0 : index
    %c0_67 = arith.constant 0 : index
    %c0_68 = arith.constant 0 : index
    %105 = vector.load %arg13[%c0_65, %c0_66, %c0_67, %c0_68] : memref<1x8x8x128xf32, #tpu.memory_space<vmem>>, vector<1x8x8x128xf32>
    %106 = vector.shape_cast %105 : vector<1x8x8x128xf32> to vector<8x8x128xf32>
    %107 = vector.shape_cast %104 : vector<8x8x128xf32> to vector<1x8x8x128xf32>
    tpu.vector_store %arg13[%c0_65, %c0_66, %c0_67, %c0_68], %107 {strides = array<i32>} : memref<1x8x8x128xf32, #tpu.memory_space<vmem>>, vector<1x8x8x128xf32>,
    return
  }
  func.func @transform_0(%arg0: i32, %arg1: i32) -> (i32, i32, i32, i32) {
    %c0_i32 = arith.constant 0 : i32
    %c0_i32_0 = arith.constant 0 : i32
    %c0_i32_1 = arith.constant 0 : i32
    return %arg0, %arg1, %c0_i32, %c0_i32_0 : i32, i32, i32, i32
  }
  func.func @transform_1(%arg0: i32, %arg1: i32) -> (i32, i32, i32, i32) {
    %c8_i32 = arith.constant 8 : i32
    %0 = arith.muli %arg1, %c8_i32 : i32
    %c1_i32 = arith.constant 1 : i32
    %1 = arith.subi %0, %c1_i32 : i32
    %c0_i32 = arith.constant 0 : i32
    %2 = arith.maxsi %1, %c0_i32 : i32
    %c0_i32_0 = arith.constant 0 : i32
    %c0_i32_1 = arith.constant 0 : i32
    %c0_i32_2 = arith.constant 0 : i32
    return %arg0, %2, %c0_i32_0, %c0_i32_1 : i32, i32, i32, i32
  }
  func.func @transform_2(%arg0: i32, %arg1: i32) -> (i32, i32, i32, i32) {
    %c8_i32 = arith.constant 8 : i32
    %0 = arith.muli %arg1, %c8_i32 : i32
    %c8_i32_0 = arith.constant 8 : i32
    %1 = arith.addi %0, %c8_i32_0 : i32
    %c7_i32 = arith.constant 7 : i32
    %2 = arith.minsi %1, %c7_i32 : i32
    %c0_i32 = arith.constant 0 : i32
    %c0_i32_1 = arith.constant 0 : i32
    %c0_i32_2 = arith.constant 0 : i32
    return %arg0, %2, %c0_i32, %c0_i32_1 : i32, i32, i32, i32
  }
  func.func @transform_3(%arg0: i32, %arg1: i32) -> (i32, i32, i32, i32) {
    %c0_i32 = arith.constant 0 : i32
    %c0_i32_0 = arith.constant 0 : i32
    %c0_i32_1 = arith.constant 0 : i32
    return %arg0, %arg1, %c0_i32, %c0_i32_0 : i32, i32, i32, i32
  }
  func.func @transform_4(%arg0: i32, %arg1: i32) -> (i32, i32, i32, i32) {
    %c4_i32 = arith.constant 4 : i32
    %0 = arith.muli %arg1, %c4_i32 : i32
    %c1_i32 = arith.constant 1 : i32
    %1 = arith.subi %0, %c1_i32 : i32
    %c0_i32 = arith.constant 0 : i32
    %2 = arith.maxsi %1, %c0_i32 : i32
    %c0_i32_0 = arith.constant 0 : i32
    %c0_i32_1 = arith.constant 0 : i32
    %c0_i32_2 = arith.constant 0 : i32
    return %arg0, %2, %c0_i32_0, %c0_i32_1 : i32, i32, i32, i32
  }
  func.func @transform_5(%arg0: i32, %arg1: i32) -> (i32, i32, i32, i32) {
    %c4_i32 = arith.constant 4 : i32
    %0 = arith.muli %arg1, %c4_i32 : i32
    %c4_i32_0 = arith.constant 4 : i32
    %1 = arith.addi %0, %c4_i32_0 : i32
    %c3_i32 = arith.constant 3 : i32
    %2 = arith.minsi %1, %c3_i32 : i32
    %c0_i32 = arith.constant 0 : i32
    %c0_i32_1 = arith.constant 0 : i32
    %c0_i32_2 = arith.constant 0 : i32
    return %arg0, %2, %c0_i32, %c0_i32_1 : i32, i32, i32, i32
  }
  func.func @transform_6(%arg0: i32, %arg1: i32) -> (i32, i32) {
    %c0_i32 = arith.constant 0 : i32
    %c0_i32_0 = arith.constant 0 : i32
    %c0_i32_1 = arith.constant 0 : i32
    return %c0_i32, %c0_i32_0 : i32, i32
  }
  func.func @transform_7(%arg0: i32, %arg1: i32) -> (i32, i32) {
    %c0_i32 = arith.constant 0 : i32
    %c0_i32_0 = arith.constant 0 : i32
    %c0_i32_1 = arith.constant 0 : i32
    return %c0_i32, %c0_i32_0 : i32, i32
  }
  func.func @transform_8(%arg0: i32, %arg1: i32) -> (i32, i32, i32) {
    %c0_i32 = arith.constant 0 : i32
    %c0_i32_0 = arith.constant 0 : i32
    %c0_i32_1 = arith.constant 0 : i32
    %c0_i32_2 = arith.constant 0 : i32
    return %c0_i32, %c0_i32_0, %c0_i32_1 : i32, i32, i32
  }
  func.func @transform_9(%arg0: i32, %arg1: i32) -> (i32, i32) {
    %c0_i32 = arith.constant 0 : i32
    %c0_i32_0 = arith.constant 0 : i32
    %c0_i32_1 = arith.constant 0 : i32
    return %c0_i32, %c0_i32_0 : i32, i32
  }
  func.func @transform_10(%arg0: i32, %arg1: i32) -> (i32, i32, i32, i32) {
    %c0_i32 = arith.constant 0 : i32
    %c0_i32_0 = arith.constant 0 : i32
    %c0_i32_1 = arith.constant 0 : i32
    return %arg0, %arg1, %c0_i32, %c0_i32_0 : i32, i32, i32, i32
  }
  func.func @transform_11(%arg0: i32, %arg1: i32) -> (i32, i32, i32, i32) {
    %c0_i32 = arith.constant 0 : i32
    %c0_i32_0 = arith.constant 0 : i32
    %c0_i32_1 = arith.constant 0 : i32
    return %arg0, %arg1, %c0_i32, %c0_i32_0 : i32, i32, i32, i32
  }
}

</mosaic_0001>

<llo_original>
// kernel: decoder_forward.3
$region0: #{decoder_forward.3}
  #allocation0 [shape = 'u32[]', space=smem, size = 0x4, offset = 0x4, fixed_abs, tag = 'smem constant byte address 0x4 - core index']
  #allocation1 [shape = 'u32[144,128]{1,0:T(1,128)}', space=vmem, size = 0x12000, scoped, tag = 'internal scratch']
  %s0 = inlined_call_operand.vmem [shape: f32[2,4,4,128], index: 0, kind: input, shape index: {}, may-alias: {0,1,2}]
  %s1 = inlined_call_operand.vmem [shape: f32[2,4,4,128], index: 1, kind: input, shape index: {}, may-alias: {0,1,2}]
  %s2 = inlined_call_operand.vmem [shape: f32[2,4,4,128], index: 2, kind: input, shape index: {}, may-alias: {0,1,2}]
  %s3 = inlined_call_operand.hbm [shape: f32[128,128], index: 3, kind: input, shape index: {}]
  %s4 = inlined_call_operand.vmem [shape: f32[1,128], index: 4, kind: input, shape index: {}]
  %s5 = inlined_call_operand.hbm [shape: f32[9,128,128], index: 5, kind: input, shape index: {}]
  %s6 = inlined_call_operand.vmem [shape: f32[1,128], index: 6, kind: input, shape index: {}]
  %s7 = inlined_call_operand.vmem [shape: f32[2,4,4,128], index: 7, kind: output, shape index: {0}]
  %s8 = inlined_call_operand.hbm [shape: f32[2,4,4,128], index: 8, kind: output, shape index: {1}]
  %9 = xla_tuple %s7, %s8
  %s10 = sld [smem:[#allocation0]]
  $region77: #{decoder_forward.3} parent=0
    _
  %s12 = ssub.s32 1, %s10
  %s13 = scalar_select 0, %s12, %s10
  $region1: #{decoder_forward.3} parent=0
    #allocation2 [shape = 'u8[65536]{0}', space=vmem, size = 0x10000, scoped, tag = 'input window, operand 3, single buffered']
    #allocation3 [shape = 's32[2]{0}', space=sflag, size = 0x8, scoped, tag = 'scoped memory for decoder_forward.3']
    #allocation4 [shape = 's32[2]{0}', space=sflag, size = 0x8, scoped, tag = 'scoped memory for decoder_forward.3']
    #allocation5 [shape = 'u8[589824]{0}', space=vmem, size = 0x90000, scoped, tag = 'input window, operand 5, single buffered']
    #allocation6 [shape = 's32[1]{0}', space=sflag, size = 0x4, scoped, tag = 'scoped memory for decoder_forward.3']
    #allocation7 [shape = 'u8[16384]{0}', space=vmem, size = 0x4000, scoped, tag = 'output window, operand 1']
    %14 = vsyncpa [#allocation3], 0
    %15 = vsyncpa [#allocation6], 0
    %16 = vsyncpa [#allocation4], 0
    %s17 = scalar_lea.sflag [#allocation4], 1
    %18 = vsyncpa %s17, 0
    loop: start=0, step=1, limit=4
    $region2: #{decoder_forward.3} parent=1 // loop_pre_header
      _
    $region3: #{decoder_forward.3} parent=1 // loop_header
      %s20 = sphi 0, %s24
      %p21 = scmp.ge.s32.totalorder %s20, 4
      %s27 = sphi 0, %s39
      %s28 = sphi 0, %s35
      %s29 = sphi 0, %s27
      %s30 = sphi 0, %s28
      %s31 = sphi 0, %s29
      %s32 = sphi 0, %s30
      %s44 = sphi 0, %s46
      %s47 = sphi 0, %s44
      %s48 = sphi 0, %s47
      %s64 = sphi 0, %s48
      %s80 = sphi 0, %s82
      %s83 = sphi 0, %s80
      %s84 = sphi 0, %s83
      %s100 = sphi 0, %s84
      %s116 = sphi 0, %s118
      %s119 = sphi 0, %s116
      %s120 = sphi 0, %s119
      %s136 = sphi 0, %s120
      %s140 = sphi 0, %s140
      %s142 = sphi 0, %s140
      %s143 = sphi 0, %s142
      %s157 = sphi 0, %s143
      %s161 = sphi 0, %s161
      %s163 = sphi 0, %s161
      %s164 = sphi 0, %s163
      %s178 = sphi 0, %s164
      %s182 = sphi 0, %s182
      %s184 = sphi 0, %s182
      %s185 = sphi 0, %s184
      %s199 = sphi 0, %s185
      %s203 = sphi 0, %s203
      %s205 = sphi 0, %s203
      %s206 = sphi 0, %s205
      %s220 = sphi 0, %s206
      %s228 = sphi 0, %s230
      %s231 = sphi 0, %s228
      %s232 = sphi 0, %s231
      %s248 = sphi 0, %s232
      %s256 = sphi 0, %s258
      %s259 = sphi 0, %s256
      %s260 = sphi 0, %s259
      %s276 = sphi 0, %s260
    $region4: #{decoder_forward.3} parent=1 // loop_header_branch
      %23 = sbr.rel (%p21) target = $region8
    $region5: #{decoder_forward.3} parent=1 // loop_body
      %s25 = ssub.s32 %s20, 1
      %s26 = ssub.s32 %s20, 2
      %s33 = sadd.s32 1, %s28
      %p34 = scmp.ge.s32.totalorder %s33, 1
      %s35 = scalar_select %p34, 0, %s33
      %s36 = sadd.s32 1, %s27
      %s37 = scalar_select %p34, %s36, %s27
      %p38 = scmp.ge.s32.totalorder %s37, 2
      %s39 = scalar_select %p38, 0, %s37
      %s40 = ssub.s32 %s27, %s39
      %s41 = ssub.s32 %s28, %s35
      %s42 = sor.u32 %s40, %s41
      %p43 = scmp.eq.s32.totalorder %s42, 0
      %s45 = sadd.s32 %s44, 1
      %s46 = scalar_select %p43, %s44, %s45
      %p49 = pneg %p43
      %p50 = scmp.eq.s32.totalorder %s20, 1
      %p51 = por %p49, %p50
      %p52 = scmp.ne.s32.totalorder %s44, %s47
      %p53 = scmp.eq.s32.totalorder %s20, 0
      %p54 = por %p52, %p53
      %p55 = scmp.ne.s32.totalorder %s44, %s47
      %p56 = scmp.eq.s32.totalorder %s25, 1
      %p57 = por %p55, %p56
      %p58 = scmp.ne.s32.totalorder %s47, %s48
      %p59 = scmp.eq.s32.totalorder %s25, 0
      %p60 = por %p58, %p59
      %p61 = scmp.ne.s32.totalorder %s47, %s48
      %p62 = scmp.eq.s32.totalorder %s26, 1
      %p63 = por %p61, %p62
      %p65 = scmp.ne.s32.totalorder %s48, %s64
      %p66 = scmp.eq.s32.totalorder %s26, 0
      %p67 = por %p65, %p66
      %s68 = smul.u32 %s28, 4
      %s69 = ssub.s32 %s68, 1
      %p70 = scmp.gt.s32.totalorder %s69, 0
      %s71 = scalar_select %p70, %s69, 0
      %s72 = smul.u32 %s35, 4
      %s73 = ssub.s32 %s72, 1
      %p74 = scmp.gt.s32.totalorder %s73, 0
      %s75 = scalar_select %p74, %s73, 0
      %s76 = ssub.s32 %s27, %s39
      %s77 = ssub.s32 %s71, %s75
      %s78 = sor.u32 %s76, %s77
      %p79 = scmp.eq.s32.totalorder %s78, 0
      %s81 = sadd.s32 %s80, 1
      %s82 = scalar_select %p79, %s80, %s81
      %p85 = pneg %p79
      %p86 = scmp.eq.s32.totalorder %s20, 1
      %p87 = por %p85, %p86
      %p88 = scmp.ne.s32.totalorder %s80, %s83
      %p89 = scmp.eq.s32.totalorder %s20, 0
      %p90 = por %p88, %p89
      %p91 = scmp.ne.s32.totalorder %s80, %s83
      %p92 = scmp.eq.s32.totalorder %s25, 1
      %p93 = por %p91, %p92
      %p94 = scmp.ne.s32.totalorder %s83, %s84
      %p95 = scmp.eq.s32.totalorder %s25, 0
      %p96 = por %p94, %p95
      %p97 = scmp.ne.s32.totalorder %s83, %s84
      %p98 = scmp.eq.s32.totalorder %s26, 1
      %p99 = por %p97, %p98
      %p101 = scmp.ne.s32.totalorder %s84, %s100
      %p102 = scmp.eq.s32.totalorder %s26, 0
      %p103 = por %p101, %p102
      %s104 = smul.u32 %s28, 4
      %s105 = sadd.s32 %s104, 4
      %p106 = scmp.lt.s32.totalorder %s105, 3
      %s107 = scalar_select %p106, %s105, 3
      %s108 = smul.u32 %s35, 4
      %s109 = sadd.s32 %s108, 4
      %p110 = scmp.lt.s32.totalorder %s109, 3
      %s111 = scalar_select %p110, %s109, 3
      %s112 = ssub.s32 %s27, %s39
      %s113 = ssub.s32 %s107, %s111
      %s114 = sor.u32 %s112, %s113
      %p115 = scmp.eq.s32.totalorder %s114, 0
      %s117 = sadd.s32 %s116, 1
      %s118 = scalar_select %p115, %s116, %s117
      %p121 = pneg %p115
      %p122 = scmp.eq.s32.totalorder %s20, 1
      %p123 = por %p121, %p122
      %p124 = scmp.ne.s32.totalorder %s116, %s119
      %p125 = scmp.eq.s32.totalorder %s20, 0
      %p126 = por %p124, %p125
      %p127 = scmp.ne.s32.totalorder %s116, %s119
      %p128 = scmp.eq.s32.totalorder %s25, 1
      %p129 = por %p127, %p128
      %p130 = scmp.ne.s32.totalorder %s119, %s120
      %p131 = scmp.eq.s32.totalorder %s25, 0
      %p132 = por %p130, %p131
      %p133 = scmp.ne.s32.totalorder %s119, %s120
      %p134 = scmp.eq.s32.totalorder %s26, 1
      %p135 = por %p133, %p134
      %p137 = scmp.ne.s32.totalorder %s120, %s136
      %p138 = scmp.eq.s32.totalorder %s26, 0
      %p139 = por %p137, %p138
      %s141 = sadd.s32 %s140, 1
      %p144 = scmp.eq.s32.totalorder %s20, 1
      %p145 = scmp.ne.s32.totalorder %s140, %s142
      %p146 = scmp.eq.s32.totalorder %s20, 0
      %p147 = por %p145, %p146
      %p148 = scmp.ne.s32.totalorder %s140, %s142
      %p149 = scmp.eq.s32.totalorder %s25, 1
      %p150 = por %p148, %p149
      %p151 = scmp.ne.s32.totalorder %s142, %s143
      %p152 = scmp.eq.s32.totalorder %s25, 0
      %p153 = por %p151, %p152
      %p154 = scmp.ne.s32.totalorder %s142, %s143
      %p155 = scmp.eq.s32.totalorder %s26, 1
      %p156 = por %p154, %p155
      %p158 = scmp.ne.s32.totalorder %s143, %s157
      %p159 = scmp.eq.s32.totalorder %s26, 0
      %p160 = por %p158, %p159
      %s162 = sadd.s32 %s161, 1
      %p165 = scmp.eq.s32.totalorder %s20, 1
      %p166 = scmp.ne.s32.totalorder %s161, %s163
      %p167 = scmp.eq.s32.totalorder %s20, 0
      %p168 = por %p166, %p167
      %p169 = scmp.ne.s32.totalorder %s161, %s163
      %p170 = scmp.eq.s32.totalorder %s25, 1
      %p171 = por %p169, %p170
      %p172 = scmp.ne.s32.totalorder %s163, %s164
      %p173 = scmp.eq.s32.totalorder %s25, 0
      %p174 = por %p172, %p173
      %p175 = scmp.ne.s32.totalorder %s163, %s164
      %p176 = scmp.eq.s32.totalorder %s26, 1
      %p177 = por %p175, %p176
      %p179 = scmp.ne.s32.totalorder %s164, %s178
      %p180 = scmp.eq.s32.totalorder %s26, 0
      %p181 = por %p179, %p180
      %s183 = sadd.s32 %s182, 1
      %p186 = scmp.eq.s32.totalorder %s20, 1
      %p187 = scmp.ne.s32.totalorder %s182, %s184
      %p188 = scmp.eq.s32.totalorder %s20, 0
      %p189 = por %p187, %p188
      %p190 = scmp.ne.s32.totalorder %s182, %s184
      %p191 = scmp.eq.s32.totalorder %s25, 1
      %p192 = por %p190, %p191
      %p193 = scmp.ne.s32.totalorder %s184, %s185
      %p194 = scmp.eq.s32.totalorder %s25, 0
      %p195 = por %p193, %p194
      %p196 = scmp.ne.s32.totalorder %s184, %s185
      %p197 = scmp.eq.s32.totalorder %s26, 1
      %p198 = por %p196, %p197
      %p200 = scmp.ne.s32.totalorder %s185, %s199
      %p201 = scmp.eq.s32.totalorder %s26, 0
      %p202 = por %p200, %p201
      %s204 = sadd.s32 %s203, 1
      %p207 = scmp.eq.s32.totalorder %s20, 1
      %p208 = scmp.ne.s32.totalorder %s203, %s205
      %p209 = scmp.eq.s32.totalorder %s20, 0
      %p210 = por %p208, %p209
      %p211 = scmp.ne.s32.totalorder %s203, %s205
      %p212 = scmp.eq.s32.totalorder %s25, 1
      %p213 = por %p211, %p212
      %p214 = scmp.ne.s32.totalorder %s205, %s206
      %p215 = scmp.eq.s32.totalorder %s25, 0
      %p216 = por %p214, %p215
      %p217 = scmp.ne.s32.totalorder %s205, %s206
      %p218 = scmp.eq.s32.totalorder %s26, 1
      %p219 = por %p217, %p218
      %p221 = scmp.ne.s32.totalorder %s206, %s220
      %p222 = scmp.eq.s32.totalorder %s26, 0
      %p223 = por %p221, %p222
      %s224 = ssub.s32 %s27, %s39
      %s225 = ssub.s32 %s28, %s35
      %s226 = sor.u32 %s224, %s225
      %p227 = scmp.eq.s32.totalorder %s226, 0
      %s229 = sadd.s32 %s228, 1
      %s230 = scalar_select %p227, %s228, %s229
      %p233 = pneg %p227
      %p234 = scmp.eq.s32.totalorder %s20, 1
      %p235 = por %p233, %p234
      %p236 = scmp.ne.s32.totalorder %s228, %s231
      %p237 = scmp.eq.s32.totalorder %s20, 0
      %p238 = por %p236, %p237
      %p239 = scmp.ne.s32.totalorder %s228, %s231
      %p240 = scmp.eq.s32.totalorder %s25, 1
      %p241 = por %p239, %p240
      %p242 = scmp.ne.s32.totalorder %s231, %s232
      %p243 = scmp.eq.s32.totalorder %s25, 0
      %p244 = por %p242, %p243
      %p245 = scmp.ne.s32.totalorder %s231, %s232
      %p246 = scmp.eq.s32.totalorder %s26, 1
      %p247 = por %p245, %p246
      %p249 = scmp.ne.s32.totalorder %s232, %s248
      %p250 = scmp.eq.s32.totalorder %s26, 0
      %p251 = por %p249, %p250
      %s252 = ssub.s32 %s27, %s39
      %s253 = ssub.s32 %s28, %s35
      %s254 = sor.u32 %s252, %s253
      %p255 = scmp.eq.s32.totalorder %s254, 0
      %s257 = sadd.s32 %s256, 1
      %s258 = scalar_select %p255, %s256, %s257
      %p261 = pneg %p255
      %p262 = scmp.eq.s32.totalorder %s20, 1
      %p263 = por %p261, %p262
      %p264 = scmp.ne.s32.totalorder %s256, %s259
      %p265 = scmp.eq.s32.totalorder %s20, 0
      %p266 = por %p264, %p265
      %p267 = scmp.ne.s32.totalorder %s256, %s259
      %p268 = scmp.eq.s32.totalorder %s25, 1
      %p269 = por %p267, %p268
      %p270 = scmp.ne.s32.totalorder %s259, %s260
      %p271 = scmp.eq.s32.totalorder %s25, 0
      %p272 = por %p270, %p271
      %p273 = scmp.ne.s32.totalorder %s259, %s260
      %p274 = scmp.eq.s32.totalorder %s26, 1
      %p275 = por %p273, %p274
      %p277 = scmp.ne.s32.totalorder %s260, %s276
      %p278 = scmp.eq.s32.totalorder %s26, 0
      %p279 = por %p277, %p278
      %p280 = scmp.le.s32.totalorder 1, %s20
      %p281 = scmp.lt.s32.totalorder %s20, 3
      %p282 = pnand %p280, %p281
      %p283 = pneg %p282
      // Predicated region
      $region9: #{decoder_forward.3} parent=5 // pred_check
        _
      $region10: #{decoder_forward.3} parent=5 // pred_check_branch
        %285 = sbr.rel (%p282) target = $region12
      $region11: #{decoder_forward.3} parent=5 // pred_region
        %s286 = ssub.s32 %s20, 1
        // Predicated region
        $region13: #{decoder_forward.3} parent=11 // pred_check
          %p287 = pneg %p153
        $region14: #{decoder_forward.3} parent=11 // pred_check_branch
          %289 = sbr.rel (%p287) target = $region16
        $region15: #{decoder_forward.3} parent=11 // pred_region
          %s291 = ssub.s32 2048, 2048
          %292 = vsyncadd [#allocation3], %s291
          %s293 = sshll.u32 [#allocation2], 4
          %s294 = int_to_ptr.vmem [resolvable:$true] %s293
          %299 = dma.hbm_to_vmem [thread:$0]  %s3, 2048, %s294, [#allocation3], 128, 128, 8
        $region16: #{decoder_forward.3} parent=11 // pred_fallthru
          _
        // Predicated region
        $region17: #{decoder_forward.3} parent=11 // pred_check
          %p300 = pneg %p174
        $region18: #{decoder_forward.3} parent=11 // pred_check_branch
          %302 = sbr.rel (%p300) target = $region20
        $region19: #{decoder_forward.3} parent=11 // pred_region
          _
        $region20: #{decoder_forward.3} parent=11 // pred_fallthru
          _
        // Predicated region
        $region21: #{decoder_forward.3} parent=11 // pred_check
          %p303 = pneg %p195
        $region22: #{decoder_forward.3} parent=11 // pred_check_branch
          %305 = sbr.rel (%p303) target = $region24
        $region23: #{decoder_forward.3} parent=11 // pred_region
          %s307 = ssub.s32 18432, 18432
          %308 = vsyncadd [#allocation6], %s307
          %s309 = sshll.u32 [#allocation5], 4
          %s310 = int_to_ptr.vmem [resolvable:$true] %s309
          %315 = dma.hbm_to_vmem [thread:$0]  %s5, 18432, %s310, [#allocation6], 128, 128, 8
        $region24: #{decoder_forward.3} parent=11 // pred_fallthru
          _
        // Predicated region
        $region25: #{decoder_forward.3} parent=11 // pred_check
          %p316 = pneg %p216
        $region26: #{decoder_forward.3} parent=11 // pred_check_branch
          %318 = sbr.rel (%p316) target = $region28
        $region27: #{decoder_forward.3} parent=11 // pred_region
          _
        $region28: #{decoder_forward.3} parent=11 // pred_fallthru
          _
      $region12: #{decoder_forward.3} parent=5 // pred_fallthru
        _
      %p319 = scmp.lt.s32.totalorder %s20, 2
      // Predicated region
      $region29: #{decoder_forward.3} parent=5 // pred_check
        %p320 = pneg %p319
      $region30: #{decoder_forward.3} parent=5 // pred_check_branch
        %322 = sbr.rel (%p320) target = $region32
      $region31: #{decoder_forward.3} parent=5 // pred_region
        // Predicated region
        $region33: #{decoder_forward.3} parent=31 // pred_check
          %p323 = pneg %p54
        $region34: #{decoder_forward.3} parent=31 // pred_check_branch
          %325 = sbr.rel (%p323) target = $region36
        $region35: #{decoder_forward.3} parent=31 // pred_region
          %s326 = smul.u32 4, %s28
          %p327 = scmp.lt.s32.totalorder %s27, 1
          %s328 = scalar_select %p327, %s27, 1
          %p329 = scmp.lt.s32.totalorder %s326, 3
          %s330 = scalar_select %p329, %s326, 3
          %s331 = smul.addr %s328, 4
          %s332 = sadd.s32 %s330, %s331
          %s333 = smul.addr %s332, 4
          %s334 = scalar_lea.vmem %s0, %s333
          %s335 = smul.u32 4, %s28
        $region36: #{decoder_forward.3} parent=31 // pred_fallthru
          _
        // Predicated region
        $region37: #{decoder_forward.3} parent=31 // pred_check
          %p336 = pneg %p90
        $region38: #{decoder_forward.3} parent=31 // pred_check_branch
          %338 = sbr.rel (%p336) target = $region40
        $region39: #{decoder_forward.3} parent=31 // pred_region
          %s339 = smul.u32 %s28, 4
          %s340 = ssub.s32 %s339, 1
          %p341 = scmp.gt.s32.totalorder %s340, 0
          %s342 = scalar_select %p341, %s340, 0
          %p343 = scmp.lt.s32.totalorder %s27, 1
          %s344 = scalar_select %p343, %s27, 1
          %p345 = scmp.lt.s32.totalorder %s342, 3
          %s346 = scalar_select %p345, %s342, 3
          %s347 = smul.addr %s344, 4
          %s348 = sadd.s32 %s346, %s347
          %s349 = smul.addr %s348, 4
          %s350 = scalar_lea.vmem %s1, %s349
          %s351 = smul.u32 %s28, 4
          %s352 = ssub.s32 %s351, 1
          %p353 = scmp.gt.s32.totalorder %s352, 0
          %s354 = scalar_select %p353, %s352, 0
        $region40: #{decoder_forward.3} parent=31 // pred_fallthru
          _
        // Predicated region
        $region41: #{decoder_forward.3} parent=31 // pred_check
          %p355 = pneg %p126
        $region42: #{decoder_forward.3} parent=31 // pred_check_branch
          %357 = sbr.rel (%p355) target = $region44
        $region43: #{decoder_forward.3} parent=31 // pred_region
          %s358 = smul.u32 %s28, 4
          %s359 = sadd.s32 %s358, 4
          %p360 = scmp.lt.s32.totalorder %s359, 3
          %s361 = scalar_select %p360, %s359, 3
          %p362 = scmp.lt.s32.totalorder %s27, 1
          %s363 = scalar_select %p362, %s27, 1
          %p364 = scmp.lt.s32.totalorder %s361, 3
          %s365 = scalar_select %p364, %s361, 3
          %s366 = smul.addr %s363, 4
          %s367 = sadd.s32 %s365, %s366
          %s368 = smul.addr %s367, 4
          %s369 = scalar_lea.vmem %s2, %s368
          %s370 = smul.u32 %s28, 4
          %s371 = sadd.s32 %s370, 4
          %p372 = scmp.lt.s32.totalorder %s371, 3
          %s373 = scalar_select %p372, %s371, 3
        $region44: #{decoder_forward.3} parent=31 // pred_fallthru
          _
      $region32: #{decoder_forward.3} parent=5 // pred_fallthru
        _
      %p374 = scmp.le.s32.totalorder 1, %s20
      %p375 = scmp.lt.s32.totalorder %s20, 3
      %p376 = pnand %p374, %p375
      %p377 = pneg %p376
      // Predicated region
      $region45: #{decoder_forward.3} parent=5 // pred_check
        _
      $region46: #{decoder_forward.3} parent=5 // pred_check_branch
        %379 = sbr.rel (%p376) target = $region48
      $region47: #{decoder_forward.3} parent=5 // pred_region
        %s380 = ssub.s32 %s20, 1
        // Predicated region
        $region49: #{decoder_forward.3} parent=47 // pred_check
          %p381 = pneg %p153
        $region50: #{decoder_forward.3} parent=47 // pred_check_branch
          %383 = sbr.rel (%p381) target = $region52
        $region51: #{decoder_forward.3} parent=47 // pred_region
          %384 = dma.done [#allocation3], 2048
        $region52: #{decoder_forward.3} parent=47 // pred_fallthru
          _
        // Predicated region
        $region53: #{decoder_forward.3} parent=47 // pred_check
          %p385 = pneg %p195
        $region54: #{decoder_forward.3} parent=47 // pred_check_branch
          %387 = sbr.rel (%p385) target = $region56
        $region55: #{decoder_forward.3} parent=47 // pred_region
          %388 = dma.done [#allocation6], 18432
        $region56: #{decoder_forward.3} parent=47 // pred_fallthru
          _
        %s389 = smul.u32 4, %s30
        %p390 = scmp.lt.s32.totalorder %s29, 1
        %s391 = scalar_select %p390, %s29, 1
        %p392 = scmp.lt.s32.totalorder %s389, 3
        %s393 = scalar_select %p392, %s389, 3
        %s394 = smul.addr %s391, 4
        %s395 = sadd.s32 %s393, %s394
        %s396 = smul.addr %s395, 4
        %s397 = scalar_lea.vmem %s0, %s396
        %p398 = pneg %p60
        %p399 = pneg %p57
        %s400 = smul.u32 %s30, 4
        %s401 = ssub.s32 %s400, 1
        %p402 = scmp.gt.s32.totalorder %s401, 0
        %s403 = scalar_select %p402, %s401, 0
        %p404 = scmp.lt.s32.totalorder %s29, 1
        %s405 = scalar_select %p404, %s29, 1
        %p406 = scmp.lt.s32.totalorder %s403, 3
        %s407 = scalar_select %p406, %s403, 3
        %s408 = smul.addr %s405, 4
        %s409 = sadd.s32 %s407, %s408
        %s410 = smul.addr %s409, 4
        %s411 = scalar_lea.vmem %s1, %s410
        %p412 = pneg %p96
        %p413 = pneg %p93
        %s414 = smul.u32 %s30, 4
        %s415 = sadd.s32 %s414, 4
        %p416 = scmp.lt.s32.totalorder %s415, 3
        %s417 = scalar_select %p416, %s415, 3
        %p418 = scmp.lt.s32.totalorder %s29, 1
        %s419 = scalar_select %p418, %s29, 1
        %p420 = scmp.lt.s32.totalorder %s417, 3
        %s421 = scalar_select %p420, %s417, 3
        %s422 = smul.addr %s419, 4
        %s423 = sadd.s32 %s421, %s422
        %s424 = smul.addr %s423, 4
        %s425 = scalar_lea.vmem %s2, %s424
        %p426 = pneg %p132
        %p427 = pneg %p129
        %p428 = pneg %p153
        %p429 = pneg %p150
        %p430 = pneg %p174
        %p431 = pneg %p171
        %p432 = pneg %p195
        %p433 = pneg %p192
        %p434 = pneg %p216
        %p435 = pneg %p213
        %p436 = pneg %p244
        %p437 = pneg %p241
        %s438 = smul.u32 4, %s30
        %p439 = scmp.lt.s32.totalorder %s29, 1
        %s440 = scalar_select %p439, %s29, 1
        %p441 = scmp.lt.s32.totalorder %s438, 3
        %s442 = scalar_select %p441, %s438, 3
        %s443 = smul.addr %s440, 4
        %s444 = sadd.s32 %s442, %s443
        %s445 = smul.addr %s444, 4
        %s446 = scalar_lea.vmem %s7, %s445
        %p447 = pneg %p272
        %p448 = pneg %p269
        %s449 = sand.u32 %s259, 1
        %s450 = scalar_lea.sflag [#allocation4], %s449
        %s451 = sand.u32 %s259, 1
        %s452 = smul.addr %s451, 16
        %s453 = scalar_lea.vmem [#allocation7], %s452
        %s454 = smul.u32 4, %s30
        %p455 = scmp.lt.s32.totalorder %s29, 1
        %s456 = scalar_select %p455, %s29, 1
        %p457 = scmp.lt.s32.totalorder %s454, 3
        %s458 = scalar_select %p457, %s454, 3
        %s459 = smul.addr %s456, 4
        %s460 = sadd.s32 %s458, %s459
        %s461 = smul.addr %s460, 4
        %s462 = scalar_lea.vmem %s0, %s461
        %s463 = smul.u32 4, %s30
        %s464 = smul.u32 %s30, 4
        %s465 = ssub.s32 %s464, 1
        %p466 = scmp.gt.s32.totalorder %s465, 0
        %s467 = scalar_select %p466, %s465, 0
        %p468 = scmp.lt.s32.totalorder %s29, 1
        %s469 = scalar_select %p468, %s29, 1
        %p470 = scmp.lt.s32.totalorder %s467, 3
        %s471 = scalar_select %p470, %s467, 3
        %s472 = smul.addr %s469, 4
        %s473 = sadd.s32 %s471, %s472
        %s474 = smul.addr %s473, 4
        %s475 = scalar_lea.vmem %s1, %s474
        %s476 = smul.u32 %s30, 4
        %s477 = ssub.s32 %s476, 1
        %p478 = scmp.gt.s32.totalorder %s477, 0
        %s479 = scalar_select %p478, %s477, 0
        %s480 = smul.u32 %s30, 4
        %s481 = sadd.s32 %s480, 4
        %p482 = scmp.lt.s32.totalorder %s481, 3
        %s483 = scalar_select %p482, %s481, 3
        %p484 = scmp.lt.s32.totalorder %s29, 1
        %s485 = scalar_select %p484, %s29, 1
        %p486 = scmp.lt.s32.totalorder %s483, 3
        %s487 = scalar_select %p486, %s483, 3
        %s488 = smul.addr %s485, 4
        %s489 = sadd.s32 %s487, %s488
        %s490 = smul.addr %s489, 4
        %s491 = scalar_lea.vmem %s2, %s490
        %s492 = smul.u32 %s30, 4
        %s493 = sadd.s32 %s492, 4
        %p494 = scmp.lt.s32.totalorder %s493, 3
        %s495 = scalar_select %p494, %s493, 3
        %s496 = smul.u32 4, %s30
        %p497 = scmp.lt.s32.totalorder %s29, 1
        %s498 = scalar_select %p497, %s29, 1
        %p499 = scmp.lt.s32.totalorder %s496, 3
        %s500 = scalar_select %p499, %s496, 3
        %s501 = smul.addr %s498, 4
        %s502 = sadd.s32 %s500, %s501
        %s503 = smul.addr %s502, 4
        %s504 = scalar_lea.vmem %s7, %s503
        %s505 = smul.u32 4, %s30
        %s506 = smul.u32 4, %s30
        %v507 = vld [vmem:[#allocation2] sm:$0xff]
        %v508 = vld [vmem:[#allocation2 + $0x8] sm:$0xff]
        %v509 = vld [vmem:[#allocation2 + $0x10] sm:$0xff]
        %v510 = vld [vmem:[#allocation2 + $0x18] sm:$0xff]
        %v511 = vld [vmem:[#allocation2 + $0x20] sm:$0xff]
        %v512 = vld [vmem:[#allocation2 + $0x28] sm:$0xff]
        %v513 = vld [vmem:[#allocation2 + $0x30] sm:$0xff]
        %v514 = vld [vmem:[#allocation2 + $0x38] sm:$0xff]
        %v515 = vld [vmem:[#allocation2 + $0x40] sm:$0xff]
        %v516 = vld [vmem:[#allocation2 + $0x48] sm:$0xff]
        %v517 = vld [vmem:[#allocation2 + $0x50] sm:$0xff]
        %v518 = vld [vmem:[#allocation2 + $0x58] sm:$0xff]
        %v519 = vld [vmem:[#allocation2 + $0x60] sm:$0xff]
        %v520 = vld [vmem:[#allocation2 + $0x68] sm:$0xff]
        %v521 = vld [vmem:[#allocation2 + $0x70] sm:$0xff]
        %v522 = vld [vmem:[#allocation2 + $0x78] sm:$0xff]
        %v523 = vld [vmem:[%s4] sm:$0x1]
        %v524 = vld [vmem:[%s6] sm:$0x1]
        %v525 = vld [vmem:[%s462] sm:$0xf]
        %v526 = vld [vmem:[%s462 + $0x4] sm:$0xf]
        %v527 = vld [vmem:[%s462 + $0x8] sm:$0xf]
        %v528 = vld [vmem:[%s462 + $0xc] sm:$0xf]
        %v530 = vlaneseq
        %v531 = vshrl.u32 %v530, 7
        %v532 = vsub.s32 0, %v531
        %v533 = vrot.slane %v523, %v532
        %v538 = vcombine.low %v525, %v526
        %v539 = vcombine.low %v527, %v528
        %v542 = vcombine.low %v533, %v533
        %544 = vmatprep.subr.mxu0 0.0
        %545 = vmatpush1.msra.mxu0 %v507
        %546 = vmatprep.subr.mxu0 0.0
        %547 = vmatpush1.msra.mxu0 %v508
        %548 = vmatprep.subr.mxu0 0.0
        %549 = vmatpush1.msra.mxu0 %v509
        %550 = vmatprep.subr.mxu0 0.0
        %551 = vmatpush1.msra.mxu0 %v510
        %552 = vmatprep.subr.mxu0 0.0
        %553 = vmatpush1.msra.mxu0 %v511
        %554 = vmatprep.subr.mxu0 0.0
        %555 = vmatpush1.msra.mxu0 %v512
        %556 = vmatprep.subr.mxu0 0.0
        %557 = vmatpush1.msra.mxu0 %v513
        %558 = vmatprep.subr.mxu0 0.0
        %559 = vmatpush1.msra.mxu0 %v514
        %560 = vmatprep.subr.mxu0 0.0
        %561 = vmatpush1.msra.mxu0 %v515
        %562 = vmatprep.subr.mxu0 0.0
        %563 = vmatpush1.msra.mxu0 %v516
        %564 = vmatprep.subr.mxu0 0.0
        %565 = vmatpush1.msra.mxu0 %v517
        %566 = vmatprep.subr.mxu0 0.0
        %567 = vmatpush1.msra.mxu0 %v518
        %568 = vmatprep.subr.mxu0 0.0
        %569 = vmatpush1.msra.mxu0 %v519
        %570 = vmatprep.subr.mxu0 0.0
        %571 = vmatpush1.msra.mxu0 %v520
        %572 = vmatprep.subr.mxu0 0.0
        %573 = vmatpush1.msra.mxu0 %v521
        %574 = vmatprep.subr.mxu0 0.0
        %575 = vmatpush1.msra.mxu0 %v522
        %576 = vmatprep.subr.mxu0 0.0
        %577 = vmatpush1.msra.mxu0 0.0
        %578 = vmatprep.subr.mxu0 0.0
        %579 = vmatpush1.msra.mxu0 0.0
        %580 = vmatprep.subr.mxu0 0.0
        %581 = vmatpush1.msra.mxu0 0.0
        %582 = vmatprep.subr.mxu0 0.0
        %583 = vmatpush1.msra.mxu0 0.0
        %584 = vmatprep.subr.mxu0 0.0
        %585 = vmatpush1.msra.mxu0 0.0
        %586 = vmatprep.subr.mxu0 0.0
        %587 = vmatpush1.msra.mxu0 0.0
        %588 = vmatprep.subr.mxu0 0.0
        %589 = vmatpush1.msra.mxu0 0.0
        %590 = vmatprep.subr.mxu0 0.0
        %591 = vmatpush1.msra.mxu0 0.0
        %592 = vmatprep.subr.mxu0 0.0
        %593 = vmatpush1.msra.mxu0 0.0
        %594 = vmatprep.subr.mxu0 0.0
        %595 = vmatpush1.msra.mxu0 0.0
        %596 = vmatprep.subr.mxu0 0.0
        %597 = vmatpush1.msra.mxu0 0.0
        %598 = vmatprep.subr.mxu0 0.0
        %599 = vmatpush1.msra.mxu0 0.0
        %600 = vmatprep.subr.mxu0 0.0
        %601 = vmatpush1.msra.mxu0 0.0
        %602 = vmatprep.subr.mxu0 0.0
        %603 = vmatpush1.msra.mxu0 0.0
        %604 = vmatprep.subr.mxu0 0.0
        %605 = vmatpush1.msra.mxu0 0.0
        %606 = vmatprep.subr.mxu0 0.0
        %607 = vmatpush1.msra.mxu0 0.0
        %608 = vmatprep.mubr.f32.mxu0 0.0
        %609 = vmatmul.mubr.f32.gmra.mrb[0].mxu0 %v538
        %v610 = vpop.f32.mrb[0].mxu0
        %v611 = vadd.f32 %v542, %v610
        %v612 = vpop.f32.mrb[0].mxu0
        %613 = vmatprep.mubr.f32.mxu0 0.0
        %614 = vmatmul.mubr.f32.gmra.mrb[0].mxu0 %v539
        %v615 = vpop.f32.mrb[0].mxu0
        %v616 = vadd.f32 %v542, %v615
        %v617 = vpop.f32.mrb[0].mxu0
        %618 = vdwg.mxu0
        %v621 = vcombine.high %v611, %v611
        %v622 = vcombine.high %v616, %v616
        %v623 = vld [vmem:[%s475] sm:$0xf]
        %625 = vmatprep.subr.mxu0 0.0
        %626 = vmatpush1.msra.mxu0 %v507
        %627 = vmatprep.subr.mxu0 0.0
        %628 = vmatpush1.msra.mxu0 %v508
        %629 = vmatprep.subr.mxu0 0.0
        %630 = vmatpush1.msra.mxu0 %v509
        %631 = vmatprep.subr.mxu0 0.0
        %632 = vmatpush1.msra.mxu0 %v510
        %633 = vmatprep.subr.mxu0 0.0
        %634 = vmatpush1.msra.mxu0 %v511
        %635 = vmatprep.subr.mxu0 0.0
        %636 = vmatpush1.msra.mxu0 %v512
        %637 = vmatprep.subr.mxu0 0.0
        %638 = vmatpush1.msra.mxu0 %v513
        %639 = vmatprep.subr.mxu0 0.0
        %640 = vmatpush1.msra.mxu0 %v514
        %641 = vmatprep.subr.mxu0 0.0
        %642 = vmatpush1.msra.mxu0 %v515
        %643 = vmatprep.subr.mxu0 0.0
        %644 = vmatpush1.msra.mxu0 %v516
        %645 = vmatprep.subr.mxu0 0.0
        %646 = vmatpush1.msra.mxu0 %v517
        %647 = vmatprep.subr.mxu0 0.0
        %648 = vmatpush1.msra.mxu0 %v518
        %649 = vmatprep.subr.mxu0 0.0
        %650 = vmatpush1.msra.mxu0 %v519
        %651 = vmatprep.subr.mxu0 0.0
        %652 = vmatpush1.msra.mxu0 %v520
        %653 = vmatprep.subr.mxu0 0.0
        %654 = vmatpush1.msra.mxu0 %v521
        %655 = vmatprep.subr.mxu0 0.0
        %656 = vmatpush1.msra.mxu0 %v522
        %657 = vmatprep.subr.mxu0 0.0
        %658 = vmatpush1.msra.mxu0 0.0
        %659 = vmatprep.subr.mxu0 0.0
        %660 = vmatpush1.msra.mxu0 0.0
        %661 = vmatprep.subr.mxu0 0.0
        %662 = vmatpush1.msra.mxu0 0.0
        %663 = vmatprep.subr.mxu0 0.0
        %664 = vmatpush1.msra.mxu0 0.0
        %665 = vmatprep.subr.mxu0 0.0
        %666 = vmatpush1.msra.mxu0 0.0
        %667 = vmatprep.subr.mxu0 0.0
        %668 = vmatpush1.msra.mxu0 0.0
        %669 = vmatprep.subr.mxu0 0.0
        %670 = vmatpush1.msra.mxu0 0.0
        %671 = vmatprep.subr.mxu0 0.0
        %672 = vmatpush1.msra.mxu0 0.0
        %673 = vmatprep.subr.mxu0 0.0
        %674 = vmatpush1.msra.mxu0 0.0
        %675 = vmatprep.subr.mxu0 0.0
        %676 = vmatpush1.msra.mxu0 0.0
        %677 = vmatprep.subr.mxu0 0.0
        %678 = vmatpush1.msra.mxu0 0.0
        %679 = vmatprep.subr.mxu0 0.0
        %680 = vmatpush1.msra.mxu0 0.0
        %681 = vmatprep.subr.mxu0 0.0
        %682 = vmatpush1.msra.mxu0 0.0
        %683 = vmatprep.subr.mxu0 0.0
        %684 = vmatpush1.msra.mxu0 0.0
        %685 = vmatprep.subr.mxu0 0.0
        %686 = vmatpush1.msra.mxu0 0.0
        %687 = vmatprep.subr.mxu0 0.0
        %688 = vmatpush1.msra.mxu0 0.0
        %689 = vmatprep.mubr.f32.mxu0 0.0
        %690 = vmatmul.mubr.f32.gmra.mrb[0].mxu0 %v623
        %v691 = vpop.f32.mrb[0].mxu0
        %v692 = vadd.f32 %v533, %v691
        %v693 = vpop.f32.mrb[0].mxu0
        %694 = vdwg.mxu0
        %v695 = vld [vmem:[%s491] sm:$0xf]
        %696 = vmatprep.subr.mxu0 0.0
        %697 = vmatpush1.msra.mxu0 %v507
        %698 = vmatprep.subr.mxu0 0.0
        %699 = vmatpush1.msra.mxu0 %v508
        %700 = vmatprep.subr.mxu0 0.0
        %701 = vmatpush1.msra.mxu0 %v509
        %702 = vmatprep.subr.mxu0 0.0
        %703 = vmatpush1.msra.mxu0 %v510
        %704 = vmatprep.subr.mxu0 0.0
        %705 = vmatpush1.msra.mxu0 %v511
        %706 = vmatprep.subr.mxu0 0.0
        %707 = vmatpush1.msra.mxu0 %v512
        %708 = vmatprep.subr.mxu0 0.0
        %709 = vmatpush1.msra.mxu0 %v513
        %710 = vmatprep.subr.mxu0 0.0
        %711 = vmatpush1.msra.mxu0 %v514
        %712 = vmatprep.subr.mxu0 0.0
        %713 = vmatpush1.msra.mxu0 %v515
        %714 = vmatprep.subr.mxu0 0.0
        %715 = vmatpush1.msra.mxu0 %v516
        %716 = vmatprep.subr.mxu0 0.0
        %717 = vmatpush1.msra.mxu0 %v517
        %718 = vmatprep.subr.mxu0 0.0
        %719 = vmatpush1.msra.mxu0 %v518
        %720 = vmatprep.subr.mxu0 0.0
        %721 = vmatpush1.msra.mxu0 %v519
        %722 = vmatprep.subr.mxu0 0.0
        %723 = vmatpush1.msra.mxu0 %v520
        %724 = vmatprep.subr.mxu0 0.0
        %725 = vmatpush1.msra.mxu0 %v521
        %726 = vmatprep.subr.mxu0 0.0
        %727 = vmatpush1.msra.mxu0 %v522
        %728 = vmatprep.subr.mxu0 0.0
        %729 = vmatpush1.msra.mxu0 0.0
        %730 = vmatprep.subr.mxu0 0.0
        %731 = vmatpush1.msra.mxu0 0.0
        %732 = vmatprep.subr.mxu0 0.0
        %733 = vmatpush1.msra.mxu0 0.0
        %734 = vmatprep.subr.mxu0 0.0
        %735 = vmatpush1.msra.mxu0 0.0
        %736 = vmatprep.subr.mxu0 0.0
        %737 = vmatpush1.msra.mxu0 0.0
        %738 = vmatprep.subr.mxu0 0.0
        %739 = vmatpush1.msra.mxu0 0.0
        %740 = vmatprep.subr.mxu0 0.0
        %741 = vmatpush1.msra.mxu0 0.0
        %742 = vmatprep.subr.mxu0 0.0
        %743 = vmatpush1.msra.mxu0 0.0
        %744 = vmatprep.subr.mxu0 0.0
        %745 = vmatpush1.msra.mxu0 0.0
        %746 = vmatprep.subr.mxu0 0.0
        %747 = vmatpush1.msra.mxu0 0.0
        %748 = vmatprep.subr.mxu0 0.0
        %749 = vmatpush1.msra.mxu0 0.0
        %750 = vmatprep.subr.mxu0 0.0
        %751 = vmatpush1.msra.mxu0 0.0
        %752 = vmatprep.subr.mxu0 0.0
        %753 = vmatpush1.msra.mxu0 0.0
        %754 = vmatprep.subr.mxu0 0.0
        %755 = vmatpush1.msra.mxu0 0.0
        %756 = vmatprep.subr.mxu0 0.0
        %757 = vmatpush1.msra.mxu0 0.0
        %758 = vmatprep.subr.mxu0 0.0
        %759 = vmatpush1.msra.mxu0 0.0
        %760 = vmatprep.mubr.f32.mxu0 0.0
        %761 = vmatmul.mubr.f32.gmra.mrb[0].mxu0 %v695
        %v762 = vpop.f32.mrb[0].mxu0
        %v763 = vadd.f32 %v533, %v762
        %v764 = vpop.f32.mrb[0].mxu0
        %765 = vdwg.mxu0
        %p766 = scmp.gt.s32.totalorder %s30, 0
        %s767 = scalar_select %p766, 1, 0
        %s768 = scvt.s32.f32 %s767
        %v769 = vstv %s768
        %v770 = vmul.f32 %v692, %v769
        %p771 = scmp.lt.s32.totalorder %s30, 0
        %s772 = scalar_select %p771, 1, 0
        %s773 = scvt.s32.f32 %s772
        %v774 = vstv %s773
        %v775 = vmul.f32 %v763, %v774
        %778 = vst [vmem:[%s504] sm:$0xf] %v611
        %779 = vst [vmem:[%s504 + $0x4] sm:$0xf] %v621
        %780 = vst [vmem:[%s504 + $0x8] sm:$0xf] %v616
        %781 = vst [vmem:[%s504 + $0xc] sm:$0xf] %v622
        %v784 = vrot.slane %v770, 7
        %v785 = vrot.slane %v611, 7
        %v786 = vrot.slane %v621, 7
        %v787 = vrot.slane %v616, 7
        %v788 = vrot.slane %v622, 7
        %v789 = vrot.slane %v775, 7
        %vm796 = vcmask 1040384
        %v797 = vsel %vm796, 0.0, %v784
        %v798 = vsel %vm796, 0.0, %v785
        %v799 = vsel %vm796, 0.0, %v786
        %v800 = vsel %vm796, 0.0, %v787
        %v801 = vsel %vm796, 0.0, %v788
        %v802 = vsel %vm796, 0.0, %v789
        %vm803 = vcmask 1044480
        %v804 = vsel %vm803, %v797, 0.0
        %v805 = vsel %vm803, %v798, 0.0
        %v806 = vsel %vm803, %v799, 0.0
        %v807 = vsel %vm803, %v800, 0.0
        %v808 = vsel %vm803, %v801, 0.0
        %v809 = vsel %vm803, %v802, 0.0
        %v810 = vld [vmem:[#allocation5] sm:$0xff]
        %v811 = vld [vmem:[#allocation5 + $0x8] sm:$0xff]
        %v812 = vld [vmem:[#allocation5 + $0x10] sm:$0xff]
        %v813 = vld [vmem:[#allocation5 + $0x18] sm:$0xff]
        %v814 = vld [vmem:[#allocation5 + $0x20] sm:$0xff]
        %v815 = vld [vmem:[#allocation5 + $0x28] sm:$0xff]
        %v816 = vld [vmem:[#allocation5 + $0x30] sm:$0xff]
        %v817 = vld [vmem:[#allocation5 + $0x38] sm:$0xff]
        %v818 = vld [vmem:[#allocation5 + $0x40] sm:$0xff]
        %v819 = vld [vmem:[#allocation5 + $0x48] sm:$0xff]
        %v820 = vld [vmem:[#allocation5 + $0x50] sm:$0xff]
        %v821 = vld [vmem:[#allocation5 + $0x58] sm:$0xff]
        %v822 = vld [vmem:[#allocation5 + $0x60] sm:$0xff]
        %v823 = vld [vmem:[#allocation5 + $0x68] sm:$0xff]
        %v824 = vld [vmem:[#allocation5 + $0x70] sm:$0xff]
        %v825 = vld [vmem:[#allocation5 + $0x78] sm:$0xff]
        %s826 = scalar_lea.vmem [#allocation5], 128
        %v827 = vld [vmem:[%s826] sm:$0xff]
        %v828 = vld [vmem:[%s826 + $0x8] sm:$0xff]
        %v829 = vld [vmem:[%s826 + $0x10] sm:$0xff]
        %v830 = vld [vmem:[%s826 + $0x18] sm:$0xff]
        %v831 = vld [vmem:[%s826 + $0x20] sm:$0xff]
        %v832 = vld [vmem:[%s826 + $0x28] sm:$0xff]
        %v833 = vld [vmem:[%s826 + $0x30] sm:$0xff]
        %v834 = vld [vmem:[%s826 + $0x38] sm:$0xff]
        %v835 = vld [vmem:[%s826 + $0x40] sm:$0xff]
        %v836 = vld [vmem:[%s826 + $0x48] sm:$0xff]
        %v837 = vld [vmem:[%s826 + $0x50] sm:$0xff]
        %v838 = vld [vmem:[%s826 + $0x58] sm:$0xff]
        %v839 = vld [vmem:[%s826 + $0x60] sm:$0xff]
        %v840 = vld [vmem:[%s826 + $0x68] sm:$0xff]
        %v841 = vld [vmem:[%s826 + $0x70] sm:$0xff]
        %v842 = vld [vmem:[%s826 + $0x78] sm:$0xff]
        %v847 = vcombine.high %v804, %v804
        %v848 = vcombine.high %v805, %v805
        %v849 = vcombine.high %v806, %v806
        %v850 = vcombine.high %v807, %v807
        %vm851 = vcmask 1042432
        %vm852 = vcmask 1046532
        %vm853 = vmor %vm851, %vm852
        %v854 = vrot.slane %v804, 5
        %v855 = vrot.slane %v854, 4
        %v856 = vrot.slane %v847, 5
        %v857 = vsel %vm853, %v855, %v856
        %v858 = vrot.slane %v805, 5
        %v859 = vrot.slane %v858, 4
        %v860 = vrot.slane %v848, 5
        %v861 = vsel %vm853, %v859, %v860
        %v862 = vrot.slane %v806, 5
        %v863 = vrot.slane %v862, 4
        %v864 = vrot.slane %v849, 5
        %v865 = vsel %vm853, %v863, %v864
        %v866 = vrot.slane %v807, 5
        %v867 = vrot.slane %v866, 4
        %v868 = vrot.slane %v850, 5
        %v869 = vsel %vm853, %v867, %v868
        %v870 = vcombine.low %v857, %v861
        %v871 = vcombine.low %v865, %v869
        %874 = vmatprep.subr.mxu0 0.0
        %875 = vmatpush1.msra.mxu0 %v827
        %876 = vmatprep.subr.mxu0 0.0
        %877 = vmatpush1.msra.mxu0 %v828
        %878 = vmatprep.subr.mxu0 0.0
        %879 = vmatpush1.msra.mxu0 %v829
        %880 = vmatprep.subr.mxu0 0.0
        %881 = vmatpush1.msra.mxu0 %v830
        %882 = vmatprep.subr.mxu0 0.0
        %883 = vmatpush1.msra.mxu0 %v831
        %884 = vmatprep.subr.mxu0 0.0
        %885 = vmatpush1.msra.mxu0 %v832
        %886 = vmatprep.subr.mxu0 0.0
        %887 = vmatpush1.msra.mxu0 %v833
        %888 = vmatprep.subr.mxu0 0.0
        %889 = vmatpush1.msra.mxu0 %v834
        %890 = vmatprep.subr.mxu0 0.0
        %891 = vmatpush1.msra.mxu0 %v835
        %892 = vmatprep.subr.mxu0 0.0
        %893 = vmatpush1.msra.mxu0 %v836
        %894 = vmatprep.subr.mxu0 0.0
        %895 = vmatpush1.msra.mxu0 %v837
        %896 = vmatprep.subr.mxu0 0.0
        %897 = vmatpush1.msra.mxu0 %v838
        %898 = vmatprep.subr.mxu0 0.0
        %899 = vmatpush1.msra.mxu0 %v839
        %900 = vmatprep.subr.mxu0 0.0
        %901 = vmatpush1.msra.mxu0 %v840
        %902 = vmatprep.subr.mxu0 0.0
        %903 = vmatpush1.msra.mxu0 %v841
        %904 = vmatprep.subr.mxu0 0.0
        %905 = vmatpush1.msra.mxu0 %v842
        %906 = vmatprep.subr.mxu0 0.0
        %907 = vmatpush1.msra.mxu0 0.0
        %908 = vmatprep.subr.mxu0 0.0
        %909 = vmatpush1.msra.mxu0 0.0
        %910 = vmatprep.subr.mxu0 0.0
        %911 = vmatpush1.msra.mxu0 0.0
        %912 = vmatprep.subr.mxu0 0.0
        %913 = vmatpush1.msra.mxu0 0.0
        %914 = vmatprep.subr.mxu0 0.0
        %915 = vmatpush1.msra.mxu0 0.0
        %916 = vmatprep.subr.mxu0 0.0
        %917 = vmatpush1.msra.mxu0 0.0
        %918 = vmatprep.subr.mxu0 0.0
        %919 = vmatpush1.msra.mxu0 0.0
        %920 = vmatprep.subr.mxu0 0.0
        %921 = vmatpush1.msra.mxu0 0.0
        %922 = vmatprep.subr.mxu0 0.0
        %923 = vmatpush1.msra.mxu0 0.0
        %924 = vmatprep.subr.mxu0 0.0
        %925 = vmatpush1.msra.mxu0 0.0
        %926 = vmatprep.subr.mxu0 0.0
        %927 = vmatpush1.msra.mxu0 0.0
        %928 = vmatprep.subr.mxu0 0.0
        %929 = vmatpush1.msra.mxu0 0.0
        %930 = vmatprep.subr.mxu0 0.0
        %931 = vmatpush1.msra.mxu0 0.0
        %932 = vmatprep.subr.mxu0 0.0
        %933 = vmatpush1.msra.mxu0 0.0
        %934 = vmatprep.subr.mxu0 0.0
        %935 = vmatpush1.msra.mxu0 0.0
        %936 = vmatprep.subr.mxu0 0.0
        %937 = vmatpush1.msra.mxu0 0.0
        %938 = vmatprep.mubr.f32.mxu0 0.0
        %939 = vmatmul.mubr.f32.gmra.mrb[0].mxu0 %v870
        %v940 = vpop.f32.mrb[0].mxu0
        %v941 = vadd.f32 0.0, %v940
        %v942 = vpop.f32.mrb[0].mxu0
        %943 = vmatprep.mubr.f32.mxu0 0.0
        %944 = vmatmul.mubr.f32.gmra.mrb[0].mxu0 %v871
        %v945 = vpop.f32.mrb[0].mxu0
        %v946 = vadd.f32 0.0, %v945
        %v947 = vpop.f32.mrb[0].mxu0
        %948 = vdwg.mxu0
        %v949 = vcombine.low %v804, %v805
        %v950 = vcombine.low %v806, %v807
        %953 = vmatprep.subr.mxu0 0.0
        %954 = vmatpush1.msra.mxu0 %v810
        %955 = vmatprep.subr.mxu0 0.0
        %956 = vmatpush1.msra.mxu0 %v811
        %957 = vmatprep.subr.mxu0 0.0
        %958 = vmatpush1.msra.mxu0 %v812
        %959 = vmatprep.subr.mxu0 0.0
        %960 = vmatpush1.msra.mxu0 %v813
        %961 = vmatprep.subr.mxu0 0.0
        %962 = vmatpush1.msra.mxu0 %v814
        %963 = vmatprep.subr.mxu0 0.0
        %964 = vmatpush1.msra.mxu0 %v815
        %965 = vmatprep.subr.mxu0 0.0
        %966 = vmatpush1.msra.mxu0 %v816
        %967 = vmatprep.subr.mxu0 0.0
        %968 = vmatpush1.msra.mxu0 %v817
        %969 = vmatprep.subr.mxu0 0.0
        %970 = vmatpush1.msra.mxu0 %v818
        %971 = vmatprep.subr.mxu0 0.0
        %972 = vmatpush1.msra.mxu0 %v819
        %973 = vmatprep.subr.mxu0 0.0
        %974 = vmatpush1.msra.mxu0 %v820
        %975 = vmatprep.subr.mxu0 0.0
        %976 = vmatpush1.msra.mxu0 %v821
        %977 = vmatprep.subr.mxu0 0.0
        %978 = vmatpush1.msra.mxu0 %v822
        %979 = vmatprep.subr.mxu0 0.0
        %980 = vmatpush1.msra.mxu0 %v823
        %981 = vmatprep.subr.mxu0 0.0
        %982 = vmatpush1.msra.mxu0 %v824
        %983 = vmatprep.subr.mxu0 0.0
        %984 = vmatpush1.msra.mxu0 %v825
        %985 = vmatprep.subr.mxu0 0.0
        %986 = vmatpush1.msra.mxu0 0.0
        %987 = vmatprep.subr.mxu0 0.0
        %988 = vmatpush1.msra.mxu0 0.0
        %989 = vmatprep.subr.mxu0 0.0
        %990 = vmatpush1.msra.mxu0 0.0
        %991 = vmatprep.subr.mxu0 0.0
        %992 = vmatpush1.msra.mxu0 0.0
        %993 = vmatprep.subr.mxu0 0.0
        %994 = vmatpush1.msra.mxu0 0.0
        %995 = vmatprep.subr.mxu0 0.0
        %996 = vmatpush1.msra.mxu0 0.0
        %997 = vmatprep.subr.mxu0 0.0
        %998 = vmatpush1.msra.mxu0 0.0
        %999 = vmatprep.subr.mxu0 0.0
        %1000 = vmatpush1.msra.mxu0 0.0
        %1001 = vmatprep.subr.mxu0 0.0
        %1002 = vmatpush1.msra.mxu0 0.0
        %1003 = vmatprep.subr.mxu0 0.0
        %1004 = vmatpush1.msra.mxu0 0.0
        %1005 = vmatprep.subr.mxu0 0.0
        %1006 = vmatpush1.msra.mxu0 0.0
        %1007 = vmatprep.subr.mxu0 0.0
        %1008 = vmatpush1.msra.mxu0 0.0
        %1009 = vmatprep.subr.mxu0 0.0
        %1010 = vmatpush1.msra.mxu0 0.0
        %1011 = vmatprep.subr.mxu0 0.0
        %1012 = vmatpush1.msra.mxu0 0.0
        %1013 = vmatprep.subr.mxu0 0.0
        %1014 = vmatpush1.msra.mxu0 0.0
        %1015 = vmatprep.subr.mxu0 0.0
        %1016 = vmatpush1.msra.mxu0 0.0
        %1017 = vmatprep.mubr.f32.mxu0 0.0
        %1018 = vmatmul.mubr.f32.gmra.mrb[0].mxu0 %v949
        %v1019 = vpop.f32.mrb[0].mxu0
        %v1020 = vadd.f32 %v941, %v1019
        %v1021 = vpop.f32.mrb[0].mxu0
        %1022 = vmatprep.mubr.f32.mxu0 0.0
        %1023 = vmatmul.mubr.f32.gmra.mrb[0].mxu0 %v950
        %v1024 = vpop.f32.mrb[0].mxu0
        %v1025 = vadd.f32 %v946, %v1024
        %v1026 = vpop.f32.mrb[0].mxu0
        %1027 = vdwg.mxu0
        %v1030 = vcombine.high %v1020, %v1020
        %v1031 = vcombine.high %v1025, %v1025
        %s1034 = scalar_lea.vmem [#allocation5], 256
        %v1035 = vld [vmem:[%s1034] sm:$0xff]
        %v1036 = vld [vmem:[%s1034 + $0x8] sm:$0xff]
        %v1037 = vld [vmem:[%s1034 + $0x10] sm:$0xff]
        %v1038 = vld [vmem:[%s1034 + $0x18] sm:$0xff]
        %v1039 = vld [vmem:[%s1034 + $0x20] sm:$0xff]
        %v1040 = vld [vmem:[%s1034 + $0x28] sm:$0xff]
        %v1041 = vld [vmem:[%s1034 + $0x30] sm:$0xff]
        %v1042 = vld [vmem:[%s1034 + $0x38] sm:$0xff]
        %v1043 = vld [vmem:[%s1034 + $0x40] sm:$0xff]
        %v1044 = vld [vmem:[%s1034 + $0x48] sm:$0xff]
        %v1045 = vld [vmem:[%s1034 + $0x50] sm:$0xff]
        %v1046 = vld [vmem:[%s1034 + $0x58] sm:$0xff]
        %v1047 = vld [vmem:[%s1034 + $0x60] sm:$0xff]
        %v1048 = vld [vmem:[%s1034 + $0x68] sm:$0xff]
        %v1049 = vld [vmem:[%s1034 + $0x70] sm:$0xff]
        %v1050 = vld [vmem:[%s1034 + $0x78] sm:$0xff]
        %vm1051 = vcmask 1041408
        %vm1052 = vcmask 1045508
        %vm1053 = vmor %vm1051, %vm1052
        %v1054 = vrot.slane %v804, 6
        %v1055 = vrot.slane %v1054, 4
        %v1056 = vrot.slane %v847, 6
        %v1057 = vsel %vm1053, %v1055, %v1056
        %v1058 = vrot.slane %v805, 6
        %v1059 = vrot.slane %v1058, 4
        %v1060 = vrot.slane %v848, 6
        %v1061 = vsel %vm1053, %v1059, %v1060
        %v1062 = vrot.slane %v806, 6
        %v1063 = vrot.slane %v1062, 4
        %v1064 = vrot.slane %v849, 6
        %v1065 = vsel %vm1053, %v1063, %v1064
        %v1066 = vrot.slane %v807, 6
        %v1067 = vrot.slane %v1066, 4
        %v1068 = vrot.slane %v850, 6
        %v1069 = vsel %vm1053, %v1067, %v1068
        %v1070 = vcombine.low %v1057, %v1061
        %v1071 = vcombine.low %v1065, %v1069
        %1074 = vmatprep.subr.mxu0 0.0
        %1075 = vmatpush1.msra.mxu0 %v1035
        %1076 = vmatprep.subr.mxu0 0.0
        %1077 = vmatpush1.msra.mxu0 %v1036
        %1078 = vmatprep.subr.mxu0 0.0
        %1079 = vmatpush1.msra.mxu0 %v1037
        %1080 = vmatprep.subr.mxu0 0.0
        %1081 = vmatpush1.msra.mxu0 %v1038
        %1082 = vmatprep.subr.mxu0 0.0
        %1083 = vmatpush1.msra.mxu0 %v1039
        %1084 = vmatprep.subr.mxu0 0.0
        %1085 = vmatpush1.msra.mxu0 %v1040
        %1086 = vmatprep.subr.mxu0 0.0
        %1087 = vmatpush1.msra.mxu0 %v1041
        %1088 = vmatprep.subr.mxu0 0.0
        %1089 = vmatpush1.msra.mxu0 %v1042
        %1090 = vmatprep.subr.mxu0 0.0
        %1091 = vmatpush1.msra.mxu0 %v1043
        %1092 = vmatprep.subr.mxu0 0.0
        %1093 = vmatpush1.msra.mxu0 %v1044
        %1094 = vmatprep.subr.mxu0 0.0
        %1095 = vmatpush1.msra.mxu0 %v1045
        %1096 = vmatprep.subr.mxu0 0.0
        %1097 = vmatpush1.msra.mxu0 %v1046
        %1098 = vmatprep.subr.mxu0 0.0
        %1099 = vmatpush1.msra.mxu0 %v1047
        %1100 = vmatprep.subr.mxu0 0.0
        %1101 = vmatpush1.msra.mxu0 %v1048
        %1102 = vmatprep.subr.mxu0 0.0
        %1103 = vmatpush1.msra.mxu0 %v1049
        %1104 = vmatprep.subr.mxu0 0.0
        %1105 = vmatpush1.msra.mxu0 %v1050
        %1106 = vmatprep.subr.mxu0 0.0
        %1107 = vmatpush1.msra.mxu0 0.0
        %1108 = vmatprep.subr.mxu0 0.0
        %1109 = vmatpush1.msra.mxu0 0.0
        %1110 = vmatprep.subr.mxu0 0.0
        %1111 = vmatpush1.msra.mxu0 0.0
        %1112 = vmatprep.subr.mxu0 0.0
        %1113 = vmatpush1.msra.mxu0 0.0
        %1114 = vmatprep.subr.mxu0 0.0
        %1115 = vmatpush1.msra.mxu0 0.0
        %1116 = vmatprep.subr.mxu0 0.0
        %1117 = vmatpush1.msra.mxu0 0.0
        %1118 = vmatprep.subr.mxu0 0.0
        %1119 = vmatpush1.msra.mxu0 0.0
        %1120 = vmatprep.subr.mxu0 0.0
        %1121 = vmatpush1.msra.mxu0 0.0
        %1122 = vmatprep.subr.mxu0 0.0
        %1123 = vmatpush1.msra.mxu0 0.0
        %1124 = vmatprep.subr.mxu0 0.0
        %1125 = vmatpush1.msra.mxu0 0.0
        %1126 = vmatprep.subr.mxu0 0.0
        %1127 = vmatpush1.msra.mxu0 0.0
        %1128 = vmatprep.subr.mxu0 0.0
        %1129 = vmatpush1.msra.mxu0 0.0
        %1130 = vmatprep.subr.mxu0 0.0
        %1131 = vmatpush1.msra.mxu0 0.0
        %1132 = vmatprep.subr.mxu0 0.0
        %1133 = vmatpush1.msra.mxu0 0.0
        %1134 = vmatprep.subr.mxu0 0.0
        %1135 = vmatpush1.msra.mxu0 0.0
        %1136 = vmatprep.subr.mxu0 0.0
        %1137 = vmatpush1.msra.mxu0 0.0
        %1138 = vmatprep.mubr.f32.mxu0 0.0
        %1139 = vmatmul.mubr.f32.gmra.mrb[0].mxu0 %v1070
        %v1140 = vpop.f32.mrb[0].mxu0
        %v1141 = vadd.f32 0.0, %v1140
        %v1142 = vpop.f32.mrb[0].mxu0
        %1143 = vmatprep.mubr.f32.mxu0 0.0
        %1144 = vmatmul.mubr.f32.gmra.mrb[0].mxu0 %v1071
        %v1145 = vpop.f32.mrb[0].mxu0
        %v1146 = vadd.f32 0.0, %v1145
        %v1147 = vpop.f32.mrb[0].mxu0
        %1148 = vdwg.mxu0
        %v1151 = vcombine.high %v1141, %v1141
        %v1152 = vcombine.high %v1146, %v1146
        %v1155 = vadd.f32 %v1020, %v1141
        %v1156 = vadd.f32 %v1030, %v1151
        %v1157 = vadd.f32 %v1025, %v1146
        %v1158 = vadd.f32 %v1031, %v1152
        %s1159 = scalar_lea.vmem [#allocation5], 384
        %v1160 = vld [vmem:[%s1159] sm:$0xff]
        %v1161 = vld [vmem:[%s1159 + $0x8] sm:$0xff]
        %v1162 = vld [vmem:[%s1159 + $0x10] sm:$0xff]
        %v1163 = vld [vmem:[%s1159 + $0x18] sm:$0xff]
        %v1164 = vld [vmem:[%s1159 + $0x20] sm:$0xff]
        %v1165 = vld [vmem:[%s1159 + $0x28] sm:$0xff]
        %v1166 = vld [vmem:[%s1159 + $0x30] sm:$0xff]
        %v1167 = vld [vmem:[%s1159 + $0x38] sm:$0xff]
        %v1168 = vld [vmem:[%s1159 + $0x40] sm:$0xff]
        %v1169 = vld [vmem:[%s1159 + $0x48] sm:$0xff]
        %v1170 = vld [vmem:[%s1159 + $0x50] sm:$0xff]
        %v1171 = vld [vmem:[%s1159 + $0x58] sm:$0xff]
        %v1172 = vld [vmem:[%s1159 + $0x60] sm:$0xff]
        %v1173 = vld [vmem:[%s1159 + $0x68] sm:$0xff]
        %v1174 = vld [vmem:[%s1159 + $0x70] sm:$0xff]
        %v1175 = vld [vmem:[%s1159 + $0x78] sm:$0xff]
        %v1177 = vcombine.low %v805, %v806
        %v1178 = vcombine.low %v807, %v808
        %1181 = vmatprep.subr.mxu0 0.0
        %1182 = vmatpush1.msra.mxu0 %v1160
        %1183 = vmatprep.subr.mxu0 0.0
        %1184 = vmatpush1.msra.mxu0 %v1161
        %1185 = vmatprep.subr.mxu0 0.0
        %1186 = vmatpush1.msra.mxu0 %v1162
        %1187 = vmatprep.subr.mxu0 0.0
        %1188 = vmatpush1.msra.mxu0 %v1163
        %1189 = vmatprep.subr.mxu0 0.0
        %1190 = vmatpush1.msra.mxu0 %v1164
        %1191 = vmatprep.subr.mxu0 0.0
        %1192 = vmatpush1.msra.mxu0 %v1165
        %1193 = vmatprep.subr.mxu0 0.0
        %1194 = vmatpush1.msra.mxu0 %v1166
        %1195 = vmatprep.subr.mxu0 0.0
        %1196 = vmatpush1.msra.mxu0 %v1167
        %1197 = vmatprep.subr.mxu0 0.0
        %1198 = vmatpush1.msra.mxu0 %v1168
        %1199 = vmatprep.subr.mxu0 0.0
        %1200 = vmatpush1.msra.mxu0 %v1169
        %1201 = vmatprep.subr.mxu0 0.0
        %1202 = vmatpush1.msra.mxu0 %v1170
        %1203 = vmatprep.subr.mxu0 0.0
        %1204 = vmatpush1.msra.mxu0 %v1171
        %1205 = vmatprep.subr.mxu0 0.0
        %1206 = vmatpush1.msra.mxu0 %v1172
        %1207 = vmatprep.subr.mxu0 0.0
        %1208 = vmatpush1.msra.mxu0 %v1173
        %1209 = vmatprep.subr.mxu0 0.0
        %1210 = vmatpush1.msra.mxu0 %v1174
        %1211 = vmatprep.subr.mxu0 0.0
        %1212 = vmatpush1.msra.mxu0 %v1175
        %1213 = vmatprep.subr.mxu0 0.0
        %1214 = vmatpush1.msra.mxu0 0.0
        %1215 = vmatprep.subr.mxu0 0.0
        %1216 = vmatpush1.msra.mxu0 0.0
        %1217 = vmatprep.subr.mxu0 0.0
        %1218 = vmatpush1.msra.mxu0 0.0
        %1219 = vmatprep.subr.mxu0 0.0
        %1220 = vmatpush1.msra.mxu0 0.0
        %1221 = vmatprep.subr.mxu0 0.0
        %1222 = vmatpush1.msra.mxu0 0.0
        %1223 = vmatprep.subr.mxu0 0.0
        %1224 = vmatpush1.msra.mxu0 0.0
        %1225 = vmatprep.subr.mxu0 0.0
        %1226 = vmatpush1.msra.mxu0 0.0
        %1227 = vmatprep.subr.mxu0 0.0
        %1228 = vmatpush1.msra.mxu0 0.0
        %1229 = vmatprep.subr.mxu0 0.0
        %1230 = vmatpush1.msra.mxu0 0.0
        %1231 = vmatprep.subr.mxu0 0.0
        %1232 = vmatpush1.msra.mxu0 0.0
        %1233 = vmatprep.subr.mxu0 0.0
        %1234 = vmatpush1.msra.mxu0 0.0
        %1235 = vmatprep.subr.mxu0 0.0
        %1236 = vmatpush1.msra.mxu0 0.0
        %1237 = vmatprep.subr.mxu0 0.0
        %1238 = vmatpush1.msra.mxu0 0.0
        %1239 = vmatprep.subr.mxu0 0.0
        %1240 = vmatpush1.msra.mxu0 0.0
        %1241 = vmatprep.subr.mxu0 0.0
        %1242 = vmatpush1.msra.mxu0 0.0
        %1243 = vmatprep.subr.mxu0 0.0
        %1244 = vmatpush1.msra.mxu0 0.0
        %1245 = vmatprep.mubr.f32.mxu0 0.0
        %1246 = vmatmul.mubr.f32.gmra.mrb[0].mxu0 %v1177
        %v1247 = vpop.f32.mrb[0].mxu0
        %v1248 = vadd.f32 0.0, %v1247
        %v1249 = vpop.f32.mrb[0].mxu0
        %1250 = vmatprep.mubr.f32.mxu0 0.0
        %1251 = vmatmul.mubr.f32.gmra.mrb[0].mxu0 %v1178
        %v1252 = vpop.f32.mrb[0].mxu0
        %v1253 = vadd.f32 0.0, %v1252
        %v1254 = vpop.f32.mrb[0].mxu0
        %1255 = vdwg.mxu0
        %v1258 = vcombine.high %v1248, %v1248
        %v1259 = vcombine.high %v1253, %v1253
        %v1262 = vadd.f32 %v1155, %v1248
        %v1263 = vadd.f32 %v1156, %v1258
        %v1264 = vadd.f32 %v1157, %v1253
        %v1265 = vadd.f32 %v1158, %v1259
        %s1266 = scalar_lea.vmem [#allocation5], 512
        %v1267 = vld [vmem:[%s1266] sm:$0xff]
        %v1268 = vld [vmem:[%s1266 + $0x8] sm:$0xff]
        %v1269 = vld [vmem:[%s1266 + $0x10] sm:$0xff]
        %v1270 = vld [vmem:[%s1266 + $0x18] sm:$0xff]
        %v1271 = vld [vmem:[%s1266 + $0x20] sm:$0xff]
        %v1272 = vld [vmem:[%s1266 + $0x28] sm:$0xff]
        %v1273 = vld [vmem:[%s1266 + $0x30] sm:$0xff]
        %v1274 = vld [vmem:[%s1266 + $0x38] sm:$0xff]
        %v1275 = vld [vmem:[%s1266 + $0x40] sm:$0xff]
        %v1276 = vld [vmem:[%s1266 + $0x48] sm:$0xff]
        %v1277 = vld [vmem:[%s1266 + $0x50] sm:$0xff]
        %v1278 = vld [vmem:[%s1266 + $0x58] sm:$0xff]
        %v1279 = vld [vmem:[%s1266 + $0x60] sm:$0xff]
        %v1280 = vld [vmem:[%s1266 + $0x68] sm:$0xff]
        %v1281 = vld [vmem:[%s1266 + $0x70] sm:$0xff]
        %v1282 = vld [vmem:[%s1266 + $0x78] sm:$0xff]
        %v1283 = vcombine.high %v808, %v808
        %v1284 = vrot.slane %v808, 5
        %v1285 = vrot.slane %v1284, 4
        %v1286 = vrot.slane %v1283, 5
        %v1287 = vsel %vm853, %v1285, %v1286
        %v1288 = vcombine.low %v861, %v865
        %v1289 = vcombine.low %v869, %v1287
        %1292 = vmatprep.subr.mxu0 0.0
        %1293 = vmatpush1.msra.mxu0 %v1267
        %1294 = vmatprep.subr.mxu0 0.0
        %1295 = vmatpush1.msra.mxu0 %v1268
        %1296 = vmatprep.subr.mxu0 0.0
        %1297 = vmatpush1.msra.mxu0 %v1269
        %1298 = vmatprep.subr.mxu0 0.0
        %1299 = vmatpush1.msra.mxu0 %v1270
        %1300 = vmatprep.subr.mxu0 0.0
        %1301 = vmatpush1.msra.mxu0 %v1271
        %1302 = vmatprep.subr.mxu0 0.0
        %1303 = vmatpush1.msra.mxu0 %v1272
        %1304 = vmatprep.subr.mxu0 0.0
        %1305 = vmatpush1.msra.mxu0 %v1273
        %1306 = vmatprep.subr.mxu0 0.0
        %1307 = vmatpush1.msra.mxu0 %v1274
        %1308 = vmatprep.subr.mxu0 0.0
        %1309 = vmatpush1.msra.mxu0 %v1275
        %1310 = vmatprep.subr.mxu0 0.0
        %1311 = vmatpush1.msra.mxu0 %v1276
        %1312 = vmatprep.subr.mxu0 0.0
        %1313 = vmatpush1.msra.mxu0 %v1277
        %1314 = vmatprep.subr.mxu0 0.0
        %1315 = vmatpush1.msra.mxu0 %v1278
        %1316 = vmatprep.subr.mxu0 0.0
        %1317 = vmatpush1.msra.mxu0 %v1279
        %1318 = vmatprep.subr.mxu0 0.0
        %1319 = vmatpush1.msra.mxu0 %v1280
        %1320 = vmatprep.subr.mxu0 0.0
        %1321 = vmatpush1.msra.mxu0 %v1281
        %1322 = vmatprep.subr.mxu0 0.0
        %1323 = vmatpush1.msra.mxu0 %v1282
        %1324 = vmatprep.subr.mxu0 0.0
        %1325 = vmatpush1.msra.mxu0 0.0
        %1326 = vmatprep.subr.mxu0 0.0
        %1327 = vmatpush1.msra.mxu0 0.0
        %1328 = vmatprep.subr.mxu0 0.0
        %1329 = vmatpush1.msra.mxu0 0.0
        %1330 = vmatprep.subr.mxu0 0.0
        %1331 = vmatpush1.msra.mxu0 0.0
        %1332 = vmatprep.subr.mxu0 0.0
        %1333 = vmatpush1.msra.mxu0 0.0
        %1334 = vmatprep.subr.mxu0 0.0
        %1335 = vmatpush1.msra.mxu0 0.0
        %1336 = vmatprep.subr.mxu0 0.0
        %1337 = vmatpush1.msra.mxu0 0.0
        %1338 = vmatprep.subr.mxu0 0.0
        %1339 = vmatpush1.msra.mxu0 0.0
        %1340 = vmatprep.subr.mxu0 0.0
        %1341 = vmatpush1.msra.mxu0 0.0
        %1342 = vmatprep.subr.mxu0 0.0
        %1343 = vmatpush1.msra.mxu0 0.0
        %1344 = vmatprep.subr.mxu0 0.0
        %1345 = vmatpush1.msra.mxu0 0.0
        %1346 = vmatprep.subr.mxu0 0.0
        %1347 = vmatpush1.msra.mxu0 0.0
        %1348 = vmatprep.subr.mxu0 0.0
        %1349 = vmatpush1.msra.mxu0 0.0
        %1350 = vmatprep.subr.mxu0 0.0
        %1351 = vmatpush1.msra.mxu0 0.0
        %1352 = vmatprep.subr.mxu0 0.0
        %1353 = vmatpush1.msra.mxu0 0.0
        %1354 = vmatprep.subr.mxu0 0.0
        %1355 = vmatpush1.msra.mxu0 0.0
        %1356 = vmatprep.mubr.f32.mxu0 0.0
        %1357 = vmatmul.mubr.f32.gmra.mrb[0].mxu0 %v1288
        %v1358 = vpop.f32.mrb[0].mxu0
        %v1359 = vadd.f32 0.0, %v1358
        %v1360 = vpop.f32.mrb[0].mxu0
        %1361 = vmatprep.mubr.f32.mxu0 0.0
        %1362 = vmatmul.mubr.f32.gmra.mrb[0].mxu0 %v1289
        %v1363 = vpop.f32.mrb[0].mxu0
        %v1364 = vadd.f32 0.0, %v1363
        %v1365 = vpop.f32.mrb[0].mxu0
        %1366 = vdwg.mxu0
        %v1369 = vcombine.high %v1359, %v1359
        %v1370 = vcombine.high %v1364, %v1364
        %v1373 = vadd.f32 %v1262, %v1359
        %v1374 = vadd.f32 %v1263, %v1369
        %v1375 = vadd.f32 %v1264, %v1364
        %v1376 = vadd.f32 %v1265, %v1370
        %s1377 = scalar_lea.vmem [#allocation5], 640
        %v1378 = vld [vmem:[%s1377] sm:$0xff]
        %v1379 = vld [vmem:[%s1377 + $0x8] sm:$0xff]
        %v1380 = vld [vmem:[%s1377 + $0x10] sm:$0xff]
        %v1381 = vld [vmem:[%s1377 + $0x18] sm:$0xff]
        %v1382 = vld [vmem:[%s1377 + $0x20] sm:$0xff]
        %v1383 = vld [vmem:[%s1377 + $0x28] sm:$0xff]
        %v1384 = vld [vmem:[%s1377 + $0x30] sm:$0xff]
        %v1385 = vld [vmem:[%s1377 + $0x38] sm:$0xff]
        %v1386 = vld [vmem:[%s1377 + $0x40] sm:$0xff]
        %v1387 = vld [vmem:[%s1377 + $0x48] sm:$0xff]
        %v1388 = vld [vmem:[%s1377 + $0x50] sm:$0xff]
        %v1389 = vld [vmem:[%s1377 + $0x58] sm:$0xff]
        %v1390 = vld [vmem:[%s1377 + $0x60] sm:$0xff]
        %v1391 = vld [vmem:[%s1377 + $0x68] sm:$0xff]
        %v1392 = vld [vmem:[%s1377 + $0x70] sm:$0xff]
        %v1393 = vld [vmem:[%s1377 + $0x78] sm:$0xff]
        %v1394 = vrot.slane %v808, 6
        %v1395 = vrot.slane %v1394, 4
        %v1396 = vrot.slane %v1283, 6
        %v1397 = vsel %vm1053, %v1395, %v1396
        %v1398 = vcombine.low %v1061, %v1065
        %v1399 = vcombine.low %v1069, %v1397
        %1402 = vmatprep.subr.mxu0 0.0
        %1403 = vmatpush1.msra.mxu0 %v1378
        %1404 = vmatprep.subr.mxu0 0.0
        %1405 = vmatpush1.msra.mxu0 %v1379
        %1406 = vmatprep.subr.mxu0 0.0
        %1407 = vmatpush1.msra.mxu0 %v1380
        %1408 = vmatprep.subr.mxu0 0.0
        %1409 = vmatpush1.msra.mxu0 %v1381
        %1410 = vmatprep.subr.mxu0 0.0
        %1411 = vmatpush1.msra.mxu0 %v1382
        %1412 = vmatprep.subr.mxu0 0.0
        %1413 = vmatpush1.msra.mxu0 %v1383
        %1414 = vmatprep.subr.mxu0 0.0
        %1415 = vmatpush1.msra.mxu0 %v1384
        %1416 = vmatprep.subr.mxu0 0.0
        %1417 = vmatpush1.msra.mxu0 %v1385
        %1418 = vmatprep.subr.mxu0 0.0
        %1419 = vmatpush1.msra.mxu0 %v1386
        %1420 = vmatprep.subr.mxu0 0.0
        %1421 = vmatpush1.msra.mxu0 %v1387
        %1422 = vmatprep.subr.mxu0 0.0
        %1423 = vmatpush1.msra.mxu0 %v1388
        %1424 = vmatprep.subr.mxu0 0.0
        %1425 = vmatpush1.msra.mxu0 %v1389
        %1426 = vmatprep.subr.mxu0 0.0
        %1427 = vmatpush1.msra.mxu0 %v1390
        %1428 = vmatprep.subr.mxu0 0.0
        %1429 = vmatpush1.msra.mxu0 %v1391
        %1430 = vmatprep.subr.mxu0 0.0
        %1431 = vmatpush1.msra.mxu0 %v1392
        %1432 = vmatprep.subr.mxu0 0.0
        %1433 = vmatpush1.msra.mxu0 %v1393
        %1434 = vmatprep.subr.mxu0 0.0
        %1435 = vmatpush1.msra.mxu0 0.0
        %1436 = vmatprep.subr.mxu0 0.0
        %1437 = vmatpush1.msra.mxu0 0.0
        %1438 = vmatprep.subr.mxu0 0.0
        %1439 = vmatpush1.msra.mxu0 0.0
        %1440 = vmatprep.subr.mxu0 0.0
        %1441 = vmatpush1.msra.mxu0 0.0
        %1442 = vmatprep.subr.mxu0 0.0
        %1443 = vmatpush1.msra.mxu0 0.0
        %1444 = vmatprep.subr.mxu0 0.0
        %1445 = vmatpush1.msra.mxu0 0.0
        %1446 = vmatprep.subr.mxu0 0.0
        %1447 = vmatpush1.msra.mxu0 0.0
        %1448 = vmatprep.subr.mxu0 0.0
        %1449 = vmatpush1.msra.mxu0 0.0
        %1450 = vmatprep.subr.mxu0 0.0
        %1451 = vmatpush1.msra.mxu0 0.0
        %1452 = vmatprep.subr.mxu0 0.0
        %1453 = vmatpush1.msra.mxu0 0.0
        %1454 = vmatprep.subr.mxu0 0.0
        %1455 = vmatpush1.msra.mxu0 0.0
        %1456 = vmatprep.subr.mxu0 0.0
        %1457 = vmatpush1.msra.mxu0 0.0
        %1458 = vmatprep.subr.mxu0 0.0
        %1459 = vmatpush1.msra.mxu0 0.0
        %1460 = vmatprep.subr.mxu0 0.0
        %1461 = vmatpush1.msra.mxu0 0.0
        %1462 = vmatprep.subr.mxu0 0.0
        %1463 = vmatpush1.msra.mxu0 0.0
        %1464 = vmatprep.subr.mxu0 0.0
        %1465 = vmatpush1.msra.mxu0 0.0
        %1466 = vmatprep.mubr.f32.mxu0 0.0
        %1467 = vmatmul.mubr.f32.gmra.mrb[0].mxu0 %v1398
        %v1468 = vpop.f32.mrb[0].mxu0
        %v1469 = vadd.f32 0.0, %v1468
        %v1470 = vpop.f32.mrb[0].mxu0
        %1471 = vmatprep.mubr.f32.mxu0 0.0
        %1472 = vmatmul.mubr.f32.gmra.mrb[0].mxu0 %v1399
        %v1473 = vpop.f32.mrb[0].mxu0
        %v1474 = vadd.f32 0.0, %v1473
        %v1475 = vpop.f32.mrb[0].mxu0
        %1476 = vdwg.mxu0
        %v1479 = vcombine.high %v1469, %v1469
        %v1480 = vcombine.high %v1474, %v1474
        %v1483 = vadd.f32 %v1373, %v1469
        %v1484 = vadd.f32 %v1374, %v1479
        %v1485 = vadd.f32 %v1375, %v1474
        %v1486 = vadd.f32 %v1376, %v1480
        %s1487 = scalar_lea.vmem [#allocation5], 768
        %v1488 = vld [vmem:[%s1487] sm:$0xff]
        %v1489 = vld [vmem:[%s1487 + $0x8] sm:$0xff]
        %v1490 = vld [vmem:[%s1487 + $0x10] sm:$0xff]
        %v1491 = vld [vmem:[%s1487 + $0x18] sm:$0xff]
        %v1492 = vld [vmem:[%s1487 + $0x20] sm:$0xff]
        %v1493 = vld [vmem:[%s1487 + $0x28] sm:$0xff]
        %v1494 = vld [vmem:[%s1487 + $0x30] sm:$0xff]
        %v1495 = vld [vmem:[%s1487 + $0x38] sm:$0xff]
        %v1496 = vld [vmem:[%s1487 + $0x40] sm:$0xff]
        %v1497 = vld [vmem:[%s1487 + $0x48] sm:$0xff]
        %v1498 = vld [vmem:[%s1487 + $0x50] sm:$0xff]
        %v1499 = vld [vmem:[%s1487 + $0x58] sm:$0xff]
        %v1500 = vld [vmem:[%s1487 + $0x60] sm:$0xff]
        %v1501 = vld [vmem:[%s1487 + $0x68] sm:$0xff]
        %v1502 = vld [vmem:[%s1487 + $0x70] sm:$0xff]
        %v1503 = vld [vmem:[%s1487 + $0x78] sm:$0xff]
        %v1505 = vcombine.low %v808, %v809
        %1507 = vmatprep.subr.mxu0 0.0
        %1508 = vmatpush1.msra.mxu0 %v1488
        %1509 = vmatprep.subr.mxu0 0.0
        %1510 = vmatpush1.msra.mxu0 %v1489
        %1511 = vmatprep.subr.mxu0 0.0
        %1512 = vmatpush1.msra.mxu0 %v1490
        %1513 = vmatprep.subr.mxu0 0.0
        %1514 = vmatpush1.msra.mxu0 %v1491
        %1515 = vmatprep.subr.mxu0 0.0
        %1516 = vmatpush1.msra.mxu0 %v1492
        %1517 = vmatprep.subr.mxu0 0.0
        %1518 = vmatpush1.msra.mxu0 %v1493
        %1519 = vmatprep.subr.mxu0 0.0
        %1520 = vmatpush1.msra.mxu0 %v1494
        %1521 = vmatprep.subr.mxu0 0.0
        %1522 = vmatpush1.msra.mxu0 %v1495
        %1523 = vmatprep.subr.mxu0 0.0
        %1524 = vmatpush1.msra.mxu0 %v1496
        %1525 = vmatprep.subr.mxu0 0.0
        %1526 = vmatpush1.msra.mxu0 %v1497
        %1527 = vmatprep.subr.mxu0 0.0
        %1528 = vmatpush1.msra.mxu0 %v1498
        %1529 = vmatprep.subr.mxu0 0.0
        %1530 = vmatpush1.msra.mxu0 %v1499
        %1531 = vmatprep.subr.mxu0 0.0
        %1532 = vmatpush1.msra.mxu0 %v1500
        %1533 = vmatprep.subr.mxu0 0.0
        %1534 = vmatpush1.msra.mxu0 %v1501
        %1535 = vmatprep.subr.mxu0 0.0
        %1536 = vmatpush1.msra.mxu0 %v1502
        %1537 = vmatprep.subr.mxu0 0.0
        %1538 = vmatpush1.msra.mxu0 %v1503
        %1539 = vmatprep.subr.mxu0 0.0
        %1540 = vmatpush1.msra.mxu0 0.0
        %1541 = vmatprep.subr.mxu0 0.0
        %1542 = vmatpush1.msra.mxu0 0.0
        %1543 = vmatprep.subr.mxu0 0.0
        %1544 = vmatpush1.msra.mxu0 0.0
        %1545 = vmatprep.subr.mxu0 0.0
        %1546 = vmatpush1.msra.mxu0 0.0
        %1547 = vmatprep.subr.mxu0 0.0
        %1548 = vmatpush1.msra.mxu0 0.0
        %1549 = vmatprep.subr.mxu0 0.0
        %1550 = vmatpush1.msra.mxu0 0.0
        %1551 = vmatprep.subr.mxu0 0.0
        %1552 = vmatpush1.msra.mxu0 0.0
        %1553 = vmatprep.subr.mxu0 0.0
        %1554 = vmatpush1.msra.mxu0 0.0
        %1555 = vmatprep.subr.mxu0 0.0
        %1556 = vmatpush1.msra.mxu0 0.0
        %1557 = vmatprep.subr.mxu0 0.0
        %1558 = vmatpush1.msra.mxu0 0.0
        %1559 = vmatprep.subr.mxu0 0.0
        %1560 = vmatpush1.msra.mxu0 0.0
        %1561 = vmatprep.subr.mxu0 0.0
        %1562 = vmatpush1.msra.mxu0 0.0
        %1563 = vmatprep.subr.mxu0 0.0
        %1564 = vmatpush1.msra.mxu0 0.0
        %1565 = vmatprep.subr.mxu0 0.0
        %1566 = vmatpush1.msra.mxu0 0.0
        %1567 = vmatprep.subr.mxu0 0.0
        %1568 = vmatpush1.msra.mxu0 0.0
        %1569 = vmatprep.subr.mxu0 0.0
        %1570 = vmatpush1.msra.mxu0 0.0
        %1571 = vmatprep.mubr.f32.mxu0 0.0
        %1572 = vmatmul.mubr.f32.gmra.mrb[0].mxu0 %v950
        %v1573 = vpop.f32.mrb[0].mxu0
        %v1574 = vadd.f32 0.0, %v1573
        %v1575 = vpop.f32.mrb[0].mxu0
        %1576 = vmatprep.mubr.f32.mxu0 0.0
        %1577 = vmatmul.mubr.f32.gmra.mrb[0].mxu0 %v1505
        %v1578 = vpop.f32.mrb[0].mxu0
        %v1579 = vadd.f32 0.0, %v1578
        %v1580 = vpop.f32.mrb[0].mxu0
        %1581 = vdwg.mxu0
        %v1584 = vcombine.high %v1574, %v1574
        %v1585 = vcombine.high %v1579, %v1579
        %v1588 = vadd.f32 %v1483, %v1574
        %v1589 = vadd.f32 %v1484, %v1584
        %v1590 = vadd.f32 %v1485, %v1579
        %v1591 = vadd.f32 %v1486, %v1585
        %s1592 = scalar_lea.vmem [#allocation5], 896
        %v1593 = vld [vmem:[%s1592] sm:$0xff]
        %v1594 = vld [vmem:[%s1592 + $0x8] sm:$0xff]
        %v1595 = vld [vmem:[%s1592 + $0x10] sm:$0xff]
        %v1596 = vld [vmem:[%s1592 + $0x18] sm:$0xff]
        %v1597 = vld [vmem:[%s1592 + $0x20] sm:$0xff]
        %v1598 = vld [vmem:[%s1592 + $0x28] sm:$0xff]
        %v1599 = vld [vmem:[%s1592 + $0x30] sm:$0xff]
        %v1600 = vld [vmem:[%s1592 + $0x38] sm:$0xff]
        %v1601 = vld [vmem:[%s1592 + $0x40] sm:$0xff]
        %v1602 = vld [vmem:[%s1592 + $0x48] sm:$0xff]
        %v1603 = vld [vmem:[%s1592 + $0x50] sm:$0xff]
        %v1604 = vld [vmem:[%s1592 + $0x58] sm:$0xff]
        %v1605 = vld [vmem:[%s1592 + $0x60] sm:$0xff]
        %v1606 = vld [vmem:[%s1592 + $0x68] sm:$0xff]
        %v1607 = vld [vmem:[%s1592 + $0x70] sm:$0xff]
        %v1608 = vld [vmem:[%s1592 + $0x78] sm:$0xff]
        %v1609 = vcombine.high %v809, %v809
        %v1610 = vrot.slane %v809, 5
        %v1611 = vrot.slane %v1610, 4
        %v1612 = vrot.slane %v1609, 5
        %v1613 = vsel %vm853, %v1611, %v1612
        %v1614 = vcombine.low %v1287, %v1613
        %1616 = vmatprep.subr.mxu0 0.0
        %1617 = vmatpush1.msra.mxu0 %v1593
        %1618 = vmatprep.subr.mxu0 0.0
        %1619 = vmatpush1.msra.mxu0 %v1594
        %1620 = vmatprep.subr.mxu0 0.0
        %1621 = vmatpush1.msra.mxu0 %v1595
        %1622 = vmatprep.subr.mxu0 0.0
        %1623 = vmatpush1.msra.mxu0 %v1596
        %1624 = vmatprep.subr.mxu0 0.0
        %1625 = vmatpush1.msra.mxu0 %v1597
        %1626 = vmatprep.subr.mxu0 0.0
        %1627 = vmatpush1.msra.mxu0 %v1598
        %1628 = vmatprep.subr.mxu0 0.0
        %1629 = vmatpush1.msra.mxu0 %v1599
        %1630 = vmatprep.subr.mxu0 0.0
        %1631 = vmatpush1.msra.mxu0 %v1600
        %1632 = vmatprep.subr.mxu0 0.0
        %1633 = vmatpush1.msra.mxu0 %v1601
        %1634 = vmatprep.subr.mxu0 0.0
        %1635 = vmatpush1.msra.mxu0 %v1602
        %1636 = vmatprep.subr.mxu0 0.0
        %1637 = vmatpush1.msra.mxu0 %v1603
        %1638 = vmatprep.subr.mxu0 0.0
        %1639 = vmatpush1.msra.mxu0 %v1604
        %1640 = vmatprep.subr.mxu0 0.0
        %1641 = vmatpush1.msra.mxu0 %v1605
        %1642 = vmatprep.subr.mxu0 0.0
        %1643 = vmatpush1.msra.mxu0 %v1606
        %1644 = vmatprep.subr.mxu0 0.0
        %1645 = vmatpush1.msra.mxu0 %v1607
        %1646 = vmatprep.subr.mxu0 0.0
        %1647 = vmatpush1.msra.mxu0 %v1608
        %1648 = vmatprep.subr.mxu0 0.0
        %1649 = vmatpush1.msra.mxu0 0.0
        %1650 = vmatprep.subr.mxu0 0.0
        %1651 = vmatpush1.msra.mxu0 0.0
        %1652 = vmatprep.subr.mxu0 0.0
        %1653 = vmatpush1.msra.mxu0 0.0
        %1654 = vmatprep.subr.mxu0 0.0
        %1655 = vmatpush1.msra.mxu0 0.0
        %1656 = vmatprep.subr.mxu0 0.0
        %1657 = vmatpush1.msra.mxu0 0.0
        %1658 = vmatprep.subr.mxu0 0.0
        %1659 = vmatpush1.msra.mxu0 0.0
        %1660 = vmatprep.subr.mxu0 0.0
        %1661 = vmatpush1.msra.mxu0 0.0
        %1662 = vmatprep.subr.mxu0 0.0
        %1663 = vmatpush1.msra.mxu0 0.0
        %1664 = vmatprep.subr.mxu0 0.0
        %1665 = vmatpush1.msra.mxu0 0.0
        %1666 = vmatprep.subr.mxu0 0.0
        %1667 = vmatpush1.msra.mxu0 0.0
        %1668 = vmatprep.subr.mxu0 0.0
        %1669 = vmatpush1.msra.mxu0 0.0
        %1670 = vmatprep.subr.mxu0 0.0
        %1671 = vmatpush1.msra.mxu0 0.0
        %1672 = vmatprep.subr.mxu0 0.0
        %1673 = vmatpush1.msra.mxu0 0.0
        %1674 = vmatprep.subr.mxu0 0.0
        %1675 = vmatpush1.msra.mxu0 0.0
        %1676 = vmatprep.subr.mxu0 0.0
        %1677 = vmatpush1.msra.mxu0 0.0
        %1678 = vmatprep.subr.mxu0 0.0
        %1679 = vmatpush1.msra.mxu0 0.0
        %1680 = vmatprep.mubr.f32.mxu0 0.0
        %1681 = vmatmul.mubr.f32.gmra.mrb[0].mxu0 %v871
        %v1682 = vpop.f32.mrb[0].mxu0
        %v1683 = vadd.f32 0.0, %v1682
        %v1684 = vpop.f32.mrb[0].mxu0
        %1685 = vmatprep.mubr.f32.mxu0 0.0
        %1686 = vmatmul.mubr.f32.gmra.mrb[0].mxu0 %v1614
        %v1687 = vpop.f32.mrb[0].mxu0
        %v1688 = vadd.f32 0.0, %v1687
        %v1689 = vpop.f32.mrb[0].mxu0
        %1690 = vdwg.mxu0
        %v1693 = vcombine.high %v1683, %v1683
        %v1694 = vcombine.high %v1688, %v1688
        %v1697 = vadd.f32 %v1588, %v1683
        %v1698 = vadd.f32 %v1589, %v1693
        %v1699 = vadd.f32 %v1590, %v1688
        %v1700 = vadd.f32 %v1591, %v1694
        %s1701 = scalar_lea.vmem [#allocation5], 1024
        %v1702 = vld [vmem:[%s1701] sm:$0xff]
        %v1703 = vld [vmem:[%s1701 + $0x8] sm:$0xff]
        %v1704 = vld [vmem:[%s1701 + $0x10] sm:$0xff]
        %v1705 = vld [vmem:[%s1701 + $0x18] sm:$0xff]
        %v1706 = vld [vmem:[%s1701 + $0x20] sm:$0xff]
        %v1707 = vld [vmem:[%s1701 + $0x28] sm:$0xff]
        %v1708 = vld [vmem:[%s1701 + $0x30] sm:$0xff]
        %v1709 = vld [vmem:[%s1701 + $0x38] sm:$0xff]
        %v1710 = vld [vmem:[%s1701 + $0x40] sm:$0xff]
        %v1711 = vld [vmem:[%s1701 + $0x48] sm:$0xff]
        %v1712 = vld [vmem:[%s1701 + $0x50] sm:$0xff]
        %v1713 = vld [vmem:[%s1701 + $0x58] sm:$0xff]
        %v1714 = vld [vmem:[%s1701 + $0x60] sm:$0xff]
        %v1715 = vld [vmem:[%s1701 + $0x68] sm:$0xff]
        %v1716 = vld [vmem:[%s1701 + $0x70] sm:$0xff]
        %v1717 = vld [vmem:[%s1701 + $0x78] sm:$0xff]
        %v1718 = vrot.slane %v809, 6
        %v1719 = vrot.slane %v1718, 4
        %v1720 = vrot.slane %v1609, 6
        %v1721 = vsel %vm1053, %v1719, %v1720
        %v1722 = vcombine.low %v1397, %v1721
        %1724 = vmatprep.subr.mxu0 0.0
        %1725 = vmatpush1.msra.mxu0 %v1702
        %1726 = vmatprep.subr.mxu0 0.0
        %1727 = vmatpush1.msra.mxu0 %v1703
        %1728 = vmatprep.subr.mxu0 0.0
        %1729 = vmatpush1.msra.mxu0 %v1704
        %1730 = vmatprep.subr.mxu0 0.0
        %1731 = vmatpush1.msra.mxu0 %v1705
        %1732 = vmatprep.subr.mxu0 0.0
        %1733 = vmatpush1.msra.mxu0 %v1706
        %1734 = vmatprep.subr.mxu0 0.0
        %1735 = vmatpush1.msra.mxu0 %v1707
        %1736 = vmatprep.subr.mxu0 0.0
        %1737 = vmatpush1.msra.mxu0 %v1708
        %1738 = vmatprep.subr.mxu0 0.0
        %1739 = vmatpush1.msra.mxu0 %v1709
        %1740 = vmatprep.subr.mxu0 0.0
        %1741 = vmatpush1.msra.mxu0 %v1710
        %1742 = vmatprep.subr.mxu0 0.0
        %1743 = vmatpush1.msra.mxu0 %v1711
        %1744 = vmatprep.subr.mxu0 0.0
        %1745 = vmatpush1.msra.mxu0 %v1712
        %1746 = vmatprep.subr.mxu0 0.0
        %1747 = vmatpush1.msra.mxu0 %v1713
        %1748 = vmatprep.subr.mxu0 0.0
        %1749 = vmatpush1.msra.mxu0 %v1714
        %1750 = vmatprep.subr.mxu0 0.0
        %1751 = vmatpush1.msra.mxu0 %v1715
        %1752 = vmatprep.subr.mxu0 0.0
        %1753 = vmatpush1.msra.mxu0 %v1716
        %1754 = vmatprep.subr.mxu0 0.0
        %1755 = vmatpush1.msra.mxu0 %v1717
        %1756 = vmatprep.subr.mxu0 0.0
        %1757 = vmatpush1.msra.mxu0 0.0
        %1758 = vmatprep.subr.mxu0 0.0
        %1759 = vmatpush1.msra.mxu0 0.0
        %1760 = vmatprep.subr.mxu0 0.0
        %1761 = vmatpush1.msra.mxu0 0.0
        %1762 = vmatprep.subr.mxu0 0.0
        %1763 = vmatpush1.msra.mxu0 0.0
        %1764 = vmatprep.subr.mxu0 0.0
        %1765 = vmatpush1.msra.mxu0 0.0
        %1766 = vmatprep.subr.mxu0 0.0
        %1767 = vmatpush1.msra.mxu0 0.0
        %1768 = vmatprep.subr.mxu0 0.0
        %1769 = vmatpush1.msra.mxu0 0.0
        %1770 = vmatprep.subr.mxu0 0.0
        %1771 = vmatpush1.msra.mxu0 0.0
        %1772 = vmatprep.subr.mxu0 0.0
        %1773 = vmatpush1.msra.mxu0 0.0
        %1774 = vmatprep.subr.mxu0 0.0
        %1775 = vmatpush1.msra.mxu0 0.0
        %1776 = vmatprep.subr.mxu0 0.0
        %1777 = vmatpush1.msra.mxu0 0.0
        %1778 = vmatprep.subr.mxu0 0.0
        %1779 = vmatpush1.msra.mxu0 0.0
        %1780 = vmatprep.subr.mxu0 0.0
        %1781 = vmatpush1.msra.mxu0 0.0
        %1782 = vmatprep.subr.mxu0 0.0
        %1783 = vmatpush1.msra.mxu0 0.0
        %1784 = vmatprep.subr.mxu0 0.0
        %1785 = vmatpush1.msra.mxu0 0.0
        %1786 = vmatprep.subr.mxu0 0.0
        %1787 = vmatpush1.msra.mxu0 0.0
        %1788 = vmatprep.mubr.f32.mxu0 0.0
        %1789 = vmatmul.mubr.f32.gmra.mrb[0].mxu0 %v1071
        %v1790 = vpop.f32.mrb[0].mxu0
        %v1791 = vadd.f32 0.0, %v1790
        %v1792 = vpop.f32.mrb[0].mxu0
        %1793 = vmatprep.mubr.f32.mxu0 0.0
        %1794 = vmatmul.mubr.f32.gmra.mrb[0].mxu0 %v1722
        %v1795 = vpop.f32.mrb[0].mxu0
        %v1796 = vadd.f32 0.0, %v1795
        %v1797 = vpop.f32.mrb[0].mxu0
        %1798 = vdwg.mxu0
        %v1801 = vcombine.high %v1791, %v1791
        %v1802 = vcombine.high %v1796, %v1796
        %v1805 = vadd.f32 %v1697, %v1791
        %v1806 = vadd.f32 %v1698, %v1801
        %v1807 = vadd.f32 %v1699, %v1796
        %v1808 = vadd.f32 %v1700, %v1802
        %v1810 = vlaneseq
        %v1811 = vshrl.u32 %v1810, 7
        %v1812 = vsub.s32 0, %v1811
        %v1813 = vrot.slane %v524, %v1812
        %v1815 = vadd.f32 %v1805, %v1813
        %v1816 = vadd.f32 %v1806, %v1813
        %v1817 = vadd.f32 %v1807, %v1813
        %v1818 = vadd.f32 %v1808, %v1813
        %1819 = vst [vmem:[%s453] sm:$0xf] %v1815
        %1820 = vst [vmem:[%s453 + $0x4] sm:$0xf] %v1816
        %1821 = vst [vmem:[%s453 + $0x8] sm:$0xf] %v1817
        %1822 = vst [vmem:[%s453 + $0xc] sm:$0xf] %v1818
        %s1823 = smul.u32 4, %s30
        %p1824 = scmp.lt.s32.totalorder %s29, 1
        %s1825 = scalar_select %p1824, %s29, 1
        %p1826 = scmp.lt.s32.totalorder %s1823, 3
        %s1827 = scalar_select %p1826, %s1823, 3
        %s1828 = smul.addr %s1825, 4
        %s1829 = sadd.s32 %s1827, %s1828
        %s1830 = smul.addr %s1829, 4
        %s1831 = scalar_lea.vmem %s7, %s1830
        %s1832 = sand.u32 %s259, 1
        %s1833 = scalar_lea.sflag [#allocation4], %s1832
        %s1834 = sand.u32 %s259, 1
        %s1835 = smul.addr %s1834, 16
        %s1836 = scalar_lea.vmem [#allocation7], %s1835
        // Predicated region
        $region57: #{decoder_forward.3} parent=47 // pred_check
          %p1837 = pneg %p241
        $region58: #{decoder_forward.3} parent=47 // pred_check_branch
          %1839 = sbr.rel (%p1837) target = $region60
        $region59: #{decoder_forward.3} parent=47 // pred_region
          %s1840 = smul.u32 4, %s30
        $region60: #{decoder_forward.3} parent=47 // pred_fallthru
          _
        // Predicated region
        $region61: #{decoder_forward.3} parent=47 // pred_check
          %p1841 = pneg %p269
        $region62: #{decoder_forward.3} parent=47 // pred_check_branch
          %1843 = sbr.rel (%p1841) target = $region64
        $region63: #{decoder_forward.3} parent=47 // pred_region
          %s1844 = smul.u32 4, %s30
          %s1846 = ssub.s32 256, 256
          %1847 = vsyncadd %s1833, %s1846
          %s1848 = smul.addr %s29, 4
          %s1849 = sadd.s32 %s1844, %s1848
          %s1850 = smul.addr %s1849, 64
          %s1851 = scalar_lea.hbm %s8, %s1850
          %s1852 = sshll.u32 %s1836, 4
          %s1853 = int_to_ptr.vmem [resolvable:$true] %s1852
          %1858 = dma.vmem_to_hbm [thread:$0]  %s1853, 256, %s1851, %s1833, 64, 64, 4
        $region64: #{decoder_forward.3} parent=47 // pred_fallthru
          _
      $region48: #{decoder_forward.3} parent=5 // pred_fallthru
        _
      %p1859 = scmp.le.s32.totalorder 2, %s20
      // Predicated region
      $region65: #{decoder_forward.3} parent=5 // pred_check
        %p1860 = pneg %p1859
      $region66: #{decoder_forward.3} parent=5 // pred_check_branch
        %1862 = sbr.rel (%p1860) target = $region68
      $region67: #{decoder_forward.3} parent=5 // pred_region
        %s1863 = ssub.s32 %s20, 2
        // Predicated region
        $region69: #{decoder_forward.3} parent=67 // pred_check
          %p1864 = pneg %p247
        $region70: #{decoder_forward.3} parent=67 // pred_check_branch
          %1866 = sbr.rel (%p1864) target = $region72
        $region71: #{decoder_forward.3} parent=67 // pred_region
          %s1867 = smul.u32 4, %s32
          %p1868 = scmp.lt.s32.totalorder %s31, 1
          %s1869 = scalar_select %p1868, %s31, 1
          %p1870 = scmp.lt.s32.totalorder %s1867, 3
          %s1871 = scalar_select %p1870, %s1867, 3
          %s1872 = smul.addr %s1869, 4
          %s1873 = sadd.s32 %s1871, %s1872
          %s1874 = smul.addr %s1873, 4
          %s1875 = scalar_lea.vmem %s7, %s1874
        $region72: #{decoder_forward.3} parent=67 // pred_fallthru
          _
        // Predicated region
        $region73: #{decoder_forward.3} parent=67 // pred_check
          %p1876 = pneg %p275
        $region74: #{decoder_forward.3} parent=67 // pred_check_branch
          %1878 = sbr.rel (%p1876) target = $region76
        $region75: #{decoder_forward.3} parent=67 // pred_region
          %s1879 = sand.u32 %s260, 1
          %s1880 = scalar_lea.sflag [#allocation4], %s1879
          %s1881 = sand.u32 %s260, 1
          %s1882 = smul.addr %s1881, 16
          %s1883 = scalar_lea.vmem [#allocation7], %s1882
          %1884 = dma.done %s1880, 256
        $region76: #{decoder_forward.3} parent=67 // pred_fallthru
          _
      $region68: #{decoder_forward.3} parent=5 // pred_fallthru
        _
    $region6: #{decoder_forward.3} parent=1 // loop_footer
      %s24 = sadd.s32 1, %s20
    $region7: #{decoder_forward.3} parent=1 // loop_footer_branch
      %19 = sbr.rel target = $region3
    $region8: #{decoder_forward.3} parent=1 // loop_exit
      _
    %1885 = vsyncpa [#allocation3], 1
    %s1886 = scalar_lea.sflag [#allocation3], 1
    %1887 = vsyncpa %s1886, 1
    %1888 = vsyncpa [#allocation6], 1
    %1889 = vsyncpa [#allocation4], 1
    %s1890 = scalar_lea.sflag [#allocation4], 1
    %1891 = vsyncpa %s1890, 1

// kernel: decoder_forward.4
$region0: #{decoder_forward.4}
  #allocation0 [shape = 'u32[]', space=smem, size = 0x4, offset = 0x4, fixed_abs, tag = 'smem constant byte address 0x4 - core index']
  #allocation1 [shape = 'u32[144,128]{1,0:T(1,128)}', space=vmem, size = 0x12000, scoped, tag = 'internal scratch']
  %s0 = inlined_call_operand.vmem [shape: f32[2,8,8,64], index: 0, kind: input, shape index: {}, may-alias: {0,1,2}]
  %s1 = inlined_call_operand.vmem [shape: f32[2,8,8,64], index: 1, kind: input, shape index: {}, may-alias: {0,1,2}]
  %s2 = inlined_call_operand.vmem [shape: f32[2,8,8,64], index: 2, kind: input, shape index: {}, may-alias: {0,1,2}]
  %s3 = inlined_call_operand.vmem [shape: f32[2,4,4,128], index: 3, kind: input, shape index: {}, may-alias: {3,4,5}]
  %s4 = inlined_call_operand.vmem [shape: f32[2,4,4,128], index: 4, kind: input, shape index: {}, may-alias: {3,4,5}]
  %s5 = inlined_call_operand.vmem [shape: f32[2,4,4,128], index: 5, kind: input, shape index: {}, may-alias: {3,4,5}]
  %s6 = inlined_call_operand.vmem [shape: f32[64,128], index: 6, kind: input, shape index: {}]
  %s7 = inlined_call_operand.vmem [shape: f32[1,128], index: 7, kind: input, shape index: {}]
  %s8 = inlined_call_operand.vmem [shape: f32[9,128,128], index: 8, kind: input, shape index: {}]
  %s9 = inlined_call_operand.vmem [shape: f32[1,128], index: 9, kind: input, shape index: {}]
  %s10 = inlined_call_operand.vmem [shape: f32[2,8,8,128], index: 10, kind: output, shape index: {0}]
  %s11 = inlined_call_operand.hbm [shape: f32[2,8,8,128], index: 11, kind: output, shape index: {1}]
  %12 = xla_tuple %s10, %s11
  %s13 = sld [smem:[#allocation0]]
  $region81: #{decoder_forward.4} parent=0
    _
  %s15 = ssub.s32 1, %s13
  %s16 = scalar_select 0, %s15, %s13
  $region1: #{decoder_forward.4} parent=0
    #allocation2 [shape = 'u8[65536]{0}', space=vmem, size = 0x10000, scoped, tag = 'output window, operand 1']
    #allocation3 [shape = 's32[2]{0}', space=sflag, size = 0x8, scoped, tag = 'scoped memory for decoder_forward.4']
    %17 = vsyncpa [#allocation3], 0
    %s18 = scalar_lea.sflag [#allocation3], 1
    %19 = vsyncpa %s18, 0
    loop: start=0, step=1, limit=4
    $region2: #{decoder_forward.4} parent=1 // loop_pre_header
      _
    $region3: #{decoder_forward.4} parent=1 // loop_header
      %s21 = sphi 0, %s25
      %p22 = scmp.ge.s32.totalorder %s21, 4
      %s28 = sphi 0, %s40
      %s29 = sphi 0, %s36
      %s30 = sphi 0, %s28
      %s31 = sphi 0, %s29
      %s32 = sphi 0, %s30
      %s33 = sphi 0, %s31
      %s45 = sphi 0, %s47
      %s48 = sphi 0, %s45
      %s49 = sphi 0, %s48
      %s65 = sphi 0, %s49
      %s81 = sphi 0, %s83
      %s84 = sphi 0, %s81
      %s85 = sphi 0, %s84
      %s101 = sphi 0, %s85
      %s117 = sphi 0, %s119
      %s120 = sphi 0, %s117
      %s121 = sphi 0, %s120
      %s137 = sphi 0, %s121
      %s145 = sphi 0, %s147
      %s148 = sphi 0, %s145
      %s149 = sphi 0, %s148
      %s165 = sphi 0, %s149
      %s181 = sphi 0, %s183
      %s184 = sphi 0, %s181
      %s185 = sphi 0, %s184
      %s201 = sphi 0, %s185
      %s217 = sphi 0, %s219
      %s220 = sphi 0, %s217
      %s221 = sphi 0, %s220
      %s237 = sphi 0, %s221
      %s241 = sphi 0, %s241
      %s243 = sphi 0, %s241
      %s244 = sphi 0, %s243
      %s258 = sphi 0, %s244
      %s262 = sphi 0, %s262
      %s264 = sphi 0, %s262
      %s265 = sphi 0, %s264
      %s279 = sphi 0, %s265
      %s283 = sphi 0, %s283
      %s285 = sphi 0, %s283
      %s286 = sphi 0, %s285
      %s300 = sphi 0, %s286
      %s304 = sphi 0, %s304
      %s306 = sphi 0, %s304
      %s307 = sphi 0, %s306
      %s321 = sphi 0, %s307
      %s329 = sphi 0, %s331
      %s332 = sphi 0, %s329
      %s333 = sphi 0, %s332
      %s349 = sphi 0, %s333
      %s357 = sphi 0, %s359
      %s360 = sphi 0, %s357
      %s361 = sphi 0, %s360
      %s377 = sphi 0, %s361
    $region4: #{decoder_forward.4} parent=1 // loop_header_branch
      %24 = sbr.rel (%p22) target = $region8
    $region5: #{decoder_forward.4} parent=1 // loop_body
      %s26 = ssub.s32 %s21, 1
      %s27 = ssub.s32 %s21, 2
      %s34 = sadd.s32 1, %s29
      %p35 = scmp.ge.s32.totalorder %s34, 1
      %s36 = scalar_select %p35, 0, %s34
      %s37 = sadd.s32 1, %s28
      %s38 = scalar_select %p35, %s37, %s28
      %p39 = scmp.ge.s32.totalorder %s38, 2
      %s40 = scalar_select %p39, 0, %s38
      %s41 = ssub.s32 %s28, %s40
      %s42 = ssub.s32 %s29, %s36
      %s43 = sor.u32 %s41, %s42
      %p44 = scmp.eq.s32.totalorder %s43, 0
      %s46 = sadd.s32 %s45, 1
      %s47 = scalar_select %p44, %s45, %s46
      %p50 = pneg %p44
      %p51 = scmp.eq.s32.totalorder %s21, 1
      %p52 = por %p50, %p51
      %p53 = scmp.ne.s32.totalorder %s45, %s48
      %p54 = scmp.eq.s32.totalorder %s21, 0
      %p55 = por %p53, %p54
      %p56 = scmp.ne.s32.totalorder %s45, %s48
      %p57 = scmp.eq.s32.totalorder %s26, 1
      %p58 = por %p56, %p57
      %p59 = scmp.ne.s32.totalorder %s48, %s49
      %p60 = scmp.eq.s32.totalorder %s26, 0
      %p61 = por %p59, %p60
      %p62 = scmp.ne.s32.totalorder %s48, %s49
      %p63 = scmp.eq.s32.totalorder %s27, 1
      %p64 = por %p62, %p63
      %p66 = scmp.ne.s32.totalorder %s49, %s65
      %p67 = scmp.eq.s32.totalorder %s27, 0
      %p68 = por %p66, %p67
      %s69 = smul.u32 %s29, 8
      %s70 = ssub.s32 %s69, 1
      %p71 = scmp.gt.s32.totalorder %s70, 0
      %s72 = scalar_select %p71, %s70, 0
      %s73 = smul.u32 %s36, 8
      %s74 = ssub.s32 %s73, 1
      %p75 = scmp.gt.s32.totalorder %s74, 0
      %s76 = scalar_select %p75, %s74, 0
      %s77 = ssub.s32 %s28, %s40
      %s78 = ssub.s32 %s72, %s76
      %s79 = sor.u32 %s77, %s78
      %p80 = scmp.eq.s32.totalorder %s79, 0
      %s82 = sadd.s32 %s81, 1
      %s83 = scalar_select %p80, %s81, %s82
      %p86 = pneg %p80
      %p87 = scmp.eq.s32.totalorder %s21, 1
      %p88 = por %p86, %p87
      %p89 = scmp.ne.s32.totalorder %s81, %s84
      %p90 = scmp.eq.s32.totalorder %s21, 0
      %p91 = por %p89, %p90
      %p92 = scmp.ne.s32.totalorder %s81, %s84
      %p93 = scmp.eq.s32.totalorder %s26, 1
      %p94 = por %p92, %p93
      %p95 = scmp.ne.s32.totalorder %s84, %s85
      %p96 = scmp.eq.s32.totalorder %s26, 0
      %p97 = por %p95, %p96
      %p98 = scmp.ne.s32.totalorder %s84, %s85
      %p99 = scmp.eq.s32.totalorder %s27, 1
      %p100 = por %p98, %p99
      %p102 = scmp.ne.s32.totalorder %s85, %s101
      %p103 = scmp.eq.s32.totalorder %s27, 0
      %p104 = por %p102, %p103
      %s105 = smul.u32 %s29, 8
      %s106 = sadd.s32 %s105, 8
      %p107 = scmp.lt.s32.totalorder %s106, 7
      %s108 = scalar_select %p107, %s106, 7
      %s109 = smul.u32 %s36, 8
      %s110 = sadd.s32 %s109, 8
      %p111 = scmp.lt.s32.totalorder %s110, 7
      %s112 = scalar_select %p111, %s110, 7
      %s113 = ssub.s32 %s28, %s40
      %s114 = ssub.s32 %s108, %s112
      %s115 = sor.u32 %s113, %s114
      %p116 = scmp.eq.s32.totalorder %s115, 0
      %s118 = sadd.s32 %s117, 1
      %s119 = scalar_select %p116, %s117, %s118
      %p122 = pneg %p116
      %p123 = scmp.eq.s32.totalorder %s21, 1
      %p124 = por %p122, %p123
      %p125 = scmp.ne.s32.totalorder %s117, %s120
      %p126 = scmp.eq.s32.totalorder %s21, 0
      %p127 = por %p125, %p126
      %p128 = scmp.ne.s32.totalorder %s117, %s120
      %p129 = scmp.eq.s32.totalorder %s26, 1
      %p130 = por %p128, %p129
      %p131 = scmp.ne.s32.totalorder %s120, %s121
      %p132 = scmp.eq.s32.totalorder %s26, 0
      %p133 = por %p131, %p132
      %p134 = scmp.ne.s32.totalorder %s120, %s121
      %p135 = scmp.eq.s32.totalorder %s27, 1
      %p136 = por %p134, %p135
      %p138 = scmp.ne.s32.totalorder %s121, %s137
      %p139 = scmp.eq.s32.totalorder %s27, 0
      %p140 = por %p138, %p139
      %s141 = ssub.s32 %s28, %s40
      %s142 = ssub.s32 %s29, %s36
      %s143 = sor.u32 %s141, %s142
      %p144 = scmp.eq.s32.totalorder %s143, 0
      %s146 = sadd.s32 %s145, 1
      %s147 = scalar_select %p144, %s145, %s146
      %p150 = pneg %p144
      %p151 = scmp.eq.s32.totalorder %s21, 1
      %p152 = por %p150, %p151
      %p153 = scmp.ne.s32.totalorder %s145, %s148
      %p154 = scmp.eq.s32.totalorder %s21, 0
      %p155 = por %p153, %p154
      %p156 = scmp.ne.s32.totalorder %s145, %s148
      %p157 = scmp.eq.s32.totalorder %s26, 1
      %p158 = por %p156, %p157
      %p159 = scmp.ne.s32.totalorder %s148, %s149
      %p160 = scmp.eq.s32.totalorder %s26, 0
      %p161 = por %p159, %p160
      %p162 = scmp.ne.s32.totalorder %s148, %s149
      %p163 = scmp.eq.s32.totalorder %s27, 1
      %p164 = por %p162, %p163
      %p166 = scmp.ne.s32.totalorder %s149, %s165
      %p167 = scmp.eq.s32.totalorder %s27, 0
      %p168 = por %p166, %p167
      %s169 = smul.u32 %s29, 4
      %s170 = ssub.s32 %s169, 1
      %p171 = scmp.gt.s32.totalorder %s170, 0
      %s172 = scalar_select %p171, %s170, 0
      %s173 = smul.u32 %s36, 4
      %s174 = ssub.s32 %s173, 1
      %p175 = scmp.gt.s32.totalorder %s174, 0
      %s176 = scalar_select %p175, %s174, 0
      %s177 = ssub.s32 %s28, %s40
      %s178 = ssub.s32 %s172, %s176
      %s179 = sor.u32 %s177, %s178
      %p180 = scmp.eq.s32.totalorder %s179, 0
      %s182 = sadd.s32 %s181, 1
      %s183 = scalar_select %p180, %s181, %s182
      %p186 = pneg %p180
      %p187 = scmp.eq.s32.totalorder %s21, 1
      %p188 = por %p186, %p187
      %p189 = scmp.ne.s32.totalorder %s181, %s184
      %p190 = scmp.eq.s32.totalorder %s21, 0
      %p191 = por %p189, %p190
      %p192 = scmp.ne.s32.totalorder %s181, %s184
      %p193 = scmp.eq.s32.totalorder %s26, 1
      %p194 = por %p192, %p193
      %p195 = scmp.ne.s32.totalorder %s184, %s185
      %p196 = scmp.eq.s32.totalorder %s26, 0
      %p197 = por %p195, %p196
      %p198 = scmp.ne.s32.totalorder %s184, %s185
      %p199 = scmp.eq.s32.totalorder %s27, 1
      %p200 = por %p198, %p199
      %p202 = scmp.ne.s32.totalorder %s185, %s201
      %p203 = scmp.eq.s32.totalorder %s27, 0
      %p204 = por %p202, %p203
      %s205 = smul.u32 %s29, 4
      %s206 = sadd.s32 %s205, 4
      %p207 = scmp.lt.s32.totalorder %s206, 3
      %s208 = scalar_select %p207, %s206, 3
      %s209 = smul.u32 %s36, 4
      %s210 = sadd.s32 %s209, 4
      %p211 = scmp.lt.s32.totalorder %s210, 3
      %s212 = scalar_select %p211, %s210, 3
      %s213 = ssub.s32 %s28, %s40
      %s214 = ssub.s32 %s208, %s212
      %s215 = sor.u32 %s213, %s214
      %p216 = scmp.eq.s32.totalorder %s215, 0
      %s218 = sadd.s32 %s217, 1
      %s219 = scalar_select %p216, %s217, %s218
      %p222 = pneg %p216
      %p223 = scmp.eq.s32.totalorder %s21, 1
      %p224 = por %p222, %p223
      %p225 = scmp.ne.s32.totalorder %s217, %s220
      %p226 = scmp.eq.s32.totalorder %s21, 0
      %p227 = por %p225, %p226
      %p228 = scmp.ne.s32.totalorder %s217, %s220
      %p229 = scmp.eq.s32.totalorder %s26, 1
      %p230 = por %p228, %p229
      %p231 = scmp.ne.s32.totalorder %s220, %s221
      %p232 = scmp.eq.s32.totalorder %s26, 0
      %p233 = por %p231, %p232
      %p234 = scmp.ne.s32.totalorder %s220, %s221
      %p235 = scmp.eq.s32.totalorder %s27, 1
      %p236 = por %p234, %p235
      %p238 = scmp.ne.s32.totalorder %s221, %s237
      %p239 = scmp.eq.s32.totalorder %s27, 0
      %p240 = por %p238, %p239
      %s242 = sadd.s32 %s241, 1
      %p245 = scmp.eq.s32.totalorder %s21, 1
      %p246 = scmp.ne.s32.totalorder %s241, %s243
      %p247 = scmp.eq.s32.totalorder %s21, 0
      %p248 = por %p246, %p247
      %p249 = scmp.ne.s32.totalorder %s241, %s243
      %p250 = scmp.eq.s32.totalorder %s26, 1
      %p251 = por %p249, %p250
      %p252 = scmp.ne.s32.totalorder %s243, %s244
      %p253 = scmp.eq.s32.totalorder %s26, 0
      %p254 = por %p252, %p253
      %p255 = scmp.ne.s32.totalorder %s243, %s244
      %p256 = scmp.eq.s32.totalorder %s27, 1
      %p257 = por %p255, %p256
      %p259 = scmp.ne.s32.totalorder %s244, %s258
      %p260 = scmp.eq.s32.totalorder %s27, 0
      %p261 = por %p259, %p260
      %s263 = sadd.s32 %s262, 1
      %p266 = scmp.eq.s32.totalorder %s21, 1
      %p267 = scmp.ne.s32.totalorder %s262, %s264
      %p268 = scmp.eq.s32.totalorder %s21, 0
      %p269 = por %p267, %p268
      %p270 = scmp.ne.s32.totalorder %s262, %s264
      %p271 = scmp.eq.s32.totalorder %s26, 1
      %p272 = por %p270, %p271
      %p273 = scmp.ne.s32.totalorder %s264, %s265
      %p274 = scmp.eq.s32.totalorder %s26, 0
      %p275 = por %p273, %p274
      %p276 = scmp.ne.s32.totalorder %s264, %s265
      %p277 = scmp.eq.s32.totalorder %s27, 1
      %p278 = por %p276, %p277
      %p280 = scmp.ne.s32.totalorder %s265, %s279
      %p281 = scmp.eq.s32.totalorder %s27, 0
      %p282 = por %p280, %p281
      %s284 = sadd.s32 %s283, 1
      %p287 = scmp.eq.s32.totalorder %s21, 1
      %p288 = scmp.ne.s32.totalorder %s283, %s285
      %p289 = scmp.eq.s32.totalorder %s21, 0
      %p290 = por %p288, %p289
      %p291 = scmp.ne.s32.totalorder %s283, %s285
      %p292 = scmp.eq.s32.totalorder %s26, 1
      %p293 = por %p291, %p292
      %p294 = scmp.ne.s32.totalorder %s285, %s286
      %p295 = scmp.eq.s32.totalorder %s26, 0
      %p296 = por %p294, %p295
      %p297 = scmp.ne.s32.totalorder %s285, %s286
      %p298 = scmp.eq.s32.totalorder %s27, 1
      %p299 = por %p297, %p298
      %p301 = scmp.ne.s32.totalorder %s286, %s300
      %p302 = scmp.eq.s32.totalorder %s27, 0
      %p303 = por %p301, %p302
      %s305 = sadd.s32 %s304, 1
      %p308 = scmp.eq.s32.totalorder %s21, 1
      %p309 = scmp.ne.s32.totalorder %s304, %s306
      %p310 = scmp.eq.s32.totalorder %s21, 0
      %p311 = por %p309, %p310
      %p312 = scmp.ne.s32.totalorder %s304, %s306
      %p313 = scmp.eq.s32.totalorder %s26, 1
      %p314 = por %p312, %p313
      %p315 = scmp.ne.s32.totalorder %s306, %s307
      %p316 = scmp.eq.s32.totalorder %s26, 0
      %p317 = por %p315, %p316
      %p318 = scmp.ne.s32.totalorder %s306, %s307
      %p319 = scmp.eq.s32.totalorder %s27, 1
      %p320 = por %p318, %p319
      %p322 = scmp.ne.s32.totalorder %s307, %s321
      %p323 = scmp.eq.s32.totalorder %s27, 0
      %p324 = por %p322, %p323
      %s325 = ssub.s32 %s28, %s40
      %s326 = ssub.s32 %s29, %s36
      %s327 = sor.u32 %s325, %s326
      %p328 = scmp.eq.s32.totalorder %s327, 0
      %s330 = sadd.s32 %s329, 1
      %s331 = scalar_select %p328, %s329, %s330
      %p334 = pneg %p328
      %p335 = scmp.eq.s32.totalorder %s21, 1
      %p336 = por %p334, %p335
      %p337 = scmp.ne.s32.totalorder %s329, %s332
      %p338 = scmp.eq.s32.totalorder %s21, 0
      %p339 = por %p337, %p338
      %p340 = scmp.ne.s32.totalorder %s329, %s332
      %p341 = scmp.eq.s32.totalorder %s26, 1
      %p342 = por %p340, %p341
      %p343 = scmp.ne.s32.totalorder %s332, %s333
      %p344 = scmp.eq.s32.totalorder %s26, 0
      %p345 = por %p343, %p344
      %p346 = scmp.ne.s32.totalorder %s332, %s333
      %p347 = scmp.eq.s32.totalorder %s27, 1
      %p348 = por %p346, %p347
      %p350 = scmp.ne.s32.totalorder %s333, %s349
      %p351 = scmp.eq.s32.totalorder %s27, 0
      %p352 = por %p350, %p351
      %s353 = ssub.s32 %s28, %s40
      %s354 = ssub.s32 %s29, %s36
      %s355 = sor.u32 %s353, %s354
      %p356 = scmp.eq.s32.totalorder %s355, 0
      %s358 = sadd.s32 %s357, 1
      %s359 = scalar_select %p356, %s357, %s358
      %p362 = pneg %p356
      %p363 = scmp.eq.s32.totalorder %s21, 1
      %p364 = por %p362, %p363
      %p365 = scmp.ne.s32.totalorder %s357, %s360
      %p366 = scmp.eq.s32.totalorder %s21, 0
      %p367 = por %p365, %p366
      %p368 = scmp.ne.s32.totalorder %s357, %s360
      %p369 = scmp.eq.s32.totalorder %s26, 1
      %p370 = por %p368, %p369
      %p371 = scmp.ne.s32.totalorder %s360, %s361
      %p372 = scmp.eq.s32.totalorder %s26, 0
      %p373 = por %p371, %p372
      %p374 = scmp.ne.s32.totalorder %s360, %s361
      %p375 = scmp.eq.s32.totalorder %s27, 1
      %p376 = por %p374, %p375
      %p378 = scmp.ne.s32.totalorder %s361, %s377
      %p379 = scmp.eq.s32.totalorder %s27, 0
      %p380 = por %p378, %p379
      %p381 = scmp.le.s32.totalorder 1, %s21
      %p382 = scmp.lt.s32.totalorder %s21, 3
      %p383 = pnand %p381, %p382
      %p384 = pneg %p383
      // Predicated region
      $region9: #{decoder_forward.4} parent=5 // pred_check
        _
      $region10: #{decoder_forward.4} parent=5 // pred_check_branch
        %386 = sbr.rel (%p383) target = $region12
      $region11: #{decoder_forward.4} parent=5 // pred_region
        %s387 = ssub.s32 %s21, 1
        // Predicated region
        $region13: #{decoder_forward.4} parent=11 // pred_check
          %p388 = pneg %p254
        $region14: #{decoder_forward.4} parent=11 // pred_check_branch
          %390 = sbr.rel (%p388) target = $region16
        $region15: #{decoder_forward.4} parent=11 // pred_region
          _
        $region16: #{decoder_forward.4} parent=11 // pred_fallthru
          _
        // Predicated region
        $region17: #{decoder_forward.4} parent=11 // pred_check
          %p391 = pneg %p275
        $region18: #{decoder_forward.4} parent=11 // pred_check_branch
          %393 = sbr.rel (%p391) target = $region20
        $region19: #{decoder_forward.4} parent=11 // pred_region
          _
        $region20: #{decoder_forward.4} parent=11 // pred_fallthru
          _
        // Predicated region
        $region21: #{decoder_forward.4} parent=11 // pred_check
          %p394 = pneg %p296
        $region22: #{decoder_forward.4} parent=11 // pred_check_branch
          %396 = sbr.rel (%p394) target = $region24
        $region23: #{decoder_forward.4} parent=11 // pred_region
          _
        $region24: #{decoder_forward.4} parent=11 // pred_fallthru
          _
        // Predicated region
        $region25: #{decoder_forward.4} parent=11 // pred_check
          %p397 = pneg %p317
        $region26: #{decoder_forward.4} parent=11 // pred_check_branch
          %399 = sbr.rel (%p397) target = $region28
        $region27: #{decoder_forward.4} parent=11 // pred_region
          _
        $region28: #{decoder_forward.4} parent=11 // pred_fallthru
          _
      $region12: #{decoder_forward.4} parent=5 // pred_fallthru
        _
      %p400 = scmp.lt.s32.totalorder %s21, 2
      // Predicated region
      $region29: #{decoder_forward.4} parent=5 // pred_check
        %p401 = pneg %p400
      $region30: #{decoder_forward.4} parent=5 // pred_check_branch
        %403 = sbr.rel (%p401) target = $region32
      $region31: #{decoder_forward.4} parent=5 // pred_region
        // Predicated region
        $region33: #{decoder_forward.4} parent=31 // pred_check
          %p404 = pneg %p55
        $region34: #{decoder_forward.4} parent=31 // pred_check_branch
          %406 = sbr.rel (%p404) target = $region36
        $region35: #{decoder_forward.4} parent=31 // pred_region
          %s407 = smul.u32 8, %s29
          %p408 = scmp.lt.s32.totalorder %s28, 1
          %s409 = scalar_select %p408, %s28, 1
          %p410 = scmp.lt.s32.totalorder %s407, 7
          %s411 = scalar_select %p410, %s407, 7
          %s412 = smul.addr %s409, 8
          %s413 = sadd.s32 %s411, %s412
          %s414 = smul.addr %s413, 8
          %s415 = scalar_lea.vmem %s0, %s414
          %s416 = smul.u32 8, %s29
        $region36: #{decoder_forward.4} parent=31 // pred_fallthru
          _
        // Predicated region
        $region37: #{decoder_forward.4} parent=31 // pred_check
          %p417 = pneg %p91
        $region38: #{decoder_forward.4} parent=31 // pred_check_branch
          %419 = sbr.rel (%p417) target = $region40
        $region39: #{decoder_forward.4} parent=31 // pred_region
          %s420 = smul.u32 %s29, 8
          %s421 = ssub.s32 %s420, 1
          %p422 = scmp.gt.s32.totalorder %s421, 0
          %s423 = scalar_select %p422, %s421, 0
          %p424 = scmp.lt.s32.totalorder %s28, 1
          %s425 = scalar_select %p424, %s28, 1
          %p426 = scmp.lt.s32.totalorder %s423, 7
          %s427 = scalar_select %p426, %s423, 7
          %s428 = smul.addr %s425, 8
          %s429 = sadd.s32 %s427, %s428
          %s430 = smul.addr %s429, 8
          %s431 = scalar_lea.vmem %s1, %s430
          %s432 = smul.u32 %s29, 8
          %s433 = ssub.s32 %s432, 1
          %p434 = scmp.gt.s32.totalorder %s433, 0
          %s435 = scalar_select %p434, %s433, 0
        $region40: #{decoder_forward.4} parent=31 // pred_fallthru
          _
        // Predicated region
        $region41: #{decoder_forward.4} parent=31 // pred_check
          %p436 = pneg %p127
        $region42: #{decoder_forward.4} parent=31 // pred_check_branch
          %438 = sbr.rel (%p436) target = $region44
        $region43: #{decoder_forward.4} parent=31 // pred_region
          %s439 = smul.u32 %s29, 8
          %s440 = sadd.s32 %s439, 8
          %p441 = scmp.lt.s32.totalorder %s440, 7
          %s442 = scalar_select %p441, %s440, 7
          %p443 = scmp.lt.s32.totalorder %s28, 1
          %s444 = scalar_select %p443, %s28, 1
          %p445 = scmp.lt.s32.totalorder %s442, 7
          %s446 = scalar_select %p445, %s442, 7
          %s447 = smul.addr %s444, 8
          %s448 = sadd.s32 %s446, %s447
          %s449 = smul.addr %s448, 8
          %s450 = scalar_lea.vmem %s2, %s449
          %s451 = smul.u32 %s29, 8
          %s452 = sadd.s32 %s451, 8
          %p453 = scmp.lt.s32.totalorder %s452, 7
          %s454 = scalar_select %p453, %s452, 7
        $region44: #{decoder_forward.4} parent=31 // pred_fallthru
          _
        // Predicated region
        $region45: #{decoder_forward.4} parent=31 // pred_check
          %p455 = pneg %p155
        $region46: #{decoder_forward.4} parent=31 // pred_check_branch
          %457 = sbr.rel (%p455) target = $region48
        $region47: #{decoder_forward.4} parent=31 // pred_region
          %s458 = smul.u32 4, %s29
          %p459 = scmp.lt.s32.totalorder %s28, 1
          %s460 = scalar_select %p459, %s28, 1
          %p461 = scmp.lt.s32.totalorder %s458, 3
          %s462 = scalar_select %p461, %s458, 3
          %s463 = smul.addr %s460, 4
          %s464 = sadd.s32 %s462, %s463
          %s465 = smul.addr %s464, 4
          %s466 = scalar_lea.vmem %s3, %s465
          %s467 = smul.u32 4, %s29
        $region48: #{decoder_forward.4} parent=31 // pred_fallthru
          _
        // Predicated region
        $region49: #{decoder_forward.4} parent=31 // pred_check
          %p468 = pneg %p191
        $region50: #{decoder_forward.4} parent=31 // pred_check_branch
          %470 = sbr.rel (%p468) target = $region52
        $region51: #{decoder_forward.4} parent=31 // pred_region
          %s471 = smul.u32 %s29, 4
          %s472 = ssub.s32 %s471, 1
          %p473 = scmp.gt.s32.totalorder %s472, 0
          %s474 = scalar_select %p473, %s472, 0
          %p475 = scmp.lt.s32.totalorder %s28, 1
          %s476 = scalar_select %p475, %s28, 1
          %p477 = scmp.lt.s32.totalorder %s474, 3
          %s478 = scalar_select %p477, %s474, 3
          %s479 = smul.addr %s476, 4
          %s480 = sadd.s32 %s478, %s479
          %s481 = smul.addr %s480, 4
          %s482 = scalar_lea.vmem %s4, %s481
          %s483 = smul.u32 %s29, 4
          %s484 = ssub.s32 %s483, 1
          %p485 = scmp.gt.s32.totalorder %s484, 0
          %s486 = scalar_select %p485, %s484, 0
        $region52: #{decoder_forward.4} parent=31 // pred_fallthru
          _
        // Predicated region
        $region53: #{decoder_forward.4} parent=31 // pred_check
          %p487 = pneg %p227
        $region54: #{decoder_forward.4} parent=31 // pred_check_branch
          %489 = sbr.rel (%p487) target = $region56
        $region55: #{decoder_forward.4} parent=31 // pred_region
          %s490 = smul.u32 %s29, 4
          %s491 = sadd.s32 %s490, 4
          %p492 = scmp.lt.s32.totalorder %s491, 3
          %s493 = scalar_select %p492, %s491, 3
          %p494 = scmp.lt.s32.totalorder %s28, 1
          %s495 = scalar_select %p494, %s28, 1
          %p496 = scmp.lt.s32.totalorder %s493, 3
          %s497 = scalar_select %p496, %s493, 3
          %s498 = smul.addr %s495, 4
          %s499 = sadd.s32 %s497, %s498
          %s500 = smul.addr %s499, 4
          %s501 = scalar_lea.vmem %s5, %s500
          %s502 = smul.u32 %s29, 4
          %s503 = sadd.s32 %s502, 4
          %p504 = scmp.lt.s32.totalorder %s503, 3
          %s505 = scalar_select %p504, %s503, 3
        $region56: #{decoder_forward.4} parent=31 // pred_fallthru
          _
      $region32: #{decoder_forward.4} parent=5 // pred_fallthru
        _
      %p506 = scmp.le.s32.totalorder 1, %s21
      %p507 = scmp.lt.s32.totalorder %s21, 3
      %p508 = pnand %p506, %p507
      %p509 = pneg %p508
      // Predicated region
      $region57: #{decoder_forward.4} parent=5 // pred_check
        _
      $region58: #{decoder_forward.4} parent=5 // pred_check_branch
        %511 = sbr.rel (%p508) target = $region60
      $region59: #{decoder_forward.4} parent=5 // pred_region
        %s512 = ssub.s32 %s21, 1
        %s513 = smul.u32 8, %s31
        %p514 = scmp.lt.s32.totalorder %s30, 1
        %s515 = scalar_select %p514, %s30, 1
        %p516 = scmp.lt.s32.totalorder %s513, 7
        %s517 = scalar_select %p516, %s513, 7
        %s518 = smul.addr %s515, 8
        %s519 = sadd.s32 %s517, %s518
        %s520 = smul.addr %s519, 8
        %s521 = scalar_lea.vmem %s0, %s520
        %p522 = pneg %p61
        %p523 = pneg %p58
        %s524 = smul.u32 %s31, 8
        %s525 = ssub.s32 %s524, 1
        %p526 = scmp.gt.s32.totalorder %s525, 0
        %s527 = scalar_select %p526, %s525, 0
        %p528 = scmp.lt.s32.totalorder %s30, 1
        %s529 = scalar_select %p528, %s30, 1
        %p530 = scmp.lt.s32.totalorder %s527, 7
        %s531 = scalar_select %p530, %s527, 7
        %s532 = smul.addr %s529, 8
        %s533 = sadd.s32 %s531, %s532
        %s534 = smul.addr %s533, 8
        %s535 = scalar_lea.vmem %s1, %s534
        %p536 = pneg %p97
        %p537 = pneg %p94
        %s538 = smul.u32 %s31, 8
        %s539 = sadd.s32 %s538, 8
        %p540 = scmp.lt.s32.totalorder %s539, 7
        %s541 = scalar_select %p540, %s539, 7
        %p542 = scmp.lt.s32.totalorder %s30, 1
        %s543 = scalar_select %p542, %s30, 1
        %p544 = scmp.lt.s32.totalorder %s541, 7
        %s545 = scalar_select %p544, %s541, 7
        %s546 = smul.addr %s543, 8
        %s547 = sadd.s32 %s545, %s546
        %s548 = smul.addr %s547, 8
        %s549 = scalar_lea.vmem %s2, %s548
        %p550 = pneg %p133
        %p551 = pneg %p130
        %s552 = smul.u32 4, %s31
        %p553 = scmp.lt.s32.totalorder %s30, 1
        %s554 = scalar_select %p553, %s30, 1
        %p555 = scmp.lt.s32.totalorder %s552, 3
        %s556 = scalar_select %p555, %s552, 3
        %s557 = smul.addr %s554, 4
        %s558 = sadd.s32 %s556, %s557
        %s559 = smul.addr %s558, 4
        %s560 = scalar_lea.vmem %s3, %s559
        %p561 = pneg %p161
        %p562 = pneg %p158
        %s563 = smul.u32 %s31, 4
        %s564 = ssub.s32 %s563, 1
        %p565 = scmp.gt.s32.totalorder %s564, 0
        %s566 = scalar_select %p565, %s564, 0
        %p567 = scmp.lt.s32.totalorder %s30, 1
        %s568 = scalar_select %p567, %s30, 1
        %p569 = scmp.lt.s32.totalorder %s566, 3
        %s570 = scalar_select %p569, %s566, 3
        %s571 = smul.addr %s568, 4
        %s572 = sadd.s32 %s570, %s571
        %s573 = smul.addr %s572, 4
        %s574 = scalar_lea.vmem %s4, %s573
        %p575 = pneg %p197
        %p576 = pneg %p194
        %s577 = smul.u32 %s31, 4
        %s578 = sadd.s32 %s577, 4
        %p579 = scmp.lt.s32.totalorder %s578, 3
        %s580 = scalar_select %p579, %s578, 3
        %p581 = scmp.lt.s32.totalorder %s30, 1
        %s582 = scalar_select %p581, %s30, 1
        %p583 = scmp.lt.s32.totalorder %s580, 3
        %s584 = scalar_select %p583, %s580, 3
        %s585 = smul.addr %s582, 4
        %s586 = sadd.s32 %s584, %s585
        %s587 = smul.addr %s586, 4
        %s588 = scalar_lea.vmem %s5, %s587
        %p589 = pneg %p233
        %p590 = pneg %p230
        %p591 = pneg %p254
        %p592 = pneg %p251
        %p593 = pneg %p275
        %p594 = pneg %p272
        %p595 = pneg %p296
        %p596 = pneg %p293
        %p597 = pneg %p317
        %p598 = pneg %p314
        %p599 = pneg %p345
        %p600 = pneg %p342
        %s601 = smul.u32 8, %s31
        %p602 = scmp.lt.s32.totalorder %s30, 1
        %s603 = scalar_select %p602, %s30, 1
        %p604 = scmp.lt.s32.totalorder %s601, 7
        %s605 = scalar_select %p604, %s601, 7
        %s606 = smul.addr %s603, 8
        %s607 = sadd.s32 %s605, %s606
        %s608 = smul.addr %s607, 8
        %s609 = scalar_lea.vmem %s10, %s608
        %p610 = pneg %p373
        %p611 = pneg %p370
        %s612 = sand.u32 %s360, 1
        %s613 = scalar_lea.sflag [#allocation3], %s612
        %s614 = sand.u32 %s360, 1
        %s615 = smul.addr %s614, 64
        %s616 = scalar_lea.vmem [#allocation2], %s615
        %s617 = smul.u32 8, %s31
        %p618 = scmp.lt.s32.totalorder %s30, 1
        %s619 = scalar_select %p618, %s30, 1
        %p620 = scmp.lt.s32.totalorder %s617, 7
        %s621 = scalar_select %p620, %s617, 7
        %s622 = smul.addr %s619, 8
        %s623 = sadd.s32 %s621, %s622
        %s624 = smul.addr %s623, 8
        %s625 = scalar_lea.vmem %s0, %s624
        %s626 = smul.u32 8, %s31
        %s627 = smul.u32 %s31, 8
        %s628 = ssub.s32 %s627, 1
        %p629 = scmp.gt.s32.totalorder %s628, 0
        %s630 = scalar_select %p629, %s628, 0
        %p631 = scmp.lt.s32.totalorder %s30, 1
        %s632 = scalar_select %p631, %s30, 1
        %p633 = scmp.lt.s32.totalorder %s630, 7
        %s634 = scalar_select %p633, %s630, 7
        %s635 = smul.addr %s632, 8
        %s636 = sadd.s32 %s634, %s635
        %s637 = smul.addr %s636, 8
        %s638 = scalar_lea.vmem %s1, %s637
        %s639 = smul.u32 %s31, 8
        %s640 = ssub.s32 %s639, 1
        %p641 = scmp.gt.s32.totalorder %s640, 0
        %s642 = scalar_select %p641, %s640, 0
        %s643 = smul.u32 %s31, 8
        %s644 = sadd.s32 %s643, 8
        %p645 = scmp.lt.s32.totalorder %s644, 7
        %s646 = scalar_select %p645, %s644, 7
        %p647 = scmp.lt.s32.totalorder %s30, 1
        %s648 = scalar_select %p647, %s30, 1
        %p649 = scmp.lt.s32.totalorder %s646, 7
        %s650 = scalar_select %p649, %s646, 7
        %s651 = smul.addr %s648, 8
        %s652 = sadd.s32 %s650, %s651
        %s653 = smul.addr %s652, 8
        %s654 = scalar_lea.vmem %s2, %s653
        %s655 = smul.u32 %s31, 8
        %s656 = sadd.s32 %s655, 8
        %p657 = scmp.lt.s32.totalorder %s656, 7
        %s658 = scalar_select %p657, %s656, 7
        %s659 = smul.u32 4, %s31
        %p660 = scmp.lt.s32.totalorder %s30, 1
        %s661 = scalar_select %p660, %s30, 1
        %p662 = scmp.lt.s32.totalorder %s659, 3
        %s663 = scalar_select %p662, %s659, 3
        %s664 = smul.addr %s661, 4
        %s665 = sadd.s32 %s663, %s664
        %s666 = smul.addr %s665, 4
        %s667 = scalar_lea.vmem %s3, %s666
        %s668 = smul.u32 4, %s31
        %s669 = smul.u32 %s31, 4
        %s670 = ssub.s32 %s669, 1
        %p671 = scmp.gt.s32.totalorder %s670, 0
        %s672 = scalar_select %p671, %s670, 0
        %p673 = scmp.lt.s32.totalorder %s30, 1
        %s674 = scalar_select %p673, %s30, 1
        %p675 = scmp.lt.s32.totalorder %s672, 3
        %s676 = scalar_select %p675, %s672, 3
        %s677 = smul.addr %s674, 4
        %s678 = sadd.s32 %s676, %s677
        %s679 = smul.addr %s678, 4
        %s680 = scalar_lea.vmem %s4, %s679
        %s681 = smul.u32 %s31, 4
        %s682 = ssub.s32 %s681, 1
        %p683 = scmp.gt.s32.totalorder %s682, 0
        %s684 = scalar_select %p683, %s682, 0
        %s685 = smul.u32 %s31, 4
        %s686 = sadd.s32 %s685, 4
        %p687 = scmp.lt.s32.totalorder %s686, 3
        %s688 = scalar_select %p687, %s686, 3
        %p689 = scmp.lt.s32.totalorder %s30, 1
        %s690 = scalar_select %p689, %s30, 1
        %p691 = scmp.lt.s32.totalorder %s688, 3
        %s692 = scalar_select %p691, %s688, 3
        %s693 = smul.addr %s690, 4
        %s694 = sadd.s32 %s692, %s693
        %s695 = smul.addr %s694, 4
        %s696 = scalar_lea.vmem %s5, %s695
        %s697 = smul.u32 %s31, 4
        %s698 = sadd.s32 %s697, 4
        %p699 = scmp.lt.s32.totalorder %s698, 3
        %s700 = scalar_select %p699, %s698, 3
        %s701 = smul.u32 8, %s31
        %p702 = scmp.lt.s32.totalorder %s30, 1
        %s703 = scalar_select %p702, %s30, 1
        %p704 = scmp.lt.s32.totalorder %s701, 7
        %s705 = scalar_select %p704, %s701, 7
        %s706 = smul.addr %s703, 8
        %s707 = sadd.s32 %s705, %s706
        %s708 = smul.addr %s707, 8
        %s709 = scalar_lea.vmem %s10, %s708
        %s710 = smul.u32 8, %s31
        %s711 = smul.u32 8, %s31
        %v712 = vld [vmem:[%s6] sm:$0xff]
        %v713 = vld [vmem:[%s6 + $0x8] sm:$0xff]
        %v714 = vld [vmem:[%s6 + $0x10] sm:$0xff]
        %v715 = vld [vmem:[%s6 + $0x18] sm:$0xff]
        %v716 = vld [vmem:[%s6 + $0x20] sm:$0xff]
        %v717 = vld [vmem:[%s6 + $0x28] sm:$0xff]
        %v718 = vld [vmem:[%s6 + $0x30] sm:$0xff]
        %v719 = vld [vmem:[%s6 + $0x38] sm:$0xff]
        %v720 = vld [vmem:[%s7] sm:$0x1]
        %v721 = vld [vmem:[%s9] sm:$0x1]
        %v722 = vld [vmem:[%s625] sm:$0xff]
        %v723 = vld [vmem:[%s625 + $0x8] sm:$0xff]
        %v724 = vld [vmem:[%s625 + $0x10] sm:$0xff]
        %v725 = vld [vmem:[%s625 + $0x18] sm:$0xff]
        %v726 = vld [vmem:[%s625 + $0x20] sm:$0xff]
        %v727 = vld [vmem:[%s625 + $0x28] sm:$0xff]
        %v728 = vld [vmem:[%s625 + $0x30] sm:$0xff]
        %v729 = vld [vmem:[%s625 + $0x38] sm:$0xff]
        %v731 = vlaneseq
        %v732 = vshrl.u32 %v731, 7
        %v733 = vsub.s32 0, %v732
        %v734 = vrot.slane %v720, %v733
        %vm736 = vcmask 523264
        %v738 = vsel %vm736, %v722, 0
        %v741 = vsel %vm736, %v723, 0
        %v744 = vsel %vm736, %v724, 0
        %v747 = vsel %vm736, %v725, 0
        %v750 = vsel %vm736, %v726, 0
        %v753 = vsel %vm736, %v727, 0
        %v756 = vsel %vm736, %v728, 0
        %v759 = vsel %vm736, %v729, 0
        %761 = vmatprep.subr.mxu0 0.0
        %762 = vmatpush1.msra.mxu0 %v712
        %763 = vmatprep.subr.mxu0 0.0
        %764 = vmatpush1.msra.mxu0 %v713
        %765 = vmatprep.subr.mxu0 0.0
        %766 = vmatpush1.msra.mxu0 %v714
        %767 = vmatprep.subr.mxu0 0.0
        %768 = vmatpush1.msra.mxu0 %v715
        %769 = vmatprep.subr.mxu0 0.0
        %770 = vmatpush1.msra.mxu0 %v716
        %771 = vmatprep.subr.mxu0 0.0
        %772 = vmatpush1.msra.mxu0 %v717
        %773 = vmatprep.subr.mxu0 0.0
        %774 = vmatpush1.msra.mxu0 %v718
        %775 = vmatprep.subr.mxu0 0.0
        %776 = vmatpush1.msra.mxu0 %v719
        %777 = vmatprep.subr.mxu0 0.0
        %778 = vmatpush1.msra.mxu0 0.0
        %779 = vmatprep.subr.mxu0 0.0
        %780 = vmatpush1.msra.mxu0 0.0
        %781 = vmatprep.subr.mxu0 0.0
        %782 = vmatpush1.msra.mxu0 0.0
        %783 = vmatprep.subr.mxu0 0.0
        %784 = vmatpush1.msra.mxu0 0.0
        %785 = vmatprep.subr.mxu0 0.0
        %786 = vmatpush1.msra.mxu0 0.0
        %787 = vmatprep.subr.mxu0 0.0
        %788 = vmatpush1.msra.mxu0 0.0
        %789 = vmatprep.subr.mxu0 0.0
        %790 = vmatpush1.msra.mxu0 0.0
        %791 = vmatprep.subr.mxu0 0.0
        %792 = vmatpush1.msra.mxu0 0.0
        %793 = vmatprep.subr.mxu0 0.0
        %794 = vmatpush1.msra.mxu0 0.0
        %795 = vmatprep.subr.mxu0 0.0
        %796 = vmatpush1.msra.mxu0 0.0
        %797 = vmatprep.subr.mxu0 0.0
        %798 = vmatpush1.msra.mxu0 0.0
        %799 = vmatprep.subr.mxu0 0.0
        %800 = vmatpush1.msra.mxu0 0.0
        %801 = vmatprep.subr.mxu0 0.0
        %802 = vmatpush1.msra.mxu0 0.0
        %803 = vmatprep.subr.mxu0 0.0
        %804 = vmatpush1.msra.mxu0 0.0
        %805 = vmatprep.subr.mxu0 0.0
        %806 = vmatpush1.msra.mxu0 0.0
        %807 = vmatprep.subr.mxu0 0.0
        %808 = vmatpush1.msra.mxu0 0.0
        %809 = vmatprep.subr.mxu0 0.0
        %810 = vmatpush1.msra.mxu0 0.0
        %811 = vmatprep.subr.mxu0 0.0
        %812 = vmatpush1.msra.mxu0 0.0
        %813 = vmatprep.subr.mxu0 0.0
        %814 = vmatpush1.msra.mxu0 0.0
        %815 = vmatprep.subr.mxu0 0.0
        %816 = vmatpush1.msra.mxu0 0.0
        %817 = vmatprep.subr.mxu0 0.0
        %818 = vmatpush1.msra.mxu0 0.0
        %819 = vmatprep.subr.mxu0 0.0
        %820 = vmatpush1.msra.mxu0 0.0
        %821 = vmatprep.subr.mxu0 0.0
        %822 = vmatpush1.msra.mxu0 0.0
        %823 = vmatprep.subr.mxu0 0.0
        %824 = vmatpush1.msra.mxu0 0.0
        %825 = vmatprep.mubr.f32.mxu0 0.0
        %826 = vmatmul.mubr.f32.gmra.mrb[0].mxu0 %v738
        %v827 = vpop.f32.mrb[0].mxu0
        %v828 = vadd.f32 %v734, %v827
        %v829 = vpop.f32.mrb[0].mxu0
        %830 = vmatprep.mubr.f32.mxu0 0.0
        %831 = vmatmul.mubr.f32.gmra.mrb[0].mxu0 %v741
        %v832 = vpop.f32.mrb[0].mxu0
        %v833 = vadd.f32 %v734, %v832
        %v834 = vpop.f32.mrb[0].mxu0
        %835 = vmatprep.mubr.f32.mxu0 0.0
        %836 = vmatmul.mubr.f32.gmra.mrb[0].mxu0 %v744
        %v837 = vpop.f32.mrb[0].mxu0
        %v838 = vadd.f32 %v734, %v837
        %v839 = vpop.f32.mrb[0].mxu0
        %840 = vmatprep.mubr.f32.mxu0 0.0
        %841 = vmatmul.mubr.f32.gmra.mrb[0].mxu0 %v747
        %v842 = vpop.f32.mrb[0].mxu0
        %v843 = vadd.f32 %v734, %v842
        %v844 = vpop.f32.mrb[0].mxu0
        %845 = vmatprep.mubr.f32.mxu0 0.0
        %846 = vmatmul.mubr.f32.gmra.mrb[0].mxu0 %v750
        %v847 = vpop.f32.mrb[0].mxu0
        %v848 = vadd.f32 %v734, %v847
        %v849 = vpop.f32.mrb[0].mxu0
        %850 = vmatprep.mubr.f32.mxu0 0.0
        %851 = vmatmul.mubr.f32.gmra.mrb[0].mxu0 %v753
        %v852 = vpop.f32.mrb[0].mxu0
        %v853 = vadd.f32 %v734, %v852
        %v854 = vpop.f32.mrb[0].mxu0
        %855 = vmatprep.mubr.f32.mxu0 0.0
        %856 = vmatmul.mubr.f32.gmra.mrb[0].mxu0 %v756
        %v857 = vpop.f32.mrb[0].mxu0
        %v858 = vadd.f32 %v734, %v857
        %v859 = vpop.f32.mrb[0].mxu0
        %860 = vmatprep.mubr.f32.mxu0 0.0
        %861 = vmatmul.mubr.f32.gmra.mrb[0].mxu0 %v759
        %v862 = vpop.f32.mrb[0].mxu0
        %v863 = vadd.f32 %v734, %v862
        %v864 = vpop.f32.mrb[0].mxu0
        %865 = vdwg.mxu0
        %v866 = vld [vmem:[%s638] sm:$0xff]
        %v868 = vsel %vm736, %v866, 0
        %870 = vmatprep.subr.mxu0 0.0
        %871 = vmatpush1.msra.mxu0 %v712
        %872 = vmatprep.subr.mxu0 0.0
        %873 = vmatpush1.msra.mxu0 %v713
        %874 = vmatprep.subr.mxu0 0.0
        %875 = vmatpush1.msra.mxu0 %v714
        %876 = vmatprep.subr.mxu0 0.0
        %877 = vmatpush1.msra.mxu0 %v715
        %878 = vmatprep.subr.mxu0 0.0
        %879 = vmatpush1.msra.mxu0 %v716
        %880 = vmatprep.subr.mxu0 0.0
        %881 = vmatpush1.msra.mxu0 %v717
        %882 = vmatprep.subr.mxu0 0.0
        %883 = vmatpush1.msra.mxu0 %v718
        %884 = vmatprep.subr.mxu0 0.0
        %885 = vmatpush1.msra.mxu0 %v719
        %886 = vmatprep.subr.mxu0 0.0
        %887 = vmatpush1.msra.mxu0 0.0
        %888 = vmatprep.subr.mxu0 0.0
        %889 = vmatpush1.msra.mxu0 0.0
        %890 = vmatprep.subr.mxu0 0.0
        %891 = vmatpush1.msra.mxu0 0.0
        %892 = vmatprep.subr.mxu0 0.0
        %893 = vmatpush1.msra.mxu0 0.0
        %894 = vmatprep.subr.mxu0 0.0
        %895 = vmatpush1.msra.mxu0 0.0
        %896 = vmatprep.subr.mxu0 0.0
        %897 = vmatpush1.msra.mxu0 0.0
        %898 = vmatprep.subr.mxu0 0.0
        %899 = vmatpush1.msra.mxu0 0.0
        %900 = vmatprep.subr.mxu0 0.0
        %901 = vmatpush1.msra.mxu0 0.0
        %902 = vmatprep.subr.mxu0 0.0
        %903 = vmatpush1.msra.mxu0 0.0
        %904 = vmatprep.subr.mxu0 0.0
        %905 = vmatpush1.msra.mxu0 0.0
        %906 = vmatprep.subr.mxu0 0.0
        %907 = vmatpush1.msra.mxu0 0.0
        %908 = vmatprep.subr.mxu0 0.0
        %909 = vmatpush1.msra.mxu0 0.0
        %910 = vmatprep.subr.mxu0 0.0
        %911 = vmatpush1.msra.mxu0 0.0
        %912 = vmatprep.subr.mxu0 0.0
        %913 = vmatpush1.msra.mxu0 0.0
        %914 = vmatprep.subr.mxu0 0.0
        %915 = vmatpush1.msra.mxu0 0.0
        %916 = vmatprep.subr.mxu0 0.0
        %917 = vmatpush1.msra.mxu0 0.0
        %918 = vmatprep.subr.mxu0 0.0
        %919 = vmatpush1.msra.mxu0 0.0
        %920 = vmatprep.subr.mxu0 0.0
        %921 = vmatpush1.msra.mxu0 0.0
        %922 = vmatprep.subr.mxu0 0.0
        %923 = vmatpush1.msra.mxu0 0.0
        %924 = vmatprep.subr.mxu0 0.0
        %925 = vmatpush1.msra.mxu0 0.0
        %926 = vmatprep.subr.mxu0 0.0
        %927 = vmatpush1.msra.mxu0 0.0
        %928 = vmatprep.subr.mxu0 0.0
        %929 = vmatpush1.msra.mxu0 0.0
        %930 = vmatprep.subr.mxu0 0.0
        %931 = vmatpush1.msra.mxu0 0.0
        %932 = vmatprep.subr.mxu0 0.0
        %933 = vmatpush1.msra.mxu0 0.0
        %934 = vmatprep.mubr.f32.mxu0 0.0
        %935 = vmatmul.mubr.f32.gmra.mrb[0].mxu0 %v868
        %v936 = vpop.f32.mrb[0].mxu0
        %v937 = vadd.f32 %v734, %v936
        %v938 = vpop.f32.mrb[0].mxu0
        %939 = vdwg.mxu0
        %v940 = vld [vmem:[%s654] sm:$0xff]
        %v942 = vsel %vm736, %v940, 0
        %944 = vmatprep.subr.mxu0 0.0
        %945 = vmatpush1.msra.mxu0 %v712
        %946 = vmatprep.subr.mxu0 0.0
        %947 = vmatpush1.msra.mxu0 %v713
        %948 = vmatprep.subr.mxu0 0.0
        %949 = vmatpush1.msra.mxu0 %v714
        %950 = vmatprep.subr.mxu0 0.0
        %951 = vmatpush1.msra.mxu0 %v715
        %952 = vmatprep.subr.mxu0 0.0
        %953 = vmatpush1.msra.mxu0 %v716
        %954 = vmatprep.subr.mxu0 0.0
        %955 = vmatpush1.msra.mxu0 %v717
        %956 = vmatprep.subr.mxu0 0.0
        %957 = vmatpush1.msra.mxu0 %v718
        %958 = vmatprep.subr.mxu0 0.0
        %959 = vmatpush1.msra.mxu0 %v719
        %960 = vmatprep.subr.mxu0 0.0
        %961 = vmatpush1.msra.mxu0 0.0
        %962 = vmatprep.subr.mxu0 0.0
        %963 = vmatpush1.msra.mxu0 0.0
        %964 = vmatprep.subr.mxu0 0.0
        %965 = vmatpush1.msra.mxu0 0.0
        %966 = vmatprep.subr.mxu0 0.0
        %967 = vmatpush1.msra.mxu0 0.0
        %968 = vmatprep.subr.mxu0 0.0
        %969 = vmatpush1.msra.mxu0 0.0
        %970 = vmatprep.subr.mxu0 0.0
        %971 = vmatpush1.msra.mxu0 0.0
        %972 = vmatprep.subr.mxu0 0.0
        %973 = vmatpush1.msra.mxu0 0.0
        %974 = vmatprep.subr.mxu0 0.0
        %975 = vmatpush1.msra.mxu0 0.0
        %976 = vmatprep.subr.mxu0 0.0
        %977 = vmatpush1.msra.mxu0 0.0
        %978 = vmatprep.subr.mxu0 0.0
        %979 = vmatpush1.msra.mxu0 0.0
        %980 = vmatprep.subr.mxu0 0.0
        %981 = vmatpush1.msra.mxu0 0.0
        %982 = vmatprep.subr.mxu0 0.0
        %983 = vmatpush1.msra.mxu0 0.0
        %984 = vmatprep.subr.mxu0 0.0
        %985 = vmatpush1.msra.mxu0 0.0
        %986 = vmatprep.subr.mxu0 0.0
        %987 = vmatpush1.msra.mxu0 0.0
        %988 = vmatprep.subr.mxu0 0.0
        %989 = vmatpush1.msra.mxu0 0.0
        %990 = vmatprep.subr.mxu0 0.0
        %991 = vmatpush1.msra.mxu0 0.0
        %992 = vmatprep.subr.mxu0 0.0
        %993 = vmatpush1.msra.mxu0 0.0
        %994 = vmatprep.subr.mxu0 0.0
        %995 = vmatpush1.msra.mxu0 0.0
        %996 = vmatprep.subr.mxu0 0.0
        %997 = vmatpush1.msra.mxu0 0.0
        %998 = vmatprep.subr.mxu0 0.0
        %999 = vmatpush1.msra.mxu0 0.0
        %1000 = vmatprep.subr.mxu0 0.0
        %1001 = vmatpush1.msra.mxu0 0.0
        %1002 = vmatprep.subr.mxu0 0.0
        %1003 = vmatpush1.msra.mxu0 0.0
        %1004 = vmatprep.subr.mxu0 0.0
        %1005 = vmatpush1.msra.mxu0 0.0
        %1006 = vmatprep.subr.mxu0 0.0
        %1007 = vmatpush1.msra.mxu0 0.0
        %1008 = vmatprep.mubr.f32.mxu0 0.0
        %1009 = vmatmul.mubr.f32.gmra.mrb[0].mxu0 %v942
        %v1010 = vpop.f32.mrb[0].mxu0
        %v1011 = vadd.f32 %v734, %v1010
        %v1012 = vpop.f32.mrb[0].mxu0
        %1013 = vdwg.mxu0
        %v1014 = vld [vmem:[%s667] sm:$0xf]
        %v1015 = vld [vmem:[%s667 + $0x4] sm:$0xf]
        %v1016 = vld [vmem:[%s667 + $0x8] sm:$0xf]
        %v1017 = vld [vmem:[%s667 + $0xc] sm:$0xf]
        %v1023 = vunpack.c.l.s4 1966171168
        %v1024 = vunpack.c.0.s8 %v1023
        %v1025 = vlaneseq
        %v1026 = vshrl.u32 %v1025, 7
        %v1027 = vsub.s32 %v1024, %v1026
        %v1028 = vrot.slane %v1014, %v1027
        %v1029 = vcombine.high %v1028, %v1028
        %v1031 = vunpack.c.l.s4 1966171168
        %v1032 = vunpack.c.0.s8 %v1031
        %v1033 = vlaneseq
        %v1034 = vshrl.u32 %v1033, 7
        %v1035 = vsub.s32 %v1032, %v1034
        %v1036 = vrot.slane %v1028, %v1035
        %v1038 = vunpack.c.l.s4 1966171168
        %v1039 = vunpack.c.0.s8 %v1038
        %v1040 = vlaneseq
        %v1041 = vshrl.u32 %v1040, 7
        %v1042 = vsub.s32 %v1039, %v1041
        %v1043 = vrot.slane %v1029, %v1042
        %v1044 = vcombine.high %v1036, %v1036
        %v1045 = vcombine.high %v1043, %v1043
        %v1047 = vunpack.c.l.s4 1966171168
        %v1048 = vunpack.c.0.s8 %v1047
        %v1049 = vlaneseq
        %v1050 = vshrl.u32 %v1049, 7
        %v1051 = vsub.s32 %v1048, %v1050
        %v1052 = vrot.slane %v1015, %v1051
        %v1053 = vcombine.high %v1052, %v1052
        %v1055 = vunpack.c.l.s4 1966171168
        %v1056 = vunpack.c.0.s8 %v1055
        %v1057 = vlaneseq
        %v1058 = vshrl.u32 %v1057, 7
        %v1059 = vsub.s32 %v1056, %v1058
        %v1060 = vrot.slane %v1052, %v1059
        %v1062 = vunpack.c.l.s4 1966171168
        %v1063 = vunpack.c.0.s8 %v1062
        %v1064 = vlaneseq
        %v1065 = vshrl.u32 %v1064, 7
        %v1066 = vsub.s32 %v1063, %v1065
        %v1067 = vrot.slane %v1053, %v1066
        %v1068 = vcombine.high %v1060, %v1060
        %v1069 = vcombine.high %v1067, %v1067
        %v1071 = vunpack.c.l.s4 1966171168
        %v1072 = vunpack.c.0.s8 %v1071
        %v1073 = vlaneseq
        %v1074 = vshrl.u32 %v1073, 7
        %v1075 = vsub.s32 %v1072, %v1074
        %v1076 = vrot.slane %v1016, %v1075
        %v1077 = vcombine.high %v1076, %v1076
        %v1079 = vunpack.c.l.s4 1966171168
        %v1080 = vunpack.c.0.s8 %v1079
        %v1081 = vlaneseq
        %v1082 = vshrl.u32 %v1081, 7
        %v1083 = vsub.s32 %v1080, %v1082
        %v1084 = vrot.slane %v1076, %v1083
        %v1086 = vunpack.c.l.s4 1966171168
        %v1087 = vunpack.c.0.s8 %v1086
        %v1088 = vlaneseq
        %v1089 = vshrl.u32 %v1088, 7
        %v1090 = vsub.s32 %v1087, %v1089
        %v1091 = vrot.slane %v1077, %v1090
        %v1092 = vcombine.high %v1084, %v1084
        %v1093 = vcombine.high %v1091, %v1091
        %v1095 = vunpack.c.l.s4 1966171168
        %v1096 = vunpack.c.0.s8 %v1095
        %v1097 = vlaneseq
        %v1098 = vshrl.u32 %v1097, 7
        %v1099 = vsub.s32 %v1096, %v1098
        %v1100 = vrot.slane %v1017, %v1099
        %v1101 = vcombine.high %v1100, %v1100
        %v1103 = vunpack.c.l.s4 1966171168
        %v1104 = vunpack.c.0.s8 %v1103
        %v1105 = vlaneseq
        %v1106 = vshrl.u32 %v1105, 7
        %v1107 = vsub.s32 %v1104, %v1106
        %v1108 = vrot.slane %v1100, %v1107
        %v1110 = vunpack.c.l.s4 1966171168
        %v1111 = vunpack.c.0.s8 %v1110
        %v1112 = vlaneseq
        %v1113 = vshrl.u32 %v1112, 7
        %v1114 = vsub.s32 %v1111, %v1113
        %v1115 = vrot.slane %v1101, %v1114
        %v1116 = vcombine.high %v1108, %v1108
        %v1117 = vcombine.high %v1115, %v1115
        %v1118 = vlaneseq
        %v1119 = vshrl.u32 %v1118, 7
        %v1120 = vsub.s32 0, %v1119
        %v1121 = vrot.slane %v1036, %v1120
        %v1122 = vlaneseq
        %v1123 = vshrl.u32 %v1122, 7
        %v1124 = vsub.s32 0, %v1123
        %v1125 = vrot.slane %v1043, %v1124
        %v1126 = vlaneseq
        %v1127 = vshrl.u32 %v1126, 7
        %v1128 = vsub.s32 0, %v1127
        %v1129 = vrot.slane %v1044, %v1128
        %v1130 = vlaneseq
        %v1131 = vshrl.u32 %v1130, 7
        %v1132 = vsub.s32 0, %v1131
        %v1133 = vrot.slane %v1045, %v1132
        %v1134 = vlaneseq
        %v1135 = vshrl.u32 %v1134, 7
        %v1136 = vsub.s32 0, %v1135
        %v1137 = vrot.slane %v1060, %v1136
        %v1138 = vlaneseq
        %v1139 = vshrl.u32 %v1138, 7
        %v1140 = vsub.s32 0, %v1139
        %v1141 = vrot.slane %v1067, %v1140
        %v1142 = vlaneseq
        %v1143 = vshrl.u32 %v1142, 7
        %v1144 = vsub.s32 0, %v1143
        %v1145 = vrot.slane %v1068, %v1144
        %v1146 = vlaneseq
        %v1147 = vshrl.u32 %v1146, 7
        %v1148 = vsub.s32 0, %v1147
        %v1149 = vrot.slane %v1069, %v1148
        %v1150 = vlaneseq
        %v1151 = vshrl.u32 %v1150, 7
        %v1152 = vsub.s32 0, %v1151
        %v1153 = vrot.slane %v1084, %v1152
        %v1154 = vlaneseq
        %v1155 = vshrl.u32 %v1154, 7
        %v1156 = vsub.s32 0, %v1155
        %v1157 = vrot.slane %v1091, %v1156
        %v1158 = vlaneseq
        %v1159 = vshrl.u32 %v1158, 7
        %v1160 = vsub.s32 0, %v1159
        %v1161 = vrot.slane %v1092, %v1160
        %v1162 = vlaneseq
        %v1163 = vshrl.u32 %v1162, 7
        %v1164 = vsub.s32 0, %v1163
        %v1165 = vrot.slane %v1093, %v1164
        %v1166 = vlaneseq
        %v1167 = vshrl.u32 %v1166, 7
        %v1168 = vsub.s32 0, %v1167
        %v1169 = vrot.slane %v1108, %v1168
        %v1170 = vlaneseq
        %v1171 = vshrl.u32 %v1170, 7
        %v1172 = vsub.s32 0, %v1171
        %v1173 = vrot.slane %v1115, %v1172
        %v1174 = vlaneseq
        %v1175 = vshrl.u32 %v1174, 7
        %v1176 = vsub.s32 0, %v1175
        %v1177 = vrot.slane %v1116, %v1176
        %v1178 = vlaneseq
        %v1179 = vshrl.u32 %v1178, 7
        %v1180 = vsub.s32 0, %v1179
        %v1181 = vrot.slane %v1117, %v1180
        %v1182 = vcombine.low %v1121, %v1125
        %v1183 = vcombine.low %v1129, %v1133
        %v1185 = vunpack.c.l.s4 1983009808
        %v1186 = vunpack.c.0.s8 %v1185
        %v1187 = vlaneseq
        %v1188 = vshrl.u32 %v1187, 7
        %v1189 = vsub.s32 %v1186, %v1188
        %v1190 = vrot.slane %v1182, %v1189
        %v1192 = vunpack.c.l.s4 1983009808
        %v1193 = vunpack.c.0.s8 %v1192
        %v1194 = vlaneseq
        %v1195 = vshrl.u32 %v1194, 7
        %v1196 = vsub.s32 %v1193, %v1195
        %v1197 = vrot.slane %v1183, %v1196
        %v1198 = vcombine.low %v1190, %v1197
        %v1199 = vcombine.low %v1137, %v1141
        %v1200 = vcombine.low %v1145, %v1149
        %v1202 = vunpack.c.l.s4 1983009808
        %v1203 = vunpack.c.0.s8 %v1202
        %v1204 = vlaneseq
        %v1205 = vshrl.u32 %v1204, 7
        %v1206 = vsub.s32 %v1203, %v1205
        %v1207 = vrot.slane %v1199, %v1206
        %v1209 = vunpack.c.l.s4 1983009808
        %v1210 = vunpack.c.0.s8 %v1209
        %v1211 = vlaneseq
        %v1212 = vshrl.u32 %v1211, 7
        %v1213 = vsub.s32 %v1210, %v1212
        %v1214 = vrot.slane %v1200, %v1213
        %v1215 = vcombine.low %v1207, %v1214
        %v1216 = vcombine.low %v1153, %v1157
        %v1217 = vcombine.low %v1161, %v1165
        %v1219 = vunpack.c.l.s4 1983009808
        %v1220 = vunpack.c.0.s8 %v1219
        %v1221 = vlaneseq
        %v1222 = vshrl.u32 %v1221, 7
        %v1223 = vsub.s32 %v1220, %v1222
        %v1224 = vrot.slane %v1216, %v1223
        %v1226 = vunpack.c.l.s4 1983009808
        %v1227 = vunpack.c.0.s8 %v1226
        %v1228 = vlaneseq
        %v1229 = vshrl.u32 %v1228, 7
        %v1230 = vsub.s32 %v1227, %v1229
        %v1231 = vrot.slane %v1217, %v1230
        %v1232 = vcombine.low %v1224, %v1231
        %v1233 = vcombine.low %v1169, %v1173
        %v1234 = vcombine.low %v1177, %v1181
        %v1236 = vunpack.c.l.s4 1983009808
        %v1237 = vunpack.c.0.s8 %v1236
        %v1238 = vlaneseq
        %v1239 = vshrl.u32 %v1238, 7
        %v1240 = vsub.s32 %v1237, %v1239
        %v1241 = vrot.slane %v1233, %v1240
        %v1243 = vunpack.c.l.s4 1983009808
        %v1244 = vunpack.c.0.s8 %v1243
        %v1245 = vlaneseq
        %v1246 = vshrl.u32 %v1245, 7
        %v1247 = vsub.s32 %v1244, %v1246
        %v1248 = vrot.slane %v1234, %v1247
        %v1249 = vcombine.low %v1241, %v1248
        %v1254 = vadd.f32 %v828, %v1198
        %v1255 = vadd.f32 %v833, %v1198
        %v1256 = vadd.f32 %v838, %v1215
        %v1257 = vadd.f32 %v843, %v1215
        %v1258 = vadd.f32 %v848, %v1232
        %v1259 = vadd.f32 %v853, %v1232
        %v1260 = vadd.f32 %v858, %v1249
        %v1261 = vadd.f32 %v863, %v1249
        %v1262 = vld [vmem:[%s680] sm:$0xf]
        %v1265 = vunpack.c.l.s4 1966171168
        %v1266 = vunpack.c.0.s8 %v1265
        %v1267 = vlaneseq
        %v1268 = vshrl.u32 %v1267, 7
        %v1269 = vsub.s32 %v1266, %v1268
        %v1270 = vrot.slane %v1262, %v1269
        %v1271 = vcombine.high %v1270, %v1270
        %v1273 = vunpack.c.l.s4 1966171168
        %v1274 = vunpack.c.0.s8 %v1273
        %v1275 = vlaneseq
        %v1276 = vshrl.u32 %v1275, 7
        %v1277 = vsub.s32 %v1274, %v1276
        %v1278 = vrot.slane %v1270, %v1277
        %v1280 = vunpack.c.l.s4 1966171168
        %v1281 = vunpack.c.0.s8 %v1280
        %v1282 = vlaneseq
        %v1283 = vshrl.u32 %v1282, 7
        %v1284 = vsub.s32 %v1281, %v1283
        %v1285 = vrot.slane %v1271, %v1284
        %v1286 = vcombine.high %v1278, %v1278
        %v1287 = vcombine.high %v1285, %v1285
        %v1288 = vlaneseq
        %v1289 = vshrl.u32 %v1288, 7
        %v1290 = vsub.s32 0, %v1289
        %v1291 = vrot.slane %v1278, %v1290
        %v1292 = vlaneseq
        %v1293 = vshrl.u32 %v1292, 7
        %v1294 = vsub.s32 0, %v1293
        %v1295 = vrot.slane %v1285, %v1294
        %v1296 = vlaneseq
        %v1297 = vshrl.u32 %v1296, 7
        %v1298 = vsub.s32 0, %v1297
        %v1299 = vrot.slane %v1286, %v1298
        %v1300 = vlaneseq
        %v1301 = vshrl.u32 %v1300, 7
        %v1302 = vsub.s32 0, %v1301
        %v1303 = vrot.slane %v1287, %v1302
        %v1304 = vcombine.low %v1291, %v1295
        %v1305 = vcombine.low %v1299, %v1303
        %v1307 = vunpack.c.l.s4 1983009808
        %v1308 = vunpack.c.0.s8 %v1307
        %v1309 = vlaneseq
        %v1310 = vshrl.u32 %v1309, 7
        %v1311 = vsub.s32 %v1308, %v1310
        %v1312 = vrot.slane %v1304, %v1311
        %v1314 = vunpack.c.l.s4 1983009808
        %v1315 = vunpack.c.0.s8 %v1314
        %v1316 = vlaneseq
        %v1317 = vshrl.u32 %v1316, 7
        %v1318 = vsub.s32 %v1315, %v1317
        %v1319 = vrot.slane %v1305, %v1318
        %v1320 = vcombine.low %v1312, %v1319
        %v1322 = vadd.f32 %v937, %v1320
        %v1323 = vld [vmem:[%s696] sm:$0xf]
        %v1326 = vunpack.c.l.s4 1966171168
        %v1327 = vunpack.c.0.s8 %v1326
        %v1328 = vlaneseq
        %v1329 = vshrl.u32 %v1328, 7
        %v1330 = vsub.s32 %v1327, %v1329
        %v1331 = vrot.slane %v1323, %v1330
        %v1332 = vcombine.high %v1331, %v1331
        %v1334 = vunpack.c.l.s4 1966171168
        %v1335 = vunpack.c.0.s8 %v1334
        %v1336 = vlaneseq
        %v1337 = vshrl.u32 %v1336, 7
        %v1338 = vsub.s32 %v1335, %v1337
        %v1339 = vrot.slane %v1331, %v1338
        %v1341 = vunpack.c.l.s4 1966171168
        %v1342 = vunpack.c.0.s8 %v1341
        %v1343 = vlaneseq
        %v1344 = vshrl.u32 %v1343, 7
        %v1345 = vsub.s32 %v1342, %v1344
        %v1346 = vrot.slane %v1332, %v1345
        %v1347 = vcombine.high %v1339, %v1339
        %v1348 = vcombine.high %v1346, %v1346
        %v1349 = vlaneseq
        %v1350 = vshrl.u32 %v1349, 7
        %v1351 = vsub.s32 0, %v1350
        %v1352 = vrot.slane %v1339, %v1351
        %v1353 = vlaneseq
        %v1354 = vshrl.u32 %v1353, 7
        %v1355 = vsub.s32 0, %v1354
        %v1356 = vrot.slane %v1346, %v1355
        %v1357 = vlaneseq
        %v1358 = vshrl.u32 %v1357, 7
        %v1359 = vsub.s32 0, %v1358
        %v1360 = vrot.slane %v1347, %v1359
        %v1361 = vlaneseq
        %v1362 = vshrl.u32 %v1361, 7
        %v1363 = vsub.s32 0, %v1362
        %v1364 = vrot.slane %v1348, %v1363
        %v1365 = vcombine.low %v1352, %v1356
        %v1366 = vcombine.low %v1360, %v1364
        %v1368 = vunpack.c.l.s4 1983009808
        %v1369 = vunpack.c.0.s8 %v1368
        %v1370 = vlaneseq
        %v1371 = vshrl.u32 %v1370, 7
        %v1372 = vsub.s32 %v1369, %v1371
        %v1373 = vrot.slane %v1365, %v1372
        %v1375 = vunpack.c.l.s4 1983009808
        %v1376 = vunpack.c.0.s8 %v1375
        %v1377 = vlaneseq
        %v1378 = vshrl.u32 %v1377, 7
        %v1379 = vsub.s32 %v1376, %v1378
        %v1380 = vrot.slane %v1366, %v1379
        %v1381 = vcombine.low %v1373, %v1380
        %v1383 = vadd.f32 %v1011, %v1381
        %p1384 = scmp.gt.s32.totalorder %s31, 0
        %s1385 = scalar_select %p1384, 1, 0
        %s1386 = scvt.s32.f32 %s1385
        %v1387 = vstv %s1386
        %v1388 = vmul.f32 %v1322, %v1387
        %p1389 = scmp.lt.s32.totalorder %s31, 0
        %s1390 = scalar_select %p1389, 1, 0
        %s1391 = scvt.s32.f32 %s1390
        %v1392 = vstv %s1391
        %v1393 = vmul.f32 %v1383, %v1392
        %1394 = vst [vmem:[%s709] sm:$0xff] %v1254
        %1395 = vst [vmem:[%s709 + $0x8] sm:$0xff] %v1255
        %1396 = vst [vmem:[%s709 + $0x10] sm:$0xff] %v1256
        %1397 = vst [vmem:[%s709 + $0x18] sm:$0xff] %v1257
        %1398 = vst [vmem:[%s709 + $0x20] sm:$0xff] %v1258
        %1399 = vst [vmem:[%s709 + $0x28] sm:$0xff] %v1259
        %1400 = vst [vmem:[%s709 + $0x30] sm:$0xff] %v1260
        %1401 = vst [vmem:[%s709 + $0x38] sm:$0xff] %v1261
        %v1412 = vrot.slane %v1388, 7
        %v1413 = vrot.slane %v1254, 7
        %v1414 = vrot.slane %v1255, 7
        %v1415 = vrot.slane %v1256, 7
        %v1416 = vrot.slane %v1257, 7
        %v1417 = vrot.slane %v1258, 7
        %v1418 = vrot.slane %v1259, 7
        %v1419 = vrot.slane %v1260, 7
        %v1420 = vrot.slane %v1261, 7
        %v1421 = vrot.slane %v1393, 7
        %vm1432 = vcmask 1040384
        %v1433 = vsel %vm1432, 0.0, %v1412
        %v1434 = vsel %vm1432, 0.0, %v1413
        %v1435 = vsel %vm1432, 0.0, %v1414
        %v1436 = vsel %vm1432, 0.0, %v1415
        %v1437 = vsel %vm1432, 0.0, %v1416
        %v1438 = vsel %vm1432, 0.0, %v1417
        %v1439 = vsel %vm1432, 0.0, %v1418
        %v1440 = vsel %vm1432, 0.0, %v1419
        %v1441 = vsel %vm1432, 0.0, %v1420
        %v1442 = vsel %vm1432, 0.0, %v1421
        %v1443 = vsel %vm1432, %v1412, 0.0
        %v1444 = vsel %vm1432, %v1413, 0.0
        %v1445 = vsel %vm1432, %v1414, 0.0
        %v1446 = vsel %vm1432, %v1415, 0.0
        %v1447 = vsel %vm1432, %v1416, 0.0
        %v1448 = vsel %vm1432, %v1417, 0.0
        %v1449 = vsel %vm1432, %v1418, 0.0
        %v1450 = vsel %vm1432, %v1419, 0.0
        %v1451 = vsel %vm1432, %v1420, 0.0
        %v1452 = vsel %vm1432, %v1421, 0.0
        %v1453 = vld [vmem:[%s8] sm:$0xff]
        %v1454 = vld [vmem:[%s8 + $0x8] sm:$0xff]
        %v1455 = vld [vmem:[%s8 + $0x10] sm:$0xff]
        %v1456 = vld [vmem:[%s8 + $0x18] sm:$0xff]
        %v1457 = vld [vmem:[%s8 + $0x20] sm:$0xff]
        %v1458 = vld [vmem:[%s8 + $0x28] sm:$0xff]
        %v1459 = vld [vmem:[%s8 + $0x30] sm:$0xff]
        %v1460 = vld [vmem:[%s8 + $0x38] sm:$0xff]
        %v1461 = vld [vmem:[%s8 + $0x40] sm:$0xff]
        %v1462 = vld [vmem:[%s8 + $0x48] sm:$0xff]
        %v1463 = vld [vmem:[%s8 + $0x50] sm:$0xff]
        %v1464 = vld [vmem:[%s8 + $0x58] sm:$0xff]
        %v1465 = vld [vmem:[%s8 + $0x60] sm:$0xff]
        %v1466 = vld [vmem:[%s8 + $0x68] sm:$0xff]
        %v1467 = vld [vmem:[%s8 + $0x70] sm:$0xff]
        %v1468 = vld [vmem:[%s8 + $0x78] sm:$0xff]
        %s1469 = scalar_lea.vmem %s8, 128
        %v1470 = vld [vmem:[%s1469] sm:$0xff]
        %v1471 = vld [vmem:[%s1469 + $0x8] sm:$0xff]
        %v1472 = vld [vmem:[%s1469 + $0x10] sm:$0xff]
        %v1473 = vld [vmem:[%s1469 + $0x18] sm:$0xff]
        %v1474 = vld [vmem:[%s1469 + $0x20] sm:$0xff]
        %v1475 = vld [vmem:[%s1469 + $0x28] sm:$0xff]
        %v1476 = vld [vmem:[%s1469 + $0x30] sm:$0xff]
        %v1477 = vld [vmem:[%s1469 + $0x38] sm:$0xff]
        %v1478 = vld [vmem:[%s1469 + $0x40] sm:$0xff]
        %v1479 = vld [vmem:[%s1469 + $0x48] sm:$0xff]
        %v1480 = vld [vmem:[%s1469 + $0x50] sm:$0xff]
        %v1481 = vld [vmem:[%s1469 + $0x58] sm:$0xff]
        %v1482 = vld [vmem:[%s1469 + $0x60] sm:$0xff]
        %v1483 = vld [vmem:[%s1469 + $0x68] sm:$0xff]
        %v1484 = vld [vmem:[%s1469 + $0x70] sm:$0xff]
        %v1485 = vld [vmem:[%s1469 + $0x78] sm:$0xff]
        %vm1502 = vcmask 1046528
        %v1503 = vrot.slane %v1433, 1
        %v1504 = vrot.slane %v1443, 1
        %v1505 = vsel %vm1502, %v1503, %v1504
        %v1506 = vrot.slane %v1434, 1
        %v1507 = vrot.slane %v1444, 1
        %v1508 = vsel %vm1502, %v1506, %v1507
        %v1509 = vrot.slane %v1435, 1
        %v1510 = vrot.slane %v1445, 1
        %v1511 = vsel %vm1502, %v1509, %v1510
        %v1512 = vrot.slane %v1436, 1
        %v1513 = vrot.slane %v1446, 1
        %v1514 = vsel %vm1502, %v1512, %v1513
        %v1515 = vrot.slane %v1437, 1
        %v1516 = vrot.slane %v1447, 1
        %v1517 = vsel %vm1502, %v1515, %v1516
        %v1518 = vrot.slane %v1438, 1
        %v1519 = vrot.slane %v1448, 1
        %v1520 = vsel %vm1502, %v1518, %v1519
        %v1521 = vrot.slane %v1439, 1
        %v1522 = vrot.slane %v1449, 1
        %v1523 = vsel %vm1502, %v1521, %v1522
        %v1524 = vrot.slane %v1440, 1
        %v1525 = vrot.slane %v1450, 1
        %v1526 = vsel %vm1502, %v1524, %v1525
        %1535 = vmatprep.subr.mxu0 0.0
        %1536 = vmatpush1.msra.mxu0 %v1470
        %1537 = vmatprep.subr.mxu0 0.0
        %1538 = vmatpush1.msra.mxu0 %v1471
        %1539 = vmatprep.subr.mxu0 0.0
        %1540 = vmatpush1.msra.mxu0 %v1472
        %1541 = vmatprep.subr.mxu0 0.0
        %1542 = vmatpush1.msra.mxu0 %v1473
        %1543 = vmatprep.subr.mxu0 0.0
        %1544 = vmatpush1.msra.mxu0 %v1474
        %1545 = vmatprep.subr.mxu0 0.0
        %1546 = vmatpush1.msra.mxu0 %v1475
        %1547 = vmatprep.subr.mxu0 0.0
        %1548 = vmatpush1.msra.mxu0 %v1476
        %1549 = vmatprep.subr.mxu0 0.0
        %1550 = vmatpush1.msra.mxu0 %v1477
        %1551 = vmatprep.subr.mxu0 0.0
        %1552 = vmatpush1.msra.mxu0 %v1478
        %1553 = vmatprep.subr.mxu0 0.0
        %1554 = vmatpush1.msra.mxu0 %v1479
        %1555 = vmatprep.subr.mxu0 0.0
        %1556 = vmatpush1.msra.mxu0 %v1480
        %1557 = vmatprep.subr.mxu0 0.0
        %1558 = vmatpush1.msra.mxu0 %v1481
        %1559 = vmatprep.subr.mxu0 0.0
        %1560 = vmatpush1.msra.mxu0 %v1482
        %1561 = vmatprep.subr.mxu0 0.0
        %1562 = vmatpush1.msra.mxu0 %v1483
        %1563 = vmatprep.subr.mxu0 0.0
        %1564 = vmatpush1.msra.mxu0 %v1484
        %1565 = vmatprep.subr.mxu0 0.0
        %1566 = vmatpush1.msra.mxu0 %v1485
        %1567 = vmatprep.subr.mxu0 0.0
        %1568 = vmatpush1.msra.mxu0 0.0
        %1569 = vmatprep.subr.mxu0 0.0
        %1570 = vmatpush1.msra.mxu0 0.0
        %1571 = vmatprep.subr.mxu0 0.0
        %1572 = vmatpush1.msra.mxu0 0.0
        %1573 = vmatprep.subr.mxu0 0.0
        %1574 = vmatpush1.msra.mxu0 0.0
        %1575 = vmatprep.subr.mxu0 0.0
        %1576 = vmatpush1.msra.mxu0 0.0
        %1577 = vmatprep.subr.mxu0 0.0
        %1578 = vmatpush1.msra.mxu0 0.0
        %1579 = vmatprep.subr.mxu0 0.0
        %1580 = vmatpush1.msra.mxu0 0.0
        %1581 = vmatprep.subr.mxu0 0.0
        %1582 = vmatpush1.msra.mxu0 0.0
        %1583 = vmatprep.subr.mxu0 0.0
        %1584 = vmatpush1.msra.mxu0 0.0
        %1585 = vmatprep.subr.mxu0 0.0
        %1586 = vmatpush1.msra.mxu0 0.0
        %1587 = vmatprep.subr.mxu0 0.0
        %1588 = vmatpush1.msra.mxu0 0.0
        %1589 = vmatprep.subr.mxu0 0.0
        %1590 = vmatpush1.msra.mxu0 0.0
        %1591 = vmatprep.subr.mxu0 0.0
        %1592 = vmatpush1.msra.mxu0 0.0
        %1593 = vmatprep.subr.mxu0 0.0
        %1594 = vmatpush1.msra.mxu0 0.0
        %1595 = vmatprep.subr.mxu0 0.0
        %1596 = vmatpush1.msra.mxu0 0.0
        %1597 = vmatprep.subr.mxu0 0.0
        %1598 = vmatpush1.msra.mxu0 0.0
        %1599 = vmatprep.mubr.f32.mxu0 0.0
        %1600 = vmatmul.mubr.f32.gmra.mrb[0].mxu0 %v1505
        %v1601 = vpop.f32.mrb[0].mxu0
        %v1602 = vadd.f32 0.0, %v1601
        %v1603 = vpop.f32.mrb[0].mxu0
        %1604 = vmatprep.mubr.f32.mxu0 0.0
        %1605 = vmatmul.mubr.f32.gmra.mrb[0].mxu0 %v1508
        %v1606 = vpop.f32.mrb[0].mxu0
        %v1607 = vadd.f32 0.0, %v1606
        %v1608 = vpop.f32.mrb[0].mxu0
        %1609 = vmatprep.mubr.f32.mxu0 0.0
        %1610 = vmatmul.mubr.f32.gmra.mrb[0].mxu0 %v1511
        %v1611 = vpop.f32.mrb[0].mxu0
        %v1612 = vadd.f32 0.0, %v1611
        %v1613 = vpop.f32.mrb[0].mxu0
        %1614 = vmatprep.mubr.f32.mxu0 0.0
        %1615 = vmatmul.mubr.f32.gmra.mrb[0].mxu0 %v1514
        %v1616 = vpop.f32.mrb[0].mxu0
        %v1617 = vadd.f32 0.0, %v1616
        %v1618 = vpop.f32.mrb[0].mxu0
        %1619 = vmatprep.mubr.f32.mxu0 0.0
        %1620 = vmatmul.mubr.f32.gmra.mrb[0].mxu0 %v1517
        %v1621 = vpop.f32.mrb[0].mxu0
        %v1622 = vadd.f32 0.0, %v1621
        %v1623 = vpop.f32.mrb[0].mxu0
        %1624 = vmatprep.mubr.f32.mxu0 0.0
        %1625 = vmatmul.mubr.f32.gmra.mrb[0].mxu0 %v1520
        %v1626 = vpop.f32.mrb[0].mxu0
        %v1627 = vadd.f32 0.0, %v1626
        %v1628 = vpop.f32.mrb[0].mxu0
        %1629 = vmatprep.mubr.f32.mxu0 0.0
        %1630 = vmatmul.mubr.f32.gmra.mrb[0].mxu0 %v1523
        %v1631 = vpop.f32.mrb[0].mxu0
        %v1632 = vadd.f32 0.0, %v1631
        %v1633 = vpop.f32.mrb[0].mxu0
        %1634 = vmatprep.mubr.f32.mxu0 0.0
        %1635 = vmatmul.mubr.f32.gmra.mrb[0].mxu0 %v1526
        %v1636 = vpop.f32.mrb[0].mxu0
        %v1637 = vadd.f32 0.0, %v1636
        %v1638 = vpop.f32.mrb[0].mxu0
        %1639 = vdwg.mxu0
        %1640 = vmatprep.subr.mxu0 0.0
        %1641 = vmatpush1.msra.mxu0 %v1453
        %1642 = vmatprep.subr.mxu0 0.0
        %1643 = vmatpush1.msra.mxu0 %v1454
        %1644 = vmatprep.subr.mxu0 0.0
        %1645 = vmatpush1.msra.mxu0 %v1455
        %1646 = vmatprep.subr.mxu0 0.0
        %1647 = vmatpush1.msra.mxu0 %v1456
        %1648 = vmatprep.subr.mxu0 0.0
        %1649 = vmatpush1.msra.mxu0 %v1457
        %1650 = vmatprep.subr.mxu0 0.0
        %1651 = vmatpush1.msra.mxu0 %v1458
        %1652 = vmatprep.subr.mxu0 0.0
        %1653 = vmatpush1.msra.mxu0 %v1459
        %1654 = vmatprep.subr.mxu0 0.0
        %1655 = vmatpush1.msra.mxu0 %v1460
        %1656 = vmatprep.subr.mxu0 0.0
        %1657 = vmatpush1.msra.mxu0 %v1461
        %1658 = vmatprep.subr.mxu0 0.0
        %1659 = vmatpush1.msra.mxu0 %v1462
        %1660 = vmatprep.subr.mxu0 0.0
        %1661 = vmatpush1.msra.mxu0 %v1463
        %1662 = vmatprep.subr.mxu0 0.0
        %1663 = vmatpush1.msra.mxu0 %v1464
        %1664 = vmatprep.subr.mxu0 0.0
        %1665 = vmatpush1.msra.mxu0 %v1465
        %1666 = vmatprep.subr.mxu0 0.0
        %1667 = vmatpush1.msra.mxu0 %v1466
        %1668 = vmatprep.subr.mxu0 0.0
        %1669 = vmatpush1.msra.mxu0 %v1467
        %1670 = vmatprep.subr.mxu0 0.0
        %1671 = vmatpush1.msra.mxu0 %v1468
        %1672 = vmatprep.subr.mxu0 0.0
        %1673 = vmatpush1.msra.mxu0 0.0
        %1674 = vmatprep.subr.mxu0 0.0
        %1675 = vmatpush1.msra.mxu0 0.0
        %1676 = vmatprep.subr.mxu0 0.0
        %1677 = vmatpush1.msra.mxu0 0.0
        %1678 = vmatprep.subr.mxu0 0.0
        %1679 = vmatpush1.msra.mxu0 0.0
        %1680 = vmatprep.subr.mxu0 0.0
        %1681 = vmatpush1.msra.mxu0 0.0
        %1682 = vmatprep.subr.mxu0 0.0
        %1683 = vmatpush1.msra.mxu0 0.0
        %1684 = vmatprep.subr.mxu0 0.0
        %1685 = vmatpush1.msra.mxu0 0.0
        %1686 = vmatprep.subr.mxu0 0.0
        %1687 = vmatpush1.msra.mxu0 0.0
        %1688 = vmatprep.subr.mxu0 0.0
        %1689 = vmatpush1.msra.mxu0 0.0
        %1690 = vmatprep.subr.mxu0 0.0
        %1691 = vmatpush1.msra.mxu0 0.0
        %1692 = vmatprep.subr.mxu0 0.0
        %1693 = vmatpush1.msra.mxu0 0.0
        %1694 = vmatprep.subr.mxu0 0.0
        %1695 = vmatpush1.msra.mxu0 0.0
        %1696 = vmatprep.subr.mxu0 0.0
        %1697 = vmatpush1.msra.mxu0 0.0
        %1698 = vmatprep.subr.mxu0 0.0
        %1699 = vmatpush1.msra.mxu0 0.0
        %1700 = vmatprep.subr.mxu0 0.0
        %1701 = vmatpush1.msra.mxu0 0.0
        %1702 = vmatprep.subr.mxu0 0.0
        %1703 = vmatpush1.msra.mxu0 0.0
        %1704 = vmatprep.mubr.f32.mxu0 0.0
        %1705 = vmatmul.mubr.f32.gmra.mrb[0].mxu0 %v1433
        %v1706 = vpop.f32.mrb[0].mxu0
        %v1707 = vadd.f32 %v1602, %v1706
        %v1708 = vpop.f32.mrb[0].mxu0
        %1709 = vmatprep.mubr.f32.mxu0 0.0
        %1710 = vmatmul.mubr.f32.gmra.mrb[0].mxu0 %v1434
        %v1711 = vpop.f32.mrb[0].mxu0
        %v1712 = vadd.f32 %v1607, %v1711
        %v1713 = vpop.f32.mrb[0].mxu0
        %1714 = vmatprep.mubr.f32.mxu0 0.0
        %1715 = vmatmul.mubr.f32.gmra.mrb[0].mxu0 %v1435
        %v1716 = vpop.f32.mrb[0].mxu0
        %v1717 = vadd.f32 %v1612, %v1716
        %v1718 = vpop.f32.mrb[0].mxu0
        %1719 = vmatprep.mubr.f32.mxu0 0.0
        %1720 = vmatmul.mubr.f32.gmra.mrb[0].mxu0 %v1436
        %v1721 = vpop.f32.mrb[0].mxu0
        %v1722 = vadd.f32 %v1617, %v1721
        %v1723 = vpop.f32.mrb[0].mxu0
        %1724 = vmatprep.mubr.f32.mxu0 0.0
        %1725 = vmatmul.mubr.f32.gmra.mrb[0].mxu0 %v1437
        %v1726 = vpop.f32.mrb[0].mxu0
        %v1727 = vadd.f32 %v1622, %v1726
        %v1728 = vpop.f32.mrb[0].mxu0
        %1729 = vmatprep.mubr.f32.mxu0 0.0
        %1730 = vmatmul.mubr.f32.gmra.mrb[0].mxu0 %v1438
        %v1731 = vpop.f32.mrb[0].mxu0
        %v1732 = vadd.f32 %v1627, %v1731
        %v1733 = vpop.f32.mrb[0].mxu0
        %1734 = vmatprep.mubr.f32.mxu0 0.0
        %1735 = vmatmul.mubr.f32.gmra.mrb[0].mxu0 %v1439
        %v1736 = vpop.f32.mrb[0].mxu0
        %v1737 = vadd.f32 %v1632, %v1736
        %v1738 = vpop.f32.mrb[0].mxu0
        %1739 = vmatprep.mubr.f32.mxu0 0.0
        %1740 = vmatmul.mubr.f32.gmra.mrb[0].mxu0 %v1440
        %v1741 = vpop.f32.mrb[0].mxu0
        %v1742 = vadd.f32 %v1637, %v1741
        %v1743 = vpop.f32.mrb[0].mxu0
        %1744 = vdwg.mxu0
        %s1745 = scalar_lea.vmem %s8, 256
        %v1746 = vld [vmem:[%s1745] sm:$0xff]
        %v1747 = vld [vmem:[%s1745 + $0x8] sm:$0xff]
        %v1748 = vld [vmem:[%s1745 + $0x10] sm:$0xff]
        %v1749 = vld [vmem:[%s1745 + $0x18] sm:$0xff]
        %v1750 = vld [vmem:[%s1745 + $0x20] sm:$0xff]
        %v1751 = vld [vmem:[%s1745 + $0x28] sm:$0xff]
        %v1752 = vld [vmem:[%s1745 + $0x30] sm:$0xff]
        %v1753 = vld [vmem:[%s1745 + $0x38] sm:$0xff]
        %v1754 = vld [vmem:[%s1745 + $0x40] sm:$0xff]
        %v1755 = vld [vmem:[%s1745 + $0x48] sm:$0xff]
        %v1756 = vld [vmem:[%s1745 + $0x50] sm:$0xff]
        %v1757 = vld [vmem:[%s1745 + $0x58] sm:$0xff]
        %v1758 = vld [vmem:[%s1745 + $0x60] sm:$0xff]
        %v1759 = vld [vmem:[%s1745 + $0x68] sm:$0xff]
        %v1760 = vld [vmem:[%s1745 + $0x70] sm:$0xff]
        %v1761 = vld [vmem:[%s1745 + $0x78] sm:$0xff]
        %vm1762 = vcmask 1045504
        %v1763 = vrot.slane %v1433, 2
        %v1764 = vrot.slane %v1443, 2
        %v1765 = vsel %vm1762, %v1763, %v1764
        %v1766 = vrot.slane %v1434, 2
        %v1767 = vrot.slane %v1444, 2
        %v1768 = vsel %vm1762, %v1766, %v1767
        %v1769 = vrot.slane %v1435, 2
        %v1770 = vrot.slane %v1445, 2
        %v1771 = vsel %vm1762, %v1769, %v1770
        %v1772 = vrot.slane %v1436, 2
        %v1773 = vrot.slane %v1446, 2
        %v1774 = vsel %vm1762, %v1772, %v1773
        %v1775 = vrot.slane %v1437, 2
        %v1776 = vrot.slane %v1447, 2
        %v1777 = vsel %vm1762, %v1775, %v1776
        %v1778 = vrot.slane %v1438, 2
        %v1779 = vrot.slane %v1448, 2
        %v1780 = vsel %vm1762, %v1778, %v1779
        %v1781 = vrot.slane %v1439, 2
        %v1782 = vrot.slane %v1449, 2
        %v1783 = vsel %vm1762, %v1781, %v1782
        %v1784 = vrot.slane %v1440, 2
        %v1785 = vrot.slane %v1450, 2
        %v1786 = vsel %vm1762, %v1784, %v1785
        %1795 = vmatprep.subr.mxu0 0.0
        %1796 = vmatpush1.msra.mxu0 %v1746
        %1797 = vmatprep.subr.mxu0 0.0
        %1798 = vmatpush1.msra.mxu0 %v1747
        %1799 = vmatprep.subr.mxu0 0.0
        %1800 = vmatpush1.msra.mxu0 %v1748
        %1801 = vmatprep.subr.mxu0 0.0
        %1802 = vmatpush1.msra.mxu0 %v1749
        %1803 = vmatprep.subr.mxu0 0.0
        %1804 = vmatpush1.msra.mxu0 %v1750
        %1805 = vmatprep.subr.mxu0 0.0
        %1806 = vmatpush1.msra.mxu0 %v1751
        %1807 = vmatprep.subr.mxu0 0.0
        %1808 = vmatpush1.msra.mxu0 %v1752
        %1809 = vmatprep.subr.mxu0 0.0
        %1810 = vmatpush1.msra.mxu0 %v1753
        %1811 = vmatprep.subr.mxu0 0.0
        %1812 = vmatpush1.msra.mxu0 %v1754
        %1813 = vmatprep.subr.mxu0 0.0
        %1814 = vmatpush1.msra.mxu0 %v1755
        %1815 = vmatprep.subr.mxu0 0.0
        %1816 = vmatpush1.msra.mxu0 %v1756
        %1817 = vmatprep.subr.mxu0 0.0
        %1818 = vmatpush1.msra.mxu0 %v1757
        %1819 = vmatprep.subr.mxu0 0.0
        %1820 = vmatpush1.msra.mxu0 %v1758
        %1821 = vmatprep.subr.mxu0 0.0
        %1822 = vmatpush1.msra.mxu0 %v1759
        %1823 = vmatprep.subr.mxu0 0.0
        %1824 = vmatpush1.msra.mxu0 %v1760
        %1825 = vmatprep.subr.mxu0 0.0
        %1826 = vmatpush1.msra.mxu0 %v1761
        %1827 = vmatprep.subr.mxu0 0.0
        %1828 = vmatpush1.msra.mxu0 0.0
        %1829 = vmatprep.subr.mxu0 0.0
        %1830 = vmatpush1.msra.mxu0 0.0
        %1831 = vmatprep.subr.mxu0 0.0
        %1832 = vmatpush1.msra.mxu0 0.0
        %1833 = vmatprep.subr.mxu0 0.0
        %1834 = vmatpush1.msra.mxu0 0.0
        %1835 = vmatprep.subr.mxu0 0.0
        %1836 = vmatpush1.msra.mxu0 0.0
        %1837 = vmatprep.subr.mxu0 0.0
        %1838 = vmatpush1.msra.mxu0 0.0
        %1839 = vmatprep.subr.mxu0 0.0
        %1840 = vmatpush1.msra.mxu0 0.0
        %1841 = vmatprep.subr.mxu0 0.0
        %1842 = vmatpush1.msra.mxu0 0.0
        %1843 = vmatprep.subr.mxu0 0.0
        %1844 = vmatpush1.msra.mxu0 0.0
        %1845 = vmatprep.subr.mxu0 0.0
        %1846 = vmatpush1.msra.mxu0 0.0
        %1847 = vmatprep.subr.mxu0 0.0
        %1848 = vmatpush1.msra.mxu0 0.0
        %1849 = vmatprep.subr.mxu0 0.0
        %1850 = vmatpush1.msra.mxu0 0.0
        %1851 = vmatprep.subr.mxu0 0.0
        %1852 = vmatpush1.msra.mxu0 0.0
        %1853 = vmatprep.subr.mxu0 0.0
        %1854 = vmatpush1.msra.mxu0 0.0
        %1855 = vmatprep.subr.mxu0 0.0
        %1856 = vmatpush1.msra.mxu0 0.0
        %1857 = vmatprep.subr.mxu0 0.0
        %1858 = vmatpush1.msra.mxu0 0.0
        %1859 = vmatprep.mubr.f32.mxu0 0.0
        %1860 = vmatmul.mubr.f32.gmra.mrb[0].mxu0 %v1765
        %v1861 = vpop.f32.mrb[0].mxu0
        %v1862 = vadd.f32 0.0, %v1861
        %v1863 = vpop.f32.mrb[0].mxu0
        %1864 = vmatprep.mubr.f32.mxu0 0.0
        %1865 = vmatmul.mubr.f32.gmra.mrb[0].mxu0 %v1768
        %v1866 = vpop.f32.mrb[0].mxu0
        %v1867 = vadd.f32 0.0, %v1866
        %v1868 = vpop.f32.mrb[0].mxu0
        %1869 = vmatprep.mubr.f32.mxu0 0.0
        %1870 = vmatmul.mubr.f32.gmra.mrb[0].mxu0 %v1771
        %v1871 = vpop.f32.mrb[0].mxu0
        %v1872 = vadd.f32 0.0, %v1871
        %v1873 = vpop.f32.mrb[0].mxu0
        %1874 = vmatprep.mubr.f32.mxu0 0.0
        %1875 = vmatmul.mubr.f32.gmra.mrb[0].mxu0 %v1774
        %v1876 = vpop.f32.mrb[0].mxu0
        %v1877 = vadd.f32 0.0, %v1876
        %v1878 = vpop.f32.mrb[0].mxu0
        %1879 = vmatprep.mubr.f32.mxu0 0.0
        %1880 = vmatmul.mubr.f32.gmra.mrb[0].mxu0 %v1777
        %v1881 = vpop.f32.mrb[0].mxu0
        %v1882 = vadd.f32 0.0, %v1881
        %v1883 = vpop.f32.mrb[0].mxu0
        %1884 = vmatprep.mubr.f32.mxu0 0.0
        %1885 = vmatmul.mubr.f32.gmra.mrb[0].mxu0 %v1780
        %v1886 = vpop.f32.mrb[0].mxu0
        %v1887 = vadd.f32 0.0, %v1886
        %v1888 = vpop.f32.mrb[0].mxu0
        %1889 = vmatprep.mubr.f32.mxu0 0.0
        %1890 = vmatmul.mubr.f32.gmra.mrb[0].mxu0 %v1783
        %v1891 = vpop.f32.mrb[0].mxu0
        %v1892 = vadd.f32 0.0, %v1891
        %v1893 = vpop.f32.mrb[0].mxu0
        %1894 = vmatprep.mubr.f32.mxu0 0.0
        %1895 = vmatmul.mubr.f32.gmra.mrb[0].mxu0 %v1786
        %v1896 = vpop.f32.mrb[0].mxu0
        %v1897 = vadd.f32 0.0, %v1896
        %v1898 = vpop.f32.mrb[0].mxu0
        %1899 = vdwg.mxu0
        %v1900 = vadd.f32 %v1707, %v1862
        %v1901 = vadd.f32 %v1712, %v1867
        %v1902 = vadd.f32 %v1717, %v1872
        %v1903 = vadd.f32 %v1722, %v1877
        %v1904 = vadd.f32 %v1727, %v1882
        %v1905 = vadd.f32 %v1732, %v1887
        %v1906 = vadd.f32 %v1737, %v1892
        %v1907 = vadd.f32 %v1742, %v1897
        %s1908 = scalar_lea.vmem %s8, 384
        %v1909 = vld [vmem:[%s1908] sm:$0xff]
        %v1910 = vld [vmem:[%s1908 + $0x8] sm:$0xff]
        %v1911 = vld [vmem:[%s1908 + $0x10] sm:$0xff]
        %v1912 = vld [vmem:[%s1908 + $0x18] sm:$0xff]
        %v1913 = vld [vmem:[%s1908 + $0x20] sm:$0xff]
        %v1914 = vld [vmem:[%s1908 + $0x28] sm:$0xff]
        %v1915 = vld [vmem:[%s1908 + $0x30] sm:$0xff]
        %v1916 = vld [vmem:[%s1908 + $0x38] sm:$0xff]
        %v1917 = vld [vmem:[%s1908 + $0x40] sm:$0xff]
        %v1918 = vld [vmem:[%s1908 + $0x48] sm:$0xff]
        %v1919 = vld [vmem:[%s1908 + $0x50] sm:$0xff]
        %v1920 = vld [vmem:[%s1908 + $0x58] sm:$0xff]
        %v1921 = vld [vmem:[%s1908 + $0x60] sm:$0xff]
        %v1922 = vld [vmem:[%s1908 + $0x68] sm:$0xff]
        %v1923 = vld [vmem:[%s1908 + $0x70] sm:$0xff]
        %v1924 = vld [vmem:[%s1908 + $0x78] sm:$0xff]
        %1925 = vmatprep.subr.mxu0 0.0
        %1926 = vmatpush1.msra.mxu0 %v1909
        %1927 = vmatprep.subr.mxu0 0.0
        %1928 = vmatpush1.msra.mxu0 %v1910
        %1929 = vmatprep.subr.mxu0 0.0
        %1930 = vmatpush1.msra.mxu0 %v1911
        %1931 = vmatprep.subr.mxu0 0.0
        %1932 = vmatpush1.msra.mxu0 %v1912
        %1933 = vmatprep.subr.mxu0 0.0
        %1934 = vmatpush1.msra.mxu0 %v1913
        %1935 = vmatprep.subr.mxu0 0.0
        %1936 = vmatpush1.msra.mxu0 %v1914
        %1937 = vmatprep.subr.mxu0 0.0
        %1938 = vmatpush1.msra.mxu0 %v1915
        %1939 = vmatprep.subr.mxu0 0.0
        %1940 = vmatpush1.msra.mxu0 %v1916
        %1941 = vmatprep.subr.mxu0 0.0
        %1942 = vmatpush1.msra.mxu0 %v1917
        %1943 = vmatprep.subr.mxu0 0.0
        %1944 = vmatpush1.msra.mxu0 %v1918
        %1945 = vmatprep.subr.mxu0 0.0
        %1946 = vmatpush1.msra.mxu0 %v1919
        %1947 = vmatprep.subr.mxu0 0.0
        %1948 = vmatpush1.msra.mxu0 %v1920
        %1949 = vmatprep.subr.mxu0 0.0
        %1950 = vmatpush1.msra.mxu0 %v1921
        %1951 = vmatprep.subr.mxu0 0.0
        %1952 = vmatpush1.msra.mxu0 %v1922
        %1953 = vmatprep.subr.mxu0 0.0
        %1954 = vmatpush1.msra.mxu0 %v1923
        %1955 = vmatprep.subr.mxu0 0.0
        %1956 = vmatpush1.msra.mxu0 %v1924
        %1957 = vmatprep.subr.mxu0 0.0
        %1958 = vmatpush1.msra.mxu0 0.0
        %1959 = vmatprep.subr.mxu0 0.0
        %1960 = vmatpush1.msra.mxu0 0.0
        %1961 = vmatprep.subr.mxu0 0.0
        %1962 = vmatpush1.msra.mxu0 0.0
        %1963 = vmatprep.subr.mxu0 0.0
        %1964 = vmatpush1.msra.mxu0 0.0
        %1965 = vmatprep.subr.mxu0 0.0
        %1966 = vmatpush1.msra.mxu0 0.0
        %1967 = vmatprep.subr.mxu0 0.0
        %1968 = vmatpush1.msra.mxu0 0.0
        %1969 = vmatprep.subr.mxu0 0.0
        %1970 = vmatpush1.msra.mxu0 0.0
        %1971 = vmatprep.subr.mxu0 0.0
        %1972 = vmatpush1.msra.mxu0 0.0
        %1973 = vmatprep.subr.mxu0 0.0
        %1974 = vmatpush1.msra.mxu0 0.0
        %1975 = vmatprep.subr.mxu0 0.0
        %1976 = vmatpush1.msra.mxu0 0.0
        %1977 = vmatprep.subr.mxu0 0.0
        %1978 = vmatpush1.msra.mxu0 0.0
        %1979 = vmatprep.subr.mxu0 0.0
        %1980 = vmatpush1.msra.mxu0 0.0
        %1981 = vmatprep.subr.mxu0 0.0
        %1982 = vmatpush1.msra.mxu0 0.0
        %1983 = vmatprep.subr.mxu0 0.0
        %1984 = vmatpush1.msra.mxu0 0.0
        %1985 = vmatprep.subr.mxu0 0.0
        %1986 = vmatpush1.msra.mxu0 0.0
        %1987 = vmatprep.subr.mxu0 0.0
        %1988 = vmatpush1.msra.mxu0 0.0
        %1989 = vmatprep.mubr.f32.mxu0 0.0
        %1990 = vmatmul.mubr.f32.gmra.mrb[0].mxu0 %v1434
        %v1991 = vpop.f32.mrb[0].mxu0
        %v1992 = vadd.f32 0.0, %v1991
        %v1993 = vpop.f32.mrb[0].mxu0
        %1994 = vmatprep.mubr.f32.mxu0 0.0
        %1995 = vmatmul.mubr.f32.gmra.mrb[0].mxu0 %v1435
        %v1996 = vpop.f32.mrb[0].mxu0
        %v1997 = vadd.f32 0.0, %v1996
        %v1998 = vpop.f32.mrb[0].mxu0
        %1999 = vmatprep.mubr.f32.mxu0 0.0
        %2000 = vmatmul.mubr.f32.gmra.mrb[0].mxu0 %v1436
        %v2001 = vpop.f32.mrb[0].mxu0
        %v2002 = vadd.f32 0.0, %v2001
        %v2003 = vpop.f32.mrb[0].mxu0
        %2004 = vmatprep.mubr.f32.mxu0 0.0
        %2005 = vmatmul.mubr.f32.gmra.mrb[0].mxu0 %v1437
        %v2006 = vpop.f32.mrb[0].mxu0
        %v2007 = vadd.f32 0.0, %v2006
        %v2008 = vpop.f32.mrb[0].mxu0
        %2009 = vmatprep.mubr.f32.mxu0 0.0
        %2010 = vmatmul.mubr.f32.gmra.mrb[0].mxu0 %v1438
        %v2011 = vpop.f32.mrb[0].mxu0
        %v2012 = vadd.f32 0.0, %v2011
        %v2013 = vpop.f32.mrb[0].mxu0
        %2014 = vmatprep.mubr.f32.mxu0 0.0
        %2015 = vmatmul.mubr.f32.gmra.mrb[0].mxu0 %v1439
        %v2016 = vpop.f32.mrb[0].mxu0
        %v2017 = vadd.f32 0.0, %v2016
        %v2018 = vpop.f32.mrb[0].mxu0
        %2019 = vmatprep.mubr.f32.mxu0 0.0
        %2020 = vmatmul.mubr.f32.gmra.mrb[0].mxu0 %v1440
        %v2021 = vpop.f32.mrb[0].mxu0
        %v2022 = vadd.f32 0.0, %v2021
        %v2023 = vpop.f32.mrb[0].mxu0
        %2024 = vmatprep.mubr.f32.mxu0 0.0
        %2025 = vmatmul.mubr.f32.gmra.mrb[0].mxu0 %v1441
        %v2026 = vpop.f32.mrb[0].mxu0
        %v2027 = vadd.f32 0.0, %v2026
        %v2028 = vpop.f32.mrb[0].mxu0
        %2029 = vdwg.mxu0
        %v2030 = vadd.f32 %v1900, %v1992
        %v2031 = vadd.f32 %v1901, %v1997
        %v2032 = vadd.f32 %v1902, %v2002
        %v2033 = vadd.f32 %v1903, %v2007
        %v2034 = vadd.f32 %v1904, %v2012
        %v2035 = vadd.f32 %v1905, %v2017
        %v2036 = vadd.f32 %v1906, %v2022
        %v2037 = vadd.f32 %v1907, %v2027
        %s2038 = scalar_lea.vmem %s8, 512
        %v2039 = vld [vmem:[%s2038] sm:$0xff]
        %v2040 = vld [vmem:[%s2038 + $0x8] sm:$0xff]
        %v2041 = vld [vmem:[%s2038 + $0x10] sm:$0xff]
        %v2042 = vld [vmem:[%s2038 + $0x18] sm:$0xff]
        %v2043 = vld [vmem:[%s2038 + $0x20] sm:$0xff]
        %v2044 = vld [vmem:[%s2038 + $0x28] sm:$0xff]
        %v2045 = vld [vmem:[%s2038 + $0x30] sm:$0xff]
        %v2046 = vld [vmem:[%s2038 + $0x38] sm:$0xff]
        %v2047 = vld [vmem:[%s2038 + $0x40] sm:$0xff]
        %v2048 = vld [vmem:[%s2038 + $0x48] sm:$0xff]
        %v2049 = vld [vmem:[%s2038 + $0x50] sm:$0xff]
        %v2050 = vld [vmem:[%s2038 + $0x58] sm:$0xff]
        %v2051 = vld [vmem:[%s2038 + $0x60] sm:$0xff]
        %v2052 = vld [vmem:[%s2038 + $0x68] sm:$0xff]
        %v2053 = vld [vmem:[%s2038 + $0x70] sm:$0xff]
        %v2054 = vld [vmem:[%s2038 + $0x78] sm:$0xff]
        %v2057 = vrot.slane %v1441, 1
        %v2058 = vrot.slane %v1451, 1
        %v2059 = vsel %vm1502, %v2057, %v2058
        %2061 = vmatprep.subr.mxu0 0.0
        %2062 = vmatpush1.msra.mxu0 %v2039
        %2063 = vmatprep.subr.mxu0 0.0
        %2064 = vmatpush1.msra.mxu0 %v2040
        %2065 = vmatprep.subr.mxu0 0.0
        %2066 = vmatpush1.msra.mxu0 %v2041
        %2067 = vmatprep.subr.mxu0 0.0
        %2068 = vmatpush1.msra.mxu0 %v2042
        %2069 = vmatprep.subr.mxu0 0.0
        %2070 = vmatpush1.msra.mxu0 %v2043
        %2071 = vmatprep.subr.mxu0 0.0
        %2072 = vmatpush1.msra.mxu0 %v2044
        %2073 = vmatprep.subr.mxu0 0.0
        %2074 = vmatpush1.msra.mxu0 %v2045
        %2075 = vmatprep.subr.mxu0 0.0
        %2076 = vmatpush1.msra.mxu0 %v2046
        %2077 = vmatprep.subr.mxu0 0.0
        %2078 = vmatpush1.msra.mxu0 %v2047
        %2079 = vmatprep.subr.mxu0 0.0
        %2080 = vmatpush1.msra.mxu0 %v2048
        %2081 = vmatprep.subr.mxu0 0.0
        %2082 = vmatpush1.msra.mxu0 %v2049
        %2083 = vmatprep.subr.mxu0 0.0
        %2084 = vmatpush1.msra.mxu0 %v2050
        %2085 = vmatprep.subr.mxu0 0.0
        %2086 = vmatpush1.msra.mxu0 %v2051
        %2087 = vmatprep.subr.mxu0 0.0
        %2088 = vmatpush1.msra.mxu0 %v2052
        %2089 = vmatprep.subr.mxu0 0.0
        %2090 = vmatpush1.msra.mxu0 %v2053
        %2091 = vmatprep.subr.mxu0 0.0
        %2092 = vmatpush1.msra.mxu0 %v2054
        %2093 = vmatprep.subr.mxu0 0.0
        %2094 = vmatpush1.msra.mxu0 0.0
        %2095 = vmatprep.subr.mxu0 0.0
        %2096 = vmatpush1.msra.mxu0 0.0
        %2097 = vmatprep.subr.mxu0 0.0
        %2098 = vmatpush1.msra.mxu0 0.0
        %2099 = vmatprep.subr.mxu0 0.0
        %2100 = vmatpush1.msra.mxu0 0.0
        %2101 = vmatprep.subr.mxu0 0.0
        %2102 = vmatpush1.msra.mxu0 0.0
        %2103 = vmatprep.subr.mxu0 0.0
        %2104 = vmatpush1.msra.mxu0 0.0
        %2105 = vmatprep.subr.mxu0 0.0
        %2106 = vmatpush1.msra.mxu0 0.0
        %2107 = vmatprep.subr.mxu0 0.0
        %2108 = vmatpush1.msra.mxu0 0.0
        %2109 = vmatprep.subr.mxu0 0.0
        %2110 = vmatpush1.msra.mxu0 0.0
        %2111 = vmatprep.subr.mxu0 0.0
        %2112 = vmatpush1.msra.mxu0 0.0
        %2113 = vmatprep.subr.mxu0 0.0
        %2114 = vmatpush1.msra.mxu0 0.0
        %2115 = vmatprep.subr.mxu0 0.0
        %2116 = vmatpush1.msra.mxu0 0.0
        %2117 = vmatprep.subr.mxu0 0.0
        %2118 = vmatpush1.msra.mxu0 0.0
        %2119 = vmatprep.subr.mxu0 0.0
        %2120 = vmatpush1.msra.mxu0 0.0
        %2121 = vmatprep.subr.mxu0 0.0
        %2122 = vmatpush1.msra.mxu0 0.0
        %2123 = vmatprep.subr.mxu0 0.0
        %2124 = vmatpush1.msra.mxu0 0.0
        %2125 = vmatprep.mubr.f32.mxu0 0.0
        %2126 = vmatmul.mubr.f32.gmra.mrb[0].mxu0 %v1508
        %v2127 = vpop.f32.mrb[0].mxu0
        %v2128 = vadd.f32 0.0, %v2127
        %v2129 = vpop.f32.mrb[0].mxu0
        %2130 = vmatprep.mubr.f32.mxu0 0.0
        %2131 = vmatmul.mubr.f32.gmra.mrb[0].mxu0 %v1511
        %v2132 = vpop.f32.mrb[0].mxu0
        %v2133 = vadd.f32 0.0, %v2132
        %v2134 = vpop.f32.mrb[0].mxu0
        %2135 = vmatprep.mubr.f32.mxu0 0.0
        %2136 = vmatmul.mubr.f32.gmra.mrb[0].mxu0 %v1514
        %v2137 = vpop.f32.mrb[0].mxu0
        %v2138 = vadd.f32 0.0, %v2137
        %v2139 = vpop.f32.mrb[0].mxu0
        %2140 = vmatprep.mubr.f32.mxu0 0.0
        %2141 = vmatmul.mubr.f32.gmra.mrb[0].mxu0 %v1517
        %v2142 = vpop.f32.mrb[0].mxu0
        %v2143 = vadd.f32 0.0, %v2142
        %v2144 = vpop.f32.mrb[0].mxu0
        %2145 = vmatprep.mubr.f32.mxu0 0.0
        %2146 = vmatmul.mubr.f32.gmra.mrb[0].mxu0 %v1520
        %v2147 = vpop.f32.mrb[0].mxu0
        %v2148 = vadd.f32 0.0, %v2147
        %v2149 = vpop.f32.mrb[0].mxu0
        %2150 = vmatprep.mubr.f32.mxu0 0.0
        %2151 = vmatmul.mubr.f32.gmra.mrb[0].mxu0 %v1523
        %v2152 = vpop.f32.mrb[0].mxu0
        %v2153 = vadd.f32 0.0, %v2152
        %v2154 = vpop.f32.mrb[0].mxu0
        %2155 = vmatprep.mubr.f32.mxu0 0.0
        %2156 = vmatmul.mubr.f32.gmra.mrb[0].mxu0 %v1526
        %v2157 = vpop.f32.mrb[0].mxu0
        %v2158 = vadd.f32 0.0, %v2157
        %v2159 = vpop.f32.mrb[0].mxu0
        %2160 = vmatprep.mubr.f32.mxu0 0.0
        %2161 = vmatmul.mubr.f32.gmra.mrb[0].mxu0 %v2059
        %v2162 = vpop.f32.mrb[0].mxu0
        %v2163 = vadd.f32 0.0, %v2162
        %v2164 = vpop.f32.mrb[0].mxu0
        %2165 = vdwg.mxu0
        %v2166 = vadd.f32 %v2030, %v2128
        %v2167 = vadd.f32 %v2031, %v2133
        %v2168 = vadd.f32 %v2032, %v2138
        %v2169 = vadd.f32 %v2033, %v2143
        %v2170 = vadd.f32 %v2034, %v2148
        %v2171 = vadd.f32 %v2035, %v2153
        %v2172 = vadd.f32 %v2036, %v2158
        %v2173 = vadd.f32 %v2037, %v2163
        %s2174 = scalar_lea.vmem %s8, 640
        %v2175 = vld [vmem:[%s2174] sm:$0xff]
        %v2176 = vld [vmem:[%s2174 + $0x8] sm:$0xff]
        %v2177 = vld [vmem:[%s2174 + $0x10] sm:$0xff]
        %v2178 = vld [vmem:[%s2174 + $0x18] sm:$0xff]
        %v2179 = vld [vmem:[%s2174 + $0x20] sm:$0xff]
        %v2180 = vld [vmem:[%s2174 + $0x28] sm:$0xff]
        %v2181 = vld [vmem:[%s2174 + $0x30] sm:$0xff]
        %v2182 = vld [vmem:[%s2174 + $0x38] sm:$0xff]
        %v2183 = vld [vmem:[%s2174 + $0x40] sm:$0xff]
        %v2184 = vld [vmem:[%s2174 + $0x48] sm:$0xff]
        %v2185 = vld [vmem:[%s2174 + $0x50] sm:$0xff]
        %v2186 = vld [vmem:[%s2174 + $0x58] sm:$0xff]
        %v2187 = vld [vmem:[%s2174 + $0x60] sm:$0xff]
        %v2188 = vld [vmem:[%s2174 + $0x68] sm:$0xff]
        %v2189 = vld [vmem:[%s2174 + $0x70] sm:$0xff]
        %v2190 = vld [vmem:[%s2174 + $0x78] sm:$0xff]
        %v2191 = vrot.slane %v1441, 2
        %v2192 = vrot.slane %v1451, 2
        %v2193 = vsel %vm1762, %v2191, %v2192
        %2195 = vmatprep.subr.mxu0 0.0
        %2196 = vmatpush1.msra.mxu0 %v2175
        %2197 = vmatprep.subr.mxu0 0.0
        %2198 = vmatpush1.msra.mxu0 %v2176
        %2199 = vmatprep.subr.mxu0 0.0
        %2200 = vmatpush1.msra.mxu0 %v2177
        %2201 = vmatprep.subr.mxu0 0.0
        %2202 = vmatpush1.msra.mxu0 %v2178
        %2203 = vmatprep.subr.mxu0 0.0
        %2204 = vmatpush1.msra.mxu0 %v2179
        %2205 = vmatprep.subr.mxu0 0.0
        %2206 = vmatpush1.msra.mxu0 %v2180
        %2207 = vmatprep.subr.mxu0 0.0
        %2208 = vmatpush1.msra.mxu0 %v2181
        %2209 = vmatprep.subr.mxu0 0.0
        %2210 = vmatpush1.msra.mxu0 %v2182
        %2211 = vmatprep.subr.mxu0 0.0
        %2212 = vmatpush1.msra.mxu0 %v2183
        %2213 = vmatprep.subr.mxu0 0.0
        %2214 = vmatpush1.msra.mxu0 %v2184
        %2215 = vmatprep.subr.mxu0 0.0
        %2216 = vmatpush1.msra.mxu0 %v2185
        %2217 = vmatprep.subr.mxu0 0.0
        %2218 = vmatpush1.msra.mxu0 %v2186
        %2219 = vmatprep.subr.mxu0 0.0
        %2220 = vmatpush1.msra.mxu0 %v2187
        %2221 = vmatprep.subr.mxu0 0.0
        %2222 = vmatpush1.msra.mxu0 %v2188
        %2223 = vmatprep.subr.mxu0 0.0
        %2224 = vmatpush1.msra.mxu0 %v2189
        %2225 = vmatprep.subr.mxu0 0.0
        %2226 = vmatpush1.msra.mxu0 %v2190
        %2227 = vmatprep.subr.mxu0 0.0
        %2228 = vmatpush1.msra.mxu0 0.0
        %2229 = vmatprep.subr.mxu0 0.0
        %2230 = vmatpush1.msra.mxu0 0.0
        %2231 = vmatprep.subr.mxu0 0.0
        %2232 = vmatpush1.msra.mxu0 0.0
        %2233 = vmatprep.subr.mxu0 0.0
        %2234 = vmatpush1.msra.mxu0 0.0
        %2235 = vmatprep.subr.mxu0 0.0
        %2236 = vmatpush1.msra.mxu0 0.0
        %2237 = vmatprep.subr.mxu0 0.0
        %2238 = vmatpush1.msra.mxu0 0.0
        %2239 = vmatprep.subr.mxu0 0.0
        %2240 = vmatpush1.msra.mxu0 0.0
        %2241 = vmatprep.subr.mxu0 0.0
        %2242 = vmatpush1.msra.mxu0 0.0
        %2243 = vmatprep.subr.mxu0 0.0
        %2244 = vmatpush1.msra.mxu0 0.0
        %2245 = vmatprep.subr.mxu0 0.0
        %2246 = vmatpush1.msra.mxu0 0.0
        %2247 = vmatprep.subr.mxu0 0.0
        %2248 = vmatpush1.msra.mxu0 0.0
        %2249 = vmatprep.subr.mxu0 0.0
        %2250 = vmatpush1.msra.mxu0 0.0
        %2251 = vmatprep.subr.mxu0 0.0
        %2252 = vmatpush1.msra.mxu0 0.0
        %2253 = vmatprep.subr.mxu0 0.0
        %2254 = vmatpush1.msra.mxu0 0.0
        %2255 = vmatprep.subr.mxu0 0.0
        %2256 = vmatpush1.msra.mxu0 0.0
        %2257 = vmatprep.subr.mxu0 0.0
        %2258 = vmatpush1.msra.mxu0 0.0
        %2259 = vmatprep.mubr.f32.mxu0 0.0
        %2260 = vmatmul.mubr.f32.gmra.mrb[0].mxu0 %v1768
        %v2261 = vpop.f32.mrb[0].mxu0
        %v2262 = vadd.f32 0.0, %v2261
        %v2263 = vpop.f32.mrb[0].mxu0
        %2264 = vmatprep.mubr.f32.mxu0 0.0
        %2265 = vmatmul.mubr.f32.gmra.mrb[0].mxu0 %v1771
        %v2266 = vpop.f32.mrb[0].mxu0
        %v2267 = vadd.f32 0.0, %v2266
        %v2268 = vpop.f32.mrb[0].mxu0
        %2269 = vmatprep.mubr.f32.mxu0 0.0
        %2270 = vmatmul.mubr.f32.gmra.mrb[0].mxu0 %v1774
        %v2271 = vpop.f32.mrb[0].mxu0
        %v2272 = vadd.f32 0.0, %v2271
        %v2273 = vpop.f32.mrb[0].mxu0
        %2274 = vmatprep.mubr.f32.mxu0 0.0
        %2275 = vmatmul.mubr.f32.gmra.mrb[0].mxu0 %v1777
        %v2276 = vpop.f32.mrb[0].mxu0
        %v2277 = vadd.f32 0.0, %v2276
        %v2278 = vpop.f32.mrb[0].mxu0
        %2279 = vmatprep.mubr.f32.mxu0 0.0
        %2280 = vmatmul.mubr.f32.gmra.mrb[0].mxu0 %v1780
        %v2281 = vpop.f32.mrb[0].mxu0
        %v2282 = vadd.f32 0.0, %v2281
        %v2283 = vpop.f32.mrb[0].mxu0
        %2284 = vmatprep.mubr.f32.mxu0 0.0
        %2285 = vmatmul.mubr.f32.gmra.mrb[0].mxu0 %v1783
        %v2286 = vpop.f32.mrb[0].mxu0
        %v2287 = vadd.f32 0.0, %v2286
        %v2288 = vpop.f32.mrb[0].mxu0
        %2289 = vmatprep.mubr.f32.mxu0 0.0
        %2290 = vmatmul.mubr.f32.gmra.mrb[0].mxu0 %v1786
        %v2291 = vpop.f32.mrb[0].mxu0
        %v2292 = vadd.f32 0.0, %v2291
        %v2293 = vpop.f32.mrb[0].mxu0
        %2294 = vmatprep.mubr.f32.mxu0 0.0
        %2295 = vmatmul.mubr.f32.gmra.mrb[0].mxu0 %v2193
        %v2296 = vpop.f32.mrb[0].mxu0
        %v2297 = vadd.f32 0.0, %v2296
        %v2298 = vpop.f32.mrb[0].mxu0
        %2299 = vdwg.mxu0
        %v2300 = vadd.f32 %v2166, %v2262
        %v2301 = vadd.f32 %v2167, %v2267
        %v2302 = vadd.f32 %v2168, %v2272
        %v2303 = vadd.f32 %v2169, %v2277
        %v2304 = vadd.f32 %v2170, %v2282
        %v2305 = vadd.f32 %v2171, %v2287
        %v2306 = vadd.f32 %v2172, %v2292
        %v2307 = vadd.f32 %v2173, %v2297
        %s2308 = scalar_lea.vmem %s8, 768
        %v2309 = vld [vmem:[%s2308] sm:$0xff]
        %v2310 = vld [vmem:[%s2308 + $0x8] sm:$0xff]
        %v2311 = vld [vmem:[%s2308 + $0x10] sm:$0xff]
        %v2312 = vld [vmem:[%s2308 + $0x18] sm:$0xff]
        %v2313 = vld [vmem:[%s2308 + $0x20] sm:$0xff]
        %v2314 = vld [vmem:[%s2308 + $0x28] sm:$0xff]
        %v2315 = vld [vmem:[%s2308 + $0x30] sm:$0xff]
        %v2316 = vld [vmem:[%s2308 + $0x38] sm:$0xff]
        %v2317 = vld [vmem:[%s2308 + $0x40] sm:$0xff]
        %v2318 = vld [vmem:[%s2308 + $0x48] sm:$0xff]
        %v2319 = vld [vmem:[%s2308 + $0x50] sm:$0xff]
        %v2320 = vld [vmem:[%s2308 + $0x58] sm:$0xff]
        %v2321 = vld [vmem:[%s2308 + $0x60] sm:$0xff]
        %v2322 = vld [vmem:[%s2308 + $0x68] sm:$0xff]
        %v2323 = vld [vmem:[%s2308 + $0x70] sm:$0xff]
        %v2324 = vld [vmem:[%s2308 + $0x78] sm:$0xff]
        %2325 = vmatprep.subr.mxu0 0.0
        %2326 = vmatpush1.msra.mxu0 %v2309
        %2327 = vmatprep.subr.mxu0 0.0
        %2328 = vmatpush1.msra.mxu0 %v2310
        %2329 = vmatprep.subr.mxu0 0.0
        %2330 = vmatpush1.msra.mxu0 %v2311
        %2331 = vmatprep.subr.mxu0 0.0
        %2332 = vmatpush1.msra.mxu0 %v2312
        %2333 = vmatprep.subr.mxu0 0.0
        %2334 = vmatpush1.msra.mxu0 %v2313
        %2335 = vmatprep.subr.mxu0 0.0
        %2336 = vmatpush1.msra.mxu0 %v2314
        %2337 = vmatprep.subr.mxu0 0.0
        %2338 = vmatpush1.msra.mxu0 %v2315
        %2339 = vmatprep.subr.mxu0 0.0
        %2340 = vmatpush1.msra.mxu0 %v2316
        %2341 = vmatprep.subr.mxu0 0.0
        %2342 = vmatpush1.msra.mxu0 %v2317
        %2343 = vmatprep.subr.mxu0 0.0
        %2344 = vmatpush1.msra.mxu0 %v2318
        %2345 = vmatprep.subr.mxu0 0.0
        %2346 = vmatpush1.msra.mxu0 %v2319
        %2347 = vmatprep.subr.mxu0 0.0
        %2348 = vmatpush1.msra.mxu0 %v2320
        %2349 = vmatprep.subr.mxu0 0.0
        %2350 = vmatpush1.msra.mxu0 %v2321
        %2351 = vmatprep.subr.mxu0 0.0
        %2352 = vmatpush1.msra.mxu0 %v2322
        %2353 = vmatprep.subr.mxu0 0.0
        %2354 = vmatpush1.msra.mxu0 %v2323
        %2355 = vmatprep.subr.mxu0 0.0
        %2356 = vmatpush1.msra.mxu0 %v2324
        %2357 = vmatprep.subr.mxu0 0.0
        %2358 = vmatpush1.msra.mxu0 0.0
        %2359 = vmatprep.subr.mxu0 0.0
        %2360 = vmatpush1.msra.mxu0 0.0
        %2361 = vmatprep.subr.mxu0 0.0
        %2362 = vmatpush1.msra.mxu0 0.0
        %2363 = vmatprep.subr.mxu0 0.0
        %2364 = vmatpush1.msra.mxu0 0.0
        %2365 = vmatprep.subr.mxu0 0.0
        %2366 = vmatpush1.msra.mxu0 0.0
        %2367 = vmatprep.subr.mxu0 0.0
        %2368 = vmatpush1.msra.mxu0 0.0
        %2369 = vmatprep.subr.mxu0 0.0
        %2370 = vmatpush1.msra.mxu0 0.0
        %2371 = vmatprep.subr.mxu0 0.0
        %2372 = vmatpush1.msra.mxu0 0.0
        %2373 = vmatprep.subr.mxu0 0.0
        %2374 = vmatpush1.msra.mxu0 0.0
        %2375 = vmatprep.subr.mxu0 0.0
        %2376 = vmatpush1.msra.mxu0 0.0
        %2377 = vmatprep.subr.mxu0 0.0
        %2378 = vmatpush1.msra.mxu0 0.0
        %2379 = vmatprep.subr.mxu0 0.0
        %2380 = vmatpush1.msra.mxu0 0.0
        %2381 = vmatprep.subr.mxu0 0.0
        %2382 = vmatpush1.msra.mxu0 0.0
        %2383 = vmatprep.subr.mxu0 0.0
        %2384 = vmatpush1.msra.mxu0 0.0
        %2385 = vmatprep.subr.mxu0 0.0
        %2386 = vmatpush1.msra.mxu0 0.0
        %2387 = vmatprep.subr.mxu0 0.0
        %2388 = vmatpush1.msra.mxu0 0.0
        %2389 = vmatprep.mubr.f32.mxu0 0.0
        %2390 = vmatmul.mubr.f32.gmra.mrb[0].mxu0 %v1435
        %v2391 = vpop.f32.mrb[0].mxu0
        %v2392 = vadd.f32 0.0, %v2391
        %v2393 = vpop.f32.mrb[0].mxu0
        %2394 = vmatprep.mubr.f32.mxu0 0.0
        %2395 = vmatmul.mubr.f32.gmra.mrb[0].mxu0 %v1436
        %v2396 = vpop.f32.mrb[0].mxu0
        %v2397 = vadd.f32 0.0, %v2396
        %v2398 = vpop.f32.mrb[0].mxu0
        %2399 = vmatprep.mubr.f32.mxu0 0.0
        %2400 = vmatmul.mubr.f32.gmra.mrb[0].mxu0 %v1437
        %v2401 = vpop.f32.mrb[0].mxu0
        %v2402 = vadd.f32 0.0, %v2401
        %v2403 = vpop.f32.mrb[0].mxu0
        %2404 = vmatprep.mubr.f32.mxu0 0.0
        %2405 = vmatmul.mubr.f32.gmra.mrb[0].mxu0 %v1438
        %v2406 = vpop.f32.mrb[0].mxu0
        %v2407 = vadd.f32 0.0, %v2406
        %v2408 = vpop.f32.mrb[0].mxu0
        %2409 = vmatprep.mubr.f32.mxu0 0.0
        %2410 = vmatmul.mubr.f32.gmra.mrb[0].mxu0 %v1439
        %v2411 = vpop.f32.mrb[0].mxu0
        %v2412 = vadd.f32 0.0, %v2411
        %v2413 = vpop.f32.mrb[0].mxu0
        %2414 = vmatprep.mubr.f32.mxu0 0.0
        %2415 = vmatmul.mubr.f32.gmra.mrb[0].mxu0 %v1440
        %v2416 = vpop.f32.mrb[0].mxu0
        %v2417 = vadd.f32 0.0, %v2416
        %v2418 = vpop.f32.mrb[0].mxu0
        %2419 = vmatprep.mubr.f32.mxu0 0.0
        %2420 = vmatmul.mubr.f32.gmra.mrb[0].mxu0 %v1441
        %v2421 = vpop.f32.mrb[0].mxu0
        %v2422 = vadd.f32 0.0, %v2421
        %v2423 = vpop.f32.mrb[0].mxu0
        %2424 = vmatprep.mubr.f32.mxu0 0.0
        %2425 = vmatmul.mubr.f32.gmra.mrb[0].mxu0 %v1442
        %v2426 = vpop.f32.mrb[0].mxu0
        %v2427 = vadd.f32 0.0, %v2426
        %v2428 = vpop.f32.mrb[0].mxu0
        %2429 = vdwg.mxu0
        %v2430 = vadd.f32 %v2300, %v2392
        %v2431 = vadd.f32 %v2301, %v2397
        %v2432 = vadd.f32 %v2302, %v2402
        %v2433 = vadd.f32 %v2303, %v2407
        %v2434 = vadd.f32 %v2304, %v2412
        %v2435 = vadd.f32 %v2305, %v2417
        %v2436 = vadd.f32 %v2306, %v2422
        %v2437 = vadd.f32 %v2307, %v2427
        %s2438 = scalar_lea.vmem %s8, 896
        %v2439 = vld [vmem:[%s2438] sm:$0xff]
        %v2440 = vld [vmem:[%s2438 + $0x8] sm:$0xff]
        %v2441 = vld [vmem:[%s2438 + $0x10] sm:$0xff]
        %v2442 = vld [vmem:[%s2438 + $0x18] sm:$0xff]
        %v2443 = vld [vmem:[%s2438 + $0x20] sm:$0xff]
        %v2444 = vld [vmem:[%s2438 + $0x28] sm:$0xff]
        %v2445 = vld [vmem:[%s2438 + $0x30] sm:$0xff]
        %v2446 = vld [vmem:[%s2438 + $0x38] sm:$0xff]
        %v2447 = vld [vmem:[%s2438 + $0x40] sm:$0xff]
        %v2448 = vld [vmem:[%s2438 + $0x48] sm:$0xff]
        %v2449 = vld [vmem:[%s2438 + $0x50] sm:$0xff]
        %v2450 = vld [vmem:[%s2438 + $0x58] sm:$0xff]
        %v2451 = vld [vmem:[%s2438 + $0x60] sm:$0xff]
        %v2452 = vld [vmem:[%s2438 + $0x68] sm:$0xff]
        %v2453 = vld [vmem:[%s2438 + $0x70] sm:$0xff]
        %v2454 = vld [vmem:[%s2438 + $0x78] sm:$0xff]
        %v2457 = vrot.slane %v1442, 1
        %v2458 = vrot.slane %v1452, 1
        %v2459 = vsel %vm1502, %v2457, %v2458
        %2461 = vmatprep.subr.mxu0 0.0
        %2462 = vmatpush1.msra.mxu0 %v2439
        %2463 = vmatprep.subr.mxu0 0.0
        %2464 = vmatpush1.msra.mxu0 %v2440
        %2465 = vmatprep.subr.mxu0 0.0
        %2466 = vmatpush1.msra.mxu0 %v2441
        %2467 = vmatprep.subr.mxu0 0.0
        %2468 = vmatpush1.msra.mxu0 %v2442
        %2469 = vmatprep.subr.mxu0 0.0
        %2470 = vmatpush1.msra.mxu0 %v2443
        %2471 = vmatprep.subr.mxu0 0.0
        %2472 = vmatpush1.msra.mxu0 %v2444
        %2473 = vmatprep.subr.mxu0 0.0
        %2474 = vmatpush1.msra.mxu0 %v2445
        %2475 = vmatprep.subr.mxu0 0.0
        %2476 = vmatpush1.msra.mxu0 %v2446
        %2477 = vmatprep.subr.mxu0 0.0
        %2478 = vmatpush1.msra.mxu0 %v2447
        %2479 = vmatprep.subr.mxu0 0.0
        %2480 = vmatpush1.msra.mxu0 %v2448
        %2481 = vmatprep.subr.mxu0 0.0
        %2482 = vmatpush1.msra.mxu0 %v2449
        %2483 = vmatprep.subr.mxu0 0.0
        %2484 = vmatpush1.msra.mxu0 %v2450
        %2485 = vmatprep.subr.mxu0 0.0
        %2486 = vmatpush1.msra.mxu0 %v2451
        %2487 = vmatprep.subr.mxu0 0.0
        %2488 = vmatpush1.msra.mxu0 %v2452
        %2489 = vmatprep.subr.mxu0 0.0
        %2490 = vmatpush1.msra.mxu0 %v2453
        %2491 = vmatprep.subr.mxu0 0.0
        %2492 = vmatpush1.msra.mxu0 %v2454
        %2493 = vmatprep.subr.mxu0 0.0
        %2494 = vmatpush1.msra.mxu0 0.0
        %2495 = vmatprep.subr.mxu0 0.0
        %2496 = vmatpush1.msra.mxu0 0.0
        %2497 = vmatprep.subr.mxu0 0.0
        %2498 = vmatpush1.msra.mxu0 0.0
        %2499 = vmatprep.subr.mxu0 0.0
        %2500 = vmatpush1.msra.mxu0 0.0
        %2501 = vmatprep.subr.mxu0 0.0
        %2502 = vmatpush1.msra.mxu0 0.0
        %2503 = vmatprep.subr.mxu0 0.0
        %2504 = vmatpush1.msra.mxu0 0.0
        %2505 = vmatprep.subr.mxu0 0.0
        %2506 = vmatpush1.msra.mxu0 0.0
        %2507 = vmatprep.subr.mxu0 0.0
        %2508 = vmatpush1.msra.mxu0 0.0
        %2509 = vmatprep.subr.mxu0 0.0
        %2510 = vmatpush1.msra.mxu0 0.0
        %2511 = vmatprep.subr.mxu0 0.0
        %2512 = vmatpush1.msra.mxu0 0.0
        %2513 = vmatprep.subr.mxu0 0.0
        %2514 = vmatpush1.msra.mxu0 0.0
        %2515 = vmatprep.subr.mxu0 0.0
        %2516 = vmatpush1.msra.mxu0 0.0
        %2517 = vmatprep.subr.mxu0 0.0
        %2518 = vmatpush1.msra.mxu0 0.0
        %2519 = vmatprep.subr.mxu0 0.0
        %2520 = vmatpush1.msra.mxu0 0.0
        %2521 = vmatprep.subr.mxu0 0.0
        %2522 = vmatpush1.msra.mxu0 0.0
        %2523 = vmatprep.subr.mxu0 0.0
        %2524 = vmatpush1.msra.mxu0 0.0
        %2525 = vmatprep.mubr.f32.mxu0 0.0
        %2526 = vmatmul.mubr.f32.gmra.mrb[0].mxu0 %v1511
        %v2527 = vpop.f32.mrb[0].mxu0
        %v2528 = vadd.f32 0.0, %v2527
        %v2529 = vpop.f32.mrb[0].mxu0
        %2530 = vmatprep.mubr.f32.mxu0 0.0
        %2531 = vmatmul.mubr.f32.gmra.mrb[0].mxu0 %v1514
        %v2532 = vpop.f32.mrb[0].mxu0
        %v2533 = vadd.f32 0.0, %v2532
        %v2534 = vpop.f32.mrb[0].mxu0
        %2535 = vmatprep.mubr.f32.mxu0 0.0
        %2536 = vmatmul.mubr.f32.gmra.mrb[0].mxu0 %v1517
        %v2537 = vpop.f32.mrb[0].mxu0
        %v2538 = vadd.f32 0.0, %v2537
        %v2539 = vpop.f32.mrb[0].mxu0
        %2540 = vmatprep.mubr.f32.mxu0 0.0
        %2541 = vmatmul.mubr.f32.gmra.mrb[0].mxu0 %v1520
        %v2542 = vpop.f32.mrb[0].mxu0
        %v2543 = vadd.f32 0.0, %v2542
        %v2544 = vpop.f32.mrb[0].mxu0
        %2545 = vmatprep.mubr.f32.mxu0 0.0
        %2546 = vmatmul.mubr.f32.gmra.mrb[0].mxu0 %v1523
        %v2547 = vpop.f32.mrb[0].mxu0
        %v2548 = vadd.f32 0.0, %v2547
        %v2549 = vpop.f32.mrb[0].mxu0
        %2550 = vmatprep.mubr.f32.mxu0 0.0
        %2551 = vmatmul.mubr.f32.gmra.mrb[0].mxu0 %v1526
        %v2552 = vpop.f32.mrb[0].mxu0
        %v2553 = vadd.f32 0.0, %v2552
        %v2554 = vpop.f32.mrb[0].mxu0
        %2555 = vmatprep.mubr.f32.mxu0 0.0
        %2556 = vmatmul.mubr.f32.gmra.mrb[0].mxu0 %v2059
        %v2557 = vpop.f32.mrb[0].mxu0
        %v2558 = vadd.f32 0.0, %v2557
        %v2559 = vpop.f32.mrb[0].mxu0
        %2560 = vmatprep.mubr.f32.mxu0 0.0
        %2561 = vmatmul.mubr.f32.gmra.mrb[0].mxu0 %v2459
        %v2562 = vpop.f32.mrb[0].mxu0
        %v2563 = vadd.f32 0.0, %v2562
        %v2564 = vpop.f32.mrb[0].mxu0
        %2565 = vdwg.mxu0
        %v2566 = vadd.f32 %v2430, %v2528
        %v2567 = vadd.f32 %v2431, %v2533
        %v2568 = vadd.f32 %v2432, %v2538
        %v2569 = vadd.f32 %v2433, %v2543
        %v2570 = vadd.f32 %v2434, %v2548
        %v2571 = vadd.f32 %v2435, %v2553
        %v2572 = vadd.f32 %v2436, %v2558
        %v2573 = vadd.f32 %v2437, %v2563
        %s2574 = scalar_lea.vmem %s8, 1024
        %v2575 = vld [vmem:[%s2574] sm:$0xff]
        %v2576 = vld [vmem:[%s2574 + $0x8] sm:$0xff]
        %v2577 = vld [vmem:[%s2574 + $0x10] sm:$0xff]
        %v2578 = vld [vmem:[%s2574 + $0x18] sm:$0xff]
        %v2579 = vld [vmem:[%s2574 + $0x20] sm:$0xff]
        %v2580 = vld [vmem:[%s2574 + $0x28] sm:$0xff]
        %v2581 = vld [vmem:[%s2574 + $0x30] sm:$0xff]
        %v2582 = vld [vmem:[%s2574 + $0x38] sm:$0xff]
        %v2583 = vld [vmem:[%s2574 + $0x40] sm:$0xff]
        %v2584 = vld [vmem:[%s2574 + $0x48] sm:$0xff]
        %v2585 = vld [vmem:[%s2574 + $0x50] sm:$0xff]
        %v2586 = vld [vmem:[%s2574 + $0x58] sm:$0xff]
        %v2587 = vld [vmem:[%s2574 + $0x60] sm:$0xff]
        %v2588 = vld [vmem:[%s2574 + $0x68] sm:$0xff]
        %v2589 = vld [vmem:[%s2574 + $0x70] sm:$0xff]
        %v2590 = vld [vmem:[%s2574 + $0x78] sm:$0xff]
        %v2591 = vrot.slane %v1442, 2
        %v2592 = vrot.slane %v1452, 2
        %v2593 = vsel %vm1762, %v2591, %v2592
        %2595 = vmatprep.subr.mxu0 0.0
        %2596 = vmatpush1.msra.mxu0 %v2575
        %2597 = vmatprep.subr.mxu0 0.0
        %2598 = vmatpush1.msra.mxu0 %v2576
        %2599 = vmatprep.subr.mxu0 0.0
        %2600 = vmatpush1.msra.mxu0 %v2577
        %2601 = vmatprep.subr.mxu0 0.0
        %2602 = vmatpush1.msra.mxu0 %v2578
        %2603 = vmatprep.subr.mxu0 0.0
        %2604 = vmatpush1.msra.mxu0 %v2579
        %2605 = vmatprep.subr.mxu0 0.0
        %2606 = vmatpush1.msra.mxu0 %v2580
        %2607 = vmatprep.subr.mxu0 0.0
        %2608 = vmatpush1.msra.mxu0 %v2581
        %2609 = vmatprep.subr.mxu0 0.0
        %2610 = vmatpush1.msra.mxu0 %v2582
        %2611 = vmatprep.subr.mxu0 0.0
        %2612 = vmatpush1.msra.mxu0 %v2583
        %2613 = vmatprep.subr.mxu0 0.0
        %2614 = vmatpush1.msra.mxu0 %v2584
        %2615 = vmatprep.subr.mxu0 0.0
        %2616 = vmatpush1.msra.mxu0 %v2585
        %2617 = vmatprep.subr.mxu0 0.0
        %2618 = vmatpush1.msra.mxu0 %v2586
        %2619 = vmatprep.subr.mxu0 0.0
        %2620 = vmatpush1.msra.mxu0 %v2587
        %2621 = vmatprep.subr.mxu0 0.0
        %2622 = vmatpush1.msra.mxu0 %v2588
        %2623 = vmatprep.subr.mxu0 0.0
        %2624 = vmatpush1.msra.mxu0 %v2589
        %2625 = vmatprep.subr.mxu0 0.0
        %2626 = vmatpush1.msra.mxu0 %v2590
        %2627 = vmatprep.subr.mxu0 0.0
        %2628 = vmatpush1.msra.mxu0 0.0
        %2629 = vmatprep.subr.mxu0 0.0
        %2630 = vmatpush1.msra.mxu0 0.0
        %2631 = vmatprep.subr.mxu0 0.0
        %2632 = vmatpush1.msra.mxu0 0.0
        %2633 = vmatprep.subr.mxu0 0.0
        %2634 = vmatpush1.msra.mxu0 0.0
        %2635 = vmatprep.subr.mxu0 0.0
        %2636 = vmatpush1.msra.mxu0 0.0
        %2637 = vmatprep.subr.mxu0 0.0
        %2638 = vmatpush1.msra.mxu0 0.0
        %2639 = vmatprep.subr.mxu0 0.0
        %2640 = vmatpush1.msra.mxu0 0.0
        %2641 = vmatprep.subr.mxu0 0.0
        %2642 = vmatpush1.msra.mxu0 0.0
        %2643 = vmatprep.subr.mxu0 0.0
        %2644 = vmatpush1.msra.mxu0 0.0
        %2645 = vmatprep.subr.mxu0 0.0
        %2646 = vmatpush1.msra.mxu0 0.0
        %2647 = vmatprep.subr.mxu0 0.0
        %2648 = vmatpush1.msra.mxu0 0.0
        %2649 = vmatprep.subr.mxu0 0.0
        %2650 = vmatpush1.msra.mxu0 0.0
        %2651 = vmatprep.subr.mxu0 0.0
        %2652 = vmatpush1.msra.mxu0 0.0
        %2653 = vmatprep.subr.mxu0 0.0
        %2654 = vmatpush1.msra.mxu0 0.0
        %2655 = vmatprep.subr.mxu0 0.0
        %2656 = vmatpush1.msra.mxu0 0.0
        %2657 = vmatprep.subr.mxu0 0.0
        %2658 = vmatpush1.msra.mxu0 0.0
        %2659 = vmatprep.mubr.f32.mxu0 0.0
        %2660 = vmatmul.mubr.f32.gmra.mrb[0].mxu0 %v1771
        %v2661 = vpop.f32.mrb[0].mxu0
        %v2662 = vadd.f32 0.0, %v2661
        %v2663 = vpop.f32.mrb[0].mxu0
        %2664 = vmatprep.mubr.f32.mxu0 0.0
        %2665 = vmatmul.mubr.f32.gmra.mrb[0].mxu0 %v1774
        %v2666 = vpop.f32.mrb[0].mxu0
        %v2667 = vadd.f32 0.0, %v2666
        %v2668 = vpop.f32.mrb[0].mxu0
        %2669 = vmatprep.mubr.f32.mxu0 0.0
        %2670 = vmatmul.mubr.f32.gmra.mrb[0].mxu0 %v1777
        %v2671 = vpop.f32.mrb[0].mxu0
        %v2672 = vadd.f32 0.0, %v2671
        %v2673 = vpop.f32.mrb[0].mxu0
        %2674 = vmatprep.mubr.f32.mxu0 0.0
        %2675 = vmatmul.mubr.f32.gmra.mrb[0].mxu0 %v1780
        %v2676 = vpop.f32.mrb[0].mxu0
        %v2677 = vadd.f32 0.0, %v2676
        %v2678 = vpop.f32.mrb[0].mxu0
        %2679 = vmatprep.mubr.f32.mxu0 0.0
        %2680 = vmatmul.mubr.f32.gmra.mrb[0].mxu0 %v1783
        %v2681 = vpop.f32.mrb[0].mxu0
        %v2682 = vadd.f32 0.0, %v2681
        %v2683 = vpop.f32.mrb[0].mxu0
        %2684 = vmatprep.mubr.f32.mxu0 0.0
        %2685 = vmatmul.mubr.f32.gmra.mrb[0].mxu0 %v1786
        %v2686 = vpop.f32.mrb[0].mxu0
        %v2687 = vadd.f32 0.0, %v2686
        %v2688 = vpop.f32.mrb[0].mxu0
        %2689 = vmatprep.mubr.f32.mxu0 0.0
        %2690 = vmatmul.mubr.f32.gmra.mrb[0].mxu0 %v2193
        %v2691 = vpop.f32.mrb[0].mxu0
        %v2692 = vadd.f32 0.0, %v2691
        %v2693 = vpop.f32.mrb[0].mxu0
        %2694 = vmatprep.mubr.f32.mxu0 0.0
        %2695 = vmatmul.mubr.f32.gmra.mrb[0].mxu0 %v2593
        %v2696 = vpop.f32.mrb[0].mxu0
        %v2697 = vadd.f32 0.0, %v2696
        %v2698 = vpop.f32.mrb[0].mxu0
        %2699 = vdwg.mxu0
        %v2700 = vadd.f32 %v2566, %v2662
        %v2701 = vadd.f32 %v2567, %v2667
        %v2702 = vadd.f32 %v2568, %v2672
        %v2703 = vadd.f32 %v2569, %v2677
        %v2704 = vadd.f32 %v2570, %v2682
        %v2705 = vadd.f32 %v2571, %v2687
        %v2706 = vadd.f32 %v2572, %v2692
        %v2707 = vadd.f32 %v2573, %v2697
        %v2709 = vlaneseq
        %v2710 = vshrl.u32 %v2709, 7
        %v2711 = vsub.s32 0, %v2710
        %v2712 = vrot.slane %v721, %v2711
        %v2714 = vadd.f32 %v2700, %v2712
        %v2715 = vadd.f32 %v2701, %v2712
        %v2716 = vadd.f32 %v2702, %v2712
        %v2717 = vadd.f32 %v2703, %v2712
        %v2718 = vadd.f32 %v2704, %v2712
        %v2719 = vadd.f32 %v2705, %v2712
        %v2720 = vadd.f32 %v2706, %v2712
        %v2721 = vadd.f32 %v2707, %v2712
        %2722 = vst [vmem:[%s616] sm:$0xff] %v2714
        %2723 = vst [vmem:[%s616 + $0x8] sm:$0xff] %v2715
        %2724 = vst [vmem:[%s616 + $0x10] sm:$0xff] %v2716
        %2725 = vst [vmem:[%s616 + $0x18] sm:$0xff] %v2717
        %2726 = vst [vmem:[%s616 + $0x20] sm:$0xff] %v2718
        %2727 = vst [vmem:[%s616 + $0x28] sm:$0xff] %v2719
        %2728 = vst [vmem:[%s616 + $0x30] sm:$0xff] %v2720
        %2729 = vst [vmem:[%s616 + $0x38] sm:$0xff] %v2721
        %s2730 = smul.u32 8, %s31
        %p2731 = scmp.lt.s32.totalorder %s30, 1
        %s2732 = scalar_select %p2731, %s30, 1
        %p2733 = scmp.lt.s32.totalorder %s2730, 7
        %s2734 = scalar_select %p2733, %s2730, 7
        %s2735 = smul.addr %s2732, 8
        %s2736 = sadd.s32 %s2734, %s2735
        %s2737 = smul.addr %s2736, 8
        %s2738 = scalar_lea.vmem %s10, %s2737
        %s2739 = sand.u32 %s360, 1
        %s2740 = scalar_lea.sflag [#allocation3], %s2739
        %s2741 = sand.u32 %s360, 1
        %s2742 = smul.addr %s2741, 64
        %s2743 = scalar_lea.vmem [#allocation2], %s2742
        // Predicated region
        $region61: #{decoder_forward.4} parent=59 // pred_check
          %p2744 = pneg %p342
        $region62: #{decoder_forward.4} parent=59 // pred_check_branch
          %2746 = sbr.rel (%p2744) target = $region64
        $region63: #{decoder_forward.4} parent=59 // pred_region
          %s2747 = smul.u32 8, %s31
        $region64: #{decoder_forward.4} parent=59 // pred_fallthru
          _
        // Predicated region
        $region65: #{decoder_forward.4} parent=59 // pred_check
          %p2748 = pneg %p370
        $region66: #{decoder_forward.4} parent=59 // pred_check_branch
          %2750 = sbr.rel (%p2748) target = $region68
        $region67: #{decoder_forward.4} parent=59 // pred_region
          %s2751 = smul.u32 8, %s31
          %s2753 = ssub.s32 1024, 1024
          %2754 = vsyncadd %s2740, %s2753
          %s2755 = smul.addr %s30, 8
          %s2756 = sadd.s32 %s2751, %s2755
          %s2757 = smul.addr %s2756, 128
          %s2758 = scalar_lea.hbm %s11, %s2757
          %s2759 = sshll.u32 %s2743, 4
          %s2760 = int_to_ptr.vmem [resolvable:$true] %s2759
          %2765 = dma.vmem_to_hbm [thread:$0]  %s2760, 1024, %s2758, %s2740, 128, 128, 8
        $region68: #{decoder_forward.4} parent=59 // pred_fallthru
          _
      $region60: #{decoder_forward.4} parent=5 // pred_fallthru
        _
      %p2766 = scmp.le.s32.totalorder 2, %s21
      // Predicated region
      $region69: #{decoder_forward.4} parent=5 // pred_check
        %p2767 = pneg %p2766
      $region70: #{decoder_forward.4} parent=5 // pred_check_branch
        %2769 = sbr.rel (%p2767) target = $region72
      $region71: #{decoder_forward.4} parent=5 // pred_region
        %s2770 = ssub.s32 %s21, 2
        // Predicated region
        $region73: #{decoder_forward.4} parent=71 // pred_check
          %p2771 = pneg %p348
        $region74: #{decoder_forward.4} parent=71 // pred_check_branch
          %2773 = sbr.rel (%p2771) target = $region76
        $region75: #{decoder_forward.4} parent=71 // pred_region
          %s2774 = smul.u32 8, %s33
          %p2775 = scmp.lt.s32.totalorder %s32, 1
          %s2776 = scalar_select %p2775, %s32, 1
          %p2777 = scmp.lt.s32.totalorder %s2774, 7
          %s2778 = scalar_select %p2777, %s2774, 7
          %s2779 = smul.addr %s2776, 8
          %s2780 = sadd.s32 %s2778, %s2779
          %s2781 = smul.addr %s2780, 8
          %s2782 = scalar_lea.vmem %s10, %s2781
        $region76: #{decoder_forward.4} parent=71 // pred_fallthru
          _
        // Predicated region
        $region77: #{decoder_forward.4} parent=71 // pred_check
          %p2783 = pneg %p376
        $region78: #{decoder_forward.4} parent=71 // pred_check_branch
          %2785 = sbr.rel (%p2783) target = $region80
        $region79: #{decoder_forward.4} parent=71 // pred_region
          %s2786 = sand.u32 %s361, 1
          %s2787 = scalar_lea.sflag [#allocation3], %s2786
          %s2788 = sand.u32 %s361, 1
          %s2789 = smul.addr %s2788, 64
          %s2790 = scalar_lea.vmem [#allocation2], %s2789
          %2791 = dma.done %s2787, 1024
        $region80: #{decoder_forward.4} parent=71 // pred_fallthru
          _
      $region72: #{decoder_forward.4} parent=5 // pred_fallthru
        _
    $region6: #{decoder_forward.4} parent=1 // loop_footer
      %s25 = sadd.s32 1, %s21
    $region7: #{decoder_forward.4} parent=1 // loop_footer_branch
      %20 = sbr.rel target = $region3
    $region8: #{decoder_forward.4} parent=1 // loop_exit
      _
    %2792 = vsyncpa [#allocation3], 1
    %s2793 = scalar_lea.sflag [#allocation3], 1
    %2794 = vsyncpa %s2793, 1

// kernel: decoder_forward.5
$region0: #{decoder_forward.5}
  #allocation0 [shape = 'u32[]', space=smem, size = 0x4, offset = 0x4, fixed_abs, tag = 'smem constant byte address 0x4 - core index']
  #allocation1 [shape = 'u32[144,128]{1,0:T(1,128)}', space=vmem, size = 0x12000, scoped, tag = 'internal scratch']
  %s0 = inlined_call_operand.vmem [shape: f32[2,16,16,32], index: 0, kind: input, shape index: {}, may-alias: {0,1,2}]
  %s1 = inlined_call_operand.vmem [shape: f32[2,16,16,32], index: 1, kind: input, shape index: {}, may-alias: {0,1,2}]
  %s2 = inlined_call_operand.vmem [shape: f32[2,16,16,32], index: 2, kind: input, shape index: {}, may-alias: {0,1,2}]
  %s3 = inlined_call_operand.vmem [shape: f32[2,8,8,128], index: 3, kind: input, shape index: {}, may-alias: {3,4,5}]
  %s4 = inlined_call_operand.vmem [shape: f32[2,8,8,128], index: 4, kind: input, shape index: {}, may-alias: {3,4,5}]
  %s5 = inlined_call_operand.vmem [shape: f32[2,8,8,128], index: 5, kind: input, shape index: {}, may-alias: {3,4,5}]
  %s6 = inlined_call_operand.vmem [shape: f32[32,128], index: 6, kind: input, shape index: {}]
  %s7 = inlined_call_operand.vmem [shape: f32[1,128], index: 7, kind: input, shape index: {}]
  %s8 = inlined_call_operand.vmem [shape: f32[9,128,128], index: 8, kind: input, shape index: {}]
  %s9 = inlined_call_operand.vmem [shape: f32[1,128], index: 9, kind: input, shape index: {}]
  %s10 = inlined_call_operand.hbm [shape: f32[2,16,16,128], index: 10, kind: output, shape index: {}]
  %s11 = sld [smem:[#allocation0]]
  $region73: #{decoder_forward.5} parent=0
    _
  %s13 = ssub.s32 1, %s11
  %s14 = scalar_select 0, %s13, %s11
  $region1: #{decoder_forward.5} parent=0
    #allocation2 [shape = 'u8[262144]{0}', space=vmem, size = 0x40000, scoped, tag = 'output window, operand 0']
    #allocation3 [shape = 's32[2]{0}', space=sflag, size = 0x8, scoped, tag = 'scoped memory for decoder_forward.5']
    %15 = vsyncpa [#allocation3], 0
    %s16 = scalar_lea.sflag [#allocation3], 1
    %17 = vsyncpa %s16, 0
    loop: start=0, step=1, limit=4
    $region2: #{decoder_forward.5} parent=1 // loop_pre_header
      _
    $region3: #{decoder_forward.5} parent=1 // loop_header
      %s19 = sphi 0, %s23
      %p20 = scmp.ge.s32.totalorder %s19, 4
      %s26 = sphi 0, %s38
      %s27 = sphi 0, %s34
      %s28 = sphi 0, %s26
      %s29 = sphi 0, %s27
      %s30 = sphi 0, %s28
      %s31 = sphi 0, %s29
      %s43 = sphi 0, %s45
      %s46 = sphi 0, %s43
      %s47 = sphi 0, %s46
      %s63 = sphi 0, %s47
      %s79 = sphi 0, %s81
      %s82 = sphi 0, %s79
      %s83 = sphi 0, %s82
      %s99 = sphi 0, %s83
      %s115 = sphi 0, %s117
      %s118 = sphi 0, %s115
      %s119 = sphi 0, %s118
      %s135 = sphi 0, %s119
      %s143 = sphi 0, %s145
      %s146 = sphi 0, %s143
      %s147 = sphi 0, %s146
      %s163 = sphi 0, %s147
      %s179 = sphi 0, %s181
      %s182 = sphi 0, %s179
      %s183 = sphi 0, %s182
      %s199 = sphi 0, %s183
      %s215 = sphi 0, %s217
      %s218 = sphi 0, %s215
      %s219 = sphi 0, %s218
      %s235 = sphi 0, %s219
      %s239 = sphi 0, %s239
      %s241 = sphi 0, %s239
      %s242 = sphi 0, %s241
      %s256 = sphi 0, %s242
      %s260 = sphi 0, %s260
      %s262 = sphi 0, %s260
      %s263 = sphi 0, %s262
      %s277 = sphi 0, %s263
      %s281 = sphi 0, %s281
      %s283 = sphi 0, %s281
      %s284 = sphi 0, %s283
      %s298 = sphi 0, %s284
      %s302 = sphi 0, %s302
      %s304 = sphi 0, %s302
      %s305 = sphi 0, %s304
      %s319 = sphi 0, %s305
      %s327 = sphi 0, %s329
      %s330 = sphi 0, %s327
      %s331 = sphi 0, %s330
      %s347 = sphi 0, %s331
    $region4: #{decoder_forward.5} parent=1 // loop_header_branch
      %22 = sbr.rel (%p20) target = $region8
    $region5: #{decoder_forward.5} parent=1 // loop_body
      %s24 = ssub.s32 %s19, 1
      %s25 = ssub.s32 %s19, 2
      %s32 = sadd.s32 1, %s27
      %p33 = scmp.ge.s32.totalorder %s32, 1
      %s34 = scalar_select %p33, 0, %s32
      %s35 = sadd.s32 1, %s26
      %s36 = scalar_select %p33, %s35, %s26
      %p37 = scmp.ge.s32.totalorder %s36, 2
      %s38 = scalar_select %p37, 0, %s36
      %s39 = ssub.s32 %s26, %s38
      %s40 = ssub.s32 %s27, %s34
      %s41 = sor.u32 %s39, %s40
      %p42 = scmp.eq.s32.totalorder %s41, 0
      %s44 = sadd.s32 %s43, 1
      %s45 = scalar_select %p42, %s43, %s44
      %p48 = pneg %p42
      %p49 = scmp.eq.s32.totalorder %s19, 1
      %p50 = por %p48, %p49
      %p51 = scmp.ne.s32.totalorder %s43, %s46
      %p52 = scmp.eq.s32.totalorder %s19, 0
      %p53 = por %p51, %p52
      %p54 = scmp.ne.s32.totalorder %s43, %s46
      %p55 = scmp.eq.s32.totalorder %s24, 1
      %p56 = por %p54, %p55
      %p57 = scmp.ne.s32.totalorder %s46, %s47
      %p58 = scmp.eq.s32.totalorder %s24, 0
      %p59 = por %p57, %p58
      %p60 = scmp.ne.s32.totalorder %s46, %s47
      %p61 = scmp.eq.s32.totalorder %s25, 1
      %p62 = por %p60, %p61
      %p64 = scmp.ne.s32.totalorder %s47, %s63
      %p65 = scmp.eq.s32.totalorder %s25, 0
      %p66 = por %p64, %p65
      %s67 = smul.u32 %s27, 16
      %s68 = ssub.s32 %s67, 1
      %p69 = scmp.gt.s32.totalorder %s68, 0
      %s70 = scalar_select %p69, %s68, 0
      %s71 = smul.u32 %s34, 16
      %s72 = ssub.s32 %s71, 1
      %p73 = scmp.gt.s32.totalorder %s72, 0
      %s74 = scalar_select %p73, %s72, 0
      %s75 = ssub.s32 %s26, %s38
      %s76 = ssub.s32 %s70, %s74
      %s77 = sor.u32 %s75, %s76
      %p78 = scmp.eq.s32.totalorder %s77, 0
      %s80 = sadd.s32 %s79, 1
      %s81 = scalar_select %p78, %s79, %s80
      %p84 = pneg %p78
      %p85 = scmp.eq.s32.totalorder %s19, 1
      %p86 = por %p84, %p85
      %p87 = scmp.ne.s32.totalorder %s79, %s82
      %p88 = scmp.eq.s32.totalorder %s19, 0
      %p89 = por %p87, %p88
      %p90 = scmp.ne.s32.totalorder %s79, %s82
      %p91 = scmp.eq.s32.totalorder %s24, 1
      %p92 = por %p90, %p91
      %p93 = scmp.ne.s32.totalorder %s82, %s83
      %p94 = scmp.eq.s32.totalorder %s24, 0
      %p95 = por %p93, %p94
      %p96 = scmp.ne.s32.totalorder %s82, %s83
      %p97 = scmp.eq.s32.totalorder %s25, 1
      %p98 = por %p96, %p97
      %p100 = scmp.ne.s32.totalorder %s83, %s99
      %p101 = scmp.eq.s32.totalorder %s25, 0
      %p102 = por %p100, %p101
      %s103 = smul.u32 %s27, 16
      %s104 = sadd.s32 %s103, 16
      %p105 = scmp.lt.s32.totalorder %s104, 15
      %s106 = scalar_select %p105, %s104, 15
      %s107 = smul.u32 %s34, 16
      %s108 = sadd.s32 %s107, 16
      %p109 = scmp.lt.s32.totalorder %s108, 15
      %s110 = scalar_select %p109, %s108, 15
      %s111 = ssub.s32 %s26, %s38
      %s112 = ssub.s32 %s106, %s110
      %s113 = sor.u32 %s111, %s112
      %p114 = scmp.eq.s32.totalorder %s113, 0
      %s116 = sadd.s32 %s115, 1
      %s117 = scalar_select %p114, %s115, %s116
      %p120 = pneg %p114
      %p121 = scmp.eq.s32.totalorder %s19, 1
      %p122 = por %p120, %p121
      %p123 = scmp.ne.s32.totalorder %s115, %s118
      %p124 = scmp.eq.s32.totalorder %s19, 0
      %p125 = por %p123, %p124
      %p126 = scmp.ne.s32.totalorder %s115, %s118
      %p127 = scmp.eq.s32.totalorder %s24, 1
      %p128 = por %p126, %p127
      %p129 = scmp.ne.s32.totalorder %s118, %s119
      %p130 = scmp.eq.s32.totalorder %s24, 0
      %p131 = por %p129, %p130
      %p132 = scmp.ne.s32.totalorder %s118, %s119
      %p133 = scmp.eq.s32.totalorder %s25, 1
      %p134 = por %p132, %p133
      %p136 = scmp.ne.s32.totalorder %s119, %s135
      %p137 = scmp.eq.s32.totalorder %s25, 0
      %p138 = por %p136, %p137
      %s139 = ssub.s32 %s26, %s38
      %s140 = ssub.s32 %s27, %s34
      %s141 = sor.u32 %s139, %s140
      %p142 = scmp.eq.s32.totalorder %s141, 0
      %s144 = sadd.s32 %s143, 1
      %s145 = scalar_select %p142, %s143, %s144
      %p148 = pneg %p142
      %p149 = scmp.eq.s32.totalorder %s19, 1
      %p150 = por %p148, %p149
      %p151 = scmp.ne.s32.totalorder %s143, %s146
      %p152 = scmp.eq.s32.totalorder %s19, 0
      %p153 = por %p151, %p152
      %p154 = scmp.ne.s32.totalorder %s143, %s146
      %p155 = scmp.eq.s32.totalorder %s24, 1
      %p156 = por %p154, %p155
      %p157 = scmp.ne.s32.totalorder %s146, %s147
      %p158 = scmp.eq.s32.totalorder %s24, 0
      %p159 = por %p157, %p158
      %p160 = scmp.ne.s32.totalorder %s146, %s147
      %p161 = scmp.eq.s32.totalorder %s25, 1
      %p162 = por %p160, %p161
      %p164 = scmp.ne.s32.totalorder %s147, %s163
      %p165 = scmp.eq.s32.totalorder %s25, 0
      %p166 = por %p164, %p165
      %s167 = smul.u32 %s27, 8
      %s168 = ssub.s32 %s167, 1
      %p169 = scmp.gt.s32.totalorder %s168, 0
      %s170 = scalar_select %p169, %s168, 0
      %s171 = smul.u32 %s34, 8
      %s172 = ssub.s32 %s171, 1
      %p173 = scmp.gt.s32.totalorder %s172, 0
      %s174 = scalar_select %p173, %s172, 0
      %s175 = ssub.s32 %s26, %s38
      %s176 = ssub.s32 %s170, %s174
      %s177 = sor.u32 %s175, %s176
      %p178 = scmp.eq.s32.totalorder %s177, 0
      %s180 = sadd.s32 %s179, 1
      %s181 = scalar_select %p178, %s179, %s180
      %p184 = pneg %p178
      %p185 = scmp.eq.s32.totalorder %s19, 1
      %p186 = por %p184, %p185
      %p187 = scmp.ne.s32.totalorder %s179, %s182
      %p188 = scmp.eq.s32.totalorder %s19, 0
      %p189 = por %p187, %p188
      %p190 = scmp.ne.s32.totalorder %s179, %s182
      %p191 = scmp.eq.s32.totalorder %s24, 1
      %p192 = por %p190, %p191
      %p193 = scmp.ne.s32.totalorder %s182, %s183
      %p194 = scmp.eq.s32.totalorder %s24, 0
      %p195 = por %p193, %p194
      %p196 = scmp.ne.s32.totalorder %s182, %s183
      %p197 = scmp.eq.s32.totalorder %s25, 1
      %p198 = por %p196, %p197
      %p200 = scmp.ne.s32.totalorder %s183, %s199
      %p201 = scmp.eq.s32.totalorder %s25, 0
      %p202 = por %p200, %p201
      %s203 = smul.u32 %s27, 8
      %s204 = sadd.s32 %s203, 8
      %p205 = scmp.lt.s32.totalorder %s204, 7
      %s206 = scalar_select %p205, %s204, 7
      %s207 = smul.u32 %s34, 8
      %s208 = sadd.s32 %s207, 8
      %p209 = scmp.lt.s32.totalorder %s208, 7
      %s210 = scalar_select %p209, %s208, 7
      %s211 = ssub.s32 %s26, %s38
      %s212 = ssub.s32 %s206, %s210
      %s213 = sor.u32 %s211, %s212
      %p214 = scmp.eq.s32.totalorder %s213, 0
      %s216 = sadd.s32 %s215, 1
      %s217 = scalar_select %p214, %s215, %s216
      %p220 = pneg %p214
      %p221 = scmp.eq.s32.totalorder %s19, 1
      %p222 = por %p220, %p221
      %p223 = scmp.ne.s32.totalorder %s215, %s218
      %p224 = scmp.eq.s32.totalorder %s19, 0
      %p225 = por %p223, %p224
      %p226 = scmp.ne.s32.totalorder %s215, %s218
      %p227 = scmp.eq.s32.totalorder %s24, 1
      %p228 = por %p226, %p227
      %p229 = scmp.ne.s32.totalorder %s218, %s219
      %p230 = scmp.eq.s32.totalorder %s24, 0
      %p231 = por %p229, %p230
      %p232 = scmp.ne.s32.totalorder %s218, %s219
      %p233 = scmp.eq.s32.totalorder %s25, 1
      %p234 = por %p232, %p233
      %p236 = scmp.ne.s32.totalorder %s219, %s235
      %p237 = scmp.eq.s32.totalorder %s25, 0
      %p238 = por %p236, %p237
      %s240 = sadd.s32 %s239, 1
      %p243 = scmp.eq.s32.totalorder %s19, 1
      %p244 = scmp.ne.s32.totalorder %s239, %s241
      %p245 = scmp.eq.s32.totalorder %s19, 0
      %p246 = por %p244, %p245
      %p247 = scmp.ne.s32.totalorder %s239, %s241
      %p248 = scmp.eq.s32.totalorder %s24, 1
      %p249 = por %p247, %p248
      %p250 = scmp.ne.s32.totalorder %s241, %s242
      %p251 = scmp.eq.s32.totalorder %s24, 0
      %p252 = por %p250, %p251
      %p253 = scmp.ne.s32.totalorder %s241, %s242
      %p254 = scmp.eq.s32.totalorder %s25, 1
      %p255 = por %p253, %p254
      %p257 = scmp.ne.s32.totalorder %s242, %s256
      %p258 = scmp.eq.s32.totalorder %s25, 0
      %p259 = por %p257, %p258
      %s261 = sadd.s32 %s260, 1
      %p264 = scmp.eq.s32.totalorder %s19, 1
      %p265 = scmp.ne.s32.totalorder %s260, %s262
      %p266 = scmp.eq.s32.totalorder %s19, 0
      %p267 = por %p265, %p266
      %p268 = scmp.ne.s32.totalorder %s260, %s262
      %p269 = scmp.eq.s32.totalorder %s24, 1
      %p270 = por %p268, %p269
      %p271 = scmp.ne.s32.totalorder %s262, %s263
      %p272 = scmp.eq.s32.totalorder %s24, 0
      %p273 = por %p271, %p272
      %p274 = scmp.ne.s32.totalorder %s262, %s263
      %p275 = scmp.eq.s32.totalorder %s25, 1
      %p276 = por %p274, %p275
      %p278 = scmp.ne.s32.totalorder %s263, %s277
      %p279 = scmp.eq.s32.totalorder %s25, 0
      %p280 = por %p278, %p279
      %s282 = sadd.s32 %s281, 1
      %p285 = scmp.eq.s32.totalorder %s19, 1
      %p286 = scmp.ne.s32.totalorder %s281, %s283
      %p287 = scmp.eq.s32.totalorder %s19, 0
      %p288 = por %p286, %p287
      %p289 = scmp.ne.s32.totalorder %s281, %s283
      %p290 = scmp.eq.s32.totalorder %s24, 1
      %p291 = por %p289, %p290
      %p292 = scmp.ne.s32.totalorder %s283, %s284
      %p293 = scmp.eq.s32.totalorder %s24, 0
      %p294 = por %p292, %p293
      %p295 = scmp.ne.s32.totalorder %s283, %s284
      %p296 = scmp.eq.s32.totalorder %s25, 1
      %p297 = por %p295, %p296
      %p299 = scmp.ne.s32.totalorder %s284, %s298
      %p300 = scmp.eq.s32.totalorder %s25, 0
      %p301 = por %p299, %p300
      %s303 = sadd.s32 %s302, 1
      %p306 = scmp.eq.s32.totalorder %s19, 1
      %p307 = scmp.ne.s32.totalorder %s302, %s304
      %p308 = scmp.eq.s32.totalorder %s19, 0
      %p309 = por %p307, %p308
      %p310 = scmp.ne.s32.totalorder %s302, %s304
      %p311 = scmp.eq.s32.totalorder %s24, 1
      %p312 = por %p310, %p311
      %p313 = scmp.ne.s32.totalorder %s304, %s305
      %p314 = scmp.eq.s32.totalorder %s24, 0
      %p315 = por %p313, %p314
      %p316 = scmp.ne.s32.totalorder %s304, %s305
      %p317 = scmp.eq.s32.totalorder %s25, 1
      %p318 = por %p316, %p317
      %p320 = scmp.ne.s32.totalorder %s305, %s319
      %p321 = scmp.eq.s32.totalorder %s25, 0
      %p322 = por %p320, %p321
      %s323 = ssub.s32 %s26, %s38
      %s324 = ssub.s32 %s27, %s34
      %s325 = sor.u32 %s323, %s324
      %p326 = scmp.eq.s32.totalorder %s325, 0
      %s328 = sadd.s32 %s327, 1
      %s329 = scalar_select %p326, %s327, %s328
      %p332 = pneg %p326
      %p333 = scmp.eq.s32.totalorder %s19, 1
      %p334 = por %p332, %p333
      %p335 = scmp.ne.s32.totalorder %s327, %s330
      %p336 = scmp.eq.s32.totalorder %s19, 0
      %p337 = por %p335, %p336
      %p338 = scmp.ne.s32.totalorder %s327, %s330
      %p339 = scmp.eq.s32.totalorder %s24, 1
      %p340 = por %p338, %p339
      %p341 = scmp.ne.s32.totalorder %s330, %s331
      %p342 = scmp.eq.s32.totalorder %s24, 0
      %p343 = por %p341, %p342
      %p344 = scmp.ne.s32.totalorder %s330, %s331
      %p345 = scmp.eq.s32.totalorder %s25, 1
      %p346 = por %p344, %p345
      %p348 = scmp.ne.s32.totalorder %s331, %s347
      %p349 = scmp.eq.s32.totalorder %s25, 0
      %p350 = por %p348, %p349
      %p351 = scmp.le.s32.totalorder 1, %s19
      %p352 = scmp.lt.s32.totalorder %s19, 3
      %p353 = pnand %p351, %p352
      %p354 = pneg %p353
      // Predicated region
      $region9: #{decoder_forward.5} parent=5 // pred_check
        _
      $region10: #{decoder_forward.5} parent=5 // pred_check_branch
        %356 = sbr.rel (%p353) target = $region12
      $region11: #{decoder_forward.5} parent=5 // pred_region
        %s357 = ssub.s32 %s19, 1
        // Predicated region
        $region13: #{decoder_forward.5} parent=11 // pred_check
          %p358 = pneg %p252
        $region14: #{decoder_forward.5} parent=11 // pred_check_branch
          %360 = sbr.rel (%p358) target = $region16
        $region15: #{decoder_forward.5} parent=11 // pred_region
          _
        $region16: #{decoder_forward.5} parent=11 // pred_fallthru
          _
        // Predicated region
        $region17: #{decoder_forward.5} parent=11 // pred_check
          %p361 = pneg %p273
        $region18: #{decoder_forward.5} parent=11 // pred_check_branch
          %363 = sbr.rel (%p361) target = $region20
        $region19: #{decoder_forward.5} parent=11 // pred_region
          _
        $region20: #{decoder_forward.5} parent=11 // pred_fallthru
          _
        // Predicated region
        $region21: #{decoder_forward.5} parent=11 // pred_check
          %p364 = pneg %p294
        $region22: #{decoder_forward.5} parent=11 // pred_check_branch
          %366 = sbr.rel (%p364) target = $region24
        $region23: #{decoder_forward.5} parent=11 // pred_region
          _
        $region24: #{decoder_forward.5} parent=11 // pred_fallthru
          _
        // Predicated region
        $region25: #{decoder_forward.5} parent=11 // pred_check
          %p367 = pneg %p315
        $region26: #{decoder_forward.5} parent=11 // pred_check_branch
          %369 = sbr.rel (%p367) target = $region28
        $region27: #{decoder_forward.5} parent=11 // pred_region
          _
        $region28: #{decoder_forward.5} parent=11 // pred_fallthru
          _
      $region12: #{decoder_forward.5} parent=5 // pred_fallthru
        _
      %p370 = scmp.lt.s32.totalorder %s19, 2
      // Predicated region
      $region29: #{decoder_forward.5} parent=5 // pred_check
        %p371 = pneg %p370
      $region30: #{decoder_forward.5} parent=5 // pred_check_branch
        %373 = sbr.rel (%p371) target = $region32
      $region31: #{decoder_forward.5} parent=5 // pred_region
        // Predicated region
        $region33: #{decoder_forward.5} parent=31 // pred_check
          %p374 = pneg %p53
        $region34: #{decoder_forward.5} parent=31 // pred_check_branch
          %376 = sbr.rel (%p374) target = $region36
        $region35: #{decoder_forward.5} parent=31 // pred_region
          %s377 = smul.u32 16, %s27
          %p378 = scmp.lt.s32.totalorder %s26, 1
          %s379 = scalar_select %p378, %s26, 1
          %p380 = scmp.lt.s32.totalorder %s377, 15
          %s381 = scalar_select %p380, %s377, 15
          %s382 = smul.addr %s381, 2
          %s383 = smul.addr %s379, 32
          %s384 = sadd.s32 %s382, %s383
          %s385 = smul.addr %s384, 8
          %s386 = scalar_lea.vmem %s0, %s385
          %s387 = smul.u32 16, %s27
        $region36: #{decoder_forward.5} parent=31 // pred_fallthru
          _
        // Predicated region
        $region37: #{decoder_forward.5} parent=31 // pred_check
          %p388 = pneg %p89
        $region38: #{decoder_forward.5} parent=31 // pred_check_branch
          %390 = sbr.rel (%p388) target = $region40
        $region39: #{decoder_forward.5} parent=31 // pred_region
          %s391 = smul.u32 %s27, 16
          %s392 = ssub.s32 %s391, 1
          %p393 = scmp.gt.s32.totalorder %s392, 0
          %s394 = scalar_select %p393, %s392, 0
          %p395 = scmp.lt.s32.totalorder %s26, 1
          %s396 = scalar_select %p395, %s26, 1
          %p397 = scmp.lt.s32.totalorder %s394, 15
          %s398 = scalar_select %p397, %s394, 15
          %s399 = smul.addr %s398, 2
          %s400 = smul.addr %s396, 32
          %s401 = sadd.s32 %s399, %s400
          %s402 = smul.addr %s401, 8
          %s403 = scalar_lea.vmem %s1, %s402
          %s404 = smul.u32 %s27, 16
          %s405 = ssub.s32 %s404, 1
          %p406 = scmp.gt.s32.totalorder %s405, 0
          %s407 = scalar_select %p406, %s405, 0
        $region40: #{decoder_forward.5} parent=31 // pred_fallthru
          _
        // Predicated region
        $region41: #{decoder_forward.5} parent=31 // pred_check
          %p408 = pneg %p125
        $region42: #{decoder_forward.5} parent=31 // pred_check_branch
          %410 = sbr.rel (%p408) target = $region44
        $region43: #{decoder_forward.5} parent=31 // pred_region
          %s411 = smul.u32 %s27, 16
          %s412 = sadd.s32 %s411, 16
          %p413 = scmp.lt.s32.totalorder %s412, 15
          %s414 = scalar_select %p413, %s412, 15
          %p415 = scmp.lt.s32.totalorder %s26, 1
          %s416 = scalar_select %p415, %s26, 1
          %p417 = scmp.lt.s32.totalorder %s414, 15
          %s418 = scalar_select %p417, %s414, 15
          %s419 = smul.addr %s418, 2
          %s420 = smul.addr %s416, 32
          %s421 = sadd.s32 %s419, %s420
          %s422 = smul.addr %s421, 8
          %s423 = scalar_lea.vmem %s2, %s422
          %s424 = smul.u32 %s27, 16
          %s425 = sadd.s32 %s424, 16
          %p426 = scmp.lt.s32.totalorder %s425, 15
          %s427 = scalar_select %p426, %s425, 15
        $region44: #{decoder_forward.5} parent=31 // pred_fallthru
          _
        // Predicated region
        $region45: #{decoder_forward.5} parent=31 // pred_check
          %p428 = pneg %p153
        $region46: #{decoder_forward.5} parent=31 // pred_check_branch
          %430 = sbr.rel (%p428) target = $region48
        $region47: #{decoder_forward.5} parent=31 // pred_region
          %s431 = smul.u32 8, %s27
          %p432 = scmp.lt.s32.totalorder %s26, 1
          %s433 = scalar_select %p432, %s26, 1
          %p434 = scmp.lt.s32.totalorder %s431, 7
          %s435 = scalar_select %p434, %s431, 7
          %s436 = smul.addr %s433, 8
          %s437 = sadd.s32 %s435, %s436
          %s438 = smul.addr %s437, 8
          %s439 = scalar_lea.vmem %s3, %s438
          %s440 = smul.u32 8, %s27
        $region48: #{decoder_forward.5} parent=31 // pred_fallthru
          _
        // Predicated region
        $region49: #{decoder_forward.5} parent=31 // pred_check
          %p441 = pneg %p189
        $region50: #{decoder_forward.5} parent=31 // pred_check_branch
          %443 = sbr.rel (%p441) target = $region52
        $region51: #{decoder_forward.5} parent=31 // pred_region
          %s444 = smul.u32 %s27, 8
          %s445 = ssub.s32 %s444, 1
          %p446 = scmp.gt.s32.totalorder %s445, 0
          %s447 = scalar_select %p446, %s445, 0
          %p448 = scmp.lt.s32.totalorder %s26, 1
          %s449 = scalar_select %p448, %s26, 1
          %p450 = scmp.lt.s32.totalorder %s447, 7
          %s451 = scalar_select %p450, %s447, 7
          %s452 = smul.addr %s449, 8
          %s453 = sadd.s32 %s451, %s452
          %s454 = smul.addr %s453, 8
          %s455 = scalar_lea.vmem %s4, %s454
          %s456 = smul.u32 %s27, 8
          %s457 = ssub.s32 %s456, 1
          %p458 = scmp.gt.s32.totalorder %s457, 0
          %s459 = scalar_select %p458, %s457, 0
        $region52: #{decoder_forward.5} parent=31 // pred_fallthru
          _
        // Predicated region
        $region53: #{decoder_forward.5} parent=31 // pred_check
          %p460 = pneg %p225
        $region54: #{decoder_forward.5} parent=31 // pred_check_branch
          %462 = sbr.rel (%p460) target = $region56
        $region55: #{decoder_forward.5} parent=31 // pred_region
          %s463 = smul.u32 %s27, 8
          %s464 = sadd.s32 %s463, 8
          %p465 = scmp.lt.s32.totalorder %s464, 7
          %s466 = scalar_select %p465, %s464, 7
          %p467 = scmp.lt.s32.totalorder %s26, 1
          %s468 = scalar_select %p467, %s26, 1
          %p469 = scmp.lt.s32.totalorder %s466, 7
          %s470 = scalar_select %p469, %s466, 7
          %s471 = smul.addr %s468, 8
          %s472 = sadd.s32 %s470, %s471
          %s473 = smul.addr %s472, 8
          %s474 = scalar_lea.vmem %s5, %s473
          %s475 = smul.u32 %s27, 8
          %s476 = sadd.s32 %s475, 8
          %p477 = scmp.lt.s32.totalorder %s476, 7
          %s478 = scalar_select %p477, %s476, 7
        $region56: #{decoder_forward.5} parent=31 // pred_fallthru
          _
      $region32: #{decoder_forward.5} parent=5 // pred_fallthru
        _
      %p479 = scmp.le.s32.totalorder 1, %s19
      %p480 = scmp.lt.s32.totalorder %s19, 3
      %p481 = pnand %p479, %p480
      %p482 = pneg %p481
      // Predicated region
      $region57: #{decoder_forward.5} parent=5 // pred_check
        _
      $region58: #{decoder_forward.5} parent=5 // pred_check_branch
        %484 = sbr.rel (%p481) target = $region60
      $region59: #{decoder_forward.5} parent=5 // pred_region
        %s485 = ssub.s32 %s19, 1
        %s486 = smul.u32 16, %s29
        %p487 = scmp.lt.s32.totalorder %s28, 1
        %s488 = scalar_select %p487, %s28, 1
        %p489 = scmp.lt.s32.totalorder %s486, 15
        %s490 = scalar_select %p489, %s486, 15
        %s491 = smul.addr %s490, 2
        %s492 = smul.addr %s488, 32
        %s493 = sadd.s32 %s491, %s492
        %s494 = smul.addr %s493, 8
        %s495 = scalar_lea.vmem %s0, %s494
        %p496 = pneg %p59
        %p497 = pneg %p56
        %s498 = smul.u32 %s29, 16
        %s499 = ssub.s32 %s498, 1
        %p500 = scmp.gt.s32.totalorder %s499, 0
        %s501 = scalar_select %p500, %s499, 0
        %p502 = scmp.lt.s32.totalorder %s28, 1
        %s503 = scalar_select %p502, %s28, 1
        %p504 = scmp.lt.s32.totalorder %s501, 15
        %s505 = scalar_select %p504, %s501, 15
        %s506 = smul.addr %s505, 2
        %s507 = smul.addr %s503, 32
        %s508 = sadd.s32 %s506, %s507
        %s509 = smul.addr %s508, 8
        %s510 = scalar_lea.vmem %s1, %s509
        %p511 = pneg %p95
        %p512 = pneg %p92
        %s513 = smul.u32 %s29, 16
        %s514 = sadd.s32 %s513, 16
        %p515 = scmp.lt.s32.totalorder %s514, 15
        %s516 = scalar_select %p515, %s514, 15
        %p517 = scmp.lt.s32.totalorder %s28, 1
        %s518 = scalar_select %p517, %s28, 1
        %p519 = scmp.lt.s32.totalorder %s516, 15
        %s520 = scalar_select %p519, %s516, 15
        %s521 = smul.addr %s520, 2
        %s522 = smul.addr %s518, 32
        %s523 = sadd.s32 %s521, %s522
        %s524 = smul.addr %s523, 8
        %s525 = scalar_lea.vmem %s2, %s524
        %p526 = pneg %p131
        %p527 = pneg %p128
        %s528 = smul.u32 8, %s29
        %p529 = scmp.lt.s32.totalorder %s28, 1
        %s530 = scalar_select %p529, %s28, 1
        %p531 = scmp.lt.s32.totalorder %s528, 7
        %s532 = scalar_select %p531, %s528, 7
        %s533 = smul.addr %s530, 8
        %s534 = sadd.s32 %s532, %s533
        %s535 = smul.addr %s534, 8
        %s536 = scalar_lea.vmem %s3, %s535
        %p537 = pneg %p159
        %p538 = pneg %p156
        %s539 = smul.u32 %s29, 8
        %s540 = ssub.s32 %s539, 1
        %p541 = scmp.gt.s32.totalorder %s540, 0
        %s542 = scalar_select %p541, %s540, 0
        %p543 = scmp.lt.s32.totalorder %s28, 1
        %s544 = scalar_select %p543, %s28, 1
        %p545 = scmp.lt.s32.totalorder %s542, 7
        %s546 = scalar_select %p545, %s542, 7
        %s547 = smul.addr %s544, 8
        %s548 = sadd.s32 %s546, %s547
        %s549 = smul.addr %s548, 8
        %s550 = scalar_lea.vmem %s4, %s549
        %p551 = pneg %p195
        %p552 = pneg %p192
        %s553 = smul.u32 %s29, 8
        %s554 = sadd.s32 %s553, 8
        %p555 = scmp.lt.s32.totalorder %s554, 7
        %s556 = scalar_select %p555, %s554, 7
        %p557 = scmp.lt.s32.totalorder %s28, 1
        %s558 = scalar_select %p557, %s28, 1
        %p559 = scmp.lt.s32.totalorder %s556, 7
        %s560 = scalar_select %p559, %s556, 7
        %s561 = smul.addr %s558, 8
        %s562 = sadd.s32 %s560, %s561
        %s563 = smul.addr %s562, 8
        %s564 = scalar_lea.vmem %s5, %s563
        %p565 = pneg %p231
        %p566 = pneg %p228
        %p567 = pneg %p252
        %p568 = pneg %p249
        %p569 = pneg %p273
        %p570 = pneg %p270
        %p571 = pneg %p294
        %p572 = pneg %p291
        %p573 = pneg %p315
        %p574 = pneg %p312
        %p575 = pneg %p343
        %p576 = pneg %p340
        %s577 = sand.u32 %s330, 1
        %s578 = scalar_lea.sflag [#allocation3], %s577
        %s579 = sand.u32 %s330, 1
        %s580 = smul.addr %s579, 256
        %s581 = scalar_lea.vmem [#allocation2], %s580
        %s582 = smul.u32 16, %s29
        %p583 = scmp.lt.s32.totalorder %s28, 1
        %s584 = scalar_select %p583, %s28, 1
        %p585 = scmp.lt.s32.totalorder %s582, 15
        %s586 = scalar_select %p585, %s582, 15
        %s587 = smul.addr %s586, 2
        %s588 = smul.addr %s584, 32
        %s589 = sadd.s32 %s587, %s588
        %s590 = smul.addr %s589, 8
        %s591 = scalar_lea.vmem %s0, %s590
        %s592 = smul.u32 16, %s29
        %s593 = smul.u32 %s29, 16
        %s594 = ssub.s32 %s593, 1
        %p595 = scmp.gt.s32.totalorder %s594, 0
        %s596 = scalar_select %p595, %s594, 0
        %p597 = scmp.lt.s32.totalorder %s28, 1
        %s598 = scalar_select %p597, %s28, 1
        %p599 = scmp.lt.s32.totalorder %s596, 15
        %s600 = scalar_select %p599, %s596, 15
        %s601 = smul.addr %s600, 2
        %s602 = smul.addr %s598, 32
        %s603 = sadd.s32 %s601, %s602
        %s604 = smul.addr %s603, 8
        %s605 = scalar_lea.vmem %s1, %s604
        %s606 = smul.u32 %s29, 16
        %s607 = ssub.s32 %s606, 1
        %p608 = scmp.gt.s32.totalorder %s607, 0
        %s609 = scalar_select %p608, %s607, 0
        %s610 = smul.u32 %s29, 16
        %s611 = sadd.s32 %s610, 16
        %p612 = scmp.lt.s32.totalorder %s611, 15
        %s613 = scalar_select %p612, %s611, 15
        %p614 = scmp.lt.s32.totalorder %s28, 1
        %s615 = scalar_select %p614, %s28, 1
        %p616 = scmp.lt.s32.totalorder %s613, 15
        %s617 = scalar_select %p616, %s613, 15
        %s618 = smul.addr %s617, 2
        %s619 = smul.addr %s615, 32
        %s620 = sadd.s32 %s618, %s619
        %s621 = smul.addr %s620, 8
        %s622 = scalar_lea.vmem %s2, %s621
        %s623 = smul.u32 %s29, 16
        %s624 = sadd.s32 %s623, 16
        %p625 = scmp.lt.s32.totalorder %s624, 15
        %s626 = scalar_select %p625, %s624, 15
        %s627 = smul.u32 8, %s29
        %p628 = scmp.lt.s32.totalorder %s28, 1
        %s629 = scalar_select %p628, %s28, 1
        %p630 = scmp.lt.s32.totalorder %s627, 7
        %s631 = scalar_select %p630, %s627, 7
        %s632 = smul.addr %s629, 8
        %s633 = sadd.s32 %s631, %s632
        %s634 = smul.addr %s633, 8
        %s635 = scalar_lea.vmem %s3, %s634
        %s636 = smul.u32 8, %s29
        %s637 = smul.u32 %s29, 8
        %s638 = ssub.s32 %s637, 1
        %p639 = scmp.gt.s32.totalorder %s638, 0
        %s640 = scalar_select %p639, %s638, 0
        %p641 = scmp.lt.s32.totalorder %s28, 1
        %s642 = scalar_select %p641, %s28, 1
        %p643 = scmp.lt.s32.totalorder %s640, 7
        %s644 = scalar_select %p643, %s640, 7
        %s645 = smul.addr %s642, 8
        %s646 = sadd.s32 %s644, %s645
        %s647 = smul.addr %s646, 8
        %s648 = scalar_lea.vmem %s4, %s647
        %s649 = smul.u32 %s29, 8
        %s650 = ssub.s32 %s649, 1
        %p651 = scmp.gt.s32.totalorder %s650, 0
        %s652 = scalar_select %p651, %s650, 0
        %s653 = smul.u32 %s29, 8
        %s654 = sadd.s32 %s653, 8
        %p655 = scmp.lt.s32.totalorder %s654, 7
        %s656 = scalar_select %p655, %s654, 7
        %p657 = scmp.lt.s32.totalorder %s28, 1
        %s658 = scalar_select %p657, %s28, 1
        %p659 = scmp.lt.s32.totalorder %s656, 7
        %s660 = scalar_select %p659, %s656, 7
        %s661 = smul.addr %s658, 8
        %s662 = sadd.s32 %s660, %s661
        %s663 = smul.addr %s662, 8
        %s664 = scalar_lea.vmem %s5, %s663
        %s665 = smul.u32 %s29, 8
        %s666 = sadd.s32 %s665, 8
        %p667 = scmp.lt.s32.totalorder %s666, 7
        %s668 = scalar_select %p667, %s666, 7
        %s669 = smul.u32 16, %s29
        %v670 = vld [vmem:[%s6] sm:$0xff]
        %v671 = vld [vmem:[%s6 + $0x8] sm:$0xff]
        %v672 = vld [vmem:[%s6 + $0x10] sm:$0xff]
        %v673 = vld [vmem:[%s6 + $0x18] sm:$0xff]
        %v674 = vld [vmem:[%s7] sm:$0x1]
        %v675 = vld [vmem:[%s9] sm:$0x1]
        %v676 = vld [vmem:[%s591] sm:$0xff]
        %v677 = vld [vmem:[%s591 + $0x8] sm:$0xff]
        %v678 = vld [vmem:[%s591 + $0x10] sm:$0xff]
        %v679 = vld [vmem:[%s591 + $0x18] sm:$0xff]
        %v680 = vld [vmem:[%s591 + $0x20] sm:$0xff]
        %v681 = vld [vmem:[%s591 + $0x28] sm:$0xff]
        %v682 = vld [vmem:[%s591 + $0x30] sm:$0xff]
        %v683 = vld [vmem:[%s591 + $0x38] sm:$0xff]
        %v684 = vld [vmem:[%s591 + $0x40] sm:$0xff]
        %v685 = vld [vmem:[%s591 + $0x48] sm:$0xff]
        %v686 = vld [vmem:[%s591 + $0x50] sm:$0xff]
        %v687 = vld [vmem:[%s591 + $0x58] sm:$0xff]
        %v688 = vld [vmem:[%s591 + $0x60] sm:$0xff]
        %v689 = vld [vmem:[%s591 + $0x68] sm:$0xff]
        %v690 = vld [vmem:[%s591 + $0x70] sm:$0xff]
        %v691 = vld [vmem:[%s591 + $0x78] sm:$0xff]
        %v692 = vld [vmem:[%s591 + $0x80] sm:$0xff]
        %v693 = vld [vmem:[%s591 + $0x88] sm:$0xff]
        %v694 = vld [vmem:[%s591 + $0x90] sm:$0xff]
        %v695 = vld [vmem:[%s591 + $0x98] sm:$0xff]
        %v696 = vld [vmem:[%s591 + $0xa0] sm:$0xff]
        %v697 = vld [vmem:[%s591 + $0xa8] sm:$0xff]
        %v698 = vld [vmem:[%s591 + $0xb0] sm:$0xff]
        %v699 = vld [vmem:[%s591 + $0xb8] sm:$0xff]
        %v700 = vld [vmem:[%s591 + $0xc0] sm:$0xff]
        %v701 = vld [vmem:[%s591 + $0xc8] sm:$0xff]
        %v702 = vld [vmem:[%s591 + $0xd0] sm:$0xff]
        %v703 = vld [vmem:[%s591 + $0xd8] sm:$0xff]
        %v704 = vld [vmem:[%s591 + $0xe0] sm:$0xff]
        %v705 = vld [vmem:[%s591 + $0xe8] sm:$0xff]
        %v706 = vld [vmem:[%s591 + $0xf0] sm:$0xff]
        %v707 = vld [vmem:[%s591 + $0xf8] sm:$0xff]
        %v709 = vlaneseq
        %v710 = vshrl.u32 %v709, 7
        %v711 = vsub.s32 0, %v710
        %v712 = vrot.slane %v674, %v711
        %vm714 = vcmask 261120
        %v716 = vsel %vm714, %v676, 0
        %v719 = vsel %vm714, %v677, 0
        %v722 = vsel %vm714, %v678, 0
        %v725 = vsel %vm714, %v679, 0
        %v728 = vsel %vm714, %v680, 0
        %v731 = vsel %vm714, %v681, 0
        %v734 = vsel %vm714, %v682, 0
        %v737 = vsel %vm714, %v683, 0
        %v740 = vsel %vm714, %v684, 0
        %v743 = vsel %vm714, %v685, 0
        %v746 = vsel %vm714, %v686, 0
        %v749 = vsel %vm714, %v687, 0
        %v752 = vsel %vm714, %v688, 0
        %v755 = vsel %vm714, %v689, 0
        %v758 = vsel %vm714, %v690, 0
        %v761 = vsel %vm714, %v691, 0
        %v764 = vsel %vm714, %v692, 0
        %v767 = vsel %vm714, %v693, 0
        %v770 = vsel %vm714, %v694, 0
        %v773 = vsel %vm714, %v695, 0
        %v776 = vsel %vm714, %v696, 0
        %v779 = vsel %vm714, %v697, 0
        %v782 = vsel %vm714, %v698, 0
        %v785 = vsel %vm714, %v699, 0
        %v788 = vsel %vm714, %v700, 0
        %v791 = vsel %vm714, %v701, 0
        %v794 = vsel %vm714, %v702, 0
        %v797 = vsel %vm714, %v703, 0
        %v800 = vsel %vm714, %v704, 0
        %v803 = vsel %vm714, %v705, 0
        %v806 = vsel %vm714, %v706, 0
        %v809 = vsel %vm714, %v707, 0
        %811 = vmatprep.subr.mxu0 0.0
        %812 = vmatpush1.msra.mxu0 %v670
        %813 = vmatprep.subr.mxu0 0.0
        %814 = vmatpush1.msra.mxu0 %v671
        %815 = vmatprep.subr.mxu0 0.0
        %816 = vmatpush1.msra.mxu0 %v672
        %817 = vmatprep.subr.mxu0 0.0
        %818 = vmatpush1.msra.mxu0 %v673
        %819 = vmatprep.subr.mxu0 0.0
        %820 = vmatpush1.msra.mxu0 0.0
        %821 = vmatprep.subr.mxu0 0.0
        %822 = vmatpush1.msra.mxu0 0.0
        %823 = vmatprep.subr.mxu0 0.0
        %824 = vmatpush1.msra.mxu0 0.0
        %825 = vmatprep.subr.mxu0 0.0
        %826 = vmatpush1.msra.mxu0 0.0
        %827 = vmatprep.subr.mxu0 0.0
        %828 = vmatpush1.msra.mxu0 0.0
        %829 = vmatprep.subr.mxu0 0.0
        %830 = vmatpush1.msra.mxu0 0.0
        %831 = vmatprep.subr.mxu0 0.0
        %832 = vmatpush1.msra.mxu0 0.0
        %833 = vmatprep.subr.mxu0 0.0
        %834 = vmatpush1.msra.mxu0 0.0
        %835 = vmatprep.subr.mxu0 0.0
        %836 = vmatpush1.msra.mxu0 0.0
        %837 = vmatprep.subr.mxu0 0.0
        %838 = vmatpush1.msra.mxu0 0.0
        %839 = vmatprep.subr.mxu0 0.0
        %840 = vmatpush1.msra.mxu0 0.0
        %841 = vmatprep.subr.mxu0 0.0
        %842 = vmatpush1.msra.mxu0 0.0
        %843 = vmatprep.subr.mxu0 0.0
        %844 = vmatpush1.msra.mxu0 0.0
        %845 = vmatprep.subr.mxu0 0.0
        %846 = vmatpush1.msra.mxu0 0.0
        %847 = vmatprep.subr.mxu0 0.0
        %848 = vmatpush1.msra.mxu0 0.0
        %849 = vmatprep.subr.mxu0 0.0
        %850 = vmatpush1.msra.mxu0 0.0
        %851 = vmatprep.subr.mxu0 0.0
        %852 = vmatpush1.msra.mxu0 0.0
        %853 = vmatprep.subr.mxu0 0.0
        %854 = vmatpush1.msra.mxu0 0.0
        %855 = vmatprep.subr.mxu0 0.0
        %856 = vmatpush1.msra.mxu0 0.0
        %857 = vmatprep.subr.mxu0 0.0
        %858 = vmatpush1.msra.mxu0 0.0
        %859 = vmatprep.subr.mxu0 0.0
        %860 = vmatpush1.msra.mxu0 0.0
        %861 = vmatprep.subr.mxu0 0.0
        %862 = vmatpush1.msra.mxu0 0.0
        %863 = vmatprep.subr.mxu0 0.0
        %864 = vmatpush1.msra.mxu0 0.0
        %865 = vmatprep.subr.mxu0 0.0
        %866 = vmatpush1.msra.mxu0 0.0
        %867 = vmatprep.subr.mxu0 0.0
        %868 = vmatpush1.msra.mxu0 0.0
        %869 = vmatprep.subr.mxu0 0.0
        %870 = vmatpush1.msra.mxu0 0.0
        %871 = vmatprep.subr.mxu0 0.0
        %872 = vmatpush1.msra.mxu0 0.0
        %873 = vmatprep.subr.mxu0 0.0
        %874 = vmatpush1.msra.mxu0 0.0
        %875 = vmatprep.mubr.f32.mxu0 0.0
        %876 = vmatmul.mubr.f32.gmra.mrb[0].mxu0 %v716
        %v877 = vpop.f32.mrb[0].mxu0
        %v878 = vadd.f32 %v712, %v877
        %v879 = vpop.f32.mrb[0].mxu0
        %880 = vmatprep.mubr.f32.mxu0 0.0
        %881 = vmatmul.mubr.f32.gmra.mrb[0].mxu0 %v719
        %v882 = vpop.f32.mrb[0].mxu0
        %v883 = vadd.f32 %v712, %v882
        %v884 = vpop.f32.mrb[0].mxu0
        %885 = vmatprep.mubr.f32.mxu0 0.0
        %886 = vmatmul.mubr.f32.gmra.mrb[0].mxu0 %v722
        %v887 = vpop.f32.mrb[0].mxu0
        %v888 = vadd.f32 %v712, %v887
        %v889 = vpop.f32.mrb[0].mxu0
        %890 = vmatprep.mubr.f32.mxu0 0.0
        %891 = vmatmul.mubr.f32.gmra.mrb[0].mxu0 %v725
        %v892 = vpop.f32.mrb[0].mxu0
        %v893 = vadd.f32 %v712, %v892
        %v894 = vpop.f32.mrb[0].mxu0
        %895 = vmatprep.mubr.f32.mxu0 0.0
        %896 = vmatmul.mubr.f32.gmra.mrb[0].mxu0 %v728
        %v897 = vpop.f32.mrb[0].mxu0
        %v898 = vadd.f32 %v712, %v897
        %v899 = vpop.f32.mrb[0].mxu0
        %900 = vmatprep.mubr.f32.mxu0 0.0
        %901 = vmatmul.mubr.f32.gmra.mrb[0].mxu0 %v731
        %v902 = vpop.f32.mrb[0].mxu0
        %v903 = vadd.f32 %v712, %v902
        %v904 = vpop.f32.mrb[0].mxu0
        %905 = vmatprep.mubr.f32.mxu0 0.0
        %906 = vmatmul.mubr.f32.gmra.mrb[0].mxu0 %v734
        %v907 = vpop.f32.mrb[0].mxu0
        %v908 = vadd.f32 %v712, %v907
        %v909 = vpop.f32.mrb[0].mxu0
        %910 = vmatprep.mubr.f32.mxu0 0.0
        %911 = vmatmul.mubr.f32.gmra.mrb[0].mxu0 %v737
        %v912 = vpop.f32.mrb[0].mxu0
        %v913 = vadd.f32 %v712, %v912
        %v914 = vpop.f32.mrb[0].mxu0
        %915 = vmatprep.mubr.f32.mxu0 0.0
        %916 = vmatmul.mubr.f32.gmra.mrb[0].mxu0 %v740
        %v917 = vpop.f32.mrb[0].mxu0
        %v918 = vadd.f32 %v712, %v917
        %v919 = vpop.f32.mrb[0].mxu0
        %920 = vmatprep.mubr.f32.mxu0 0.0
        %921 = vmatmul.mubr.f32.gmra.mrb[0].mxu0 %v743
        %v922 = vpop.f32.mrb[0].mxu0
        %v923 = vadd.f32 %v712, %v922
        %v924 = vpop.f32.mrb[0].mxu0
        %925 = vmatprep.mubr.f32.mxu0 0.0
        %926 = vmatmul.mubr.f32.gmra.mrb[0].mxu0 %v746
        %v927 = vpop.f32.mrb[0].mxu0
        %v928 = vadd.f32 %v712, %v927
        %v929 = vpop.f32.mrb[0].mxu0
        %930 = vmatprep.mubr.f32.mxu0 0.0
        %931 = vmatmul.mubr.f32.gmra.mrb[0].mxu0 %v749
        %v932 = vpop.f32.mrb[0].mxu0
        %v933 = vadd.f32 %v712, %v932
        %v934 = vpop.f32.mrb[0].mxu0
        %935 = vmatprep.mubr.f32.mxu0 0.0
        %936 = vmatmul.mubr.f32.gmra.mrb[0].mxu0 %v752
        %v937 = vpop.f32.mrb[0].mxu0
        %v938 = vadd.f32 %v712, %v937
        %v939 = vpop.f32.mrb[0].mxu0
        %940 = vmatprep.mubr.f32.mxu0 0.0
        %941 = vmatmul.mubr.f32.gmra.mrb[0].mxu0 %v755
        %v942 = vpop.f32.mrb[0].mxu0
        %v943 = vadd.f32 %v712, %v942
        %v944 = vpop.f32.mrb[0].mxu0
        %945 = vmatprep.mubr.f32.mxu0 0.0
        %946 = vmatmul.mubr.f32.gmra.mrb[0].mxu0 %v758
        %v947 = vpop.f32.mrb[0].mxu0
        %v948 = vadd.f32 %v712, %v947
        %v949 = vpop.f32.mrb[0].mxu0
        %950 = vmatprep.mubr.f32.mxu0 0.0
        %951 = vmatmul.mubr.f32.gmra.mrb[0].mxu0 %v761
        %v952 = vpop.f32.mrb[0].mxu0
        %v953 = vadd.f32 %v712, %v952
        %v954 = vpop.f32.mrb[0].mxu0
        %955 = vmatprep.mubr.f32.mxu0 0.0
        %956 = vmatmul.mubr.f32.gmra.mrb[0].mxu0 %v764
        %v957 = vpop.f32.mrb[0].mxu0
        %v958 = vadd.f32 %v712, %v957
        %v959 = vpop.f32.mrb[0].mxu0
        %960 = vmatprep.mubr.f32.mxu0 0.0
        %961 = vmatmul.mubr.f32.gmra.mrb[0].mxu0 %v767
        %v962 = vpop.f32.mrb[0].mxu0
        %v963 = vadd.f32 %v712, %v962
        %v964 = vpop.f32.mrb[0].mxu0
        %965 = vmatprep.mubr.f32.mxu0 0.0
        %966 = vmatmul.mubr.f32.gmra.mrb[0].mxu0 %v770
        %v967 = vpop.f32.mrb[0].mxu0
        %v968 = vadd.f32 %v712, %v967
        %v969 = vpop.f32.mrb[0].mxu0
        %970 = vmatprep.mubr.f32.mxu0 0.0
        %971 = vmatmul.mubr.f32.gmra.mrb[0].mxu0 %v773
        %v972 = vpop.f32.mrb[0].mxu0
        %v973 = vadd.f32 %v712, %v972
        %v974 = vpop.f32.mrb[0].mxu0
        %975 = vmatprep.mubr.f32.mxu0 0.0
        %976 = vmatmul.mubr.f32.gmra.mrb[0].mxu0 %v776
        %v977 = vpop.f32.mrb[0].mxu0
        %v978 = vadd.f32 %v712, %v977
        %v979 = vpop.f32.mrb[0].mxu0
        %980 = vmatprep.mubr.f32.mxu0 0.0
        %981 = vmatmul.mubr.f32.gmra.mrb[0].mxu0 %v779
        %v982 = vpop.f32.mrb[0].mxu0
        %v983 = vadd.f32 %v712, %v982
        %v984 = vpop.f32.mrb[0].mxu0
        %985 = vmatprep.mubr.f32.mxu0 0.0
        %986 = vmatmul.mubr.f32.gmra.mrb[0].mxu0 %v782
        %v987 = vpop.f32.mrb[0].mxu0
        %v988 = vadd.f32 %v712, %v987
        %v989 = vpop.f32.mrb[0].mxu0
        %990 = vmatprep.mubr.f32.mxu0 0.0
        %991 = vmatmul.mubr.f32.gmra.mrb[0].mxu0 %v785
        %v992 = vpop.f32.mrb[0].mxu0
        %v993 = vadd.f32 %v712, %v992
        %v994 = vpop.f32.mrb[0].mxu0
        %995 = vmatprep.mubr.f32.mxu0 0.0
        %996 = vmatmul.mubr.f32.gmra.mrb[0].mxu0 %v788
        %v997 = vpop.f32.mrb[0].mxu0
        %v998 = vadd.f32 %v712, %v997
        %v999 = vpop.f32.mrb[0].mxu0
        %1000 = vmatprep.mubr.f32.mxu0 0.0
        %1001 = vmatmul.mubr.f32.gmra.mrb[0].mxu0 %v791
        %v1002 = vpop.f32.mrb[0].mxu0
        %v1003 = vadd.f32 %v712, %v1002
        %v1004 = vpop.f32.mrb[0].mxu0
        %1005 = vmatprep.mubr.f32.mxu0 0.0
        %1006 = vmatmul.mubr.f32.gmra.mrb[0].mxu0 %v794
        %v1007 = vpop.f32.mrb[0].mxu0
        %v1008 = vadd.f32 %v712, %v1007
        %v1009 = vpop.f32.mrb[0].mxu0
        %1010 = vmatprep.mubr.f32.mxu0 0.0
        %1011 = vmatmul.mubr.f32.gmra.mrb[0].mxu0 %v797
        %v1012 = vpop.f32.mrb[0].mxu0
        %v1013 = vadd.f32 %v712, %v1012
        %v1014 = vpop.f32.mrb[0].mxu0
        %1015 = vmatprep.mubr.f32.mxu0 0.0
        %1016 = vmatmul.mubr.f32.gmra.mrb[0].mxu0 %v800
        %v1017 = vpop.f32.mrb[0].mxu0
        %v1018 = vadd.f32 %v712, %v1017
        %v1019 = vpop.f32.mrb[0].mxu0
        %1020 = vmatprep.mubr.f32.mxu0 0.0
        %1021 = vmatmul.mubr.f32.gmra.mrb[0].mxu0 %v803
        %v1022 = vpop.f32.mrb[0].mxu0
        %v1023 = vadd.f32 %v712, %v1022
        %v1024 = vpop.f32.mrb[0].mxu0
        %1025 = vmatprep.mubr.f32.mxu0 0.0
        %1026 = vmatmul.mubr.f32.gmra.mrb[0].mxu0 %v806
        %v1027 = vpop.f32.mrb[0].mxu0
        %v1028 = vadd.f32 %v712, %v1027
        %v1029 = vpop.f32.mrb[0].mxu0
        %1030 = vmatprep.mubr.f32.mxu0 0.0
        %1031 = vmatmul.mubr.f32.gmra.mrb[0].mxu0 %v809
        %v1032 = vpop.f32.mrb[0].mxu0
        %v1033 = vadd.f32 %v712, %v1032
        %v1034 = vpop.f32.mrb[0].mxu0
        %1035 = vdwg.mxu0
        %v1036 = vld [vmem:[%s605] sm:$0xff]
        %v1037 = vld [vmem:[%s605 + $0x8] sm:$0xff]
        %v1039 = vsel %vm714, %v1036, 0
        %v1042 = vsel %vm714, %v1037, 0
        %1044 = vmatprep.subr.mxu0 0.0
        %1045 = vmatpush1.msra.mxu0 %v670
        %1046 = vmatprep.subr.mxu0 0.0
        %1047 = vmatpush1.msra.mxu0 %v671
        %1048 = vmatprep.subr.mxu0 0.0
        %1049 = vmatpush1.msra.mxu0 %v672
        %1050 = vmatprep.subr.mxu0 0.0
        %1051 = vmatpush1.msra.mxu0 %v673
        %1052 = vmatprep.subr.mxu0 0.0
        %1053 = vmatpush1.msra.mxu0 0.0
        %1054 = vmatprep.subr.mxu0 0.0
        %1055 = vmatpush1.msra.mxu0 0.0
        %1056 = vmatprep.subr.mxu0 0.0
        %1057 = vmatpush1.msra.mxu0 0.0
        %1058 = vmatprep.subr.mxu0 0.0
        %1059 = vmatpush1.msra.mxu0 0.0
        %1060 = vmatprep.subr.mxu0 0.0
        %1061 = vmatpush1.msra.mxu0 0.0
        %1062 = vmatprep.subr.mxu0 0.0
        %1063 = vmatpush1.msra.mxu0 0.0
        %1064 = vmatprep.subr.mxu0 0.0
        %1065 = vmatpush1.msra.mxu0 0.0
        %1066 = vmatprep.subr.mxu0 0.0
        %1067 = vmatpush1.msra.mxu0 0.0
        %1068 = vmatprep.subr.mxu0 0.0
        %1069 = vmatpush1.msra.mxu0 0.0
        %1070 = vmatprep.subr.mxu0 0.0
        %1071 = vmatpush1.msra.mxu0 0.0
        %1072 = vmatprep.subr.mxu0 0.0
        %1073 = vmatpush1.msra.mxu0 0.0
        %1074 = vmatprep.subr.mxu0 0.0
        %1075 = vmatpush1.msra.mxu0 0.0
        %1076 = vmatprep.subr.mxu0 0.0
        %1077 = vmatpush1.msra.mxu0 0.0
        %1078 = vmatprep.subr.mxu0 0.0
        %1079 = vmatpush1.msra.mxu0 0.0
        %1080 = vmatprep.subr.mxu0 0.0
        %1081 = vmatpush1.msra.mxu0 0.0
        %1082 = vmatprep.subr.mxu0 0.0
        %1083 = vmatpush1.msra.mxu0 0.0
        %1084 = vmatprep.subr.mxu0 0.0
        %1085 = vmatpush1.msra.mxu0 0.0
        %1086 = vmatprep.subr.mxu0 0.0
        %1087 = vmatpush1.msra.mxu0 0.0
        %1088 = vmatprep.subr.mxu0 0.0
        %1089 = vmatpush1.msra.mxu0 0.0
        %1090 = vmatprep.subr.mxu0 0.0
        %1091 = vmatpush1.msra.mxu0 0.0
        %1092 = vmatprep.subr.mxu0 0.0
        %1093 = vmatpush1.msra.mxu0 0.0
        %1094 = vmatprep.subr.mxu0 0.0
        %1095 = vmatpush1.msra.mxu0 0.0
        %1096 = vmatprep.subr.mxu0 0.0
        %1097 = vmatpush1.msra.mxu0 0.0
        %1098 = vmatprep.subr.mxu0 0.0
        %1099 = vmatpush1.msra.mxu0 0.0
        %1100 = vmatprep.subr.mxu0 0.0
        %1101 = vmatpush1.msra.mxu0 0.0
        %1102 = vmatprep.subr.mxu0 0.0
        %1103 = vmatpush1.msra.mxu0 0.0
        %1104 = vmatprep.subr.mxu0 0.0
        %1105 = vmatpush1.msra.mxu0 0.0
        %1106 = vmatprep.subr.mxu0 0.0
        %1107 = vmatpush1.msra.mxu0 0.0
        %1108 = vmatprep.mubr.f32.mxu0 0.0
        %1109 = vmatmul.mubr.f32.gmra.mrb[0].mxu0 %v1039
        %v1110 = vpop.f32.mrb[0].mxu0
        %v1111 = vadd.f32 %v712, %v1110
        %v1112 = vpop.f32.mrb[0].mxu0
        %1113 = vmatprep.mubr.f32.mxu0 0.0
        %1114 = vmatmul.mubr.f32.gmra.mrb[0].mxu0 %v1042
        %v1115 = vpop.f32.mrb[0].mxu0
        %v1116 = vadd.f32 %v712, %v1115
        %v1117 = vpop.f32.mrb[0].mxu0
        %1118 = vdwg.mxu0
        %v1119 = vld [vmem:[%s622] sm:$0xff]
        %v1120 = vld [vmem:[%s622 + $0x8] sm:$0xff]
        %v1122 = vsel %vm714, %v1119, 0
        %v1125 = vsel %vm714, %v1120, 0
        %1127 = vmatprep.subr.mxu0 0.0
        %1128 = vmatpush1.msra.mxu0 %v670
        %1129 = vmatprep.subr.mxu0 0.0
        %1130 = vmatpush1.msra.mxu0 %v671
        %1131 = vmatprep.subr.mxu0 0.0
        %1132 = vmatpush1.msra.mxu0 %v672
        %1133 = vmatprep.subr.mxu0 0.0
        %1134 = vmatpush1.msra.mxu0 %v673
        %1135 = vmatprep.subr.mxu0 0.0
        %1136 = vmatpush1.msra.mxu0 0.0
        %1137 = vmatprep.subr.mxu0 0.0
        %1138 = vmatpush1.msra.mxu0 0.0
        %1139 = vmatprep.subr.mxu0 0.0
        %1140 = vmatpush1.msra.mxu0 0.0
        %1141 = vmatprep.subr.mxu0 0.0
        %1142 = vmatpush1.msra.mxu0 0.0
        %1143 = vmatprep.subr.mxu0 0.0
        %1144 = vmatpush1.msra.mxu0 0.0
        %1145 = vmatprep.subr.mxu0 0.0
        %1146 = vmatpush1.msra.mxu0 0.0
        %1147 = vmatprep.subr.mxu0 0.0
        %1148 = vmatpush1.msra.mxu0 0.0
        %1149 = vmatprep.subr.mxu0 0.0
        %1150 = vmatpush1.msra.mxu0 0.0
        %1151 = vmatprep.subr.mxu0 0.0
        %1152 = vmatpush1.msra.mxu0 0.0
        %1153 = vmatprep.subr.mxu0 0.0
        %1154 = vmatpush1.msra.mxu0 0.0
        %1155 = vmatprep.subr.mxu0 0.0
        %1156 = vmatpush1.msra.mxu0 0.0
        %1157 = vmatprep.subr.mxu0 0.0
        %1158 = vmatpush1.msra.mxu0 0.0
        %1159 = vmatprep.subr.mxu0 0.0
        %1160 = vmatpush1.msra.mxu0 0.0
        %1161 = vmatprep.subr.mxu0 0.0
        %1162 = vmatpush1.msra.mxu0 0.0
        %1163 = vmatprep.subr.mxu0 0.0
        %1164 = vmatpush1.msra.mxu0 0.0
        %1165 = vmatprep.subr.mxu0 0.0
        %1166 = vmatpush1.msra.mxu0 0.0
        %1167 = vmatprep.subr.mxu0 0.0
        %1168 = vmatpush1.msra.mxu0 0.0
        %1169 = vmatprep.subr.mxu0 0.0
        %1170 = vmatpush1.msra.mxu0 0.0
        %1171 = vmatprep.subr.mxu0 0.0
        %1172 = vmatpush1.msra.mxu0 0.0
        %1173 = vmatprep.subr.mxu0 0.0
        %1174 = vmatpush1.msra.mxu0 0.0
        %1175 = vmatprep.subr.mxu0 0.0
        %1176 = vmatpush1.msra.mxu0 0.0
        %1177 = vmatprep.subr.mxu0 0.0
        %1178 = vmatpush1.msra.mxu0 0.0
        %1179 = vmatprep.subr.mxu0 0.0
        %1180 = vmatpush1.msra.mxu0 0.0
        %1181 = vmatprep.subr.mxu0 0.0
        %1182 = vmatpush1.msra.mxu0 0.0
        %1183 = vmatprep.subr.mxu0 0.0
        %1184 = vmatpush1.msra.mxu0 0.0
        %1185 = vmatprep.subr.mxu0 0.0
        %1186 = vmatpush1.msra.mxu0 0.0
        %1187 = vmatprep.subr.mxu0 0.0
        %1188 = vmatpush1.msra.mxu0 0.0
        %1189 = vmatprep.subr.mxu0 0.0
        %1190 = vmatpush1.msra.mxu0 0.0
        %1191 = vmatprep.mubr.f32.mxu0 0.0
        %1192 = vmatmul.mubr.f32.gmra.mrb[0].mxu0 %v1122
        %v1193 = vpop.f32.mrb[0].mxu0
        %v1194 = vadd.f32 %v712, %v1193
        %v1195 = vpop.f32.mrb[0].mxu0
        %1196 = vmatprep.mubr.f32.mxu0 0.0
        %1197 = vmatmul.mubr.f32.gmra.mrb[0].mxu0 %v1125
        %v1198 = vpop.f32.mrb[0].mxu0
        %v1199 = vadd.f32 %v712, %v1198
        %v1200 = vpop.f32.mrb[0].mxu0
        %1201 = vdwg.mxu0
        %v1202 = vld [vmem:[%s635] sm:$0xff]
        %v1203 = vld [vmem:[%s635 + $0x8] sm:$0xff]
        %v1204 = vld [vmem:[%s635 + $0x10] sm:$0xff]
        %v1205 = vld [vmem:[%s635 + $0x18] sm:$0xff]
        %v1206 = vld [vmem:[%s635 + $0x20] sm:$0xff]
        %v1207 = vld [vmem:[%s635 + $0x28] sm:$0xff]
        %v1208 = vld [vmem:[%s635 + $0x30] sm:$0xff]
        %v1209 = vld [vmem:[%s635 + $0x38] sm:$0xff]
        %v1218 = vcombine.high %v1202, %v1202
        %v1220 = vunpack.c.l.s4 1966171168
        %v1221 = vunpack.c.0.s8 %v1220
        %v1222 = vlaneseq
        %v1223 = vshrl.u32 %v1222, 7
        %v1224 = vsub.s32 %v1221, %v1223
        %v1225 = vrot.slane %v1202, %v1224
        %v1227 = vunpack.c.l.s4 1966171168
        %v1228 = vunpack.c.0.s8 %v1227
        %v1229 = vlaneseq
        %v1230 = vshrl.u32 %v1229, 7
        %v1231 = vsub.s32 %v1228, %v1230
        %v1232 = vrot.slane %v1218, %v1231
        %v1233 = vcombine.high %v1225, %v1225
        %v1234 = vcombine.high %v1232, %v1232
        %v1236 = vunpack.c.l.s4 1966171168
        %v1237 = vunpack.c.0.s8 %v1236
        %v1238 = vlaneseq
        %v1239 = vshrl.u32 %v1238, 7
        %v1240 = vsub.s32 %v1237, %v1239
        %v1241 = vrot.slane %v1225, %v1240
        %v1243 = vunpack.c.l.s4 1966171168
        %v1244 = vunpack.c.0.s8 %v1243
        %v1245 = vlaneseq
        %v1246 = vshrl.u32 %v1245, 7
        %v1247 = vsub.s32 %v1244, %v1246
        %v1248 = vrot.slane %v1232, %v1247
        %v1250 = vunpack.c.l.s4 1966171168
        %v1251 = vunpack.c.0.s8 %v1250
        %v1252 = vlaneseq
        %v1253 = vshrl.u32 %v1252, 7
        %v1254 = vsub.s32 %v1251, %v1253
        %v1255 = vrot.slane %v1233, %v1254
        %v1257 = vunpack.c.l.s4 1966171168
        %v1258 = vunpack.c.0.s8 %v1257
        %v1259 = vlaneseq
        %v1260 = vshrl.u32 %v1259, 7
        %v1261 = vsub.s32 %v1258, %v1260
        %v1262 = vrot.slane %v1234, %v1261
        %v1263 = vcombine.high %v1241, %v1241
        %v1264 = vcombine.high %v1248, %v1248
        %v1265 = vcombine.high %v1255, %v1255
        %v1266 = vcombine.high %v1262, %v1262
        %v1267 = vcombine.high %v1203, %v1203
        %v1269 = vunpack.c.l.s4 1966171168
        %v1270 = vunpack.c.0.s8 %v1269
        %v1271 = vlaneseq
        %v1272 = vshrl.u32 %v1271, 7
        %v1273 = vsub.s32 %v1270, %v1272
        %v1274 = vrot.slane %v1203, %v1273
        %v1276 = vunpack.c.l.s4 1966171168
        %v1277 = vunpack.c.0.s8 %v1276
        %v1278 = vlaneseq
        %v1279 = vshrl.u32 %v1278, 7
        %v1280 = vsub.s32 %v1277, %v1279
        %v1281 = vrot.slane %v1267, %v1280
        %v1282 = vcombine.high %v1274, %v1274
        %v1283 = vcombine.high %v1281, %v1281
        %v1285 = vunpack.c.l.s4 1966171168
        %v1286 = vunpack.c.0.s8 %v1285
        %v1287 = vlaneseq
        %v1288 = vshrl.u32 %v1287, 7
        %v1289 = vsub.s32 %v1286, %v1288
        %v1290 = vrot.slane %v1274, %v1289
        %v1292 = vunpack.c.l.s4 1966171168
        %v1293 = vunpack.c.0.s8 %v1292
        %v1294 = vlaneseq
        %v1295 = vshrl.u32 %v1294, 7
        %v1296 = vsub.s32 %v1293, %v1295
        %v1297 = vrot.slane %v1281, %v1296
        %v1299 = vunpack.c.l.s4 1966171168
        %v1300 = vunpack.c.0.s8 %v1299
        %v1301 = vlaneseq
        %v1302 = vshrl.u32 %v1301, 7
        %v1303 = vsub.s32 %v1300, %v1302
        %v1304 = vrot.slane %v1282, %v1303
        %v1306 = vunpack.c.l.s4 1966171168
        %v1307 = vunpack.c.0.s8 %v1306
        %v1308 = vlaneseq
        %v1309 = vshrl.u32 %v1308, 7
        %v1310 = vsub.s32 %v1307, %v1309
        %v1311 = vrot.slane %v1283, %v1310
        %v1312 = vcombine.high %v1290, %v1290
        %v1313 = vcombine.high %v1297, %v1297
        %v1314 = vcombine.high %v1304, %v1304
        %v1315 = vcombine.high %v1311, %v1311
        %v1316 = vcombine.high %v1204, %v1204
        %v1318 = vunpack.c.l.s4 1966171168
        %v1319 = vunpack.c.0.s8 %v1318
        %v1320 = vlaneseq
        %v1321 = vshrl.u32 %v1320, 7
        %v1322 = vsub.s32 %v1319, %v1321
        %v1323 = vrot.slane %v1204, %v1322
        %v1325 = vunpack.c.l.s4 1966171168
        %v1326 = vunpack.c.0.s8 %v1325
        %v1327 = vlaneseq
        %v1328 = vshrl.u32 %v1327, 7
        %v1329 = vsub.s32 %v1326, %v1328
        %v1330 = vrot.slane %v1316, %v1329
        %v1331 = vcombine.high %v1323, %v1323
        %v1332 = vcombine.high %v1330, %v1330
        %v1334 = vunpack.c.l.s4 1966171168
        %v1335 = vunpack.c.0.s8 %v1334
        %v1336 = vlaneseq
        %v1337 = vshrl.u32 %v1336, 7
        %v1338 = vsub.s32 %v1335, %v1337
        %v1339 = vrot.slane %v1323, %v1338
        %v1341 = vunpack.c.l.s4 1966171168
        %v1342 = vunpack.c.0.s8 %v1341
        %v1343 = vlaneseq
        %v1344 = vshrl.u32 %v1343, 7
        %v1345 = vsub.s32 %v1342, %v1344
        %v1346 = vrot.slane %v1330, %v1345
        %v1348 = vunpack.c.l.s4 1966171168
        %v1349 = vunpack.c.0.s8 %v1348
        %v1350 = vlaneseq
        %v1351 = vshrl.u32 %v1350, 7
        %v1352 = vsub.s32 %v1349, %v1351
        %v1353 = vrot.slane %v1331, %v1352
        %v1355 = vunpack.c.l.s4 1966171168
        %v1356 = vunpack.c.0.s8 %v1355
        %v1357 = vlaneseq
        %v1358 = vshrl.u32 %v1357, 7
        %v1359 = vsub.s32 %v1356, %v1358
        %v1360 = vrot.slane %v1332, %v1359
        %v1361 = vcombine.high %v1339, %v1339
        %v1362 = vcombine.high %v1346, %v1346
        %v1363 = vcombine.high %v1353, %v1353
        %v1364 = vcombine.high %v1360, %v1360
        %v1365 = vcombine.high %v1205, %v1205
        %v1367 = vunpack.c.l.s4 1966171168
        %v1368 = vunpack.c.0.s8 %v1367
        %v1369 = vlaneseq
        %v1370 = vshrl.u32 %v1369, 7
        %v1371 = vsub.s32 %v1368, %v1370
        %v1372 = vrot.slane %v1205, %v1371
        %v1374 = vunpack.c.l.s4 1966171168
        %v1375 = vunpack.c.0.s8 %v1374
        %v1376 = vlaneseq
        %v1377 = vshrl.u32 %v1376, 7
        %v1378 = vsub.s32 %v1375, %v1377
        %v1379 = vrot.slane %v1365, %v1378
        %v1380 = vcombine.high %v1372, %v1372
        %v1381 = vcombine.high %v1379, %v1379
        %v1383 = vunpack.c.l.s4 1966171168
        %v1384 = vunpack.c.0.s8 %v1383
        %v1385 = vlaneseq
        %v1386 = vshrl.u32 %v1385, 7
        %v1387 = vsub.s32 %v1384, %v1386
        %v1388 = vrot.slane %v1372, %v1387
        %v1390 = vunpack.c.l.s4 1966171168
        %v1391 = vunpack.c.0.s8 %v1390
        %v1392 = vlaneseq
        %v1393 = vshrl.u32 %v1392, 7
        %v1394 = vsub.s32 %v1391, %v1393
        %v1395 = vrot.slane %v1379, %v1394
        %v1397 = vunpack.c.l.s4 1966171168
        %v1398 = vunpack.c.0.s8 %v1397
        %v1399 = vlaneseq
        %v1400 = vshrl.u32 %v1399, 7
        %v1401 = vsub.s32 %v1398, %v1400
        %v1402 = vrot.slane %v1380, %v1401
        %v1404 = vunpack.c.l.s4 1966171168
        %v1405 = vunpack.c.0.s8 %v1404
        %v1406 = vlaneseq
        %v1407 = vshrl.u32 %v1406, 7
        %v1408 = vsub.s32 %v1405, %v1407
        %v1409 = vrot.slane %v1381, %v1408
        %v1410 = vcombine.high %v1388, %v1388
        %v1411 = vcombine.high %v1395, %v1395
        %v1412 = vcombine.high %v1402, %v1402
        %v1413 = vcombine.high %v1409, %v1409
        %v1414 = vcombine.high %v1206, %v1206
        %v1416 = vunpack.c.l.s4 1966171168
        %v1417 = vunpack.c.0.s8 %v1416
        %v1418 = vlaneseq
        %v1419 = vshrl.u32 %v1418, 7
        %v1420 = vsub.s32 %v1417, %v1419
        %v1421 = vrot.slane %v1206, %v1420
        %v1423 = vunpack.c.l.s4 1966171168
        %v1424 = vunpack.c.0.s8 %v1423
        %v1425 = vlaneseq
        %v1426 = vshrl.u32 %v1425, 7
        %v1427 = vsub.s32 %v1424, %v1426
        %v1428 = vrot.slane %v1414, %v1427
        %v1429 = vcombine.high %v1421, %v1421
        %v1430 = vcombine.high %v1428, %v1428
        %v1432 = vunpack.c.l.s4 1966171168
        %v1433 = vunpack.c.0.s8 %v1432
        %v1434 = vlaneseq
        %v1435 = vshrl.u32 %v1434, 7
        %v1436 = vsub.s32 %v1433, %v1435
        %v1437 = vrot.slane %v1421, %v1436
        %v1439 = vunpack.c.l.s4 1966171168
        %v1440 = vunpack.c.0.s8 %v1439
        %v1441 = vlaneseq
        %v1442 = vshrl.u32 %v1441, 7
        %v1443 = vsub.s32 %v1440, %v1442
        %v1444 = vrot.slane %v1428, %v1443
        %v1446 = vunpack.c.l.s4 1966171168
        %v1447 = vunpack.c.0.s8 %v1446
        %v1448 = vlaneseq
        %v1449 = vshrl.u32 %v1448, 7
        %v1450 = vsub.s32 %v1447, %v1449
        %v1451 = vrot.slane %v1429, %v1450
        %v1453 = vunpack.c.l.s4 1966171168
        %v1454 = vunpack.c.0.s8 %v1453
        %v1455 = vlaneseq
        %v1456 = vshrl.u32 %v1455, 7
        %v1457 = vsub.s32 %v1454, %v1456
        %v1458 = vrot.slane %v1430, %v1457
        %v1459 = vcombine.high %v1437, %v1437
        %v1460 = vcombine.high %v1444, %v1444
        %v1461 = vcombine.high %v1451, %v1451
        %v1462 = vcombine.high %v1458, %v1458
        %v1463 = vcombine.high %v1207, %v1207
        %v1465 = vunpack.c.l.s4 1966171168
        %v1466 = vunpack.c.0.s8 %v1465
        %v1467 = vlaneseq
        %v1468 = vshrl.u32 %v1467, 7
        %v1469 = vsub.s32 %v1466, %v1468
        %v1470 = vrot.slane %v1207, %v1469
        %v1472 = vunpack.c.l.s4 1966171168
        %v1473 = vunpack.c.0.s8 %v1472
        %v1474 = vlaneseq
        %v1475 = vshrl.u32 %v1474, 7
        %v1476 = vsub.s32 %v1473, %v1475
        %v1477 = vrot.slane %v1463, %v1476
        %v1478 = vcombine.high %v1470, %v1470
        %v1479 = vcombine.high %v1477, %v1477
        %v1481 = vunpack.c.l.s4 1966171168
        %v1482 = vunpack.c.0.s8 %v1481
        %v1483 = vlaneseq
        %v1484 = vshrl.u32 %v1483, 7
        %v1485 = vsub.s32 %v1482, %v1484
        %v1486 = vrot.slane %v1470, %v1485
        %v1488 = vunpack.c.l.s4 1966171168
        %v1489 = vunpack.c.0.s8 %v1488
        %v1490 = vlaneseq
        %v1491 = vshrl.u32 %v1490, 7
        %v1492 = vsub.s32 %v1489, %v1491
        %v1493 = vrot.slane %v1477, %v1492
        %v1495 = vunpack.c.l.s4 1966171168
        %v1496 = vunpack.c.0.s8 %v1495
        %v1497 = vlaneseq
        %v1498 = vshrl.u32 %v1497, 7
        %v1499 = vsub.s32 %v1496, %v1498
        %v1500 = vrot.slane %v1478, %v1499
        %v1502 = vunpack.c.l.s4 1966171168
        %v1503 = vunpack.c.0.s8 %v1502
        %v1504 = vlaneseq
        %v1505 = vshrl.u32 %v1504, 7
        %v1506 = vsub.s32 %v1503, %v1505
        %v1507 = vrot.slane %v1479, %v1506
        %v1508 = vcombine.high %v1486, %v1486
        %v1509 = vcombine.high %v1493, %v1493
        %v1510 = vcombine.high %v1500, %v1500
        %v1511 = vcombine.high %v1507, %v1507
        %v1512 = vcombine.high %v1208, %v1208
        %v1514 = vunpack.c.l.s4 1966171168
        %v1515 = vunpack.c.0.s8 %v1514
        %v1516 = vlaneseq
        %v1517 = vshrl.u32 %v1516, 7
        %v1518 = vsub.s32 %v1515, %v1517
        %v1519 = vrot.slane %v1208, %v1518
        %v1521 = vunpack.c.l.s4 1966171168
        %v1522 = vunpack.c.0.s8 %v1521
        %v1523 = vlaneseq
        %v1524 = vshrl.u32 %v1523, 7
        %v1525 = vsub.s32 %v1522, %v1524
        %v1526 = vrot.slane %v1512, %v1525
        %v1527 = vcombine.high %v1519, %v1519
        %v1528 = vcombine.high %v1526, %v1526
        %v1530 = vunpack.c.l.s4 1966171168
        %v1531 = vunpack.c.0.s8 %v1530
        %v1532 = vlaneseq
        %v1533 = vshrl.u32 %v1532, 7
        %v1534 = vsub.s32 %v1531, %v1533
        %v1535 = vrot.slane %v1519, %v1534
        %v1537 = vunpack.c.l.s4 1966171168
        %v1538 = vunpack.c.0.s8 %v1537
        %v1539 = vlaneseq
        %v1540 = vshrl.u32 %v1539, 7
        %v1541 = vsub.s32 %v1538, %v1540
        %v1542 = vrot.slane %v1526, %v1541
        %v1544 = vunpack.c.l.s4 1966171168
        %v1545 = vunpack.c.0.s8 %v1544
        %v1546 = vlaneseq
        %v1547 = vshrl.u32 %v1546, 7
        %v1548 = vsub.s32 %v1545, %v1547
        %v1549 = vrot.slane %v1527, %v1548
        %v1551 = vunpack.c.l.s4 1966171168
        %v1552 = vunpack.c.0.s8 %v1551
        %v1553 = vlaneseq
        %v1554 = vshrl.u32 %v1553, 7
        %v1555 = vsub.s32 %v1552, %v1554
        %v1556 = vrot.slane %v1528, %v1555
        %v1557 = vcombine.high %v1535, %v1535
        %v1558 = vcombine.high %v1542, %v1542
        %v1559 = vcombine.high %v1549, %v1549
        %v1560 = vcombine.high %v1556, %v1556
        %v1561 = vcombine.high %v1209, %v1209
        %v1563 = vunpack.c.l.s4 1966171168
        %v1564 = vunpack.c.0.s8 %v1563
        %v1565 = vlaneseq
        %v1566 = vshrl.u32 %v1565, 7
        %v1567 = vsub.s32 %v1564, %v1566
        %v1568 = vrot.slane %v1209, %v1567
        %v1570 = vunpack.c.l.s4 1966171168
        %v1571 = vunpack.c.0.s8 %v1570
        %v1572 = vlaneseq
        %v1573 = vshrl.u32 %v1572, 7
        %v1574 = vsub.s32 %v1571, %v1573
        %v1575 = vrot.slane %v1561, %v1574
        %v1576 = vcombine.high %v1568, %v1568
        %v1577 = vcombine.high %v1575, %v1575
        %v1579 = vunpack.c.l.s4 1966171168
        %v1580 = vunpack.c.0.s8 %v1579
        %v1581 = vlaneseq
        %v1582 = vshrl.u32 %v1581, 7
        %v1583 = vsub.s32 %v1580, %v1582
        %v1584 = vrot.slane %v1568, %v1583
        %v1586 = vunpack.c.l.s4 1966171168
        %v1587 = vunpack.c.0.s8 %v1586
        %v1588 = vlaneseq
        %v1589 = vshrl.u32 %v1588, 7
        %v1590 = vsub.s32 %v1587, %v1589
        %v1591 = vrot.slane %v1575, %v1590
        %v1593 = vunpack.c.l.s4 1966171168
        %v1594 = vunpack.c.0.s8 %v1593
        %v1595 = vlaneseq
        %v1596 = vshrl.u32 %v1595, 7
        %v1597 = vsub.s32 %v1594, %v1596
        %v1598 = vrot.slane %v1576, %v1597
        %v1600 = vunpack.c.l.s4 1966171168
        %v1601 = vunpack.c.0.s8 %v1600
        %v1602 = vlaneseq
        %v1603 = vshrl.u32 %v1602, 7
        %v1604 = vsub.s32 %v1601, %v1603
        %v1605 = vrot.slane %v1577, %v1604
        %v1606 = vcombine.high %v1584, %v1584
        %v1607 = vcombine.high %v1591, %v1591
        %v1608 = vcombine.high %v1598, %v1598
        %v1609 = vcombine.high %v1605, %v1605
        %v1610 = vlaneseq
        %v1611 = vshrl.u32 %v1610, 7
        %v1612 = vsub.s32 0, %v1611
        %v1613 = vrot.slane %v1241, %v1612
        %v1614 = vlaneseq
        %v1615 = vshrl.u32 %v1614, 7
        %v1616 = vsub.s32 0, %v1615
        %v1617 = vrot.slane %v1255, %v1616
        %v1618 = vlaneseq
        %v1619 = vshrl.u32 %v1618, 7
        %v1620 = vsub.s32 0, %v1619
        %v1621 = vrot.slane %v1263, %v1620
        %v1622 = vlaneseq
        %v1623 = vshrl.u32 %v1622, 7
        %v1624 = vsub.s32 0, %v1623
        %v1625 = vrot.slane %v1265, %v1624
        %v1626 = vlaneseq
        %v1627 = vshrl.u32 %v1626, 7
        %v1628 = vsub.s32 0, %v1627
        %v1629 = vrot.slane %v1248, %v1628
        %v1630 = vlaneseq
        %v1631 = vshrl.u32 %v1630, 7
        %v1632 = vsub.s32 0, %v1631
        %v1633 = vrot.slane %v1262, %v1632
        %v1634 = vlaneseq
        %v1635 = vshrl.u32 %v1634, 7
        %v1636 = vsub.s32 0, %v1635
        %v1637 = vrot.slane %v1264, %v1636
        %v1638 = vlaneseq
        %v1639 = vshrl.u32 %v1638, 7
        %v1640 = vsub.s32 0, %v1639
        %v1641 = vrot.slane %v1266, %v1640
        %v1642 = vlaneseq
        %v1643 = vshrl.u32 %v1642, 7
        %v1644 = vsub.s32 0, %v1643
        %v1645 = vrot.slane %v1290, %v1644
        %v1646 = vlaneseq
        %v1647 = vshrl.u32 %v1646, 7
        %v1648 = vsub.s32 0, %v1647
        %v1649 = vrot.slane %v1304, %v1648
        %v1650 = vlaneseq
        %v1651 = vshrl.u32 %v1650, 7
        %v1652 = vsub.s32 0, %v1651
        %v1653 = vrot.slane %v1312, %v1652
        %v1654 = vlaneseq
        %v1655 = vshrl.u32 %v1654, 7
        %v1656 = vsub.s32 0, %v1655
        %v1657 = vrot.slane %v1314, %v1656
        %v1658 = vlaneseq
        %v1659 = vshrl.u32 %v1658, 7
        %v1660 = vsub.s32 0, %v1659
        %v1661 = vrot.slane %v1297, %v1660
        %v1662 = vlaneseq
        %v1663 = vshrl.u32 %v1662, 7
        %v1664 = vsub.s32 0, %v1663
        %v1665 = vrot.slane %v1311, %v1664
        %v1666 = vlaneseq
        %v1667 = vshrl.u32 %v1666, 7
        %v1668 = vsub.s32 0, %v1667
        %v1669 = vrot.slane %v1313, %v1668
        %v1670 = vlaneseq
        %v1671 = vshrl.u32 %v1670, 7
        %v1672 = vsub.s32 0, %v1671
        %v1673 = vrot.slane %v1315, %v1672
        %v1674 = vlaneseq
        %v1675 = vshrl.u32 %v1674, 7
        %v1676 = vsub.s32 0, %v1675
        %v1677 = vrot.slane %v1339, %v1676
        %v1678 = vlaneseq
        %v1679 = vshrl.u32 %v1678, 7
        %v1680 = vsub.s32 0, %v1679
        %v1681 = vrot.slane %v1353, %v1680
        %v1682 = vlaneseq
        %v1683 = vshrl.u32 %v1682, 7
        %v1684 = vsub.s32 0, %v1683
        %v1685 = vrot.slane %v1361, %v1684
        %v1686 = vlaneseq
        %v1687 = vshrl.u32 %v1686, 7
        %v1688 = vsub.s32 0, %v1687
        %v1689 = vrot.slane %v1363, %v1688
        %v1690 = vlaneseq
        %v1691 = vshrl.u32 %v1690, 7
        %v1692 = vsub.s32 0, %v1691
        %v1693 = vrot.slane %v1346, %v1692
        %v1694 = vlaneseq
        %v1695 = vshrl.u32 %v1694, 7
        %v1696 = vsub.s32 0, %v1695
        %v1697 = vrot.slane %v1360, %v1696
        %v1698 = vlaneseq
        %v1699 = vshrl.u32 %v1698, 7
        %v1700 = vsub.s32 0, %v1699
        %v1701 = vrot.slane %v1362, %v1700
        %v1702 = vlaneseq
        %v1703 = vshrl.u32 %v1702, 7
        %v1704 = vsub.s32 0, %v1703
        %v1705 = vrot.slane %v1364, %v1704
        %v1706 = vlaneseq
        %v1707 = vshrl.u32 %v1706, 7
        %v1708 = vsub.s32 0, %v1707
        %v1709 = vrot.slane %v1388, %v1708
        %v1710 = vlaneseq
        %v1711 = vshrl.u32 %v1710, 7
        %v1712 = vsub.s32 0, %v1711
        %v1713 = vrot.slane %v1402, %v1712
        %v1714 = vlaneseq
        %v1715 = vshrl.u32 %v1714, 7
        %v1716 = vsub.s32 0, %v1715
        %v1717 = vrot.slane %v1410, %v1716
        %v1718 = vlaneseq
        %v1719 = vshrl.u32 %v1718, 7
        %v1720 = vsub.s32 0, %v1719
        %v1721 = vrot.slane %v1412, %v1720
        %v1722 = vlaneseq
        %v1723 = vshrl.u32 %v1722, 7
        %v1724 = vsub.s32 0, %v1723
        %v1725 = vrot.slane %v1395, %v1724
        %v1726 = vlaneseq
        %v1727 = vshrl.u32 %v1726, 7
        %v1728 = vsub.s32 0, %v1727
        %v1729 = vrot.slane %v1409, %v1728
        %v1730 = vlaneseq
        %v1731 = vshrl.u32 %v1730, 7
        %v1732 = vsub.s32 0, %v1731
        %v1733 = vrot.slane %v1411, %v1732
        %v1734 = vlaneseq
        %v1735 = vshrl.u32 %v1734, 7
        %v1736 = vsub.s32 0, %v1735
        %v1737 = vrot.slane %v1413, %v1736
        %v1738 = vlaneseq
        %v1739 = vshrl.u32 %v1738, 7
        %v1740 = vsub.s32 0, %v1739
        %v1741 = vrot.slane %v1437, %v1740
        %v1742 = vlaneseq
        %v1743 = vshrl.u32 %v1742, 7
        %v1744 = vsub.s32 0, %v1743
        %v1745 = vrot.slane %v1451, %v1744
        %v1746 = vlaneseq
        %v1747 = vshrl.u32 %v1746, 7
        %v1748 = vsub.s32 0, %v1747
        %v1749 = vrot.slane %v1459, %v1748
        %v1750 = vlaneseq
        %v1751 = vshrl.u32 %v1750, 7
        %v1752 = vsub.s32 0, %v1751
        %v1753 = vrot.slane %v1461, %v1752
        %v1754 = vlaneseq
        %v1755 = vshrl.u32 %v1754, 7
        %v1756 = vsub.s32 0, %v1755
        %v1757 = vrot.slane %v1444, %v1756
        %v1758 = vlaneseq
        %v1759 = vshrl.u32 %v1758, 7
        %v1760 = vsub.s32 0, %v1759
        %v1761 = vrot.slane %v1458, %v1760
        %v1762 = vlaneseq
        %v1763 = vshrl.u32 %v1762, 7
        %v1764 = vsub.s32 0, %v1763
        %v1765 = vrot.slane %v1460, %v1764
        %v1766 = vlaneseq
        %v1767 = vshrl.u32 %v1766, 7
        %v1768 = vsub.s32 0, %v1767
        %v1769 = vrot.slane %v1462, %v1768
        %v1770 = vlaneseq
        %v1771 = vshrl.u32 %v1770, 7
        %v1772 = vsub.s32 0, %v1771
        %v1773 = vrot.slane %v1486, %v1772
        %v1774 = vlaneseq
        %v1775 = vshrl.u32 %v1774, 7
        %v1776 = vsub.s32 0, %v1775
        %v1777 = vrot.slane %v1500, %v1776
        %v1778 = vlaneseq
        %v1779 = vshrl.u32 %v1778, 7
        %v1780 = vsub.s32 0, %v1779
        %v1781 = vrot.slane %v1508, %v1780
        %v1782 = vlaneseq
        %v1783 = vshrl.u32 %v1782, 7
        %v1784 = vsub.s32 0, %v1783
        %v1785 = vrot.slane %v1510, %v1784
        %v1786 = vlaneseq
        %v1787 = vshrl.u32 %v1786, 7
        %v1788 = vsub.s32 0, %v1787
        %v1789 = vrot.slane %v1493, %v1788
        %v1790 = vlaneseq
        %v1791 = vshrl.u32 %v1790, 7
        %v1792 = vsub.s32 0, %v1791
        %v1793 = vrot.slane %v1507, %v1792
        %v1794 = vlaneseq
        %v1795 = vshrl.u32 %v1794, 7
        %v1796 = vsub.s32 0, %v1795
        %v1797 = vrot.slane %v1509, %v1796
        %v1798 = vlaneseq
        %v1799 = vshrl.u32 %v1798, 7
        %v1800 = vsub.s32 0, %v1799
        %v1801 = vrot.slane %v1511, %v1800
        %v1802 = vlaneseq
        %v1803 = vshrl.u32 %v1802, 7
        %v1804 = vsub.s32 0, %v1803
        %v1805 = vrot.slane %v1535, %v1804
        %v1806 = vlaneseq
        %v1807 = vshrl.u32 %v1806, 7
        %v1808 = vsub.s32 0, %v1807
        %v1809 = vrot.slane %v1549, %v1808
        %v1810 = vlaneseq
        %v1811 = vshrl.u32 %v1810, 7
        %v1812 = vsub.s32 0, %v1811
        %v1813 = vrot.slane %v1557, %v1812
        %v1814 = vlaneseq
        %v1815 = vshrl.u32 %v1814, 7
        %v1816 = vsub.s32 0, %v1815
        %v1817 = vrot.slane %v1559, %v1816
        %v1818 = vlaneseq
        %v1819 = vshrl.u32 %v1818, 7
        %v1820 = vsub.s32 0, %v1819
        %v1821 = vrot.slane %v1542, %v1820
        %v1822 = vlaneseq
        %v1823 = vshrl.u32 %v1822, 7
        %v1824 = vsub.s32 0, %v1823
        %v1825 = vrot.slane %v1556, %v1824
        %v1826 = vlaneseq
        %v1827 = vshrl.u32 %v1826, 7
        %v1828 = vsub.s32 0, %v1827
        %v1829 = vrot.slane %v1558, %v1828
        %v1830 = vlaneseq
        %v1831 = vshrl.u32 %v1830, 7
        %v1832 = vsub.s32 0, %v1831
        %v1833 = vrot.slane %v1560, %v1832
        %v1834 = vlaneseq
        %v1835 = vshrl.u32 %v1834, 7
        %v1836 = vsub.s32 0, %v1835
        %v1837 = vrot.slane %v1584, %v1836
        %v1838 = vlaneseq
        %v1839 = vshrl.u32 %v1838, 7
        %v1840 = vsub.s32 0, %v1839
        %v1841 = vrot.slane %v1598, %v1840
        %v1842 = vlaneseq
        %v1843 = vshrl.u32 %v1842, 7
        %v1844 = vsub.s32 0, %v1843
        %v1845 = vrot.slane %v1606, %v1844
        %v1846 = vlaneseq
        %v1847 = vshrl.u32 %v1846, 7
        %v1848 = vsub.s32 0, %v1847
        %v1849 = vrot.slane %v1608, %v1848
        %v1850 = vlaneseq
        %v1851 = vshrl.u32 %v1850, 7
        %v1852 = vsub.s32 0, %v1851
        %v1853 = vrot.slane %v1591, %v1852
        %v1854 = vlaneseq
        %v1855 = vshrl.u32 %v1854, 7
        %v1856 = vsub.s32 0, %v1855
        %v1857 = vrot.slane %v1605, %v1856
        %v1858 = vlaneseq
        %v1859 = vshrl.u32 %v1858, 7
        %v1860 = vsub.s32 0, %v1859
        %v1861 = vrot.slane %v1607, %v1860
        %v1862 = vlaneseq
        %v1863 = vshrl.u32 %v1862, 7
        %v1864 = vsub.s32 0, %v1863
        %v1865 = vrot.slane %v1609, %v1864
        %v1866 = vcombine.low %v1613, %v1617
        %v1867 = vcombine.low %v1621, %v1625
        %v1869 = vunpack.c.l.s4 1983009808
        %v1870 = vunpack.c.0.s8 %v1869
        %v1871 = vlaneseq
        %v1872 = vshrl.u32 %v1871, 7
        %v1873 = vsub.s32 %v1870, %v1872
        %v1874 = vrot.slane %v1866, %v1873
        %v1876 = vunpack.c.l.s4 1983009808
        %v1877 = vunpack.c.0.s8 %v1876
        %v1878 = vlaneseq
        %v1879 = vshrl.u32 %v1878, 7
        %v1880 = vsub.s32 %v1877, %v1879
        %v1881 = vrot.slane %v1867, %v1880
        %v1882 = vcombine.low %v1874, %v1881
        %v1883 = vcombine.low %v1629, %v1633
        %v1884 = vcombine.low %v1637, %v1641
        %v1886 = vunpack.c.l.s4 1983009808
        %v1887 = vunpack.c.0.s8 %v1886
        %v1888 = vlaneseq
        %v1889 = vshrl.u32 %v1888, 7
        %v1890 = vsub.s32 %v1887, %v1889
        %v1891 = vrot.slane %v1883, %v1890
        %v1893 = vunpack.c.l.s4 1983009808
        %v1894 = vunpack.c.0.s8 %v1893
        %v1895 = vlaneseq
        %v1896 = vshrl.u32 %v1895, 7
        %v1897 = vsub.s32 %v1894, %v1896
        %v1898 = vrot.slane %v1884, %v1897
        %v1899 = vcombine.low %v1891, %v1898
        %v1900 = vcombine.low %v1645, %v1649
        %v1901 = vcombine.low %v1653, %v1657
        %v1903 = vunpack.c.l.s4 1983009808
        %v1904 = vunpack.c.0.s8 %v1903
        %v1905 = vlaneseq
        %v1906 = vshrl.u32 %v1905, 7
        %v1907 = vsub.s32 %v1904, %v1906
        %v1908 = vrot.slane %v1900, %v1907
        %v1910 = vunpack.c.l.s4 1983009808
        %v1911 = vunpack.c.0.s8 %v1910
        %v1912 = vlaneseq
        %v1913 = vshrl.u32 %v1912, 7
        %v1914 = vsub.s32 %v1911, %v1913
        %v1915 = vrot.slane %v1901, %v1914
        %v1916 = vcombine.low %v1908, %v1915
        %v1917 = vcombine.low %v1661, %v1665
        %v1918 = vcombine.low %v1669, %v1673
        %v1920 = vunpack.c.l.s4 1983009808
        %v1921 = vunpack.c.0.s8 %v1920
        %v1922 = vlaneseq
        %v1923 = vshrl.u32 %v1922, 7
        %v1924 = vsub.s32 %v1921, %v1923
        %v1925 = vrot.slane %v1917, %v1924
        %v1927 = vunpack.c.l.s4 1983009808
        %v1928 = vunpack.c.0.s8 %v1927
        %v1929 = vlaneseq
        %v1930 = vshrl.u32 %v1929, 7
        %v1931 = vsub.s32 %v1928, %v1930
        %v1932 = vrot.slane %v1918, %v1931
        %v1933 = vcombine.low %v1925, %v1932
        %v1934 = vcombine.low %v1677, %v1681
        %v1935 = vcombine.low %v1685, %v1689
        %v1937 = vunpack.c.l.s4 1983009808
        %v1938 = vunpack.c.0.s8 %v1937
        %v1939 = vlaneseq
        %v1940 = vshrl.u32 %v1939, 7
        %v1941 = vsub.s32 %v1938, %v1940
        %v1942 = vrot.slane %v1934, %v1941
        %v1944 = vunpack.c.l.s4 1983009808
        %v1945 = vunpack.c.0.s8 %v1944
        %v1946 = vlaneseq
        %v1947 = vshrl.u32 %v1946, 7
        %v1948 = vsub.s32 %v1945, %v1947
        %v1949 = vrot.slane %v1935, %v1948
        %v1950 = vcombine.low %v1942, %v1949
        %v1951 = vcombine.low %v1693, %v1697
        %v1952 = vcombine.low %v1701, %v1705
        %v1954 = vunpack.c.l.s4 1983009808
        %v1955 = vunpack.c.0.s8 %v1954
        %v1956 = vlaneseq
        %v1957 = vshrl.u32 %v1956, 7
        %v1958 = vsub.s32 %v1955, %v1957
        %v1959 = vrot.slane %v1951, %v1958
        %v1961 = vunpack.c.l.s4 1983009808
        %v1962 = vunpack.c.0.s8 %v1961
        %v1963 = vlaneseq
        %v1964 = vshrl.u32 %v1963, 7
        %v1965 = vsub.s32 %v1962, %v1964
        %v1966 = vrot.slane %v1952, %v1965
        %v1967 = vcombine.low %v1959, %v1966
        %v1968 = vcombine.low %v1709, %v1713
        %v1969 = vcombine.low %v1717, %v1721
        %v1971 = vunpack.c.l.s4 1983009808
        %v1972 = vunpack.c.0.s8 %v1971
        %v1973 = vlaneseq
        %v1974 = vshrl.u32 %v1973, 7
        %v1975 = vsub.s32 %v1972, %v1974
        %v1976 = vrot.slane %v1968, %v1975
        %v1978 = vunpack.c.l.s4 1983009808
        %v1979 = vunpack.c.0.s8 %v1978
        %v1980 = vlaneseq
        %v1981 = vshrl.u32 %v1980, 7
        %v1982 = vsub.s32 %v1979, %v1981
        %v1983 = vrot.slane %v1969, %v1982
        %v1984 = vcombine.low %v1976, %v1983
        %v1985 = vcombine.low %v1725, %v1729
        %v1986 = vcombine.low %v1733, %v1737
        %v1988 = vunpack.c.l.s4 1983009808
        %v1989 = vunpack.c.0.s8 %v1988
        %v1990 = vlaneseq
        %v1991 = vshrl.u32 %v1990, 7
        %v1992 = vsub.s32 %v1989, %v1991
        %v1993 = vrot.slane %v1985, %v1992
        %v1995 = vunpack.c.l.s4 1983009808
        %v1996 = vunpack.c.0.s8 %v1995
        %v1997 = vlaneseq
        %v1998 = vshrl.u32 %v1997, 7
        %v1999 = vsub.s32 %v1996, %v1998
        %v2000 = vrot.slane %v1986, %v1999
        %v2001 = vcombine.low %v1993, %v2000
        %v2002 = vcombine.low %v1741, %v1745
        %v2003 = vcombine.low %v1749, %v1753
        %v2005 = vunpack.c.l.s4 1983009808
        %v2006 = vunpack.c.0.s8 %v2005
        %v2007 = vlaneseq
        %v2008 = vshrl.u32 %v2007, 7
        %v2009 = vsub.s32 %v2006, %v2008
        %v2010 = vrot.slane %v2002, %v2009
        %v2012 = vunpack.c.l.s4 1983009808
        %v2013 = vunpack.c.0.s8 %v2012
        %v2014 = vlaneseq
        %v2015 = vshrl.u32 %v2014, 7
        %v2016 = vsub.s32 %v2013, %v2015
        %v2017 = vrot.slane %v2003, %v2016
        %v2018 = vcombine.low %v2010, %v2017
        %v2019 = vcombine.low %v1757, %v1761
        %v2020 = vcombine.low %v1765, %v1769
        %v2022 = vunpack.c.l.s4 1983009808
        %v2023 = vunpack.c.0.s8 %v2022
        %v2024 = vlaneseq
        %v2025 = vshrl.u32 %v2024, 7
        %v2026 = vsub.s32 %v2023, %v2025
        %v2027 = vrot.slane %v2019, %v2026
        %v2029 = vunpack.c.l.s4 1983009808
        %v2030 = vunpack.c.0.s8 %v2029
        %v2031 = vlaneseq
        %v2032 = vshrl.u32 %v2031, 7
        %v2033 = vsub.s32 %v2030, %v2032
        %v2034 = vrot.slane %v2020, %v2033
        %v2035 = vcombine.low %v2027, %v2034
        %v2036 = vcombine.low %v1773, %v1777
        %v2037 = vcombine.low %v1781, %v1785
        %v2039 = vunpack.c.l.s4 1983009808
        %v2040 = vunpack.c.0.s8 %v2039
        %v2041 = vlaneseq
        %v2042 = vshrl.u32 %v2041, 7
        %v2043 = vsub.s32 %v2040, %v2042
        %v2044 = vrot.slane %v2036, %v2043
        %v2046 = vunpack.c.l.s4 1983009808
        %v2047 = vunpack.c.0.s8 %v2046
        %v2048 = vlaneseq
        %v2049 = vshrl.u32 %v2048, 7
        %v2050 = vsub.s32 %v2047, %v2049
        %v2051 = vrot.slane %v2037, %v2050
        %v2052 = vcombine.low %v2044, %v2051
        %v2053 = vcombine.low %v1789, %v1793
        %v2054 = vcombine.low %v1797, %v1801
        %v2056 = vunpack.c.l.s4 1983009808
        %v2057 = vunpack.c.0.s8 %v2056
        %v2058 = vlaneseq
        %v2059 = vshrl.u32 %v2058, 7
        %v2060 = vsub.s32 %v2057, %v2059
        %v2061 = vrot.slane %v2053, %v2060
        %v2063 = vunpack.c.l.s4 1983009808
        %v2064 = vunpack.c.0.s8 %v2063
        %v2065 = vlaneseq
        %v2066 = vshrl.u32 %v2065, 7
        %v2067 = vsub.s32 %v2064, %v2066
        %v2068 = vrot.slane %v2054, %v2067
        %v2069 = vcombine.low %v2061, %v2068
        %v2070 = vcombine.low %v1805, %v1809
        %v2071 = vcombine.low %v1813, %v1817
        %v2073 = vunpack.c.l.s4 1983009808
        %v2074 = vunpack.c.0.s8 %v2073
        %v2075 = vlaneseq
        %v2076 = vshrl.u32 %v2075, 7
        %v2077 = vsub.s32 %v2074, %v2076
        %v2078 = vrot.slane %v2070, %v2077
        %v2080 = vunpack.c.l.s4 1983009808
        %v2081 = vunpack.c.0.s8 %v2080
        %v2082 = vlaneseq
        %v2083 = vshrl.u32 %v2082, 7
        %v2084 = vsub.s32 %v2081, %v2083
        %v2085 = vrot.slane %v2071, %v2084
        %v2086 = vcombine.low %v2078, %v2085
        %v2087 = vcombine.low %v1821, %v1825
        %v2088 = vcombine.low %v1829, %v1833
        %v2090 = vunpack.c.l.s4 1983009808
        %v2091 = vunpack.c.0.s8 %v2090
        %v2092 = vlaneseq
        %v2093 = vshrl.u32 %v2092, 7
        %v2094 = vsub.s32 %v2091, %v2093
        %v2095 = vrot.slane %v2087, %v2094
        %v2097 = vunpack.c.l.s4 1983009808
        %v2098 = vunpack.c.0.s8 %v2097
        %v2099 = vlaneseq
        %v2100 = vshrl.u32 %v2099, 7
        %v2101 = vsub.s32 %v2098, %v2100
        %v2102 = vrot.slane %v2088, %v2101
        %v2103 = vcombine.low %v2095, %v2102
        %v2104 = vcombine.low %v1837, %v1841
        %v2105 = vcombine.low %v1845, %v1849
        %v2107 = vunpack.c.l.s4 1983009808
        %v2108 = vunpack.c.0.s8 %v2107
        %v2109 = vlaneseq
        %v2110 = vshrl.u32 %v2109, 7
        %v2111 = vsub.s32 %v2108, %v2110
        %v2112 = vrot.slane %v2104, %v2111
        %v2114 = vunpack.c.l.s4 1983009808
        %v2115 = vunpack.c.0.s8 %v2114
        %v2116 = vlaneseq
        %v2117 = vshrl.u32 %v2116, 7
        %v2118 = vsub.s32 %v2115, %v2117
        %v2119 = vrot.slane %v2105, %v2118
        %v2120 = vcombine.low %v2112, %v2119
        %v2121 = vcombine.low %v1853, %v1857
        %v2122 = vcombine.low %v1861, %v1865
        %v2124 = vunpack.c.l.s4 1983009808
        %v2125 = vunpack.c.0.s8 %v2124
        %v2126 = vlaneseq
        %v2127 = vshrl.u32 %v2126, 7
        %v2128 = vsub.s32 %v2125, %v2127
        %v2129 = vrot.slane %v2121, %v2128
        %v2131 = vunpack.c.l.s4 1983009808
        %v2132 = vunpack.c.0.s8 %v2131
        %v2133 = vlaneseq
        %v2134 = vshrl.u32 %v2133, 7
        %v2135 = vsub.s32 %v2132, %v2134
        %v2136 = vrot.slane %v2122, %v2135
        %v2137 = vcombine.low %v2129, %v2136
        %v2154 = vadd.f32 %v878, %v1882
        %v2155 = vadd.f32 %v883, %v1899
        %v2156 = vadd.f32 %v888, %v1882
        %v2157 = vadd.f32 %v893, %v1899
        %v2158 = vadd.f32 %v898, %v1916
        %v2159 = vadd.f32 %v903, %v1933
        %v2160 = vadd.f32 %v908, %v1916
        %v2161 = vadd.f32 %v913, %v1933
        %v2162 = vadd.f32 %v918, %v1950
        %v2163 = vadd.f32 %v923, %v1967
        %v2164 = vadd.f32 %v928, %v1950
        %v2165 = vadd.f32 %v933, %v1967
        %v2166 = vadd.f32 %v938, %v1984
        %v2167 = vadd.f32 %v943, %v2001
        %v2168 = vadd.f32 %v948, %v1984
        %v2169 = vadd.f32 %v953, %v2001
        %v2170 = vadd.f32 %v958, %v2018
        %v2171 = vadd.f32 %v963, %v2035
        %v2172 = vadd.f32 %v968, %v2018
        %v2173 = vadd.f32 %v973, %v2035
        %v2174 = vadd.f32 %v978, %v2052
        %v2175 = vadd.f32 %v983, %v2069
        %v2176 = vadd.f32 %v988, %v2052
        %v2177 = vadd.f32 %v993, %v2069
        %v2178 = vadd.f32 %v998, %v2086
        %v2179 = vadd.f32 %v1003, %v2103
        %v2180 = vadd.f32 %v1008, %v2086
        %v2181 = vadd.f32 %v1013, %v2103
        %v2182 = vadd.f32 %v1018, %v2120
        %v2183 = vadd.f32 %v1023, %v2137
        %v2184 = vadd.f32 %v1028, %v2120
        %v2185 = vadd.f32 %v1033, %v2137
        %v2186 = vld [vmem:[%s648] sm:$0xff]
        %v2188 = vcombine.high %v2186, %v2186
        %v2190 = vunpack.c.l.s4 1966171168
        %v2191 = vunpack.c.0.s8 %v2190
        %v2192 = vlaneseq
        %v2193 = vshrl.u32 %v2192, 7
        %v2194 = vsub.s32 %v2191, %v2193
        %v2195 = vrot.slane %v2186, %v2194
        %v2197 = vunpack.c.l.s4 1966171168
        %v2198 = vunpack.c.0.s8 %v2197
        %v2199 = vlaneseq
        %v2200 = vshrl.u32 %v2199, 7
        %v2201 = vsub.s32 %v2198, %v2200
        %v2202 = vrot.slane %v2188, %v2201
        %v2203 = vcombine.high %v2195, %v2195
        %v2204 = vcombine.high %v2202, %v2202
        %v2206 = vunpack.c.l.s4 1966171168
        %v2207 = vunpack.c.0.s8 %v2206
        %v2208 = vlaneseq
        %v2209 = vshrl.u32 %v2208, 7
        %v2210 = vsub.s32 %v2207, %v2209
        %v2211 = vrot.slane %v2195, %v2210
        %v2213 = vunpack.c.l.s4 1966171168
        %v2214 = vunpack.c.0.s8 %v2213
        %v2215 = vlaneseq
        %v2216 = vshrl.u32 %v2215, 7
        %v2217 = vsub.s32 %v2214, %v2216
        %v2218 = vrot.slane %v2202, %v2217
        %v2220 = vunpack.c.l.s4 1966171168
        %v2221 = vunpack.c.0.s8 %v2220
        %v2222 = vlaneseq
        %v2223 = vshrl.u32 %v2222, 7
        %v2224 = vsub.s32 %v2221, %v2223
        %v2225 = vrot.slane %v2203, %v2224
        %v2227 = vunpack.c.l.s4 1966171168
        %v2228 = vunpack.c.0.s8 %v2227
        %v2229 = vlaneseq
        %v2230 = vshrl.u32 %v2229, 7
        %v2231 = vsub.s32 %v2228, %v2230
        %v2232 = vrot.slane %v2204, %v2231
        %v2233 = vcombine.high %v2211, %v2211
        %v2234 = vcombine.high %v2218, %v2218
        %v2235 = vcombine.high %v2225, %v2225
        %v2236 = vcombine.high %v2232, %v2232
        %v2237 = vlaneseq
        %v2238 = vshrl.u32 %v2237, 7
        %v2239 = vsub.s32 0, %v2238
        %v2240 = vrot.slane %v2211, %v2239
        %v2241 = vlaneseq
        %v2242 = vshrl.u32 %v2241, 7
        %v2243 = vsub.s32 0, %v2242
        %v2244 = vrot.slane %v2225, %v2243
        %v2245 = vlaneseq
        %v2246 = vshrl.u32 %v2245, 7
        %v2247 = vsub.s32 0, %v2246
        %v2248 = vrot.slane %v2233, %v2247
        %v2249 = vlaneseq
        %v2250 = vshrl.u32 %v2249, 7
        %v2251 = vsub.s32 0, %v2250
        %v2252 = vrot.slane %v2235, %v2251
        %v2253 = vlaneseq
        %v2254 = vshrl.u32 %v2253, 7
        %v2255 = vsub.s32 0, %v2254
        %v2256 = vrot.slane %v2218, %v2255
        %v2257 = vlaneseq
        %v2258 = vshrl.u32 %v2257, 7
        %v2259 = vsub.s32 0, %v2258
        %v2260 = vrot.slane %v2232, %v2259
        %v2261 = vlaneseq
        %v2262 = vshrl.u32 %v2261, 7
        %v2263 = vsub.s32 0, %v2262
        %v2264 = vrot.slane %v2234, %v2263
        %v2265 = vlaneseq
        %v2266 = vshrl.u32 %v2265, 7
        %v2267 = vsub.s32 0, %v2266
        %v2268 = vrot.slane %v2236, %v2267
        %v2269 = vcombine.low %v2240, %v2244
        %v2270 = vcombine.low %v2248, %v2252
        %v2272 = vunpack.c.l.s4 1983009808
        %v2273 = vunpack.c.0.s8 %v2272
        %v2274 = vlaneseq
        %v2275 = vshrl.u32 %v2274, 7
        %v2276 = vsub.s32 %v2273, %v2275
        %v2277 = vrot.slane %v2269, %v2276
        %v2279 = vunpack.c.l.s4 1983009808
        %v2280 = vunpack.c.0.s8 %v2279
        %v2281 = vlaneseq
        %v2282 = vshrl.u32 %v2281, 7
        %v2283 = vsub.s32 %v2280, %v2282
        %v2284 = vrot.slane %v2270, %v2283
        %v2285 = vcombine.low %v2277, %v2284
        %v2286 = vcombine.low %v2256, %v2260
        %v2287 = vcombine.low %v2264, %v2268
        %v2289 = vunpack.c.l.s4 1983009808
        %v2290 = vunpack.c.0.s8 %v2289
        %v2291 = vlaneseq
        %v2292 = vshrl.u32 %v2291, 7
        %v2293 = vsub.s32 %v2290, %v2292
        %v2294 = vrot.slane %v2286, %v2293
        %v2296 = vunpack.c.l.s4 1983009808
        %v2297 = vunpack.c.0.s8 %v2296
        %v2298 = vlaneseq
        %v2299 = vshrl.u32 %v2298, 7
        %v2300 = vsub.s32 %v2297, %v2299
        %v2301 = vrot.slane %v2287, %v2300
        %v2302 = vcombine.low %v2294, %v2301
        %v2305 = vadd.f32 %v1111, %v2285
        %v2306 = vadd.f32 %v1116, %v2302
        %v2307 = vld [vmem:[%s664] sm:$0xff]
        %v2309 = vcombine.high %v2307, %v2307
        %v2311 = vunpack.c.l.s4 1966171168
        %v2312 = vunpack.c.0.s8 %v2311
        %v2313 = vlaneseq
        %v2314 = vshrl.u32 %v2313, 7
        %v2315 = vsub.s32 %v2312, %v2314
        %v2316 = vrot.slane %v2307, %v2315
        %v2318 = vunpack.c.l.s4 1966171168
        %v2319 = vunpack.c.0.s8 %v2318
        %v2320 = vlaneseq
        %v2321 = vshrl.u32 %v2320, 7
        %v2322 = vsub.s32 %v2319, %v2321
        %v2323 = vrot.slane %v2309, %v2322
        %v2324 = vcombine.high %v2316, %v2316
        %v2325 = vcombine.high %v2323, %v2323
        %v2327 = vunpack.c.l.s4 1966171168
        %v2328 = vunpack.c.0.s8 %v2327
        %v2329 = vlaneseq
        %v2330 = vshrl.u32 %v2329, 7
        %v2331 = vsub.s32 %v2328, %v2330
        %v2332 = vrot.slane %v2316, %v2331
        %v2334 = vunpack.c.l.s4 1966171168
        %v2335 = vunpack.c.0.s8 %v2334
        %v2336 = vlaneseq
        %v2337 = vshrl.u32 %v2336, 7
        %v2338 = vsub.s32 %v2335, %v2337
        %v2339 = vrot.slane %v2323, %v2338
        %v2341 = vunpack.c.l.s4 1966171168
        %v2342 = vunpack.c.0.s8 %v2341
        %v2343 = vlaneseq
        %v2344 = vshrl.u32 %v2343, 7
        %v2345 = vsub.s32 %v2342, %v2344
        %v2346 = vrot.slane %v2324, %v2345
        %v2348 = vunpack.c.l.s4 1966171168
        %v2349 = vunpack.c.0.s8 %v2348
        %v2350 = vlaneseq
        %v2351 = vshrl.u32 %v2350, 7
        %v2352 = vsub.s32 %v2349, %v2351
        %v2353 = vrot.slane %v2325, %v2352
        %v2354 = vcombine.high %v2332, %v2332
        %v2355 = vcombine.high %v2339, %v2339
        %v2356 = vcombine.high %v2346, %v2346
        %v2357 = vcombine.high %v2353, %v2353
        %v2358 = vlaneseq
        %v2359 = vshrl.u32 %v2358, 7
        %v2360 = vsub.s32 0, %v2359
        %v2361 = vrot.slane %v2332, %v2360
        %v2362 = vlaneseq
        %v2363 = vshrl.u32 %v2362, 7
        %v2364 = vsub.s32 0, %v2363
        %v2365 = vrot.slane %v2346, %v2364
        %v2366 = vlaneseq
        %v2367 = vshrl.u32 %v2366, 7
        %v2368 = vsub.s32 0, %v2367
        %v2369 = vrot.slane %v2354, %v2368
        %v2370 = vlaneseq
        %v2371 = vshrl.u32 %v2370, 7
        %v2372 = vsub.s32 0, %v2371
        %v2373 = vrot.slane %v2356, %v2372
        %v2374 = vlaneseq
        %v2375 = vshrl.u32 %v2374, 7
        %v2376 = vsub.s32 0, %v2375
        %v2377 = vrot.slane %v2339, %v2376
        %v2378 = vlaneseq
        %v2379 = vshrl.u32 %v2378, 7
        %v2380 = vsub.s32 0, %v2379
        %v2381 = vrot.slane %v2353, %v2380
        %v2382 = vlaneseq
        %v2383 = vshrl.u32 %v2382, 7
        %v2384 = vsub.s32 0, %v2383
        %v2385 = vrot.slane %v2355, %v2384
        %v2386 = vlaneseq
        %v2387 = vshrl.u32 %v2386, 7
        %v2388 = vsub.s32 0, %v2387
        %v2389 = vrot.slane %v2357, %v2388
        %v2390 = vcombine.low %v2361, %v2365
        %v2391 = vcombine.low %v2369, %v2373
        %v2393 = vunpack.c.l.s4 1983009808
        %v2394 = vunpack.c.0.s8 %v2393
        %v2395 = vlaneseq
        %v2396 = vshrl.u32 %v2395, 7
        %v2397 = vsub.s32 %v2394, %v2396
        %v2398 = vrot.slane %v2390, %v2397
        %v2400 = vunpack.c.l.s4 1983009808
        %v2401 = vunpack.c.0.s8 %v2400
        %v2402 = vlaneseq
        %v2403 = vshrl.u32 %v2402, 7
        %v2404 = vsub.s32 %v2401, %v2403
        %v2405 = vrot.slane %v2391, %v2404
        %v2406 = vcombine.low %v2398, %v2405
        %v2407 = vcombine.low %v2377, %v2381
        %v2408 = vcombine.low %v2385, %v2389
        %v2410 = vunpack.c.l.s4 1983009808
        %v2411 = vunpack.c.0.s8 %v2410
        %v2412 = vlaneseq
        %v2413 = vshrl.u32 %v2412, 7
        %v2414 = vsub.s32 %v2411, %v2413
        %v2415 = vrot.slane %v2407, %v2414
        %v2417 = vunpack.c.l.s4 1983009808
        %v2418 = vunpack.c.0.s8 %v2417
        %v2419 = vlaneseq
        %v2420 = vshrl.u32 %v2419, 7
        %v2421 = vsub.s32 %v2418, %v2420
        %v2422 = vrot.slane %v2408, %v2421
        %v2423 = vcombine.low %v2415, %v2422
        %v2426 = vadd.f32 %v1194, %v2406
        %v2427 = vadd.f32 %v1199, %v2423
        %p2428 = scmp.gt.s32.totalorder %s29, 0
        %s2429 = scalar_select %p2428, 1, 0
        %s2430 = scvt.s32.f32 %s2429
        %v2431 = vstv %s2430
        %v2432 = vmul.f32 %v2305, %v2431
        %v2433 = vmul.f32 %v2306, %v2431
        %p2434 = scmp.lt.s32.totalorder %s29, 0
        %s2435 = scalar_select %p2434, 1, 0
        %s2436 = scvt.s32.f32 %s2435
        %v2437 = vstv %s2436
        %v2438 = vmul.f32 %v2426, %v2437
        %v2439 = vmul.f32 %v2427, %v2437
        %vm2476 = vcmask 1040384
        %v2477 = vrot.slane %v2432, 7
        %v2478 = vrot.slane %v2433, 7
        %v2479 = vsel %vm2476, %v2477, %v2478
        %v2480 = vrot.slane %v2154, 7
        %v2481 = vrot.slane %v2155, 7
        %v2482 = vsel %vm2476, %v2480, %v2481
        %v2483 = vrot.slane %v2156, 7
        %v2484 = vrot.slane %v2157, 7
        %v2485 = vsel %vm2476, %v2483, %v2484
        %v2486 = vrot.slane %v2158, 7
        %v2487 = vrot.slane %v2159, 7
        %v2488 = vsel %vm2476, %v2486, %v2487
        %v2489 = vrot.slane %v2160, 7
        %v2490 = vrot.slane %v2161, 7
        %v2491 = vsel %vm2476, %v2489, %v2490
        %v2492 = vrot.slane %v2162, 7
        %v2493 = vrot.slane %v2163, 7
        %v2494 = vsel %vm2476, %v2492, %v2493
        %v2495 = vrot.slane %v2164, 7
        %v2496 = vrot.slane %v2165, 7
        %v2497 = vsel %vm2476, %v2495, %v2496
        %v2498 = vrot.slane %v2166, 7
        %v2499 = vrot.slane %v2167, 7
        %v2500 = vsel %vm2476, %v2498, %v2499
        %v2501 = vrot.slane %v2168, 7
        %v2502 = vrot.slane %v2169, 7
        %v2503 = vsel %vm2476, %v2501, %v2502
        %v2504 = vrot.slane %v2170, 7
        %v2505 = vrot.slane %v2171, 7
        %v2506 = vsel %vm2476, %v2504, %v2505
        %v2507 = vrot.slane %v2172, 7
        %v2508 = vrot.slane %v2173, 7
        %v2509 = vsel %vm2476, %v2507, %v2508
        %v2510 = vrot.slane %v2174, 7
        %v2511 = vrot.slane %v2175, 7
        %v2512 = vsel %vm2476, %v2510, %v2511
        %v2513 = vrot.slane %v2176, 7
        %v2514 = vrot.slane %v2177, 7
        %v2515 = vsel %vm2476, %v2513, %v2514
        %v2516 = vrot.slane %v2178, 7
        %v2517 = vrot.slane %v2179, 7
        %v2518 = vsel %vm2476, %v2516, %v2517
        %v2519 = vrot.slane %v2180, 7
        %v2520 = vrot.slane %v2181, 7
        %v2521 = vsel %vm2476, %v2519, %v2520
        %v2522 = vrot.slane %v2182, 7
        %v2523 = vrot.slane %v2183, 7
        %v2524 = vsel %vm2476, %v2522, %v2523
        %v2525 = vrot.slane %v2184, 7
        %v2526 = vrot.slane %v2185, 7
        %v2527 = vsel %vm2476, %v2525, %v2526
        %v2528 = vrot.slane %v2438, 7
        %v2529 = vrot.slane %v2439, 7
        %v2530 = vsel %vm2476, %v2528, %v2529
        %v2585 = vsel %vm2476, 0.0, %v2477
        %v2586 = vsel %vm2476, 0.0, %v2480
        %v2587 = vsel %vm2476, 0.0, %v2483
        %v2588 = vsel %vm2476, 0.0, %v2486
        %v2589 = vsel %vm2476, 0.0, %v2489
        %v2590 = vsel %vm2476, 0.0, %v2492
        %v2591 = vsel %vm2476, 0.0, %v2495
        %v2592 = vsel %vm2476, 0.0, %v2498
        %v2593 = vsel %vm2476, 0.0, %v2501
        %v2594 = vsel %vm2476, 0.0, %v2504
        %v2595 = vsel %vm2476, 0.0, %v2507
        %v2596 = vsel %vm2476, 0.0, %v2510
        %v2597 = vsel %vm2476, 0.0, %v2513
        %v2598 = vsel %vm2476, 0.0, %v2516
        %v2599 = vsel %vm2476, 0.0, %v2519
        %v2600 = vsel %vm2476, 0.0, %v2522
        %v2601 = vsel %vm2476, 0.0, %v2525
        %v2602 = vsel %vm2476, 0.0, %v2528
        %v2603 = vsel %vm2476, %v2478, 0.0
        %v2604 = vsel %vm2476, %v2481, 0.0
        %v2605 = vsel %vm2476, %v2484, 0.0
        %v2606 = vsel %vm2476, %v2487, 0.0
        %v2607 = vsel %vm2476, %v2490, 0.0
        %v2608 = vsel %vm2476, %v2493, 0.0
        %v2609 = vsel %vm2476, %v2496, 0.0
        %v2610 = vsel %vm2476, %v2499, 0.0
        %v2611 = vsel %vm2476, %v2502, 0.0
        %v2612 = vsel %vm2476, %v2505, 0.0
        %v2613 = vsel %vm2476, %v2508, 0.0
        %v2614 = vsel %vm2476, %v2511, 0.0
        %v2615 = vsel %vm2476, %v2514, 0.0
        %v2616 = vsel %vm2476, %v2517, 0.0
        %v2617 = vsel %vm2476, %v2520, 0.0
        %v2618 = vsel %vm2476, %v2523, 0.0
        %v2619 = vsel %vm2476, %v2526, 0.0
        %v2620 = vsel %vm2476, %v2529, 0.0
        %v2621 = vld [vmem:[%s8] sm:$0xff]
        %v2622 = vld [vmem:[%s8 + $0x8] sm:$0xff]
        %v2623 = vld [vmem:[%s8 + $0x10] sm:$0xff]
        %v2624 = vld [vmem:[%s8 + $0x18] sm:$0xff]
        %v2625 = vld [vmem:[%s8 + $0x20] sm:$0xff]
        %v2626 = vld [vmem:[%s8 + $0x28] sm:$0xff]
        %v2627 = vld [vmem:[%s8 + $0x30] sm:$0xff]
        %v2628 = vld [vmem:[%s8 + $0x38] sm:$0xff]
        %v2629 = vld [vmem:[%s8 + $0x40] sm:$0xff]
        %v2630 = vld [vmem:[%s8 + $0x48] sm:$0xff]
        %v2631 = vld [vmem:[%s8 + $0x50] sm:$0xff]
        %v2632 = vld [vmem:[%s8 + $0x58] sm:$0xff]
        %v2633 = vld [vmem:[%s8 + $0x60] sm:$0xff]
        %v2634 = vld [vmem:[%s8 + $0x68] sm:$0xff]
        %v2635 = vld [vmem:[%s8 + $0x70] sm:$0xff]
        %v2636 = vld [vmem:[%s8 + $0x78] sm:$0xff]
        %s2637 = scalar_lea.vmem %s8, 128
        %v2638 = vld [vmem:[%s2637] sm:$0xff]
        %v2639 = vld [vmem:[%s2637 + $0x8] sm:$0xff]
        %v2640 = vld [vmem:[%s2637 + $0x10] sm:$0xff]
        %v2641 = vld [vmem:[%s2637 + $0x18] sm:$0xff]
        %v2642 = vld [vmem:[%s2637 + $0x20] sm:$0xff]
        %v2643 = vld [vmem:[%s2637 + $0x28] sm:$0xff]
        %v2644 = vld [vmem:[%s2637 + $0x30] sm:$0xff]
        %v2645 = vld [vmem:[%s2637 + $0x38] sm:$0xff]
        %v2646 = vld [vmem:[%s2637 + $0x40] sm:$0xff]
        %v2647 = vld [vmem:[%s2637 + $0x48] sm:$0xff]
        %v2648 = vld [vmem:[%s2637 + $0x50] sm:$0xff]
        %v2649 = vld [vmem:[%s2637 + $0x58] sm:$0xff]
        %v2650 = vld [vmem:[%s2637 + $0x60] sm:$0xff]
        %v2651 = vld [vmem:[%s2637 + $0x68] sm:$0xff]
        %v2652 = vld [vmem:[%s2637 + $0x70] sm:$0xff]
        %v2653 = vld [vmem:[%s2637 + $0x78] sm:$0xff]
        %vm2686 = vcmask 1046528
        %v2687 = vrot.slane %v2585, 1
        %v2688 = vrot.slane %v2479, 1
        %v2689 = vsel %vm2686, %v2687, %v2688
        %v2690 = vrot.slane %v2603, 1
        %v2691 = vsel %vm2686, %v2688, %v2690
        %v2692 = vrot.slane %v2586, 1
        %v2693 = vrot.slane %v2482, 1
        %v2694 = vsel %vm2686, %v2692, %v2693
        %v2695 = vrot.slane %v2604, 1
        %v2696 = vsel %vm2686, %v2693, %v2695
        %v2697 = vrot.slane %v2587, 1
        %v2698 = vrot.slane %v2485, 1
        %v2699 = vsel %vm2686, %v2697, %v2698
        %v2700 = vrot.slane %v2605, 1
        %v2701 = vsel %vm2686, %v2698, %v2700
        %v2702 = vrot.slane %v2588, 1
        %v2703 = vrot.slane %v2488, 1
        %v2704 = vsel %vm2686, %v2702, %v2703
        %v2705 = vrot.slane %v2606, 1
        %v2706 = vsel %vm2686, %v2703, %v2705
        %v2707 = vrot.slane %v2589, 1
        %v2708 = vrot.slane %v2491, 1
        %v2709 = vsel %vm2686, %v2707, %v2708
        %v2710 = vrot.slane %v2607, 1
        %v2711 = vsel %vm2686, %v2708, %v2710
        %v2712 = vrot.slane %v2590, 1
        %v2713 = vrot.slane %v2494, 1
        %v2714 = vsel %vm2686, %v2712, %v2713
        %v2715 = vrot.slane %v2608, 1
        %v2716 = vsel %vm2686, %v2713, %v2715
        %v2717 = vrot.slane %v2591, 1
        %v2718 = vrot.slane %v2497, 1
        %v2719 = vsel %vm2686, %v2717, %v2718
        %v2720 = vrot.slane %v2609, 1
        %v2721 = vsel %vm2686, %v2718, %v2720
        %v2722 = vrot.slane %v2592, 1
        %v2723 = vrot.slane %v2500, 1
        %v2724 = vsel %vm2686, %v2722, %v2723
        %v2725 = vrot.slane %v2610, 1
        %v2726 = vsel %vm2686, %v2723, %v2725
        %v2727 = vrot.slane %v2593, 1
        %v2728 = vrot.slane %v2503, 1
        %v2729 = vsel %vm2686, %v2727, %v2728
        %v2730 = vrot.slane %v2611, 1
        %v2731 = vsel %vm2686, %v2728, %v2730
        %v2732 = vrot.slane %v2594, 1
        %v2733 = vrot.slane %v2506, 1
        %v2734 = vsel %vm2686, %v2732, %v2733
        %v2735 = vrot.slane %v2612, 1
        %v2736 = vsel %vm2686, %v2733, %v2735
        %v2737 = vrot.slane %v2595, 1
        %v2738 = vrot.slane %v2509, 1
        %v2739 = vsel %vm2686, %v2737, %v2738
        %v2740 = vrot.slane %v2613, 1
        %v2741 = vsel %vm2686, %v2738, %v2740
        %v2742 = vrot.slane %v2596, 1
        %v2743 = vrot.slane %v2512, 1
        %v2744 = vsel %vm2686, %v2742, %v2743
        %v2745 = vrot.slane %v2614, 1
        %v2746 = vsel %vm2686, %v2743, %v2745
        %v2747 = vrot.slane %v2597, 1
        %v2748 = vrot.slane %v2515, 1
        %v2749 = vsel %vm2686, %v2747, %v2748
        %v2750 = vrot.slane %v2615, 1
        %v2751 = vsel %vm2686, %v2748, %v2750
        %v2752 = vrot.slane %v2598, 1
        %v2753 = vrot.slane %v2518, 1
        %v2754 = vsel %vm2686, %v2752, %v2753
        %v2755 = vrot.slane %v2616, 1
        %v2756 = vsel %vm2686, %v2753, %v2755
        %v2757 = vrot.slane %v2599, 1
        %v2758 = vrot.slane %v2521, 1
        %v2759 = vsel %vm2686, %v2757, %v2758
        %v2760 = vrot.slane %v2617, 1
        %v2761 = vsel %vm2686, %v2758, %v2760
        %v2762 = vrot.slane %v2600, 1
        %v2763 = vrot.slane %v2524, 1
        %v2764 = vsel %vm2686, %v2762, %v2763
        %v2765 = vrot.slane %v2618, 1
        %v2766 = vsel %vm2686, %v2763, %v2765
        %2799 = vmatprep.subr.mxu0 0.0
        %2800 = vmatpush1.msra.mxu0 %v2638
        %2801 = vmatprep.subr.mxu0 0.0
        %2802 = vmatpush1.msra.mxu0 %v2639
        %2803 = vmatprep.subr.mxu0 0.0
        %2804 = vmatpush1.msra.mxu0 %v2640
        %2805 = vmatprep.subr.mxu0 0.0
        %2806 = vmatpush1.msra.mxu0 %v2641
        %2807 = vmatprep.subr.mxu0 0.0
        %2808 = vmatpush1.msra.mxu0 %v2642
        %2809 = vmatprep.subr.mxu0 0.0
        %2810 = vmatpush1.msra.mxu0 %v2643
        %2811 = vmatprep.subr.mxu0 0.0
        %2812 = vmatpush1.msra.mxu0 %v2644
        %2813 = vmatprep.subr.mxu0 0.0
        %2814 = vmatpush1.msra.mxu0 %v2645
        %2815 = vmatprep.subr.mxu0 0.0
        %2816 = vmatpush1.msra.mxu0 %v2646
        %2817 = vmatprep.subr.mxu0 0.0
        %2818 = vmatpush1.msra.mxu0 %v2647
        %2819 = vmatprep.subr.mxu0 0.0
        %2820 = vmatpush1.msra.mxu0 %v2648
        %2821 = vmatprep.subr.mxu0 0.0
        %2822 = vmatpush1.msra.mxu0 %v2649
        %2823 = vmatprep.subr.mxu0 0.0
        %2824 = vmatpush1.msra.mxu0 %v2650
        %2825 = vmatprep.subr.mxu0 0.0
        %2826 = vmatpush1.msra.mxu0 %v2651
        %2827 = vmatprep.subr.mxu0 0.0
        %2828 = vmatpush1.msra.mxu0 %v2652
        %2829 = vmatprep.subr.mxu0 0.0
        %2830 = vmatpush1.msra.mxu0 %v2653
        %2831 = vmatprep.subr.mxu0 0.0
        %2832 = vmatpush1.msra.mxu0 0.0
        %2833 = vmatprep.subr.mxu0 0.0
        %2834 = vmatpush1.msra.mxu0 0.0
        %2835 = vmatprep.subr.mxu0 0.0
        %2836 = vmatpush1.msra.mxu0 0.0
        %2837 = vmatprep.subr.mxu0 0.0
        %2838 = vmatpush1.msra.mxu0 0.0
        %2839 = vmatprep.subr.mxu0 0.0
        %2840 = vmatpush1.msra.mxu0 0.0
        %2841 = vmatprep.subr.mxu0 0.0
        %2842 = vmatpush1.msra.mxu0 0.0
        %2843 = vmatprep.subr.mxu0 0.0
        %2844 = vmatpush1.msra.mxu0 0.0
        %2845 = vmatprep.subr.mxu0 0.0
        %2846 = vmatpush1.msra.mxu0 0.0
        %2847 = vmatprep.subr.mxu0 0.0
        %2848 = vmatpush1.msra.mxu0 0.0
        %2849 = vmatprep.subr.mxu0 0.0
        %2850 = vmatpush1.msra.mxu0 0.0
        %2851 = vmatprep.subr.mxu0 0.0
        %2852 = vmatpush1.msra.mxu0 0.0
        %2853 = vmatprep.subr.mxu0 0.0
        %2854 = vmatpush1.msra.mxu0 0.0
        %2855 = vmatprep.subr.mxu0 0.0
        %2856 = vmatpush1.msra.mxu0 0.0
        %2857 = vmatprep.subr.mxu0 0.0
        %2858 = vmatpush1.msra.mxu0 0.0
        %2859 = vmatprep.subr.mxu0 0.0
        %2860 = vmatpush1.msra.mxu0 0.0
        %2861 = vmatprep.subr.mxu0 0.0
        %2862 = vmatpush1.msra.mxu0 0.0
        %2863 = vmatprep.mubr.f32.mxu0 0.0
        %2864 = vmatmul.mubr.f32.gmra.mrb[0].mxu0 %v2689
        %v2865 = vpop.f32.mrb[0].mxu0
        %v2866 = vadd.f32 0.0, %v2865
        %v2867 = vpop.f32.mrb[0].mxu0
        %2868 = vmatprep.mubr.f32.mxu0 0.0
        %2869 = vmatmul.mubr.f32.gmra.mrb[0].mxu0 %v2691
        %v2870 = vpop.f32.mrb[0].mxu0
        %v2871 = vadd.f32 0.0, %v2870
        %v2872 = vpop.f32.mrb[0].mxu0
        %2873 = vmatprep.mubr.f32.mxu0 0.0
        %2874 = vmatmul.mubr.f32.gmra.mrb[0].mxu0 %v2694
        %v2875 = vpop.f32.mrb[0].mxu0
        %v2876 = vadd.f32 0.0, %v2875
        %v2877 = vpop.f32.mrb[0].mxu0
        %2878 = vmatprep.mubr.f32.mxu0 0.0
        %2879 = vmatmul.mubr.f32.gmra.mrb[0].mxu0 %v2696
        %v2880 = vpop.f32.mrb[0].mxu0
        %v2881 = vadd.f32 0.0, %v2880
        %v2882 = vpop.f32.mrb[0].mxu0
        %2883 = vmatprep.mubr.f32.mxu0 0.0
        %2884 = vmatmul.mubr.f32.gmra.mrb[0].mxu0 %v2699
        %v2885 = vpop.f32.mrb[0].mxu0
        %v2886 = vadd.f32 0.0, %v2885
        %v2887 = vpop.f32.mrb[0].mxu0
        %2888 = vmatprep.mubr.f32.mxu0 0.0
        %2889 = vmatmul.mubr.f32.gmra.mrb[0].mxu0 %v2701
        %v2890 = vpop.f32.mrb[0].mxu0
        %v2891 = vadd.f32 0.0, %v2890
        %v2892 = vpop.f32.mrb[0].mxu0
        %2893 = vmatprep.mubr.f32.mxu0 0.0
        %2894 = vmatmul.mubr.f32.gmra.mrb[0].mxu0 %v2704
        %v2895 = vpop.f32.mrb[0].mxu0
        %v2896 = vadd.f32 0.0, %v2895
        %v2897 = vpop.f32.mrb[0].mxu0
        %2898 = vmatprep.mubr.f32.mxu0 0.0
        %2899 = vmatmul.mubr.f32.gmra.mrb[0].mxu0 %v2706
        %v2900 = vpop.f32.mrb[0].mxu0
        %v2901 = vadd.f32 0.0, %v2900
        %v2902 = vpop.f32.mrb[0].mxu0
        %2903 = vmatprep.mubr.f32.mxu0 0.0
        %2904 = vmatmul.mubr.f32.gmra.mrb[0].mxu0 %v2709
        %v2905 = vpop.f32.mrb[0].mxu0
        %v2906 = vadd.f32 0.0, %v2905
        %v2907 = vpop.f32.mrb[0].mxu0
        %2908 = vmatprep.mubr.f32.mxu0 0.0
        %2909 = vmatmul.mubr.f32.gmra.mrb[0].mxu0 %v2711
        %v2910 = vpop.f32.mrb[0].mxu0
        %v2911 = vadd.f32 0.0, %v2910
        %v2912 = vpop.f32.mrb[0].mxu0
        %2913 = vmatprep.mubr.f32.mxu0 0.0
        %2914 = vmatmul.mubr.f32.gmra.mrb[0].mxu0 %v2714
        %v2915 = vpop.f32.mrb[0].mxu0
        %v2916 = vadd.f32 0.0, %v2915
        %v2917 = vpop.f32.mrb[0].mxu0
        %2918 = vmatprep.mubr.f32.mxu0 0.0
        %2919 = vmatmul.mubr.f32.gmra.mrb[0].mxu0 %v2716
        %v2920 = vpop.f32.mrb[0].mxu0
        %v2921 = vadd.f32 0.0, %v2920
        %v2922 = vpop.f32.mrb[0].mxu0
        %2923 = vmatprep.mubr.f32.mxu0 0.0
        %2924 = vmatmul.mubr.f32.gmra.mrb[0].mxu0 %v2719
        %v2925 = vpop.f32.mrb[0].mxu0
        %v2926 = vadd.f32 0.0, %v2925
        %v2927 = vpop.f32.mrb[0].mxu0
        %2928 = vmatprep.mubr.f32.mxu0 0.0
        %2929 = vmatmul.mubr.f32.gmra.mrb[0].mxu0 %v2721
        %v2930 = vpop.f32.mrb[0].mxu0
        %v2931 = vadd.f32 0.0, %v2930
        %v2932 = vpop.f32.mrb[0].mxu0
        %2933 = vmatprep.mubr.f32.mxu0 0.0
        %2934 = vmatmul.mubr.f32.gmra.mrb[0].mxu0 %v2724
        %v2935 = vpop.f32.mrb[0].mxu0
        %v2936 = vadd.f32 0.0, %v2935
        %v2937 = vpop.f32.mrb[0].mxu0
        %2938 = vmatprep.mubr.f32.mxu0 0.0
        %2939 = vmatmul.mubr.f32.gmra.mrb[0].mxu0 %v2726
        %v2940 = vpop.f32.mrb[0].mxu0
        %v2941 = vadd.f32 0.0, %v2940
        %v2942 = vpop.f32.mrb[0].mxu0
        %2943 = vmatprep.mubr.f32.mxu0 0.0
        %2944 = vmatmul.mubr.f32.gmra.mrb[0].mxu0 %v2729
        %v2945 = vpop.f32.mrb[0].mxu0
        %v2946 = vadd.f32 0.0, %v2945
        %v2947 = vpop.f32.mrb[0].mxu0
        %2948 = vmatprep.mubr.f32.mxu0 0.0
        %2949 = vmatmul.mubr.f32.gmra.mrb[0].mxu0 %v2731
        %v2950 = vpop.f32.mrb[0].mxu0
        %v2951 = vadd.f32 0.0, %v2950
        %v2952 = vpop.f32.mrb[0].mxu0
        %2953 = vmatprep.mubr.f32.mxu0 0.0
        %2954 = vmatmul.mubr.f32.gmra.mrb[0].mxu0 %v2734
        %v2955 = vpop.f32.mrb[0].mxu0
        %v2956 = vadd.f32 0.0, %v2955
        %v2957 = vpop.f32.mrb[0].mxu0
        %2958 = vmatprep.mubr.f32.mxu0 0.0
        %2959 = vmatmul.mubr.f32.gmra.mrb[0].mxu0 %v2736
        %v2960 = vpop.f32.mrb[0].mxu0
        %v2961 = vadd.f32 0.0, %v2960
        %v2962 = vpop.f32.mrb[0].mxu0
        %2963 = vmatprep.mubr.f32.mxu0 0.0
        %2964 = vmatmul.mubr.f32.gmra.mrb[0].mxu0 %v2739
        %v2965 = vpop.f32.mrb[0].mxu0
        %v2966 = vadd.f32 0.0, %v2965
        %v2967 = vpop.f32.mrb[0].mxu0
        %2968 = vmatprep.mubr.f32.mxu0 0.0
        %2969 = vmatmul.mubr.f32.gmra.mrb[0].mxu0 %v2741
        %v2970 = vpop.f32.mrb[0].mxu0
        %v2971 = vadd.f32 0.0, %v2970
        %v2972 = vpop.f32.mrb[0].mxu0
        %2973 = vmatprep.mubr.f32.mxu0 0.0
        %2974 = vmatmul.mubr.f32.gmra.mrb[0].mxu0 %v2744
        %v2975 = vpop.f32.mrb[0].mxu0
        %v2976 = vadd.f32 0.0, %v2975
        %v2977 = vpop.f32.mrb[0].mxu0
        %2978 = vmatprep.mubr.f32.mxu0 0.0
        %2979 = vmatmul.mubr.f32.gmra.mrb[0].mxu0 %v2746
        %v2980 = vpop.f32.mrb[0].mxu0
        %v2981 = vadd.f32 0.0, %v2980
        %v2982 = vpop.f32.mrb[0].mxu0
        %2983 = vmatprep.mubr.f32.mxu0 0.0
        %2984 = vmatmul.mubr.f32.gmra.mrb[0].mxu0 %v2749
        %v2985 = vpop.f32.mrb[0].mxu0
        %v2986 = vadd.f32 0.0, %v2985
        %v2987 = vpop.f32.mrb[0].mxu0
        %2988 = vmatprep.mubr.f32.mxu0 0.0
        %2989 = vmatmul.mubr.f32.gmra.mrb[0].mxu0 %v2751
        %v2990 = vpop.f32.mrb[0].mxu0
        %v2991 = vadd.f32 0.0, %v2990
        %v2992 = vpop.f32.mrb[0].mxu0
        %2993 = vmatprep.mubr.f32.mxu0 0.0
        %2994 = vmatmul.mubr.f32.gmra.mrb[0].mxu0 %v2754
        %v2995 = vpop.f32.mrb[0].mxu0
        %v2996 = vadd.f32 0.0, %v2995
        %v2997 = vpop.f32.mrb[0].mxu0
        %2998 = vmatprep.mubr.f32.mxu0 0.0
        %2999 = vmatmul.mubr.f32.gmra.mrb[0].mxu0 %v2756
        %v3000 = vpop.f32.mrb[0].mxu0
        %v3001 = vadd.f32 0.0, %v3000
        %v3002 = vpop.f32.mrb[0].mxu0
        %3003 = vmatprep.mubr.f32.mxu0 0.0
        %3004 = vmatmul.mubr.f32.gmra.mrb[0].mxu0 %v2759
        %v3005 = vpop.f32.mrb[0].mxu0
        %v3006 = vadd.f32 0.0, %v3005
        %v3007 = vpop.f32.mrb[0].mxu0
        %3008 = vmatprep.mubr.f32.mxu0 0.0
        %3009 = vmatmul.mubr.f32.gmra.mrb[0].mxu0 %v2761
        %v3010 = vpop.f32.mrb[0].mxu0
        %v3011 = vadd.f32 0.0, %v3010
        %v3012 = vpop.f32.mrb[0].mxu0
        %3013 = vmatprep.mubr.f32.mxu0 0.0
        %3014 = vmatmul.mubr.f32.gmra.mrb[0].mxu0 %v2764
        %v3015 = vpop.f32.mrb[0].mxu0
        %v3016 = vadd.f32 0.0, %v3015
        %v3017 = vpop.f32.mrb[0].mxu0
        %3018 = vmatprep.mubr.f32.mxu0 0.0
        %3019 = vmatmul.mubr.f32.gmra.mrb[0].mxu0 %v2766
        %v3020 = vpop.f32.mrb[0].mxu0
        %v3021 = vadd.f32 0.0, %v3020
        %v3022 = vpop.f32.mrb[0].mxu0
        %3023 = vdwg.mxu0
        %3024 = vmatprep.subr.mxu0 0.0
        %3025 = vmatpush1.msra.mxu0 %v2621
        %3026 = vmatprep.subr.mxu0 0.0
        %3027 = vmatpush1.msra.mxu0 %v2622
        %3028 = vmatprep.subr.mxu0 0.0
        %3029 = vmatpush1.msra.mxu0 %v2623
        %3030 = vmatprep.subr.mxu0 0.0
        %3031 = vmatpush1.msra.mxu0 %v2624
        %3032 = vmatprep.subr.mxu0 0.0
        %3033 = vmatpush1.msra.mxu0 %v2625
        %3034 = vmatprep.subr.mxu0 0.0
        %3035 = vmatpush1.msra.mxu0 %v2626
        %3036 = vmatprep.subr.mxu0 0.0
        %3037 = vmatpush1.msra.mxu0 %v2627
        %3038 = vmatprep.subr.mxu0 0.0
        %3039 = vmatpush1.msra.mxu0 %v2628
        %3040 = vmatprep.subr.mxu0 0.0
        %3041 = vmatpush1.msra.mxu0 %v2629
        %3042 = vmatprep.subr.mxu0 0.0
        %3043 = vmatpush1.msra.mxu0 %v2630
        %3044 = vmatprep.subr.mxu0 0.0
        %3045 = vmatpush1.msra.mxu0 %v2631
        %3046 = vmatprep.subr.mxu0 0.0
        %3047 = vmatpush1.msra.mxu0 %v2632
        %3048 = vmatprep.subr.mxu0 0.0
        %3049 = vmatpush1.msra.mxu0 %v2633
        %3050 = vmatprep.subr.mxu0 0.0
        %3051 = vmatpush1.msra.mxu0 %v2634
        %3052 = vmatprep.subr.mxu0 0.0
        %3053 = vmatpush1.msra.mxu0 %v2635
        %3054 = vmatprep.subr.mxu0 0.0
        %3055 = vmatpush1.msra.mxu0 %v2636
        %3056 = vmatprep.subr.mxu0 0.0
        %3057 = vmatpush1.msra.mxu0 0.0
        %3058 = vmatprep.subr.mxu0 0.0
        %3059 = vmatpush1.msra.mxu0 0.0
        %3060 = vmatprep.subr.mxu0 0.0
        %3061 = vmatpush1.msra.mxu0 0.0
        %3062 = vmatprep.subr.mxu0 0.0
        %3063 = vmatpush1.msra.mxu0 0.0
        %3064 = vmatprep.subr.mxu0 0.0
        %3065 = vmatpush1.msra.mxu0 0.0
        %3066 = vmatprep.subr.mxu0 0.0
        %3067 = vmatpush1.msra.mxu0 0.0
        %3068 = vmatprep.subr.mxu0 0.0
        %3069 = vmatpush1.msra.mxu0 0.0
        %3070 = vmatprep.subr.mxu0 0.0
        %3071 = vmatpush1.msra.mxu0 0.0
        %3072 = vmatprep.subr.mxu0 0.0
        %3073 = vmatpush1.msra.mxu0 0.0
        %3074 = vmatprep.subr.mxu0 0.0
        %3075 = vmatpush1.msra.mxu0 0.0
        %3076 = vmatprep.subr.mxu0 0.0
        %3077 = vmatpush1.msra.mxu0 0.0
        %3078 = vmatprep.subr.mxu0 0.0
        %3079 = vmatpush1.msra.mxu0 0.0
        %3080 = vmatprep.subr.mxu0 0.0
        %3081 = vmatpush1.msra.mxu0 0.0
        %3082 = vmatprep.subr.mxu0 0.0
        %3083 = vmatpush1.msra.mxu0 0.0
        %3084 = vmatprep.subr.mxu0 0.0
        %3085 = vmatpush1.msra.mxu0 0.0
        %3086 = vmatprep.subr.mxu0 0.0
        %3087 = vmatpush1.msra.mxu0 0.0
        %3088 = vmatprep.mubr.f32.mxu0 0.0
        %3089 = vmatmul.mubr.f32.gmra.mrb[0].mxu0 %v2585
        %v3090 = vpop.f32.mrb[0].mxu0
        %v3091 = vadd.f32 %v2866, %v3090
        %v3092 = vpop.f32.mrb[0].mxu0
        %3093 = vmatprep.mubr.f32.mxu0 0.0
        %3094 = vmatmul.mubr.f32.gmra.mrb[0].mxu0 %v2479
        %v3095 = vpop.f32.mrb[0].mxu0
        %v3096 = vadd.f32 %v2871, %v3095
        %v3097 = vpop.f32.mrb[0].mxu0
        %3098 = vmatprep.mubr.f32.mxu0 0.0
        %3099 = vmatmul.mubr.f32.gmra.mrb[0].mxu0 %v2586
        %v3100 = vpop.f32.mrb[0].mxu0
        %v3101 = vadd.f32 %v2876, %v3100
        %v3102 = vpop.f32.mrb[0].mxu0
        %3103 = vmatprep.mubr.f32.mxu0 0.0
        %3104 = vmatmul.mubr.f32.gmra.mrb[0].mxu0 %v2482
        %v3105 = vpop.f32.mrb[0].mxu0
        %v3106 = vadd.f32 %v2881, %v3105
        %v3107 = vpop.f32.mrb[0].mxu0
        %3108 = vmatprep.mubr.f32.mxu0 0.0
        %3109 = vmatmul.mubr.f32.gmra.mrb[0].mxu0 %v2587
        %v3110 = vpop.f32.mrb[0].mxu0
        %v3111 = vadd.f32 %v2886, %v3110
        %v3112 = vpop.f32.mrb[0].mxu0
        %3113 = vmatprep.mubr.f32.mxu0 0.0
        %3114 = vmatmul.mubr.f32.gmra.mrb[0].mxu0 %v2485
        %v3115 = vpop.f32.mrb[0].mxu0
        %v3116 = vadd.f32 %v2891, %v3115
        %v3117 = vpop.f32.mrb[0].mxu0
        %3118 = vmatprep.mubr.f32.mxu0 0.0
        %3119 = vmatmul.mubr.f32.gmra.mrb[0].mxu0 %v2588
        %v3120 = vpop.f32.mrb[0].mxu0
        %v3121 = vadd.f32 %v2896, %v3120
        %v3122 = vpop.f32.mrb[0].mxu0
        %3123 = vmatprep.mubr.f32.mxu0 0.0
        %3124 = vmatmul.mubr.f32.gmra.mrb[0].mxu0 %v2488
        %v3125 = vpop.f32.mrb[0].mxu0
        %v3126 = vadd.f32 %v2901, %v3125
        %v3127 = vpop.f32.mrb[0].mxu0
        %3128 = vmatprep.mubr.f32.mxu0 0.0
        %3129 = vmatmul.mubr.f32.gmra.mrb[0].mxu0 %v2589
        %v3130 = vpop.f32.mrb[0].mxu0
        %v3131 = vadd.f32 %v2906, %v3130
        %v3132 = vpop.f32.mrb[0].mxu0
        %3133 = vmatprep.mubr.f32.mxu0 0.0
        %3134 = vmatmul.mubr.f32.gmra.mrb[0].mxu0 %v2491
        %v3135 = vpop.f32.mrb[0].mxu0
        %v3136 = vadd.f32 %v2911, %v3135
        %v3137 = vpop.f32.mrb[0].mxu0
        %3138 = vmatprep.mubr.f32.mxu0 0.0
        %3139 = vmatmul.mubr.f32.gmra.mrb[0].mxu0 %v2590
        %v3140 = vpop.f32.mrb[0].mxu0
        %v3141 = vadd.f32 %v2916, %v3140
        %v3142 = vpop.f32.mrb[0].mxu0
        %3143 = vmatprep.mubr.f32.mxu0 0.0
        %3144 = vmatmul.mubr.f32.gmra.mrb[0].mxu0 %v2494
        %v3145 = vpop.f32.mrb[0].mxu0
        %v3146 = vadd.f32 %v2921, %v3145
        %v3147 = vpop.f32.mrb[0].mxu0
        %3148 = vmatprep.mubr.f32.mxu0 0.0
        %3149 = vmatmul.mubr.f32.gmra.mrb[0].mxu0 %v2591
        %v3150 = vpop.f32.mrb[0].mxu0
        %v3151 = vadd.f32 %v2926, %v3150
        %v3152 = vpop.f32.mrb[0].mxu0
        %3153 = vmatprep.mubr.f32.mxu0 0.0
        %3154 = vmatmul.mubr.f32.gmra.mrb[0].mxu0 %v2497
        %v3155 = vpop.f32.mrb[0].mxu0
        %v3156 = vadd.f32 %v2931, %v3155
        %v3157 = vpop.f32.mrb[0].mxu0
        %3158 = vmatprep.mubr.f32.mxu0 0.0
        %3159 = vmatmul.mubr.f32.gmra.mrb[0].mxu0 %v2592
        %v3160 = vpop.f32.mrb[0].mxu0
        %v3161 = vadd.f32 %v2936, %v3160
        %v3162 = vpop.f32.mrb[0].mxu0
        %3163 = vmatprep.mubr.f32.mxu0 0.0
        %3164 = vmatmul.mubr.f32.gmra.mrb[0].mxu0 %v2500
        %v3165 = vpop.f32.mrb[0].mxu0
        %v3166 = vadd.f32 %v2941, %v3165
        %v3167 = vpop.f32.mrb[0].mxu0
        %3168 = vmatprep.mubr.f32.mxu0 0.0
        %3169 = vmatmul.mubr.f32.gmra.mrb[0].mxu0 %v2593
        %v3170 = vpop.f32.mrb[0].mxu0
        %v3171 = vadd.f32 %v2946, %v3170
        %v3172 = vpop.f32.mrb[0].mxu0
        %3173 = vmatprep.mubr.f32.mxu0 0.0
        %3174 = vmatmul.mubr.f32.gmra.mrb[0].mxu0 %v2503
        %v3175 = vpop.f32.mrb[0].mxu0
        %v3176 = vadd.f32 %v2951, %v3175
        %v3177 = vpop.f32.mrb[0].mxu0
        %3178 = vmatprep.mubr.f32.mxu0 0.0
        %3179 = vmatmul.mubr.f32.gmra.mrb[0].mxu0 %v2594
        %v3180 = vpop.f32.mrb[0].mxu0
        %v3181 = vadd.f32 %v2956, %v3180
        %v3182 = vpop.f32.mrb[0].mxu0
        %3183 = vmatprep.mubr.f32.mxu0 0.0
        %3184 = vmatmul.mubr.f32.gmra.mrb[0].mxu0 %v2506
        %v3185 = vpop.f32.mrb[0].mxu0
        %v3186 = vadd.f32 %v2961, %v3185
        %v3187 = vpop.f32.mrb[0].mxu0
        %3188 = vmatprep.mubr.f32.mxu0 0.0
        %3189 = vmatmul.mubr.f32.gmra.mrb[0].mxu0 %v2595
        %v3190 = vpop.f32.mrb[0].mxu0
        %v3191 = vadd.f32 %v2966, %v3190
        %v3192 = vpop.f32.mrb[0].mxu0
        %3193 = vmatprep.mubr.f32.mxu0 0.0
        %3194 = vmatmul.mubr.f32.gmra.mrb[0].mxu0 %v2509
        %v3195 = vpop.f32.mrb[0].mxu0
        %v3196 = vadd.f32 %v2971, %v3195
        %v3197 = vpop.f32.mrb[0].mxu0
        %3198 = vmatprep.mubr.f32.mxu0 0.0
        %3199 = vmatmul.mubr.f32.gmra.mrb[0].mxu0 %v2596
        %v3200 = vpop.f32.mrb[0].mxu0
        %v3201 = vadd.f32 %v2976, %v3200
        %v3202 = vpop.f32.mrb[0].mxu0
        %3203 = vmatprep.mubr.f32.mxu0 0.0
        %3204 = vmatmul.mubr.f32.gmra.mrb[0].mxu0 %v2512
        %v3205 = vpop.f32.mrb[0].mxu0
        %v3206 = vadd.f32 %v2981, %v3205
        %v3207 = vpop.f32.mrb[0].mxu0
        %3208 = vmatprep.mubr.f32.mxu0 0.0
        %3209 = vmatmul.mubr.f32.gmra.mrb[0].mxu0 %v2597
        %v3210 = vpop.f32.mrb[0].mxu0
        %v3211 = vadd.f32 %v2986, %v3210
        %v3212 = vpop.f32.mrb[0].mxu0
        %3213 = vmatprep.mubr.f32.mxu0 0.0
        %3214 = vmatmul.mubr.f32.gmra.mrb[0].mxu0 %v2515
        %v3215 = vpop.f32.mrb[0].mxu0
        %v3216 = vadd.f32 %v2991, %v3215
        %v3217 = vpop.f32.mrb[0].mxu0
        %3218 = vmatprep.mubr.f32.mxu0 0.0
        %3219 = vmatmul.mubr.f32.gmra.mrb[0].mxu0 %v2598
        %v3220 = vpop.f32.mrb[0].mxu0
        %v3221 = vadd.f32 %v2996, %v3220
        %v3222 = vpop.f32.mrb[0].mxu0
        %3223 = vmatprep.mubr.f32.mxu0 0.0
        %3224 = vmatmul.mubr.f32.gmra.mrb[0].mxu0 %v2518
        %v3225 = vpop.f32.mrb[0].mxu0
        %v3226 = vadd.f32 %v3001, %v3225
        %v3227 = vpop.f32.mrb[0].mxu0
        %3228 = vmatprep.mubr.f32.mxu0 0.0
        %3229 = vmatmul.mubr.f32.gmra.mrb[0].mxu0 %v2599
        %v3230 = vpop.f32.mrb[0].mxu0
        %v3231 = vadd.f32 %v3006, %v3230
        %v3232 = vpop.f32.mrb[0].mxu0
        %3233 = vmatprep.mubr.f32.mxu0 0.0
        %3234 = vmatmul.mubr.f32.gmra.mrb[0].mxu0 %v2521
        %v3235 = vpop.f32.mrb[0].mxu0
        %v3236 = vadd.f32 %v3011, %v3235
        %v3237 = vpop.f32.mrb[0].mxu0
        %3238 = vmatprep.mubr.f32.mxu0 0.0
        %3239 = vmatmul.mubr.f32.gmra.mrb[0].mxu0 %v2600
        %v3240 = vpop.f32.mrb[0].mxu0
        %v3241 = vadd.f32 %v3016, %v3240
        %v3242 = vpop.f32.mrb[0].mxu0
        %3243 = vmatprep.mubr.f32.mxu0 0.0
        %3244 = vmatmul.mubr.f32.gmra.mrb[0].mxu0 %v2524
        %v3245 = vpop.f32.mrb[0].mxu0
        %v3246 = vadd.f32 %v3021, %v3245
        %v3247 = vpop.f32.mrb[0].mxu0
        %3248 = vdwg.mxu0
        %s3249 = scalar_lea.vmem %s8, 256
        %v3250 = vld [vmem:[%s3249] sm:$0xff]
        %v3251 = vld [vmem:[%s3249 + $0x8] sm:$0xff]
        %v3252 = vld [vmem:[%s3249 + $0x10] sm:$0xff]
        %v3253 = vld [vmem:[%s3249 + $0x18] sm:$0xff]
        %v3254 = vld [vmem:[%s3249 + $0x20] sm:$0xff]
        %v3255 = vld [vmem:[%s3249 + $0x28] sm:$0xff]
        %v3256 = vld [vmem:[%s3249 + $0x30] sm:$0xff]
        %v3257 = vld [vmem:[%s3249 + $0x38] sm:$0xff]
        %v3258 = vld [vmem:[%s3249 + $0x40] sm:$0xff]
        %v3259 = vld [vmem:[%s3249 + $0x48] sm:$0xff]
        %v3260 = vld [vmem:[%s3249 + $0x50] sm:$0xff]
        %v3261 = vld [vmem:[%s3249 + $0x58] sm:$0xff]
        %v3262 = vld [vmem:[%s3249 + $0x60] sm:$0xff]
        %v3263 = vld [vmem:[%s3249 + $0x68] sm:$0xff]
        %v3264 = vld [vmem:[%s3249 + $0x70] sm:$0xff]
        %v3265 = vld [vmem:[%s3249 + $0x78] sm:$0xff]
        %vm3266 = vcmask 1045504
        %v3267 = vrot.slane %v2585, 2
        %v3268 = vrot.slane %v2479, 2
        %v3269 = vsel %vm3266, %v3267, %v3268
        %v3270 = vrot.slane %v2603, 2
        %v3271 = vsel %vm3266, %v3268, %v3270
        %v3272 = vrot.slane %v2586, 2
        %v3273 = vrot.slane %v2482, 2
        %v3274 = vsel %vm3266, %v3272, %v3273
        %v3275 = vrot.slane %v2604, 2
        %v3276 = vsel %vm3266, %v3273, %v3275
        %v3277 = vrot.slane %v2587, 2
        %v3278 = vrot.slane %v2485, 2
        %v3279 = vsel %vm3266, %v3277, %v3278
        %v3280 = vrot.slane %v2605, 2
        %v3281 = vsel %vm3266, %v3278, %v3280
        %v3282 = vrot.slane %v2588, 2
        %v3283 = vrot.slane %v2488, 2
        %v3284 = vsel %vm3266, %v3282, %v3283
        %v3285 = vrot.slane %v2606, 2
        %v3286 = vsel %vm3266, %v3283, %v3285
        %v3287 = vrot.slane %v2589, 2
        %v3288 = vrot.slane %v2491, 2
        %v3289 = vsel %vm3266, %v3287, %v3288
        %v3290 = vrot.slane %v2607, 2
        %v3291 = vsel %vm3266, %v3288, %v3290
        %v3292 = vrot.slane %v2590, 2
        %v3293 = vrot.slane %v2494, 2
        %v3294 = vsel %vm3266, %v3292, %v3293
        %v3295 = vrot.slane %v2608, 2
        %v3296 = vsel %vm3266, %v3293, %v3295
        %v3297 = vrot.slane %v2591, 2
        %v3298 = vrot.slane %v2497, 2
        %v3299 = vsel %vm3266, %v3297, %v3298
        %v3300 = vrot.slane %v2609, 2
        %v3301 = vsel %vm3266, %v3298, %v3300
        %v3302 = vrot.slane %v2592, 2
        %v3303 = vrot.slane %v2500, 2
        %v3304 = vsel %vm3266, %v3302, %v3303
        %v3305 = vrot.slane %v2610, 2
        %v3306 = vsel %vm3266, %v3303, %v3305
        %v3307 = vrot.slane %v2593, 2
        %v3308 = vrot.slane %v2503, 2
        %v3309 = vsel %vm3266, %v3307, %v3308
        %v3310 = vrot.slane %v2611, 2
        %v3311 = vsel %vm3266, %v3308, %v3310
        %v3312 = vrot.slane %v2594, 2
        %v3313 = vrot.slane %v2506, 2
        %v3314 = vsel %vm3266, %v3312, %v3313
        %v3315 = vrot.slane %v2612, 2
        %v3316 = vsel %vm3266, %v3313, %v3315
        %v3317 = vrot.slane %v2595, 2
        %v3318 = vrot.slane %v2509, 2
        %v3319 = vsel %vm3266, %v3317, %v3318
        %v3320 = vrot.slane %v2613, 2
        %v3321 = vsel %vm3266, %v3318, %v3320
        %v3322 = vrot.slane %v2596, 2
        %v3323 = vrot.slane %v2512, 2
        %v3324 = vsel %vm3266, %v3322, %v3323
        %v3325 = vrot.slane %v2614, 2
        %v3326 = vsel %vm3266, %v3323, %v3325
        %v3327 = vrot.slane %v2597, 2
        %v3328 = vrot.slane %v2515, 2
        %v3329 = vsel %vm3266, %v3327, %v3328
        %v3330 = vrot.slane %v2615, 2
        %v3331 = vsel %vm3266, %v3328, %v3330
        %v3332 = vrot.slane %v2598, 2
        %v3333 = vrot.slane %v2518, 2
        %v3334 = vsel %vm3266, %v3332, %v3333
        %v3335 = vrot.slane %v2616, 2
        %v3336 = vsel %vm3266, %v3333, %v3335
        %v3337 = vrot.slane %v2599, 2
        %v3338 = vrot.slane %v2521, 2
        %v3339 = vsel %vm3266, %v3337, %v3338
        %v3340 = vrot.slane %v2617, 2
        %v3341 = vsel %vm3266, %v3338, %v3340
        %v3342 = vrot.slane %v2600, 2
        %v3343 = vrot.slane %v2524, 2
        %v3344 = vsel %vm3266, %v3342, %v3343
        %v3345 = vrot.slane %v2618, 2
        %v3346 = vsel %vm3266, %v3343, %v3345
        %3379 = vmatprep.subr.mxu0 0.0
        %3380 = vmatpush1.msra.mxu0 %v3250
        %3381 = vmatprep.subr.mxu0 0.0
        %3382 = vmatpush1.msra.mxu0 %v3251
        %3383 = vmatprep.subr.mxu0 0.0
        %3384 = vmatpush1.msra.mxu0 %v3252
        %3385 = vmatprep.subr.mxu0 0.0
        %3386 = vmatpush1.msra.mxu0 %v3253
        %3387 = vmatprep.subr.mxu0 0.0
        %3388 = vmatpush1.msra.mxu0 %v3254
        %3389 = vmatprep.subr.mxu0 0.0
        %3390 = vmatpush1.msra.mxu0 %v3255
        %3391 = vmatprep.subr.mxu0 0.0
        %3392 = vmatpush1.msra.mxu0 %v3256
        %3393 = vmatprep.subr.mxu0 0.0
        %3394 = vmatpush1.msra.mxu0 %v3257
        %3395 = vmatprep.subr.mxu0 0.0
        %3396 = vmatpush1.msra.mxu0 %v3258
        %3397 = vmatprep.subr.mxu0 0.0
        %3398 = vmatpush1.msra.mxu0 %v3259
        %3399 = vmatprep.subr.mxu0 0.0
        %3400 = vmatpush1.msra.mxu0 %v3260
        %3401 = vmatprep.subr.mxu0 0.0
        %3402 = vmatpush1.msra.mxu0 %v3261
        %3403 = vmatprep.subr.mxu0 0.0
        %3404 = vmatpush1.msra.mxu0 %v3262
        %3405 = vmatprep.subr.mxu0 0.0
        %3406 = vmatpush1.msra.mxu0 %v3263
        %3407 = vmatprep.subr.mxu0 0.0
        %3408 = vmatpush1.msra.mxu0 %v3264
        %3409 = vmatprep.subr.mxu0 0.0
        %3410 = vmatpush1.msra.mxu0 %v3265
        %3411 = vmatprep.subr.mxu0 0.0
        %3412 = vmatpush1.msra.mxu0 0.0
        %3413 = vmatprep.subr.mxu0 0.0
        %3414 = vmatpush1.msra.mxu0 0.0
        %3415 = vmatprep.subr.mxu0 0.0
        %3416 = vmatpush1.msra.mxu0 0.0
        %3417 = vmatprep.subr.mxu0 0.0
        %3418 = vmatpush1.msra.mxu0 0.0
        %3419 = vmatprep.subr.mxu0 0.0
        %3420 = vmatpush1.msra.mxu0 0.0
        %3421 = vmatprep.subr.mxu0 0.0
        %3422 = vmatpush1.msra.mxu0 0.0
        %3423 = vmatprep.subr.mxu0 0.0
        %3424 = vmatpush1.msra.mxu0 0.0
        %3425 = vmatprep.subr.mxu0 0.0
        %3426 = vmatpush1.msra.mxu0 0.0
        %3427 = vmatprep.subr.mxu0 0.0
        %3428 = vmatpush1.msra.mxu0 0.0
        %3429 = vmatprep.subr.mxu0 0.0
        %3430 = vmatpush1.msra.mxu0 0.0
        %3431 = vmatprep.subr.mxu0 0.0
        %3432 = vmatpush1.msra.mxu0 0.0
        %3433 = vmatprep.subr.mxu0 0.0
        %3434 = vmatpush1.msra.mxu0 0.0
        %3435 = vmatprep.subr.mxu0 0.0
        %3436 = vmatpush1.msra.mxu0 0.0
        %3437 = vmatprep.subr.mxu0 0.0
        %3438 = vmatpush1.msra.mxu0 0.0
        %3439 = vmatprep.subr.mxu0 0.0
        %3440 = vmatpush1.msra.mxu0 0.0
        %3441 = vmatprep.subr.mxu0 0.0
        %3442 = vmatpush1.msra.mxu0 0.0
        %3443 = vmatprep.mubr.f32.mxu0 0.0
        %3444 = vmatmul.mubr.f32.gmra.mrb[0].mxu0 %v3269
        %v3445 = vpop.f32.mrb[0].mxu0
        %v3446 = vadd.f32 0.0, %v3445
        %v3447 = vpop.f32.mrb[0].mxu0
        %3448 = vmatprep.mubr.f32.mxu0 0.0
        %3449 = vmatmul.mubr.f32.gmra.mrb[0].mxu0 %v3271
        %v3450 = vpop.f32.mrb[0].mxu0
        %v3451 = vadd.f32 0.0, %v3450
        %v3452 = vpop.f32.mrb[0].mxu0
        %3453 = vmatprep.mubr.f32.mxu0 0.0
        %3454 = vmatmul.mubr.f32.gmra.mrb[0].mxu0 %v3274
        %v3455 = vpop.f32.mrb[0].mxu0
        %v3456 = vadd.f32 0.0, %v3455
        %v3457 = vpop.f32.mrb[0].mxu0
        %3458 = vmatprep.mubr.f32.mxu0 0.0
        %3459 = vmatmul.mubr.f32.gmra.mrb[0].mxu0 %v3276
        %v3460 = vpop.f32.mrb[0].mxu0
        %v3461 = vadd.f32 0.0, %v3460
        %v3462 = vpop.f32.mrb[0].mxu0
        %3463 = vmatprep.mubr.f32.mxu0 0.0
        %3464 = vmatmul.mubr.f32.gmra.mrb[0].mxu0 %v3279
        %v3465 = vpop.f32.mrb[0].mxu0
        %v3466 = vadd.f32 0.0, %v3465
        %v3467 = vpop.f32.mrb[0].mxu0
        %3468 = vmatprep.mubr.f32.mxu0 0.0
        %3469 = vmatmul.mubr.f32.gmra.mrb[0].mxu0 %v3281
        %v3470 = vpop.f32.mrb[0].mxu0
        %v3471 = vadd.f32 0.0, %v3470
        %v3472 = vpop.f32.mrb[0].mxu0
        %3473 = vmatprep.mubr.f32.mxu0 0.0
        %3474 = vmatmul.mubr.f32.gmra.mrb[0].mxu0 %v3284
        %v3475 = vpop.f32.mrb[0].mxu0
        %v3476 = vadd.f32 0.0, %v3475
        %v3477 = vpop.f32.mrb[0].mxu0
        %3478 = vmatprep.mubr.f32.mxu0 0.0
        %3479 = vmatmul.mubr.f32.gmra.mrb[0].mxu0 %v3286
        %v3480 = vpop.f32.mrb[0].mxu0
        %v3481 = vadd.f32 0.0, %v3480
        %v3482 = vpop.f32.mrb[0].mxu0
        %3483 = vmatprep.mubr.f32.mxu0 0.0
        %3484 = vmatmul.mubr.f32.gmra.mrb[0].mxu0 %v3289
        %v3485 = vpop.f32.mrb[0].mxu0
        %v3486 = vadd.f32 0.0, %v3485
        %v3487 = vpop.f32.mrb[0].mxu0
        %3488 = vmatprep.mubr.f32.mxu0 0.0
        %3489 = vmatmul.mubr.f32.gmra.mrb[0].mxu0 %v3291
        %v3490 = vpop.f32.mrb[0].mxu0
        %v3491 = vadd.f32 0.0, %v3490
        %v3492 = vpop.f32.mrb[0].mxu0
        %3493 = vmatprep.mubr.f32.mxu0 0.0
        %3494 = vmatmul.mubr.f32.gmra.mrb[0].mxu0 %v3294
        %v3495 = vpop.f32.mrb[0].mxu0
        %v3496 = vadd.f32 0.0, %v3495
        %v3497 = vpop.f32.mrb[0].mxu0
        %3498 = vmatprep.mubr.f32.mxu0 0.0
        %3499 = vmatmul.mubr.f32.gmra.mrb[0].mxu0 %v3296
        %v3500 = vpop.f32.mrb[0].mxu0
        %v3501 = vadd.f32 0.0, %v3500
        %v3502 = vpop.f32.mrb[0].mxu0
        %3503 = vmatprep.mubr.f32.mxu0 0.0
        %3504 = vmatmul.mubr.f32.gmra.mrb[0].mxu0 %v3299
        %v3505 = vpop.f32.mrb[0].mxu0
        %v3506 = vadd.f32 0.0, %v3505
        %v3507 = vpop.f32.mrb[0].mxu0
        %3508 = vmatprep.mubr.f32.mxu0 0.0
        %3509 = vmatmul.mubr.f32.gmra.mrb[0].mxu0 %v3301
        %v3510 = vpop.f32.mrb[0].mxu0
        %v3511 = vadd.f32 0.0, %v3510
        %v3512 = vpop.f32.mrb[0].mxu0
        %3513 = vmatprep.mubr.f32.mxu0 0.0
        %3514 = vmatmul.mubr.f32.gmra.mrb[0].mxu0 %v3304
        %v3515 = vpop.f32.mrb[0].mxu0
        %v3516 = vadd.f32 0.0, %v3515
        %v3517 = vpop.f32.mrb[0].mxu0
        %3518 = vmatprep.mubr.f32.mxu0 0.0
        %3519 = vmatmul.mubr.f32.gmra.mrb[0].mxu0 %v3306
        %v3520 = vpop.f32.mrb[0].mxu0
        %v3521 = vadd.f32 0.0, %v3520
        %v3522 = vpop.f32.mrb[0].mxu0
        %3523 = vmatprep.mubr.f32.mxu0 0.0
        %3524 = vmatmul.mubr.f32.gmra.mrb[0].mxu0 %v3309
        %v3525 = vpop.f32.mrb[0].mxu0
        %v3526 = vadd.f32 0.0, %v3525
        %v3527 = vpop.f32.mrb[0].mxu0
        %3528 = vmatprep.mubr.f32.mxu0 0.0
        %3529 = vmatmul.mubr.f32.gmra.mrb[0].mxu0 %v3311
        %v3530 = vpop.f32.mrb[0].mxu0
        %v3531 = vadd.f32 0.0, %v3530
        %v3532 = vpop.f32.mrb[0].mxu0
        %3533 = vmatprep.mubr.f32.mxu0 0.0
        %3534 = vmatmul.mubr.f32.gmra.mrb[0].mxu0 %v3314
        %v3535 = vpop.f32.mrb[0].mxu0
        %v3536 = vadd.f32 0.0, %v3535
        %v3537 = vpop.f32.mrb[0].mxu0
        %3538 = vmatprep.mubr.f32.mxu0 0.0
        %3539 = vmatmul.mubr.f32.gmra.mrb[0].mxu0 %v3316
        %v3540 = vpop.f32.mrb[0].mxu0
        %v3541 = vadd.f32 0.0, %v3540
        %v3542 = vpop.f32.mrb[0].mxu0
        %3543 = vmatprep.mubr.f32.mxu0 0.0
        %3544 = vmatmul.mubr.f32.gmra.mrb[0].mxu0 %v3319
        %v3545 = vpop.f32.mrb[0].mxu0
        %v3546 = vadd.f32 0.0, %v3545
        %v3547 = vpop.f32.mrb[0].mxu0
        %3548 = vmatprep.mubr.f32.mxu0 0.0
        %3549 = vmatmul.mubr.f32.gmra.mrb[0].mxu0 %v3321
        %v3550 = vpop.f32.mrb[0].mxu0
        %v3551 = vadd.f32 0.0, %v3550
        %v3552 = vpop.f32.mrb[0].mxu0
        %3553 = vmatprep.mubr.f32.mxu0 0.0
        %3554 = vmatmul.mubr.f32.gmra.mrb[0].mxu0 %v3324
        %v3555 = vpop.f32.mrb[0].mxu0
        %v3556 = vadd.f32 0.0, %v3555
        %v3557 = vpop.f32.mrb[0].mxu0
        %3558 = vmatprep.mubr.f32.mxu0 0.0
        %3559 = vmatmul.mubr.f32.gmra.mrb[0].mxu0 %v3326
        %v3560 = vpop.f32.mrb[0].mxu0
        %v3561 = vadd.f32 0.0, %v3560
        %v3562 = vpop.f32.mrb[0].mxu0
        %3563 = vmatprep.mubr.f32.mxu0 0.0
        %3564 = vmatmul.mubr.f32.gmra.mrb[0].mxu0 %v3329
        %v3565 = vpop.f32.mrb[0].mxu0
        %v3566 = vadd.f32 0.0, %v3565
        %v3567 = vpop.f32.mrb[0].mxu0
        %3568 = vmatprep.mubr.f32.mxu0 0.0
        %3569 = vmatmul.mubr.f32.gmra.mrb[0].mxu0 %v3331
        %v3570 = vpop.f32.mrb[0].mxu0
        %v3571 = vadd.f32 0.0, %v3570
        %v3572 = vpop.f32.mrb[0].mxu0
        %3573 = vmatprep.mubr.f32.mxu0 0.0
        %3574 = vmatmul.mubr.f32.gmra.mrb[0].mxu0 %v3334
        %v3575 = vpop.f32.mrb[0].mxu0
        %v3576 = vadd.f32 0.0, %v3575
        %v3577 = vpop.f32.mrb[0].mxu0
        %3578 = vmatprep.mubr.f32.mxu0 0.0
        %3579 = vmatmul.mubr.f32.gmra.mrb[0].mxu0 %v3336
        %v3580 = vpop.f32.mrb[0].mxu0
        %v3581 = vadd.f32 0.0, %v3580
        %v3582 = vpop.f32.mrb[0].mxu0
        %3583 = vmatprep.mubr.f32.mxu0 0.0
        %3584 = vmatmul.mubr.f32.gmra.mrb[0].mxu0 %v3339
        %v3585 = vpop.f32.mrb[0].mxu0
        %v3586 = vadd.f32 0.0, %v3585
        %v3587 = vpop.f32.mrb[0].mxu0
        %3588 = vmatprep.mubr.f32.mxu0 0.0
        %3589 = vmatmul.mubr.f32.gmra.mrb[0].mxu0 %v3341
        %v3590 = vpop.f32.mrb[0].mxu0
        %v3591 = vadd.f32 0.0, %v3590
        %v3592 = vpop.f32.mrb[0].mxu0
        %3593 = vmatprep.mubr.f32.mxu0 0.0
        %3594 = vmatmul.mubr.f32.gmra.mrb[0].mxu0 %v3344
        %v3595 = vpop.f32.mrb[0].mxu0
        %v3596 = vadd.f32 0.0, %v3595
        %v3597 = vpop.f32.mrb[0].mxu0
        %3598 = vmatprep.mubr.f32.mxu0 0.0
        %3599 = vmatmul.mubr.f32.gmra.mrb[0].mxu0 %v3346
        %v3600 = vpop.f32.mrb[0].mxu0
        %v3601 = vadd.f32 0.0, %v3600
        %v3602 = vpop.f32.mrb[0].mxu0
        %3603 = vdwg.mxu0
        %v3604 = vadd.f32 %v3091, %v3446
        %v3605 = vadd.f32 %v3096, %v3451
        %v3606 = vadd.f32 %v3101, %v3456
        %v3607 = vadd.f32 %v3106, %v3461
        %v3608 = vadd.f32 %v3111, %v3466
        %v3609 = vadd.f32 %v3116, %v3471
        %v3610 = vadd.f32 %v3121, %v3476
        %v3611 = vadd.f32 %v3126, %v3481
        %v3612 = vadd.f32 %v3131, %v3486
        %v3613 = vadd.f32 %v3136, %v3491
        %v3614 = vadd.f32 %v3141, %v3496
        %v3615 = vadd.f32 %v3146, %v3501
        %v3616 = vadd.f32 %v3151, %v3506
        %v3617 = vadd.f32 %v3156, %v3511
        %v3618 = vadd.f32 %v3161, %v3516
        %v3619 = vadd.f32 %v3166, %v3521
        %v3620 = vadd.f32 %v3171, %v3526
        %v3621 = vadd.f32 %v3176, %v3531
        %v3622 = vadd.f32 %v3181, %v3536
        %v3623 = vadd.f32 %v3186, %v3541
        %v3624 = vadd.f32 %v3191, %v3546
        %v3625 = vadd.f32 %v3196, %v3551
        %v3626 = vadd.f32 %v3201, %v3556
        %v3627 = vadd.f32 %v3206, %v3561
        %v3628 = vadd.f32 %v3211, %v3566
        %v3629 = vadd.f32 %v3216, %v3571
        %v3630 = vadd.f32 %v3221, %v3576
        %v3631 = vadd.f32 %v3226, %v3581
        %v3632 = vadd.f32 %v3231, %v3586
        %v3633 = vadd.f32 %v3236, %v3591
        %v3634 = vadd.f32 %v3241, %v3596
        %v3635 = vadd.f32 %v3246, %v3601
        %s3636 = scalar_lea.vmem %s8, 384
        %v3637 = vld [vmem:[%s3636] sm:$0xff]
        %v3638 = vld [vmem:[%s3636 + $0x8] sm:$0xff]
        %v3639 = vld [vmem:[%s3636 + $0x10] sm:$0xff]
        %v3640 = vld [vmem:[%s3636 + $0x18] sm:$0xff]
        %v3641 = vld [vmem:[%s3636 + $0x20] sm:$0xff]
        %v3642 = vld [vmem:[%s3636 + $0x28] sm:$0xff]
        %v3643 = vld [vmem:[%s3636 + $0x30] sm:$0xff]
        %v3644 = vld [vmem:[%s3636 + $0x38] sm:$0xff]
        %v3645 = vld [vmem:[%s3636 + $0x40] sm:$0xff]
        %v3646 = vld [vmem:[%s3636 + $0x48] sm:$0xff]
        %v3647 = vld [vmem:[%s3636 + $0x50] sm:$0xff]
        %v3648 = vld [vmem:[%s3636 + $0x58] sm:$0xff]
        %v3649 = vld [vmem:[%s3636 + $0x60] sm:$0xff]
        %v3650 = vld [vmem:[%s3636 + $0x68] sm:$0xff]
        %v3651 = vld [vmem:[%s3636 + $0x70] sm:$0xff]
        %v3652 = vld [vmem:[%s3636 + $0x78] sm:$0xff]
        %3653 = vmatprep.subr.mxu0 0.0
        %3654 = vmatpush1.msra.mxu0 %v3637
        %3655 = vmatprep.subr.mxu0 0.0
        %3656 = vmatpush1.msra.mxu0 %v3638
        %3657 = vmatprep.subr.mxu0 0.0
        %3658 = vmatpush1.msra.mxu0 %v3639
        %3659 = vmatprep.subr.mxu0 0.0
        %3660 = vmatpush1.msra.mxu0 %v3640
        %3661 = vmatprep.subr.mxu0 0.0
        %3662 = vmatpush1.msra.mxu0 %v3641
        %3663 = vmatprep.subr.mxu0 0.0
        %3664 = vmatpush1.msra.mxu0 %v3642
        %3665 = vmatprep.subr.mxu0 0.0
        %3666 = vmatpush1.msra.mxu0 %v3643
        %3667 = vmatprep.subr.mxu0 0.0
        %3668 = vmatpush1.msra.mxu0 %v3644
        %3669 = vmatprep.subr.mxu0 0.0
        %3670 = vmatpush1.msra.mxu0 %v3645
        %3671 = vmatprep.subr.mxu0 0.0
        %3672 = vmatpush1.msra.mxu0 %v3646
        %3673 = vmatprep.subr.mxu0 0.0
        %3674 = vmatpush1.msra.mxu0 %v3647
        %3675 = vmatprep.subr.mxu0 0.0
        %3676 = vmatpush1.msra.mxu0 %v3648
        %3677 = vmatprep.subr.mxu0 0.0
        %3678 = vmatpush1.msra.mxu0 %v3649
        %3679 = vmatprep.subr.mxu0 0.0
        %3680 = vmatpush1.msra.mxu0 %v3650
        %3681 = vmatprep.subr.mxu0 0.0
        %3682 = vmatpush1.msra.mxu0 %v3651
        %3683 = vmatprep.subr.mxu0 0.0
        %3684 = vmatpush1.msra.mxu0 %v3652
        %3685 = vmatprep.subr.mxu0 0.0
        %3686 = vmatpush1.msra.mxu0 0.0
        %3687 = vmatprep.subr.mxu0 0.0
        %3688 = vmatpush1.msra.mxu0 0.0
        %3689 = vmatprep.subr.mxu0 0.0
        %3690 = vmatpush1.msra.mxu0 0.0
        %3691 = vmatprep.subr.mxu0 0.0
        %3692 = vmatpush1.msra.mxu0 0.0
        %3693 = vmatprep.subr.mxu0 0.0
        %3694 = vmatpush1.msra.mxu0 0.0
        %3695 = vmatprep.subr.mxu0 0.0
        %3696 = vmatpush1.msra.mxu0 0.0
        %3697 = vmatprep.subr.mxu0 0.0
        %3698 = vmatpush1.msra.mxu0 0.0
        %3699 = vmatprep.subr.mxu0 0.0
        %3700 = vmatpush1.msra.mxu0 0.0
        %3701 = vmatprep.subr.mxu0 0.0
        %3702 = vmatpush1.msra.mxu0 0.0
        %3703 = vmatprep.subr.mxu0 0.0
        %3704 = vmatpush1.msra.mxu0 0.0
        %3705 = vmatprep.subr.mxu0 0.0
        %3706 = vmatpush1.msra.mxu0 0.0
        %3707 = vmatprep.subr.mxu0 0.0
        %3708 = vmatpush1.msra.mxu0 0.0
        %3709 = vmatprep.subr.mxu0 0.0
        %3710 = vmatpush1.msra.mxu0 0.0
        %3711 = vmatprep.subr.mxu0 0.0
        %3712 = vmatpush1.msra.mxu0 0.0
        %3713 = vmatprep.subr.mxu0 0.0
        %3714 = vmatpush1.msra.mxu0 0.0
        %3715 = vmatprep.subr.mxu0 0.0
        %3716 = vmatpush1.msra.mxu0 0.0
        %3717 = vmatprep.mubr.f32.mxu0 0.0
        %3718 = vmatmul.mubr.f32.gmra.mrb[0].mxu0 %v2586
        %v3719 = vpop.f32.mrb[0].mxu0
        %v3720 = vadd.f32 0.0, %v3719
        %v3721 = vpop.f32.mrb[0].mxu0
        %3722 = vmatprep.mubr.f32.mxu0 0.0
        %3723 = vmatmul.mubr.f32.gmra.mrb[0].mxu0 %v2482
        %v3724 = vpop.f32.mrb[0].mxu0
        %v3725 = vadd.f32 0.0, %v3724
        %v3726 = vpop.f32.mrb[0].mxu0
        %3727 = vmatprep.mubr.f32.mxu0 0.0
        %3728 = vmatmul.mubr.f32.gmra.mrb[0].mxu0 %v2587
        %v3729 = vpop.f32.mrb[0].mxu0
        %v3730 = vadd.f32 0.0, %v3729
        %v3731 = vpop.f32.mrb[0].mxu0
        %3732 = vmatprep.mubr.f32.mxu0 0.0
        %3733 = vmatmul.mubr.f32.gmra.mrb[0].mxu0 %v2485
        %v3734 = vpop.f32.mrb[0].mxu0
        %v3735 = vadd.f32 0.0, %v3734
        %v3736 = vpop.f32.mrb[0].mxu0
        %3737 = vmatprep.mubr.f32.mxu0 0.0
        %3738 = vmatmul.mubr.f32.gmra.mrb[0].mxu0 %v2588
        %v3739 = vpop.f32.mrb[0].mxu0
        %v3740 = vadd.f32 0.0, %v3739
        %v3741 = vpop.f32.mrb[0].mxu0
        %3742 = vmatprep.mubr.f32.mxu0 0.0
        %3743 = vmatmul.mubr.f32.gmra.mrb[0].mxu0 %v2488
        %v3744 = vpop.f32.mrb[0].mxu0
        %v3745 = vadd.f32 0.0, %v3744
        %v3746 = vpop.f32.mrb[0].mxu0
        %3747 = vmatprep.mubr.f32.mxu0 0.0
        %3748 = vmatmul.mubr.f32.gmra.mrb[0].mxu0 %v2589
        %v3749 = vpop.f32.mrb[0].mxu0
        %v3750 = vadd.f32 0.0, %v3749
        %v3751 = vpop.f32.mrb[0].mxu0
        %3752 = vmatprep.mubr.f32.mxu0 0.0
        %3753 = vmatmul.mubr.f32.gmra.mrb[0].mxu0 %v2491
        %v3754 = vpop.f32.mrb[0].mxu0
        %v3755 = vadd.f32 0.0, %v3754
        %v3756 = vpop.f32.mrb[0].mxu0
        %3757 = vmatprep.mubr.f32.mxu0 0.0
        %3758 = vmatmul.mubr.f32.gmra.mrb[0].mxu0 %v2590
        %v3759 = vpop.f32.mrb[0].mxu0
        %v3760 = vadd.f32 0.0, %v3759
        %v3761 = vpop.f32.mrb[0].mxu0
        %3762 = vmatprep.mubr.f32.mxu0 0.0
        %3763 = vmatmul.mubr.f32.gmra.mrb[0].mxu0 %v2494
        %v3764 = vpop.f32.mrb[0].mxu0
        %v3765 = vadd.f32 0.0, %v3764
        %v3766 = vpop.f32.mrb[0].mxu0
        %3767 = vmatprep.mubr.f32.mxu0 0.0
        %3768 = vmatmul.mubr.f32.gmra.mrb[0].mxu0 %v2591
        %v3769 = vpop.f32.mrb[0].mxu0
        %v3770 = vadd.f32 0.0, %v3769
        %v3771 = vpop.f32.mrb[0].mxu0
        %3772 = vmatprep.mubr.f32.mxu0 0.0
        %3773 = vmatmul.mubr.f32.gmra.mrb[0].mxu0 %v2497
        %v3774 = vpop.f32.mrb[0].mxu0
        %v3775 = vadd.f32 0.0, %v3774
        %v3776 = vpop.f32.mrb[0].mxu0
        %3777 = vmatprep.mubr.f32.mxu0 0.0
        %3778 = vmatmul.mubr.f32.gmra.mrb[0].mxu0 %v2592
        %v3779 = vpop.f32.mrb[0].mxu0
        %v3780 = vadd.f32 0.0, %v3779
        %v3781 = vpop.f32.mrb[0].mxu0
        %3782 = vmatprep.mubr.f32.mxu0 0.0
        %3783 = vmatmul.mubr.f32.gmra.mrb[0].mxu0 %v2500
        %v3784 = vpop.f32.mrb[0].mxu0
        %v3785 = vadd.f32 0.0, %v3784
        %v3786 = vpop.f32.mrb[0].mxu0
        %3787 = vmatprep.mubr.f32.mxu0 0.0
        %3788 = vmatmul.mubr.f32.gmra.mrb[0].mxu0 %v2593
        %v3789 = vpop.f32.mrb[0].mxu0
        %v3790 = vadd.f32 0.0, %v3789
        %v3791 = vpop.f32.mrb[0].mxu0
        %3792 = vmatprep.mubr.f32.mxu0 0.0
        %3793 = vmatmul.mubr.f32.gmra.mrb[0].mxu0 %v2503
        %v3794 = vpop.f32.mrb[0].mxu0
        %v3795 = vadd.f32 0.0, %v3794
        %v3796 = vpop.f32.mrb[0].mxu0
        %3797 = vmatprep.mubr.f32.mxu0 0.0
        %3798 = vmatmul.mubr.f32.gmra.mrb[0].mxu0 %v2594
        %v3799 = vpop.f32.mrb[0].mxu0
        %v3800 = vadd.f32 0.0, %v3799
        %v3801 = vpop.f32.mrb[0].mxu0
        %3802 = vmatprep.mubr.f32.mxu0 0.0
        %3803 = vmatmul.mubr.f32.gmra.mrb[0].mxu0 %v2506
        %v3804 = vpop.f32.mrb[0].mxu0
        %v3805 = vadd.f32 0.0, %v3804
        %v3806 = vpop.f32.mrb[0].mxu0
        %3807 = vmatprep.mubr.f32.mxu0 0.0
        %3808 = vmatmul.mubr.f32.gmra.mrb[0].mxu0 %v2595
        %v3809 = vpop.f32.mrb[0].mxu0
        %v3810 = vadd.f32 0.0, %v3809
        %v3811 = vpop.f32.mrb[0].mxu0
        %3812 = vmatprep.mubr.f32.mxu0 0.0
        %3813 = vmatmul.mubr.f32.gmra.mrb[0].mxu0 %v2509
        %v3814 = vpop.f32.mrb[0].mxu0
        %v3815 = vadd.f32 0.0, %v3814
        %v3816 = vpop.f32.mrb[0].mxu0
        %3817 = vmatprep.mubr.f32.mxu0 0.0
        %3818 = vmatmul.mubr.f32.gmra.mrb[0].mxu0 %v2596
        %v3819 = vpop.f32.mrb[0].mxu0
        %v3820 = vadd.f32 0.0, %v3819
        %v3821 = vpop.f32.mrb[0].mxu0
        %3822 = vmatprep.mubr.f32.mxu0 0.0
        %3823 = vmatmul.mubr.f32.gmra.mrb[0].mxu0 %v2512
        %v3824 = vpop.f32.mrb[0].mxu0
        %v3825 = vadd.f32 0.0, %v3824
        %v3826 = vpop.f32.mrb[0].mxu0
        %3827 = vmatprep.mubr.f32.mxu0 0.0
        %3828 = vmatmul.mubr.f32.gmra.mrb[0].mxu0 %v2597
        %v3829 = vpop.f32.mrb[0].mxu0
        %v3830 = vadd.f32 0.0, %v3829
        %v3831 = vpop.f32.mrb[0].mxu0
        %3832 = vmatprep.mubr.f32.mxu0 0.0
        %3833 = vmatmul.mubr.f32.gmra.mrb[0].mxu0 %v2515
        %v3834 = vpop.f32.mrb[0].mxu0
        %v3835 = vadd.f32 0.0, %v3834
        %v3836 = vpop.f32.mrb[0].mxu0
        %3837 = vmatprep.mubr.f32.mxu0 0.0
        %3838 = vmatmul.mubr.f32.gmra.mrb[0].mxu0 %v2598
        %v3839 = vpop.f32.mrb[0].mxu0
        %v3840 = vadd.f32 0.0, %v3839
        %v3841 = vpop.f32.mrb[0].mxu0
        %3842 = vmatprep.mubr.f32.mxu0 0.0
        %3843 = vmatmul.mubr.f32.gmra.mrb[0].mxu0 %v2518
        %v3844 = vpop.f32.mrb[0].mxu0
        %v3845 = vadd.f32 0.0, %v3844
        %v3846 = vpop.f32.mrb[0].mxu0
        %3847 = vmatprep.mubr.f32.mxu0 0.0
        %3848 = vmatmul.mubr.f32.gmra.mrb[0].mxu0 %v2599
        %v3849 = vpop.f32.mrb[0].mxu0
        %v3850 = vadd.f32 0.0, %v3849
        %v3851 = vpop.f32.mrb[0].mxu0
        %3852 = vmatprep.mubr.f32.mxu0 0.0
        %3853 = vmatmul.mubr.f32.gmra.mrb[0].mxu0 %v2521
        %v3854 = vpop.f32.mrb[0].mxu0
        %v3855 = vadd.f32 0.0, %v3854
        %v3856 = vpop.f32.mrb[0].mxu0
        %3857 = vmatprep.mubr.f32.mxu0 0.0
        %3858 = vmatmul.mubr.f32.gmra.mrb[0].mxu0 %v2600
        %v3859 = vpop.f32.mrb[0].mxu0
        %v3860 = vadd.f32 0.0, %v3859
        %v3861 = vpop.f32.mrb[0].mxu0
        %3862 = vmatprep.mubr.f32.mxu0 0.0
        %3863 = vmatmul.mubr.f32.gmra.mrb[0].mxu0 %v2524
        %v3864 = vpop.f32.mrb[0].mxu0
        %v3865 = vadd.f32 0.0, %v3864
        %v3866 = vpop.f32.mrb[0].mxu0
        %3867 = vmatprep.mubr.f32.mxu0 0.0
        %3868 = vmatmul.mubr.f32.gmra.mrb[0].mxu0 %v2601
        %v3869 = vpop.f32.mrb[0].mxu0
        %v3870 = vadd.f32 0.0, %v3869
        %v3871 = vpop.f32.mrb[0].mxu0
        %3872 = vmatprep.mubr.f32.mxu0 0.0
        %3873 = vmatmul.mubr.f32.gmra.mrb[0].mxu0 %v2527
        %v3874 = vpop.f32.mrb[0].mxu0
        %v3875 = vadd.f32 0.0, %v3874
        %v3876 = vpop.f32.mrb[0].mxu0
        %3877 = vdwg.mxu0
        %v3878 = vadd.f32 %v3604, %v3720
        %v3879 = vadd.f32 %v3605, %v3725
        %v3880 = vadd.f32 %v3606, %v3730
        %v3881 = vadd.f32 %v3607, %v3735
        %v3882 = vadd.f32 %v3608, %v3740
        %v3883 = vadd.f32 %v3609, %v3745
        %v3884 = vadd.f32 %v3610, %v3750
        %v3885 = vadd.f32 %v3611, %v3755
        %v3886 = vadd.f32 %v3612, %v3760
        %v3887 = vadd.f32 %v3613, %v3765
        %v3888 = vadd.f32 %v3614, %v3770
        %v3889 = vadd.f32 %v3615, %v3775
        %v3890 = vadd.f32 %v3616, %v3780
        %v3891 = vadd.f32 %v3617, %v3785
        %v3892 = vadd.f32 %v3618, %v3790
        %v3893 = vadd.f32 %v3619, %v3795
        %v3894 = vadd.f32 %v3620, %v3800
        %v3895 = vadd.f32 %v3621, %v3805
        %v3896 = vadd.f32 %v3622, %v3810
        %v3897 = vadd.f32 %v3623, %v3815
        %v3898 = vadd.f32 %v3624, %v3820
        %v3899 = vadd.f32 %v3625, %v3825
        %v3900 = vadd.f32 %v3626, %v3830
        %v3901 = vadd.f32 %v3627, %v3835
        %v3902 = vadd.f32 %v3628, %v3840
        %v3903 = vadd.f32 %v3629, %v3845
        %v3904 = vadd.f32 %v3630, %v3850
        %v3905 = vadd.f32 %v3631, %v3855
        %v3906 = vadd.f32 %v3632, %v3860
        %v3907 = vadd.f32 %v3633, %v3865
        %v3908 = vadd.f32 %v3634, %v3870
        %v3909 = vadd.f32 %v3635, %v3875
        %s3910 = scalar_lea.vmem %s8, 512
        %v3911 = vld [vmem:[%s3910] sm:$0xff]
        %v3912 = vld [vmem:[%s3910 + $0x8] sm:$0xff]
        %v3913 = vld [vmem:[%s3910 + $0x10] sm:$0xff]
        %v3914 = vld [vmem:[%s3910 + $0x18] sm:$0xff]
        %v3915 = vld [vmem:[%s3910 + $0x20] sm:$0xff]
        %v3916 = vld [vmem:[%s3910 + $0x28] sm:$0xff]
        %v3917 = vld [vmem:[%s3910 + $0x30] sm:$0xff]
        %v3918 = vld [vmem:[%s3910 + $0x38] sm:$0xff]
        %v3919 = vld [vmem:[%s3910 + $0x40] sm:$0xff]
        %v3920 = vld [vmem:[%s3910 + $0x48] sm:$0xff]
        %v3921 = vld [vmem:[%s3910 + $0x50] sm:$0xff]
        %v3922 = vld [vmem:[%s3910 + $0x58] sm:$0xff]
        %v3923 = vld [vmem:[%s3910 + $0x60] sm:$0xff]
        %v3924 = vld [vmem:[%s3910 + $0x68] sm:$0xff]
        %v3925 = vld [vmem:[%s3910 + $0x70] sm:$0xff]
        %v3926 = vld [vmem:[%s3910 + $0x78] sm:$0xff]
        %v3929 = vrot.slane %v2601, 1
        %v3930 = vrot.slane %v2527, 1
        %v3931 = vsel %vm2686, %v3929, %v3930
        %v3932 = vrot.slane %v2619, 1
        %v3933 = vsel %vm2686, %v3930, %v3932
        %3936 = vmatprep.subr.mxu0 0.0
        %3937 = vmatpush1.msra.mxu0 %v3911
        %3938 = vmatprep.subr.mxu0 0.0
        %3939 = vmatpush1.msra.mxu0 %v3912
        %3940 = vmatprep.subr.mxu0 0.0
        %3941 = vmatpush1.msra.mxu0 %v3913
        %3942 = vmatprep.subr.mxu0 0.0
        %3943 = vmatpush1.msra.mxu0 %v3914
        %3944 = vmatprep.subr.mxu0 0.0
        %3945 = vmatpush1.msra.mxu0 %v3915
        %3946 = vmatprep.subr.mxu0 0.0
        %3947 = vmatpush1.msra.mxu0 %v3916
        %3948 = vmatprep.subr.mxu0 0.0
        %3949 = vmatpush1.msra.mxu0 %v3917
        %3950 = vmatprep.subr.mxu0 0.0
        %3951 = vmatpush1.msra.mxu0 %v3918
        %3952 = vmatprep.subr.mxu0 0.0
        %3953 = vmatpush1.msra.mxu0 %v3919
        %3954 = vmatprep.subr.mxu0 0.0
        %3955 = vmatpush1.msra.mxu0 %v3920
        %3956 = vmatprep.subr.mxu0 0.0
        %3957 = vmatpush1.msra.mxu0 %v3921
        %3958 = vmatprep.subr.mxu0 0.0
        %3959 = vmatpush1.msra.mxu0 %v3922
        %3960 = vmatprep.subr.mxu0 0.0
        %3961 = vmatpush1.msra.mxu0 %v3923
        %3962 = vmatprep.subr.mxu0 0.0
        %3963 = vmatpush1.msra.mxu0 %v3924
        %3964 = vmatprep.subr.mxu0 0.0
        %3965 = vmatpush1.msra.mxu0 %v3925
        %3966 = vmatprep.subr.mxu0 0.0
        %3967 = vmatpush1.msra.mxu0 %v3926
        %3968 = vmatprep.subr.mxu0 0.0
        %3969 = vmatpush1.msra.mxu0 0.0
        %3970 = vmatprep.subr.mxu0 0.0
        %3971 = vmatpush1.msra.mxu0 0.0
        %3972 = vmatprep.subr.mxu0 0.0
        %3973 = vmatpush1.msra.mxu0 0.0
        %3974 = vmatprep.subr.mxu0 0.0
        %3975 = vmatpush1.msra.mxu0 0.0
        %3976 = vmatprep.subr.mxu0 0.0
        %3977 = vmatpush1.msra.mxu0 0.0
        %3978 = vmatprep.subr.mxu0 0.0
        %3979 = vmatpush1.msra.mxu0 0.0
        %3980 = vmatprep.subr.mxu0 0.0
        %3981 = vmatpush1.msra.mxu0 0.0
        %3982 = vmatprep.subr.mxu0 0.0
        %3983 = vmatpush1.msra.mxu0 0.0
        %3984 = vmatprep.subr.mxu0 0.0
        %3985 = vmatpush1.msra.mxu0 0.0
        %3986 = vmatprep.subr.mxu0 0.0
        %3987 = vmatpush1.msra.mxu0 0.0
        %3988 = vmatprep.subr.mxu0 0.0
        %3989 = vmatpush1.msra.mxu0 0.0
        %3990 = vmatprep.subr.mxu0 0.0
        %3991 = vmatpush1.msra.mxu0 0.0
        %3992 = vmatprep.subr.mxu0 0.0
        %3993 = vmatpush1.msra.mxu0 0.0
        %3994 = vmatprep.subr.mxu0 0.0
        %3995 = vmatpush1.msra.mxu0 0.0
        %3996 = vmatprep.subr.mxu0 0.0
        %3997 = vmatpush1.msra.mxu0 0.0
        %3998 = vmatprep.subr.mxu0 0.0
        %3999 = vmatpush1.msra.mxu0 0.0
        %4000 = vmatprep.mubr.f32.mxu0 0.0
        %4001 = vmatmul.mubr.f32.gmra.mrb[0].mxu0 %v2694
        %v4002 = vpop.f32.mrb[0].mxu0
        %v4003 = vadd.f32 0.0, %v4002
        %v4004 = vpop.f32.mrb[0].mxu0
        %4005 = vmatprep.mubr.f32.mxu0 0.0
        %4006 = vmatmul.mubr.f32.gmra.mrb[0].mxu0 %v2696
        %v4007 = vpop.f32.mrb[0].mxu0
        %v4008 = vadd.f32 0.0, %v4007
        %v4009 = vpop.f32.mrb[0].mxu0
        %4010 = vmatprep.mubr.f32.mxu0 0.0
        %4011 = vmatmul.mubr.f32.gmra.mrb[0].mxu0 %v2699
        %v4012 = vpop.f32.mrb[0].mxu0
        %v4013 = vadd.f32 0.0, %v4012
        %v4014 = vpop.f32.mrb[0].mxu0
        %4015 = vmatprep.mubr.f32.mxu0 0.0
        %4016 = vmatmul.mubr.f32.gmra.mrb[0].mxu0 %v2701
        %v4017 = vpop.f32.mrb[0].mxu0
        %v4018 = vadd.f32 0.0, %v4017
        %v4019 = vpop.f32.mrb[0].mxu0
        %4020 = vmatprep.mubr.f32.mxu0 0.0
        %4021 = vmatmul.mubr.f32.gmra.mrb[0].mxu0 %v2704
        %v4022 = vpop.f32.mrb[0].mxu0
        %v4023 = vadd.f32 0.0, %v4022
        %v4024 = vpop.f32.mrb[0].mxu0
        %4025 = vmatprep.mubr.f32.mxu0 0.0
        %4026 = vmatmul.mubr.f32.gmra.mrb[0].mxu0 %v2706
        %v4027 = vpop.f32.mrb[0].mxu0
        %v4028 = vadd.f32 0.0, %v4027
        %v4029 = vpop.f32.mrb[0].mxu0
        %4030 = vmatprep.mubr.f32.mxu0 0.0
        %4031 = vmatmul.mubr.f32.gmra.mrb[0].mxu0 %v2709
        %v4032 = vpop.f32.mrb[0].mxu0
        %v4033 = vadd.f32 0.0, %v4032
        %v4034 = vpop.f32.mrb[0].mxu0
        %4035 = vmatprep.mubr.f32.mxu0 0.0
        %4036 = vmatmul.mubr.f32.gmra.mrb[0].mxu0 %v2711
        %v4037 = vpop.f32.mrb[0].mxu0
        %v4038 = vadd.f32 0.0, %v4037
        %v4039 = vpop.f32.mrb[0].mxu0
        %4040 = vmatprep.mubr.f32.mxu0 0.0
        %4041 = vmatmul.mubr.f32.gmra.mrb[0].mxu0 %v2714
        %v4042 = vpop.f32.mrb[0].mxu0
        %v4043 = vadd.f32 0.0, %v4042
        %v4044 = vpop.f32.mrb[0].mxu0
        %4045 = vmatprep.mubr.f32.mxu0 0.0
        %4046 = vmatmul.mubr.f32.gmra.mrb[0].mxu0 %v2716
        %v4047 = vpop.f32.mrb[0].mxu0
        %v4048 = vadd.f32 0.0, %v4047
        %v4049 = vpop.f32.mrb[0].mxu0
        %4050 = vmatprep.mubr.f32.mxu0 0.0
        %4051 = vmatmul.mubr.f32.gmra.mrb[0].mxu0 %v2719
        %v4052 = vpop.f32.mrb[0].mxu0
        %v4053 = vadd.f32 0.0, %v4052
        %v4054 = vpop.f32.mrb[0].mxu0
        %4055 = vmatprep.mubr.f32.mxu0 0.0
        %4056 = vmatmul.mubr.f32.gmra.mrb[0].mxu0 %v2721
        %v4057 = vpop.f32.mrb[0].mxu0
        %v4058 = vadd.f32 0.0, %v4057
        %v4059 = vpop.f32.mrb[0].mxu0
        %4060 = vmatprep.mubr.f32.mxu0 0.0
        %4061 = vmatmul.mubr.f32.gmra.mrb[0].mxu0 %v2724
        %v4062 = vpop.f32.mrb[0].mxu0
        %v4063 = vadd.f32 0.0, %v4062
        %v4064 = vpop.f32.mrb[0].mxu0
        %4065 = vmatprep.mubr.f32.mxu0 0.0
        %4066 = vmatmul.mubr.f32.gmra.mrb[0].mxu0 %v2726
        %v4067 = vpop.f32.mrb[0].mxu0
        %v4068 = vadd.f32 0.0, %v4067
        %v4069 = vpop.f32.mrb[0].mxu0
        %4070 = vmatprep.mubr.f32.mxu0 0.0
        %4071 = vmatmul.mubr.f32.gmra.mrb[0].mxu0 %v2729
        %v4072 = vpop.f32.mrb[0].mxu0
        %v4073 = vadd.f32 0.0, %v4072
        %v4074 = vpop.f32.mrb[0].mxu0
        %4075 = vmatprep.mubr.f32.mxu0 0.0
        %4076 = vmatmul.mubr.f32.gmra.mrb[0].mxu0 %v2731
        %v4077 = vpop.f32.mrb[0].mxu0
        %v4078 = vadd.f32 0.0, %v4077
        %v4079 = vpop.f32.mrb[0].mxu0
        %4080 = vmatprep.mubr.f32.mxu0 0.0
        %4081 = vmatmul.mubr.f32.gmra.mrb[0].mxu0 %v2734
        %v4082 = vpop.f32.mrb[0].mxu0
        %v4083 = vadd.f32 0.0, %v4082
        %v4084 = vpop.f32.mrb[0].mxu0
        %4085 = vmatprep.mubr.f32.mxu0 0.0
        %4086 = vmatmul.mubr.f32.gmra.mrb[0].mxu0 %v2736
        %v4087 = vpop.f32.mrb[0].mxu0
        %v4088 = vadd.f32 0.0, %v4087
        %v4089 = vpop.f32.mrb[0].mxu0
        %4090 = vmatprep.mubr.f32.mxu0 0.0
        %4091 = vmatmul.mubr.f32.gmra.mrb[0].mxu0 %v2739
        %v4092 = vpop.f32.mrb[0].mxu0
        %v4093 = vadd.f32 0.0, %v4092
        %v4094 = vpop.f32.mrb[0].mxu0
        %4095 = vmatprep.mubr.f32.mxu0 0.0
        %4096 = vmatmul.mubr.f32.gmra.mrb[0].mxu0 %v2741
        %v4097 = vpop.f32.mrb[0].mxu0
        %v4098 = vadd.f32 0.0, %v4097
        %v4099 = vpop.f32.mrb[0].mxu0
        %4100 = vmatprep.mubr.f32.mxu0 0.0
        %4101 = vmatmul.mubr.f32.gmra.mrb[0].mxu0 %v2744
        %v4102 = vpop.f32.mrb[0].mxu0
        %v4103 = vadd.f32 0.0, %v4102
        %v4104 = vpop.f32.mrb[0].mxu0
        %4105 = vmatprep.mubr.f32.mxu0 0.0
        %4106 = vmatmul.mubr.f32.gmra.mrb[0].mxu0 %v2746
        %v4107 = vpop.f32.mrb[0].mxu0
        %v4108 = vadd.f32 0.0, %v4107
        %v4109 = vpop.f32.mrb[0].mxu0
        %4110 = vmatprep.mubr.f32.mxu0 0.0
        %4111 = vmatmul.mubr.f32.gmra.mrb[0].mxu0 %v2749
        %v4112 = vpop.f32.mrb[0].mxu0
        %v4113 = vadd.f32 0.0, %v4112
        %v4114 = vpop.f32.mrb[0].mxu0
        %4115 = vmatprep.mubr.f32.mxu0 0.0
        %4116 = vmatmul.mubr.f32.gmra.mrb[0].mxu0 %v2751
        %v4117 = vpop.f32.mrb[0].mxu0
        %v4118 = vadd.f32 0.0, %v4117
        %v4119 = vpop.f32.mrb[0].mxu0
        %4120 = vmatprep.mubr.f32.mxu0 0.0
        %4121 = vmatmul.mubr.f32.gmra.mrb[0].mxu0 %v2754
        %v4122 = vpop.f32.mrb[0].mxu0
        %v4123 = vadd.f32 0.0, %v4122
        %v4124 = vpop.f32.mrb[0].mxu0
        %4125 = vmatprep.mubr.f32.mxu0 0.0
        %4126 = vmatmul.mubr.f32.gmra.mrb[0].mxu0 %v2756
        %v4127 = vpop.f32.mrb[0].mxu0
        %v4128 = vadd.f32 0.0, %v4127
        %v4129 = vpop.f32.mrb[0].mxu0
        %4130 = vmatprep.mubr.f32.mxu0 0.0
        %4131 = vmatmul.mubr.f32.gmra.mrb[0].mxu0 %v2759
        %v4132 = vpop.f32.mrb[0].mxu0
        %v4133 = vadd.f32 0.0, %v4132
        %v4134 = vpop.f32.mrb[0].mxu0
        %4135 = vmatprep.mubr.f32.mxu0 0.0
        %4136 = vmatmul.mubr.f32.gmra.mrb[0].mxu0 %v2761
        %v4137 = vpop.f32.mrb[0].mxu0
        %v4138 = vadd.f32 0.0, %v4137
        %v4139 = vpop.f32.mrb[0].mxu0
        %4140 = vmatprep.mubr.f32.mxu0 0.0
        %4141 = vmatmul.mubr.f32.gmra.mrb[0].mxu0 %v2764
        %v4142 = vpop.f32.mrb[0].mxu0
        %v4143 = vadd.f32 0.0, %v4142
        %v4144 = vpop.f32.mrb[0].mxu0
        %4145 = vmatprep.mubr.f32.mxu0 0.0
        %4146 = vmatmul.mubr.f32.gmra.mrb[0].mxu0 %v2766
        %v4147 = vpop.f32.mrb[0].mxu0
        %v4148 = vadd.f32 0.0, %v4147
        %v4149 = vpop.f32.mrb[0].mxu0
        %4150 = vmatprep.mubr.f32.mxu0 0.0
        %4151 = vmatmul.mubr.f32.gmra.mrb[0].mxu0 %v3931
        %v4152 = vpop.f32.mrb[0].mxu0
        %v4153 = vadd.f32 0.0, %v4152
        %v4154 = vpop.f32.mrb[0].mxu0
        %4155 = vmatprep.mubr.f32.mxu0 0.0
        %4156 = vmatmul.mubr.f32.gmra.mrb[0].mxu0 %v3933
        %v4157 = vpop.f32.mrb[0].mxu0
        %v4158 = vadd.f32 0.0, %v4157
        %v4159 = vpop.f32.mrb[0].mxu0
        %4160 = vdwg.mxu0
        %v4161 = vadd.f32 %v3878, %v4003
        %v4162 = vadd.f32 %v3879, %v4008
        %v4163 = vadd.f32 %v3880, %v4013
        %v4164 = vadd.f32 %v3881, %v4018
        %v4165 = vadd.f32 %v3882, %v4023
        %v4166 = vadd.f32 %v3883, %v4028
        %v4167 = vadd.f32 %v3884, %v4033
        %v4168 = vadd.f32 %v3885, %v4038
        %v4169 = vadd.f32 %v3886, %v4043
        %v4170 = vadd.f32 %v3887, %v4048
        %v4171 = vadd.f32 %v3888, %v4053
        %v4172 = vadd.f32 %v3889, %v4058
        %v4173 = vadd.f32 %v3890, %v4063
        %v4174 = vadd.f32 %v3891, %v4068
        %v4175 = vadd.f32 %v3892, %v4073
        %v4176 = vadd.f32 %v3893, %v4078
        %v4177 = vadd.f32 %v3894, %v4083
        %v4178 = vadd.f32 %v3895, %v4088
        %v4179 = vadd.f32 %v3896, %v4093
        %v4180 = vadd.f32 %v3897, %v4098
        %v4181 = vadd.f32 %v3898, %v4103
        %v4182 = vadd.f32 %v3899, %v4108
        %v4183 = vadd.f32 %v3900, %v4113
        %v4184 = vadd.f32 %v3901, %v4118
        %v4185 = vadd.f32 %v3902, %v4123
        %v4186 = vadd.f32 %v3903, %v4128
        %v4187 = vadd.f32 %v3904, %v4133
        %v4188 = vadd.f32 %v3905, %v4138
        %v4189 = vadd.f32 %v3906, %v4143
        %v4190 = vadd.f32 %v3907, %v4148
        %v4191 = vadd.f32 %v3908, %v4153
        %v4192 = vadd.f32 %v3909, %v4158
        %s4193 = scalar_lea.vmem %s8, 640
        %v4194 = vld [vmem:[%s4193] sm:$0xff]
        %v4195 = vld [vmem:[%s4193 + $0x8] sm:$0xff]
        %v4196 = vld [vmem:[%s4193 + $0x10] sm:$0xff]
        %v4197 = vld [vmem:[%s4193 + $0x18] sm:$0xff]
        %v4198 = vld [vmem:[%s4193 + $0x20] sm:$0xff]
        %v4199 = vld [vmem:[%s4193 + $0x28] sm:$0xff]
        %v4200 = vld [vmem:[%s4193 + $0x30] sm:$0xff]
        %v4201 = vld [vmem:[%s4193 + $0x38] sm:$0xff]
        %v4202 = vld [vmem:[%s4193 + $0x40] sm:$0xff]
        %v4203 = vld [vmem:[%s4193 + $0x48] sm:$0xff]
        %v4204 = vld [vmem:[%s4193 + $0x50] sm:$0xff]
        %v4205 = vld [vmem:[%s4193 + $0x58] sm:$0xff]
        %v4206 = vld [vmem:[%s4193 + $0x60] sm:$0xff]
        %v4207 = vld [vmem:[%s4193 + $0x68] sm:$0xff]
        %v4208 = vld [vmem:[%s4193 + $0x70] sm:$0xff]
        %v4209 = vld [vmem:[%s4193 + $0x78] sm:$0xff]
        %v4210 = vrot.slane %v2601, 2
        %v4211 = vrot.slane %v2527, 2
        %v4212 = vsel %vm3266, %v4210, %v4211
        %v4213 = vrot.slane %v2619, 2
        %v4214 = vsel %vm3266, %v4211, %v4213
        %4217 = vmatprep.subr.mxu0 0.0
        %4218 = vmatpush1.msra.mxu0 %v4194
        %4219 = vmatprep.subr.mxu0 0.0
        %4220 = vmatpush1.msra.mxu0 %v4195
        %4221 = vmatprep.subr.mxu0 0.0
        %4222 = vmatpush1.msra.mxu0 %v4196
        %4223 = vmatprep.subr.mxu0 0.0
        %4224 = vmatpush1.msra.mxu0 %v4197
        %4225 = vmatprep.subr.mxu0 0.0
        %4226 = vmatpush1.msra.mxu0 %v4198
        %4227 = vmatprep.subr.mxu0 0.0
        %4228 = vmatpush1.msra.mxu0 %v4199
        %4229 = vmatprep.subr.mxu0 0.0
        %4230 = vmatpush1.msra.mxu0 %v4200
        %4231 = vmatprep.subr.mxu0 0.0
        %4232 = vmatpush1.msra.mxu0 %v4201
        %4233 = vmatprep.subr.mxu0 0.0
        %4234 = vmatpush1.msra.mxu0 %v4202
        %4235 = vmatprep.subr.mxu0 0.0
        %4236 = vmatpush1.msra.mxu0 %v4203
        %4237 = vmatprep.subr.mxu0 0.0
        %4238 = vmatpush1.msra.mxu0 %v4204
        %4239 = vmatprep.subr.mxu0 0.0
        %4240 = vmatpush1.msra.mxu0 %v4205
        %4241 = vmatprep.subr.mxu0 0.0
        %4242 = vmatpush1.msra.mxu0 %v4206
        %4243 = vmatprep.subr.mxu0 0.0
        %4244 = vmatpush1.msra.mxu0 %v4207
        %4245 = vmatprep.subr.mxu0 0.0
        %4246 = vmatpush1.msra.mxu0 %v4208
        %4247 = vmatprep.subr.mxu0 0.0
        %4248 = vmatpush1.msra.mxu0 %v4209
        %4249 = vmatprep.subr.mxu0 0.0
        %4250 = vmatpush1.msra.mxu0 0.0
        %4251 = vmatprep.subr.mxu0 0.0
        %4252 = vmatpush1.msra.mxu0 0.0
        %4253 = vmatprep.subr.mxu0 0.0
        %4254 = vmatpush1.msra.mxu0 0.0
        %4255 = vmatprep.subr.mxu0 0.0
        %4256 = vmatpush1.msra.mxu0 0.0
        %4257 = vmatprep.subr.mxu0 0.0
        %4258 = vmatpush1.msra.mxu0 0.0
        %4259 = vmatprep.subr.mxu0 0.0
        %4260 = vmatpush1.msra.mxu0 0.0
        %4261 = vmatprep.subr.mxu0 0.0
        %4262 = vmatpush1.msra.mxu0 0.0
        %4263 = vmatprep.subr.mxu0 0.0
        %4264 = vmatpush1.msra.mxu0 0.0
        %4265 = vmatprep.subr.mxu0 0.0
        %4266 = vmatpush1.msra.mxu0 0.0
        %4267 = vmatprep.subr.mxu0 0.0
        %4268 = vmatpush1.msra.mxu0 0.0
        %4269 = vmatprep.subr.mxu0 0.0
        %4270 = vmatpush1.msra.mxu0 0.0
        %4271 = vmatprep.subr.mxu0 0.0
        %4272 = vmatpush1.msra.mxu0 0.0
        %4273 = vmatprep.subr.mxu0 0.0
        %4274 = vmatpush1.msra.mxu0 0.0
        %4275 = vmatprep.subr.mxu0 0.0
        %4276 = vmatpush1.msra.mxu0 0.0
        %4277 = vmatprep.subr.mxu0 0.0
        %4278 = vmatpush1.msra.mxu0 0.0
        %4279 = vmatprep.subr.mxu0 0.0
        %4280 = vmatpush1.msra.mxu0 0.0
        %4281 = vmatprep.mubr.f32.mxu0 0.0
        %4282 = vmatmul.mubr.f32.gmra.mrb[0].mxu0 %v3274
        %v4283 = vpop.f32.mrb[0].mxu0
        %v4284 = vadd.f32 0.0, %v4283
        %v4285 = vpop.f32.mrb[0].mxu0
        %4286 = vmatprep.mubr.f32.mxu0 0.0
        %4287 = vmatmul.mubr.f32.gmra.mrb[0].mxu0 %v3276
        %v4288 = vpop.f32.mrb[0].mxu0
        %v4289 = vadd.f32 0.0, %v4288
        %v4290 = vpop.f32.mrb[0].mxu0
        %4291 = vmatprep.mubr.f32.mxu0 0.0
        %4292 = vmatmul.mubr.f32.gmra.mrb[0].mxu0 %v3279
        %v4293 = vpop.f32.mrb[0].mxu0
        %v4294 = vadd.f32 0.0, %v4293
        %v4295 = vpop.f32.mrb[0].mxu0
        %4296 = vmatprep.mubr.f32.mxu0 0.0
        %4297 = vmatmul.mubr.f32.gmra.mrb[0].mxu0 %v3281
        %v4298 = vpop.f32.mrb[0].mxu0
        %v4299 = vadd.f32 0.0, %v4298
        %v4300 = vpop.f32.mrb[0].mxu0
        %4301 = vmatprep.mubr.f32.mxu0 0.0
        %4302 = vmatmul.mubr.f32.gmra.mrb[0].mxu0 %v3284
        %v4303 = vpop.f32.mrb[0].mxu0
        %v4304 = vadd.f32 0.0, %v4303
        %v4305 = vpop.f32.mrb[0].mxu0
        %4306 = vmatprep.mubr.f32.mxu0 0.0
        %4307 = vmatmul.mubr.f32.gmra.mrb[0].mxu0 %v3286
        %v4308 = vpop.f32.mrb[0].mxu0
        %v4309 = vadd.f32 0.0, %v4308
        %v4310 = vpop.f32.mrb[0].mxu0
        %4311 = vmatprep.mubr.f32.mxu0 0.0
        %4312 = vmatmul.mubr.f32.gmra.mrb[0].mxu0 %v3289
        %v4313 = vpop.f32.mrb[0].mxu0
        %v4314 = vadd.f32 0.0, %v4313
        %v4315 = vpop.f32.mrb[0].mxu0
        %4316 = vmatprep.mubr.f32.mxu0 0.0
        %4317 = vmatmul.mubr.f32.gmra.mrb[0].mxu0 %v3291
        %v4318 = vpop.f32.mrb[0].mxu0
        %v4319 = vadd.f32 0.0, %v4318
        %v4320 = vpop.f32.mrb[0].mxu0
        %4321 = vmatprep.mubr.f32.mxu0 0.0
        %4322 = vmatmul.mubr.f32.gmra.mrb[0].mxu0 %v3294
        %v4323 = vpop.f32.mrb[0].mxu0
        %v4324 = vadd.f32 0.0, %v4323
        %v4325 = vpop.f32.mrb[0].mxu0
        %4326 = vmatprep.mubr.f32.mxu0 0.0
        %4327 = vmatmul.mubr.f32.gmra.mrb[0].mxu0 %v3296
        %v4328 = vpop.f32.mrb[0].mxu0
        %v4329 = vadd.f32 0.0, %v4328
        %v4330 = vpop.f32.mrb[0].mxu0
        %4331 = vmatprep.mubr.f32.mxu0 0.0
        %4332 = vmatmul.mubr.f32.gmra.mrb[0].mxu0 %v3299
        %v4333 = vpop.f32.mrb[0].mxu0
        %v4334 = vadd.f32 0.0, %v4333
        %v4335 = vpop.f32.mrb[0].mxu0
        %4336 = vmatprep.mubr.f32.mxu0 0.0
        %4337 = vmatmul.mubr.f32.gmra.mrb[0].mxu0 %v3301
        %v4338 = vpop.f32.mrb[0].mxu0
        %v4339 = vadd.f32 0.0, %v4338
        %v4340 = vpop.f32.mrb[0].mxu0
        %4341 = vmatprep.mubr.f32.mxu0 0.0
        %4342 = vmatmul.mubr.f32.gmra.mrb[0].mxu0 %v3304
        %v4343 = vpop.f32.mrb[0].mxu0
        %v4344 = vadd.f32 0.0, %v4343
        %v4345 = vpop.f32.mrb[0].mxu0
        %4346 = vmatprep.mubr.f32.mxu0 0.0
        %4347 = vmatmul.mubr.f32.gmra.mrb[0].mxu0 %v3306
        %v4348 = vpop.f32.mrb[0].mxu0
        %v4349 = vadd.f32 0.0, %v4348
        %v4350 = vpop.f32.mrb[0].mxu0
        %4351 = vmatprep.mubr.f32.mxu0 0.0
        %4352 = vmatmul.mubr.f32.gmra.mrb[0].mxu0 %v3309
        %v4353 = vpop.f32.mrb[0].mxu0
        %v4354 = vadd.f32 0.0, %v4353
        %v4355 = vpop.f32.mrb[0].mxu0
        %4356 = vmatprep.mubr.f32.mxu0 0.0
        %4357 = vmatmul.mubr.f32.gmra.mrb[0].mxu0 %v3311
        %v4358 = vpop.f32.mrb[0].mxu0
        %v4359 = vadd.f32 0.0, %v4358
        %v4360 = vpop.f32.mrb[0].mxu0
        %4361 = vmatprep.mubr.f32.mxu0 0.0
        %4362 = vmatmul.mubr.f32.gmra.mrb[0].mxu0 %v3314
        %v4363 = vpop.f32.mrb[0].mxu0
        %v4364 = vadd.f32 0.0, %v4363
        %v4365 = vpop.f32.mrb[0].mxu0
        %4366 = vmatprep.mubr.f32.mxu0 0.0
        %4367 = vmatmul.mubr.f32.gmra.mrb[0].mxu0 %v3316
        %v4368 = vpop.f32.mrb[0].mxu0
        %v4369 = vadd.f32 0.0, %v4368
        %v4370 = vpop.f32.mrb[0].mxu0
        %4371 = vmatprep.mubr.f32.mxu0 0.0
        %4372 = vmatmul.mubr.f32.gmra.mrb[0].mxu0 %v3319
        %v4373 = vpop.f32.mrb[0].mxu0
        %v4374 = vadd.f32 0.0, %v4373
        %v4375 = vpop.f32.mrb[0].mxu0
        %4376 = vmatprep.mubr.f32.mxu0 0.0
        %4377 = vmatmul.mubr.f32.gmra.mrb[0].mxu0 %v3321
        %v4378 = vpop.f32.mrb[0].mxu0
        %v4379 = vadd.f32 0.0, %v4378
        %v4380 = vpop.f32.mrb[0].mxu0
        %4381 = vmatprep.mubr.f32.mxu0 0.0
        %4382 = vmatmul.mubr.f32.gmra.mrb[0].mxu0 %v3324
        %v4383 = vpop.f32.mrb[0].mxu0
        %v4384 = vadd.f32 0.0, %v4383
        %v4385 = vpop.f32.mrb[0].mxu0
        %4386 = vmatprep.mubr.f32.mxu0 0.0
        %4387 = vmatmul.mubr.f32.gmra.mrb[0].mxu0 %v3326
        %v4388 = vpop.f32.mrb[0].mxu0
        %v4389 = vadd.f32 0.0, %v4388
        %v4390 = vpop.f32.mrb[0].mxu0
        %4391 = vmatprep.mubr.f32.mxu0 0.0
        %4392 = vmatmul.mubr.f32.gmra.mrb[0].mxu0 %v3329
        %v4393 = vpop.f32.mrb[0].mxu0
        %v4394 = vadd.f32 0.0, %v4393
        %v4395 = vpop.f32.mrb[0].mxu0
        %4396 = vmatprep.mubr.f32.mxu0 0.0
        %4397 = vmatmul.mubr.f32.gmra.mrb[0].mxu0 %v3331
        %v4398 = vpop.f32.mrb[0].mxu0
        %v4399 = vadd.f32 0.0, %v4398
        %v4400 = vpop.f32.mrb[0].mxu0
        %4401 = vmatprep.mubr.f32.mxu0 0.0
        %4402 = vmatmul.mubr.f32.gmra.mrb[0].mxu0 %v3334
        %v4403 = vpop.f32.mrb[0].mxu0
        %v4404 = vadd.f32 0.0, %v4403
        %v4405 = vpop.f32.mrb[0].mxu0
        %4406 = vmatprep.mubr.f32.mxu0 0.0
        %4407 = vmatmul.mubr.f32.gmra.mrb[0].mxu0 %v3336
        %v4408 = vpop.f32.mrb[0].mxu0
        %v4409 = vadd.f32 0.0, %v4408
        %v4410 = vpop.f32.mrb[0].mxu0
        %4411 = vmatprep.mubr.f32.mxu0 0.0
        %4412 = vmatmul.mubr.f32.gmra.mrb[0].mxu0 %v3339
        %v4413 = vpop.f32.mrb[0].mxu0
        %v4414 = vadd.f32 0.0, %v4413
        %v4415 = vpop.f32.mrb[0].mxu0
        %4416 = vmatprep.mubr.f32.mxu0 0.0
        %4417 = vmatmul.mubr.f32.gmra.mrb[0].mxu0 %v3341
        %v4418 = vpop.f32.mrb[0].mxu0
        %v4419 = vadd.f32 0.0, %v4418
        %v4420 = vpop.f32.mrb[0].mxu0
        %4421 = vmatprep.mubr.f32.mxu0 0.0
        %4422 = vmatmul.mubr.f32.gmra.mrb[0].mxu0 %v3344
        %v4423 = vpop.f32.mrb[0].mxu0
        %v4424 = vadd.f32 0.0, %v4423
        %v4425 = vpop.f32.mrb[0].mxu0
        %4426 = vmatprep.mubr.f32.mxu0 0.0
        %4427 = vmatmul.mubr.f32.gmra.mrb[0].mxu0 %v3346
        %v4428 = vpop.f32.mrb[0].mxu0
        %v4429 = vadd.f32 0.0, %v4428
        %v4430 = vpop.f32.mrb[0].mxu0
        %4431 = vmatprep.mubr.f32.mxu0 0.0
        %4432 = vmatmul.mubr.f32.gmra.mrb[0].mxu0 %v4212
        %v4433 = vpop.f32.mrb[0].mxu0
        %v4434 = vadd.f32 0.0, %v4433
        %v4435 = vpop.f32.mrb[0].mxu0
        %4436 = vmatprep.mubr.f32.mxu0 0.0
        %4437 = vmatmul.mubr.f32.gmra.mrb[0].mxu0 %v4214
        %v4438 = vpop.f32.mrb[0].mxu0
        %v4439 = vadd.f32 0.0, %v4438
        %v4440 = vpop.f32.mrb[0].mxu0
        %4441 = vdwg.mxu0
        %v4442 = vadd.f32 %v4161, %v4284
        %v4443 = vadd.f32 %v4162, %v4289
        %v4444 = vadd.f32 %v4163, %v4294
        %v4445 = vadd.f32 %v4164, %v4299
        %v4446 = vadd.f32 %v4165, %v4304
        %v4447 = vadd.f32 %v4166, %v4309
        %v4448 = vadd.f32 %v4167, %v4314
        %v4449 = vadd.f32 %v4168, %v4319
        %v4450 = vadd.f32 %v4169, %v4324
        %v4451 = vadd.f32 %v4170, %v4329
        %v4452 = vadd.f32 %v4171, %v4334
        %v4453 = vadd.f32 %v4172, %v4339
        %v4454 = vadd.f32 %v4173, %v4344
        %v4455 = vadd.f32 %v4174, %v4349
        %v4456 = vadd.f32 %v4175, %v4354
        %v4457 = vadd.f32 %v4176, %v4359
        %v4458 = vadd.f32 %v4177, %v4364
        %v4459 = vadd.f32 %v4178, %v4369
        %v4460 = vadd.f32 %v4179, %v4374
        %v4461 = vadd.f32 %v4180, %v4379
        %v4462 = vadd.f32 %v4181, %v4384
        %v4463 = vadd.f32 %v4182, %v4389
        %v4464 = vadd.f32 %v4183, %v4394
        %v4465 = vadd.f32 %v4184, %v4399
        %v4466 = vadd.f32 %v4185, %v4404
        %v4467 = vadd.f32 %v4186, %v4409
        %v4468 = vadd.f32 %v4187, %v4414
        %v4469 = vadd.f32 %v4188, %v4419
        %v4470 = vadd.f32 %v4189, %v4424
        %v4471 = vadd.f32 %v4190, %v4429
        %v4472 = vadd.f32 %v4191, %v4434
        %v4473 = vadd.f32 %v4192, %v4439
        %s4474 = scalar_lea.vmem %s8, 768
        %v4475 = vld [vmem:[%s4474] sm:$0xff]
        %v4476 = vld [vmem:[%s4474 + $0x8] sm:$0xff]
        %v4477 = vld [vmem:[%s4474 + $0x10] sm:$0xff]
        %v4478 = vld [vmem:[%s4474 + $0x18] sm:$0xff]
        %v4479 = vld [vmem:[%s4474 + $0x20] sm:$0xff]
        %v4480 = vld [vmem:[%s4474 + $0x28] sm:$0xff]
        %v4481 = vld [vmem:[%s4474 + $0x30] sm:$0xff]
        %v4482 = vld [vmem:[%s4474 + $0x38] sm:$0xff]
        %v4483 = vld [vmem:[%s4474 + $0x40] sm:$0xff]
        %v4484 = vld [vmem:[%s4474 + $0x48] sm:$0xff]
        %v4485 = vld [vmem:[%s4474 + $0x50] sm:$0xff]
        %v4486 = vld [vmem:[%s4474 + $0x58] sm:$0xff]
        %v4487 = vld [vmem:[%s4474 + $0x60] sm:$0xff]
        %v4488 = vld [vmem:[%s4474 + $0x68] sm:$0xff]
        %v4489 = vld [vmem:[%s4474 + $0x70] sm:$0xff]
        %v4490 = vld [vmem:[%s4474 + $0x78] sm:$0xff]
        %4491 = vmatprep.subr.mxu0 0.0
        %4492 = vmatpush1.msra.mxu0 %v4475
        %4493 = vmatprep.subr.mxu0 0.0
        %4494 = vmatpush1.msra.mxu0 %v4476
        %4495 = vmatprep.subr.mxu0 0.0
        %4496 = vmatpush1.msra.mxu0 %v4477
        %4497 = vmatprep.subr.mxu0 0.0
        %4498 = vmatpush1.msra.mxu0 %v4478
        %4499 = vmatprep.subr.mxu0 0.0
        %4500 = vmatpush1.msra.mxu0 %v4479
        %4501 = vmatprep.subr.mxu0 0.0
        %4502 = vmatpush1.msra.mxu0 %v4480
        %4503 = vmatprep.subr.mxu0 0.0
        %4504 = vmatpush1.msra.mxu0 %v4481
        %4505 = vmatprep.subr.mxu0 0.0
        %4506 = vmatpush1.msra.mxu0 %v4482
        %4507 = vmatprep.subr.mxu0 0.0
        %4508 = vmatpush1.msra.mxu0 %v4483
        %4509 = vmatprep.subr.mxu0 0.0
        %4510 = vmatpush1.msra.mxu0 %v4484
        %4511 = vmatprep.subr.mxu0 0.0
        %4512 = vmatpush1.msra.mxu0 %v4485
        %4513 = vmatprep.subr.mxu0 0.0
        %4514 = vmatpush1.msra.mxu0 %v4486
        %4515 = vmatprep.subr.mxu0 0.0
        %4516 = vmatpush1.msra.mxu0 %v4487
        %4517 = vmatprep.subr.mxu0 0.0
        %4518 = vmatpush1.msra.mxu0 %v4488
        %4519 = vmatprep.subr.mxu0 0.0
        %4520 = vmatpush1.msra.mxu0 %v4489
        %4521 = vmatprep.subr.mxu0 0.0
        %4522 = vmatpush1.msra.mxu0 %v4490
        %4523 = vmatprep.subr.mxu0 0.0
        %4524 = vmatpush1.msra.mxu0 0.0
        %4525 = vmatprep.subr.mxu0 0.0
        %4526 = vmatpush1.msra.mxu0 0.0
        %4527 = vmatprep.subr.mxu0 0.0
        %4528 = vmatpush1.msra.mxu0 0.0
        %4529 = vmatprep.subr.mxu0 0.0
        %4530 = vmatpush1.msra.mxu0 0.0
        %4531 = vmatprep.subr.mxu0 0.0
        %4532 = vmatpush1.msra.mxu0 0.0
        %4533 = vmatprep.subr.mxu0 0.0
        %4534 = vmatpush1.msra.mxu0 0.0
        %4535 = vmatprep.subr.mxu0 0.0
        %4536 = vmatpush1.msra.mxu0 0.0
        %4537 = vmatprep.subr.mxu0 0.0
        %4538 = vmatpush1.msra.mxu0 0.0
        %4539 = vmatprep.subr.mxu0 0.0
        %4540 = vmatpush1.msra.mxu0 0.0
        %4541 = vmatprep.subr.mxu0 0.0
        %4542 = vmatpush1.msra.mxu0 0.0
        %4543 = vmatprep.subr.mxu0 0.0
        %4544 = vmatpush1.msra.mxu0 0.0
        %4545 = vmatprep.subr.mxu0 0.0
        %4546 = vmatpush1.msra.mxu0 0.0
        %4547 = vmatprep.subr.mxu0 0.0
        %4548 = vmatpush1.msra.mxu0 0.0
        %4549 = vmatprep.subr.mxu0 0.0
        %4550 = vmatpush1.msra.mxu0 0.0
        %4551 = vmatprep.subr.mxu0 0.0
        %4552 = vmatpush1.msra.mxu0 0.0
        %4553 = vmatprep.subr.mxu0 0.0
        %4554 = vmatpush1.msra.mxu0 0.0
        %4555 = vmatprep.mubr.f32.mxu0 0.0
        %4556 = vmatmul.mubr.f32.gmra.mrb[0].mxu0 %v2587
        %v4557 = vpop.f32.mrb[0].mxu0
        %v4558 = vadd.f32 0.0, %v4557
        %v4559 = vpop.f32.mrb[0].mxu0
        %4560 = vmatprep.mubr.f32.mxu0 0.0
        %4561 = vmatmul.mubr.f32.gmra.mrb[0].mxu0 %v2485
        %v4562 = vpop.f32.mrb[0].mxu0
        %v4563 = vadd.f32 0.0, %v4562
        %v4564 = vpop.f32.mrb[0].mxu0
        %4565 = vmatprep.mubr.f32.mxu0 0.0
        %4566 = vmatmul.mubr.f32.gmra.mrb[0].mxu0 %v2588
        %v4567 = vpop.f32.mrb[0].mxu0
        %v4568 = vadd.f32 0.0, %v4567
        %v4569 = vpop.f32.mrb[0].mxu0
        %4570 = vmatprep.mubr.f32.mxu0 0.0
        %4571 = vmatmul.mubr.f32.gmra.mrb[0].mxu0 %v2488
        %v4572 = vpop.f32.mrb[0].mxu0
        %v4573 = vadd.f32 0.0, %v4572
        %v4574 = vpop.f32.mrb[0].mxu0
        %4575 = vmatprep.mubr.f32.mxu0 0.0
        %4576 = vmatmul.mubr.f32.gmra.mrb[0].mxu0 %v2589
        %v4577 = vpop.f32.mrb[0].mxu0
        %v4578 = vadd.f32 0.0, %v4577
        %v4579 = vpop.f32.mrb[0].mxu0
        %4580 = vmatprep.mubr.f32.mxu0 0.0
        %4581 = vmatmul.mubr.f32.gmra.mrb[0].mxu0 %v2491
        %v4582 = vpop.f32.mrb[0].mxu0
        %v4583 = vadd.f32 0.0, %v4582
        %v4584 = vpop.f32.mrb[0].mxu0
        %4585 = vmatprep.mubr.f32.mxu0 0.0
        %4586 = vmatmul.mubr.f32.gmra.mrb[0].mxu0 %v2590
        %v4587 = vpop.f32.mrb[0].mxu0
        %v4588 = vadd.f32 0.0, %v4587
        %v4589 = vpop.f32.mrb[0].mxu0
        %4590 = vmatprep.mubr.f32.mxu0 0.0
        %4591 = vmatmul.mubr.f32.gmra.mrb[0].mxu0 %v2494
        %v4592 = vpop.f32.mrb[0].mxu0
        %v4593 = vadd.f32 0.0, %v4592
        %v4594 = vpop.f32.mrb[0].mxu0
        %4595 = vmatprep.mubr.f32.mxu0 0.0
        %4596 = vmatmul.mubr.f32.gmra.mrb[0].mxu0 %v2591
        %v4597 = vpop.f32.mrb[0].mxu0
        %v4598 = vadd.f32 0.0, %v4597
        %v4599 = vpop.f32.mrb[0].mxu0
        %4600 = vmatprep.mubr.f32.mxu0 0.0
        %4601 = vmatmul.mubr.f32.gmra.mrb[0].mxu0 %v2497
        %v4602 = vpop.f32.mrb[0].mxu0
        %v4603 = vadd.f32 0.0, %v4602
        %v4604 = vpop.f32.mrb[0].mxu0
        %4605 = vmatprep.mubr.f32.mxu0 0.0
        %4606 = vmatmul.mubr.f32.gmra.mrb[0].mxu0 %v2592
        %v4607 = vpop.f32.mrb[0].mxu0
        %v4608 = vadd.f32 0.0, %v4607
        %v4609 = vpop.f32.mrb[0].mxu0
        %4610 = vmatprep.mubr.f32.mxu0 0.0
        %4611 = vmatmul.mubr.f32.gmra.mrb[0].mxu0 %v2500
        %v4612 = vpop.f32.mrb[0].mxu0
        %v4613 = vadd.f32 0.0, %v4612
        %v4614 = vpop.f32.mrb[0].mxu0
        %4615 = vmatprep.mubr.f32.mxu0 0.0
        %4616 = vmatmul.mubr.f32.gmra.mrb[0].mxu0 %v2593
        %v4617 = vpop.f32.mrb[0].mxu0
        %v4618 = vadd.f32 0.0, %v4617
        %v4619 = vpop.f32.mrb[0].mxu0
        %4620 = vmatprep.mubr.f32.mxu0 0.0
        %4621 = vmatmul.mubr.f32.gmra.mrb[0].mxu0 %v2503
        %v4622 = vpop.f32.mrb[0].mxu0
        %v4623 = vadd.f32 0.0, %v4622
        %v4624 = vpop.f32.mrb[0].mxu0
        %4625 = vmatprep.mubr.f32.mxu0 0.0
        %4626 = vmatmul.mubr.f32.gmra.mrb[0].mxu0 %v2594
        %v4627 = vpop.f32.mrb[0].mxu0
        %v4628 = vadd.f32 0.0, %v4627
        %v4629 = vpop.f32.mrb[0].mxu0
        %4630 = vmatprep.mubr.f32.mxu0 0.0
        %4631 = vmatmul.mubr.f32.gmra.mrb[0].mxu0 %v2506
        %v4632 = vpop.f32.mrb[0].mxu0
        %v4633 = vadd.f32 0.0, %v4632
        %v4634 = vpop.f32.mrb[0].mxu0
        %4635 = vmatprep.mubr.f32.mxu0 0.0
        %4636 = vmatmul.mubr.f32.gmra.mrb[0].mxu0 %v2595
        %v4637 = vpop.f32.mrb[0].mxu0
        %v4638 = vadd.f32 0.0, %v4637
        %v4639 = vpop.f32.mrb[0].mxu0
        %4640 = vmatprep.mubr.f32.mxu0 0.0
        %4641 = vmatmul.mubr.f32.gmra.mrb[0].mxu0 %v2509
        %v4642 = vpop.f32.mrb[0].mxu0
        %v4643 = vadd.f32 0.0, %v4642
        %v4644 = vpop.f32.mrb[0].mxu0
        %4645 = vmatprep.mubr.f32.mxu0 0.0
        %4646 = vmatmul.mubr.f32.gmra.mrb[0].mxu0 %v2596
        %v4647 = vpop.f32.mrb[0].mxu0
        %v4648 = vadd.f32 0.0, %v4647
        %v4649 = vpop.f32.mrb[0].mxu0
        %4650 = vmatprep.mubr.f32.mxu0 0.0
        %4651 = vmatmul.mubr.f32.gmra.mrb[0].mxu0 %v2512
        %v4652 = vpop.f32.mrb[0].mxu0
        %v4653 = vadd.f32 0.0, %v4652
        %v4654 = vpop.f32.mrb[0].mxu0
        %4655 = vmatprep.mubr.f32.mxu0 0.0
        %4656 = vmatmul.mubr.f32.gmra.mrb[0].mxu0 %v2597
        %v4657 = vpop.f32.mrb[0].mxu0
        %v4658 = vadd.f32 0.0, %v4657
        %v4659 = vpop.f32.mrb[0].mxu0
        %4660 = vmatprep.mubr.f32.mxu0 0.0
        %4661 = vmatmul.mubr.f32.gmra.mrb[0].mxu0 %v2515
        %v4662 = vpop.f32.mrb[0].mxu0
        %v4663 = vadd.f32 0.0, %v4662
        %v4664 = vpop.f32.mrb[0].mxu0
        %4665 = vmatprep.mubr.f32.mxu0 0.0
        %4666 = vmatmul.mubr.f32.gmra.mrb[0].mxu0 %v2598
        %v4667 = vpop.f32.mrb[0].mxu0
        %v4668 = vadd.f32 0.0, %v4667
        %v4669 = vpop.f32.mrb[0].mxu0
        %4670 = vmatprep.mubr.f32.mxu0 0.0
        %4671 = vmatmul.mubr.f32.gmra.mrb[0].mxu0 %v2518
        %v4672 = vpop.f32.mrb[0].mxu0
        %v4673 = vadd.f32 0.0, %v4672
        %v4674 = vpop.f32.mrb[0].mxu0
        %4675 = vmatprep.mubr.f32.mxu0 0.0
        %4676 = vmatmul.mubr.f32.gmra.mrb[0].mxu0 %v2599
        %v4677 = vpop.f32.mrb[0].mxu0
        %v4678 = vadd.f32 0.0, %v4677
        %v4679 = vpop.f32.mrb[0].mxu0
        %4680 = vmatprep.mubr.f32.mxu0 0.0
        %4681 = vmatmul.mubr.f32.gmra.mrb[0].mxu0 %v2521
        %v4682 = vpop.f32.mrb[0].mxu0
        %v4683 = vadd.f32 0.0, %v4682
        %v4684 = vpop.f32.mrb[0].mxu0
        %4685 = vmatprep.mubr.f32.mxu0 0.0
        %4686 = vmatmul.mubr.f32.gmra.mrb[0].mxu0 %v2600
        %v4687 = vpop.f32.mrb[0].mxu0
        %v4688 = vadd.f32 0.0, %v4687
        %v4689 = vpop.f32.mrb[0].mxu0
        %4690 = vmatprep.mubr.f32.mxu0 0.0
        %4691 = vmatmul.mubr.f32.gmra.mrb[0].mxu0 %v2524
        %v4692 = vpop.f32.mrb[0].mxu0
        %v4693 = vadd.f32 0.0, %v4692
        %v4694 = vpop.f32.mrb[0].mxu0
        %4695 = vmatprep.mubr.f32.mxu0 0.0
        %4696 = vmatmul.mubr.f32.gmra.mrb[0].mxu0 %v2601
        %v4697 = vpop.f32.mrb[0].mxu0
        %v4698 = vadd.f32 0.0, %v4697
        %v4699 = vpop.f32.mrb[0].mxu0
        %4700 = vmatprep.mubr.f32.mxu0 0.0
        %4701 = vmatmul.mubr.f32.gmra.mrb[0].mxu0 %v2527
        %v4702 = vpop.f32.mrb[0].mxu0
        %v4703 = vadd.f32 0.0, %v4702
        %v4704 = vpop.f32.mrb[0].mxu0
        %4705 = vmatprep.mubr.f32.mxu0 0.0
        %4706 = vmatmul.mubr.f32.gmra.mrb[0].mxu0 %v2602
        %v4707 = vpop.f32.mrb[0].mxu0
        %v4708 = vadd.f32 0.0, %v4707
        %v4709 = vpop.f32.mrb[0].mxu0
        %4710 = vmatprep.mubr.f32.mxu0 0.0
        %4711 = vmatmul.mubr.f32.gmra.mrb[0].mxu0 %v2530
        %v4712 = vpop.f32.mrb[0].mxu0
        %v4713 = vadd.f32 0.0, %v4712
        %v4714 = vpop.f32.mrb[0].mxu0
        %4715 = vdwg.mxu0
        %v4716 = vadd.f32 %v4442, %v4558
        %v4717 = vadd.f32 %v4443, %v4563
        %v4718 = vadd.f32 %v4444, %v4568
        %v4719 = vadd.f32 %v4445, %v4573
        %v4720 = vadd.f32 %v4446, %v4578
        %v4721 = vadd.f32 %v4447, %v4583
        %v4722 = vadd.f32 %v4448, %v4588
        %v4723 = vadd.f32 %v4449, %v4593
        %v4724 = vadd.f32 %v4450, %v4598
        %v4725 = vadd.f32 %v4451, %v4603
        %v4726 = vadd.f32 %v4452, %v4608
        %v4727 = vadd.f32 %v4453, %v4613
        %v4728 = vadd.f32 %v4454, %v4618
        %v4729 = vadd.f32 %v4455, %v4623
        %v4730 = vadd.f32 %v4456, %v4628
        %v4731 = vadd.f32 %v4457, %v4633
        %v4732 = vadd.f32 %v4458, %v4638
        %v4733 = vadd.f32 %v4459, %v4643
        %v4734 = vadd.f32 %v4460, %v4648
        %v4735 = vadd.f32 %v4461, %v4653
        %v4736 = vadd.f32 %v4462, %v4658
        %v4737 = vadd.f32 %v4463, %v4663
        %v4738 = vadd.f32 %v4464, %v4668
        %v4739 = vadd.f32 %v4465, %v4673
        %v4740 = vadd.f32 %v4466, %v4678
        %v4741 = vadd.f32 %v4467, %v4683
        %v4742 = vadd.f32 %v4468, %v4688
        %v4743 = vadd.f32 %v4469, %v4693
        %v4744 = vadd.f32 %v4470, %v4698
        %v4745 = vadd.f32 %v4471, %v4703
        %v4746 = vadd.f32 %v4472, %v4708
        %v4747 = vadd.f32 %v4473, %v4713
        %s4748 = scalar_lea.vmem %s8, 896
        %v4749 = vld [vmem:[%s4748] sm:$0xff]
        %v4750 = vld [vmem:[%s4748 + $0x8] sm:$0xff]
        %v4751 = vld [vmem:[%s4748 + $0x10] sm:$0xff]
        %v4752 = vld [vmem:[%s4748 + $0x18] sm:$0xff]
        %v4753 = vld [vmem:[%s4748 + $0x20] sm:$0xff]
        %v4754 = vld [vmem:[%s4748 + $0x28] sm:$0xff]
        %v4755 = vld [vmem:[%s4748 + $0x30] sm:$0xff]
        %v4756 = vld [vmem:[%s4748 + $0x38] sm:$0xff]
        %v4757 = vld [vmem:[%s4748 + $0x40] sm:$0xff]
        %v4758 = vld [vmem:[%s4748 + $0x48] sm:$0xff]
        %v4759 = vld [vmem:[%s4748 + $0x50] sm:$0xff]
        %v4760 = vld [vmem:[%s4748 + $0x58] sm:$0xff]
        %v4761 = vld [vmem:[%s4748 + $0x60] sm:$0xff]
        %v4762 = vld [vmem:[%s4748 + $0x68] sm:$0xff]
        %v4763 = vld [vmem:[%s4748 + $0x70] sm:$0xff]
        %v4764 = vld [vmem:[%s4748 + $0x78] sm:$0xff]
        %v4767 = vrot.slane %v2602, 1
        %v4768 = vrot.slane %v2530, 1
        %v4769 = vsel %vm2686, %v4767, %v4768
        %v4770 = vrot.slane %v2620, 1
        %v4771 = vsel %vm2686, %v4768, %v4770
        %4774 = vmatprep.subr.mxu0 0.0
        %4775 = vmatpush1.msra.mxu0 %v4749
        %4776 = vmatprep.subr.mxu0 0.0
        %4777 = vmatpush1.msra.mxu0 %v4750
        %4778 = vmatprep.subr.mxu0 0.0
        %4779 = vmatpush1.msra.mxu0 %v4751
        %4780 = vmatprep.subr.mxu0 0.0
        %4781 = vmatpush1.msra.mxu0 %v4752
        %4782 = vmatprep.subr.mxu0 0.0
        %4783 = vmatpush1.msra.mxu0 %v4753
        %4784 = vmatprep.subr.mxu0 0.0
        %4785 = vmatpush1.msra.mxu0 %v4754
        %4786 = vmatprep.subr.mxu0 0.0
        %4787 = vmatpush1.msra.mxu0 %v4755
        %4788 = vmatprep.subr.mxu0 0.0
        %4789 = vmatpush1.msra.mxu0 %v4756
        %4790 = vmatprep.subr.mxu0 0.0
        %4791 = vmatpush1.msra.mxu0 %v4757
        %4792 = vmatprep.subr.mxu0 0.0
        %4793 = vmatpush1.msra.mxu0 %v4758
        %4794 = vmatprep.subr.mxu0 0.0
        %4795 = vmatpush1.msra.mxu0 %v4759
        %4796 = vmatprep.subr.mxu0 0.0
        %4797 = vmatpush1.msra.mxu0 %v4760
        %4798 = vmatprep.subr.mxu0 0.0
        %4799 = vmatpush1.msra.mxu0 %v4761
        %4800 = vmatprep.subr.mxu0 0.0
        %4801 = vmatpush1.msra.mxu0 %v4762
        %4802 = vmatprep.subr.mxu0 0.0
        %4803 = vmatpush1.msra.mxu0 %v4763
        %4804 = vmatprep.subr.mxu0 0.0
        %4805 = vmatpush1.msra.mxu0 %v4764
        %4806 = vmatprep.subr.mxu0 0.0
        %4807 = vmatpush1.msra.mxu0 0.0
        %4808 = vmatprep.subr.mxu0 0.0
        %4809 = vmatpush1.msra.mxu0 0.0
        %4810 = vmatprep.subr.mxu0 0.0
        %4811 = vmatpush1.msra.mxu0 0.0
        %4812 = vmatprep.subr.mxu0 0.0
        %4813 = vmatpush1.msra.mxu0 0.0
        %4814 = vmatprep.subr.mxu0 0.0
        %4815 = vmatpush1.msra.mxu0 0.0
        %4816 = vmatprep.subr.mxu0 0.0
        %4817 = vmatpush1.msra.mxu0 0.0
        %4818 = vmatprep.subr.mxu0 0.0
        %4819 = vmatpush1.msra.mxu0 0.0
        %4820 = vmatprep.subr.mxu0 0.0
        %4821 = vmatpush1.msra.mxu0 0.0
        %4822 = vmatprep.subr.mxu0 0.0
        %4823 = vmatpush1.msra.mxu0 0.0
        %4824 = vmatprep.subr.mxu0 0.0
        %4825 = vmatpush1.msra.mxu0 0.0
        %4826 = vmatprep.subr.mxu0 0.0
        %4827 = vmatpush1.msra.mxu0 0.0
        %4828 = vmatprep.subr.mxu0 0.0
        %4829 = vmatpush1.msra.mxu0 0.0
        %4830 = vmatprep.subr.mxu0 0.0
        %4831 = vmatpush1.msra.mxu0 0.0
        %4832 = vmatprep.subr.mxu0 0.0
        %4833 = vmatpush1.msra.mxu0 0.0
        %4834 = vmatprep.subr.mxu0 0.0
        %4835 = vmatpush1.msra.mxu0 0.0
        %4836 = vmatprep.subr.mxu0 0.0
        %4837 = vmatpush1.msra.mxu0 0.0
        %4838 = vmatprep.mubr.f32.mxu0 0.0
        %4839 = vmatmul.mubr.f32.gmra.mrb[0].mxu0 %v2699
        %v4840 = vpop.f32.mrb[0].mxu0
        %v4841 = vadd.f32 0.0, %v4840
        %v4842 = vpop.f32.mrb[0].mxu0
        %4843 = vmatprep.mubr.f32.mxu0 0.0
        %4844 = vmatmul.mubr.f32.gmra.mrb[0].mxu0 %v2701
        %v4845 = vpop.f32.mrb[0].mxu0
        %v4846 = vadd.f32 0.0, %v4845
        %v4847 = vpop.f32.mrb[0].mxu0
        %4848 = vmatprep.mubr.f32.mxu0 0.0
        %4849 = vmatmul.mubr.f32.gmra.mrb[0].mxu0 %v2704
        %v4850 = vpop.f32.mrb[0].mxu0
        %v4851 = vadd.f32 0.0, %v4850
        %v4852 = vpop.f32.mrb[0].mxu0
        %4853 = vmatprep.mubr.f32.mxu0 0.0
        %4854 = vmatmul.mubr.f32.gmra.mrb[0].mxu0 %v2706
        %v4855 = vpop.f32.mrb[0].mxu0
        %v4856 = vadd.f32 0.0, %v4855
        %v4857 = vpop.f32.mrb[0].mxu0
        %4858 = vmatprep.mubr.f32.mxu0 0.0
        %4859 = vmatmul.mubr.f32.gmra.mrb[0].mxu0 %v2709
        %v4860 = vpop.f32.mrb[0].mxu0
        %v4861 = vadd.f32 0.0, %v4860
        %v4862 = vpop.f32.mrb[0].mxu0
        %4863 = vmatprep.mubr.f32.mxu0 0.0
        %4864 = vmatmul.mubr.f32.gmra.mrb[0].mxu0 %v2711
        %v4865 = vpop.f32.mrb[0].mxu0
        %v4866 = vadd.f32 0.0, %v4865
        %v4867 = vpop.f32.mrb[0].mxu0
        %4868 = vmatprep.mubr.f32.mxu0 0.0
        %4869 = vmatmul.mubr.f32.gmra.mrb[0].mxu0 %v2714
        %v4870 = vpop.f32.mrb[0].mxu0
        %v4871 = vadd.f32 0.0, %v4870
        %v4872 = vpop.f32.mrb[0].mxu0
        %4873 = vmatprep.mubr.f32.mxu0 0.0
        %4874 = vmatmul.mubr.f32.gmra.mrb[0].mxu0 %v2716
        %v4875 = vpop.f32.mrb[0].mxu0
        %v4876 = vadd.f32 0.0, %v4875
        %v4877 = vpop.f32.mrb[0].mxu0
        %4878 = vmatprep.mubr.f32.mxu0 0.0
        %4879 = vmatmul.mubr.f32.gmra.mrb[0].mxu0 %v2719
        %v4880 = vpop.f32.mrb[0].mxu0
        %v4881 = vadd.f32 0.0, %v4880
        %v4882 = vpop.f32.mrb[0].mxu0
        %4883 = vmatprep.mubr.f32.mxu0 0.0
        %4884 = vmatmul.mubr.f32.gmra.mrb[0].mxu0 %v2721
        %v4885 = vpop.f32.mrb[0].mxu0
        %v4886 = vadd.f32 0.0, %v4885
        %v4887 = vpop.f32.mrb[0].mxu0
        %4888 = vmatprep.mubr.f32.mxu0 0.0
        %4889 = vmatmul.mubr.f32.gmra.mrb[0].mxu0 %v2724
        %v4890 = vpop.f32.mrb[0].mxu0
        %v4891 = vadd.f32 0.0, %v4890
        %v4892 = vpop.f32.mrb[0].mxu0
        %4893 = vmatprep.mubr.f32.mxu0 0.0
        %4894 = vmatmul.mubr.f32.gmra.mrb[0].mxu0 %v2726
        %v4895 = vpop.f32.mrb[0].mxu0
        %v4896 = vadd.f32 0.0, %v4895
        %v4897 = vpop.f32.mrb[0].mxu0
        %4898 = vmatprep.mubr.f32.mxu0 0.0
        %4899 = vmatmul.mubr.f32.gmra.mrb[0].mxu0 %v2729
        %v4900 = vpop.f32.mrb[0].mxu0
        %v4901 = vadd.f32 0.0, %v4900
        %v4902 = vpop.f32.mrb[0].mxu0
        %4903 = vmatprep.mubr.f32.mxu0 0.0
        %4904 = vmatmul.mubr.f32.gmra.mrb[0].mxu0 %v2731
        %v4905 = vpop.f32.mrb[0].mxu0
        %v4906 = vadd.f32 0.0, %v4905
        %v4907 = vpop.f32.mrb[0].mxu0
        %4908 = vmatprep.mubr.f32.mxu0 0.0
        %4909 = vmatmul.mubr.f32.gmra.mrb[0].mxu0 %v2734
        %v4910 = vpop.f32.mrb[0].mxu0
        %v4911 = vadd.f32 0.0, %v4910
        %v4912 = vpop.f32.mrb[0].mxu0
        %4913 = vmatprep.mubr.f32.mxu0 0.0
        %4914 = vmatmul.mubr.f32.gmra.mrb[0].mxu0 %v2736
        %v4915 = vpop.f32.mrb[0].mxu0
        %v4916 = vadd.f32 0.0, %v4915
        %v4917 = vpop.f32.mrb[0].mxu0
        %4918 = vmatprep.mubr.f32.mxu0 0.0
        %4919 = vmatmul.mubr.f32.gmra.mrb[0].mxu0 %v2739
        %v4920 = vpop.f32.mrb[0].mxu0
        %v4921 = vadd.f32 0.0, %v4920
        %v4922 = vpop.f32.mrb[0].mxu0
        %4923 = vmatprep.mubr.f32.mxu0 0.0
        %4924 = vmatmul.mubr.f32.gmra.mrb[0].mxu0 %v2741
        %v4925 = vpop.f32.mrb[0].mxu0
        %v4926 = vadd.f32 0.0, %v4925
        %v4927 = vpop.f32.mrb[0].mxu0
        %4928 = vmatprep.mubr.f32.mxu0 0.0
        %4929 = vmatmul.mubr.f32.gmra.mrb[0].mxu0 %v2744
        %v4930 = vpop.f32.mrb[0].mxu0
        %v4931 = vadd.f32 0.0, %v4930
        %v4932 = vpop.f32.mrb[0].mxu0
        %4933 = vmatprep.mubr.f32.mxu0 0.0
        %4934 = vmatmul.mubr.f32.gmra.mrb[0].mxu0 %v2746
        %v4935 = vpop.f32.mrb[0].mxu0
        %v4936 = vadd.f32 0.0, %v4935
        %v4937 = vpop.f32.mrb[0].mxu0
        %4938 = vmatprep.mubr.f32.mxu0 0.0
        %4939 = vmatmul.mubr.f32.gmra.mrb[0].mxu0 %v2749
        %v4940 = vpop.f32.mrb[0].mxu0
        %v4941 = vadd.f32 0.0, %v4940
        %v4942 = vpop.f32.mrb[0].mxu0
        %4943 = vmatprep.mubr.f32.mxu0 0.0
        %4944 = vmatmul.mubr.f32.gmra.mrb[0].mxu0 %v2751
        %v4945 = vpop.f32.mrb[0].mxu0
        %v4946 = vadd.f32 0.0, %v4945
        %v4947 = vpop.f32.mrb[0].mxu0
        %4948 = vmatprep.mubr.f32.mxu0 0.0
        %4949 = vmatmul.mubr.f32.gmra.mrb[0].mxu0 %v2754
        %v4950 = vpop.f32.mrb[0].mxu0
        %v4951 = vadd.f32 0.0, %v4950
        %v4952 = vpop.f32.mrb[0].mxu0
        %4953 = vmatprep.mubr.f32.mxu0 0.0
        %4954 = vmatmul.mubr.f32.gmra.mrb[0].mxu0 %v2756
        %v4955 = vpop.f32.mrb[0].mxu0
        %v4956 = vadd.f32 0.0, %v4955
        %v4957 = vpop.f32.mrb[0].mxu0
        %4958 = vmatprep.mubr.f32.mxu0 0.0
        %4959 = vmatmul.mubr.f32.gmra.mrb[0].mxu0 %v2759
        %v4960 = vpop.f32.mrb[0].mxu0
        %v4961 = vadd.f32 0.0, %v4960
        %v4962 = vpop.f32.mrb[0].mxu0
        %4963 = vmatprep.mubr.f32.mxu0 0.0
        %4964 = vmatmul.mubr.f32.gmra.mrb[0].mxu0 %v2761
        %v4965 = vpop.f32.mrb[0].mxu0
        %v4966 = vadd.f32 0.0, %v4965
        %v4967 = vpop.f32.mrb[0].mxu0
        %4968 = vmatprep.mubr.f32.mxu0 0.0
        %4969 = vmatmul.mubr.f32.gmra.mrb[0].mxu0 %v2764
        %v4970 = vpop.f32.mrb[0].mxu0
        %v4971 = vadd.f32 0.0, %v4970
        %v4972 = vpop.f32.mrb[0].mxu0
        %4973 = vmatprep.mubr.f32.mxu0 0.0
        %4974 = vmatmul.mubr.f32.gmra.mrb[0].mxu0 %v2766
        %v4975 = vpop.f32.mrb[0].mxu0
        %v4976 = vadd.f32 0.0, %v4975
        %v4977 = vpop.f32.mrb[0].mxu0
        %4978 = vmatprep.mubr.f32.mxu0 0.0
        %4979 = vmatmul.mubr.f32.gmra.mrb[0].mxu0 %v3931
        %v4980 = vpop.f32.mrb[0].mxu0
        %v4981 = vadd.f32 0.0, %v4980
        %v4982 = vpop.f32.mrb[0].mxu0
        %4983 = vmatprep.mubr.f32.mxu0 0.0
        %4984 = vmatmul.mubr.f32.gmra.mrb[0].mxu0 %v3933
        %v4985 = vpop.f32.mrb[0].mxu0
        %v4986 = vadd.f32 0.0, %v4985
        %v4987 = vpop.f32.mrb[0].mxu0
        %4988 = vmatprep.mubr.f32.mxu0 0.0
        %4989 = vmatmul.mubr.f32.gmra.mrb[0].mxu0 %v4769
        %v4990 = vpop.f32.mrb[0].mxu0
        %v4991 = vadd.f32 0.0, %v4990
        %v4992 = vpop.f32.mrb[0].mxu0
        %4993 = vmatprep.mubr.f32.mxu0 0.0
        %4994 = vmatmul.mubr.f32.gmra.mrb[0].mxu0 %v4771
        %v4995 = vpop.f32.mrb[0].mxu0
        %v4996 = vadd.f32 0.0, %v4995
        %v4997 = vpop.f32.mrb[0].mxu0
        %4998 = vdwg.mxu0
        %v4999 = vadd.f32 %v4716, %v4841
        %v5000 = vadd.f32 %v4717, %v4846
        %v5001 = vadd.f32 %v4718, %v4851
        %v5002 = vadd.f32 %v4719, %v4856
        %v5003 = vadd.f32 %v4720, %v4861
        %v5004 = vadd.f32 %v4721, %v4866
        %v5005 = vadd.f32 %v4722, %v4871
        %v5006 = vadd.f32 %v4723, %v4876
        %v5007 = vadd.f32 %v4724, %v4881
        %v5008 = vadd.f32 %v4725, %v4886
        %v5009 = vadd.f32 %v4726, %v4891
        %v5010 = vadd.f32 %v4727, %v4896
        %v5011 = vadd.f32 %v4728, %v4901
        %v5012 = vadd.f32 %v4729, %v4906
        %v5013 = vadd.f32 %v4730, %v4911
        %v5014 = vadd.f32 %v4731, %v4916
        %v5015 = vadd.f32 %v4732, %v4921
        %v5016 = vadd.f32 %v4733, %v4926
        %v5017 = vadd.f32 %v4734, %v4931
        %v5018 = vadd.f32 %v4735, %v4936
        %v5019 = vadd.f32 %v4736, %v4941
        %v5020 = vadd.f32 %v4737, %v4946
        %v5021 = vadd.f32 %v4738, %v4951
        %v5022 = vadd.f32 %v4739, %v4956
        %v5023 = vadd.f32 %v4740, %v4961
        %v5024 = vadd.f32 %v4741, %v4966
        %v5025 = vadd.f32 %v4742, %v4971
        %v5026 = vadd.f32 %v4743, %v4976
        %v5027 = vadd.f32 %v4744, %v4981
        %v5028 = vadd.f32 %v4745, %v4986
        %v5029 = vadd.f32 %v4746, %v4991
        %v5030 = vadd.f32 %v4747, %v4996
        %s5031 = scalar_lea.vmem %s8, 1024
        %v5032 = vld [vmem:[%s5031] sm:$0xff]
        %v5033 = vld [vmem:[%s5031 + $0x8] sm:$0xff]
        %v5034 = vld [vmem:[%s5031 + $0x10] sm:$0xff]
        %v5035 = vld [vmem:[%s5031 + $0x18] sm:$0xff]
        %v5036 = vld [vmem:[%s5031 + $0x20] sm:$0xff]
        %v5037 = vld [vmem:[%s5031 + $0x28] sm:$0xff]
        %v5038 = vld [vmem:[%s5031 + $0x30] sm:$0xff]
        %v5039 = vld [vmem:[%s5031 + $0x38] sm:$0xff]
        %v5040 = vld [vmem:[%s5031 + $0x40] sm:$0xff]
        %v5041 = vld [vmem:[%s5031 + $0x48] sm:$0xff]
        %v5042 = vld [vmem:[%s5031 + $0x50] sm:$0xff]
        %v5043 = vld [vmem:[%s5031 + $0x58] sm:$0xff]
        %v5044 = vld [vmem:[%s5031 + $0x60] sm:$0xff]
        %v5045 = vld [vmem:[%s5031 + $0x68] sm:$0xff]
        %v5046 = vld [vmem:[%s5031 + $0x70] sm:$0xff]
        %v5047 = vld [vmem:[%s5031 + $0x78] sm:$0xff]
        %v5048 = vrot.slane %v2602, 2
        %v5049 = vrot.slane %v2530, 2
        %v5050 = vsel %vm3266, %v5048, %v5049
        %v5051 = vrot.slane %v2620, 2
        %v5052 = vsel %vm3266, %v5049, %v5051
        %5055 = vmatprep.subr.mxu0 0.0
        %5056 = vmatpush1.msra.mxu0 %v5032
        %5057 = vmatprep.subr.mxu0 0.0
        %5058 = vmatpush1.msra.mxu0 %v5033
        %5059 = vmatprep.subr.mxu0 0.0
        %5060 = vmatpush1.msra.mxu0 %v5034
        %5061 = vmatprep.subr.mxu0 0.0
        %5062 = vmatpush1.msra.mxu0 %v5035
        %5063 = vmatprep.subr.mxu0 0.0
        %5064 = vmatpush1.msra.mxu0 %v5036
        %5065 = vmatprep.subr.mxu0 0.0
        %5066 = vmatpush1.msra.mxu0 %v5037
        %5067 = vmatprep.subr.mxu0 0.0
        %5068 = vmatpush1.msra.mxu0 %v5038
        %5069 = vmatprep.subr.mxu0 0.0
        %5070 = vmatpush1.msra.mxu0 %v5039
        %5071 = vmatprep.subr.mxu0 0.0
        %5072 = vmatpush1.msra.mxu0 %v5040
        %5073 = vmatprep.subr.mxu0 0.0
        %5074 = vmatpush1.msra.mxu0 %v5041
        %5075 = vmatprep.subr.mxu0 0.0
        %5076 = vmatpush1.msra.mxu0 %v5042
        %5077 = vmatprep.subr.mxu0 0.0
        %5078 = vmatpush1.msra.mxu0 %v5043
        %5079 = vmatprep.subr.mxu0 0.0
        %5080 = vmatpush1.msra.mxu0 %v5044
        %5081 = vmatprep.subr.mxu0 0.0
        %5082 = vmatpush1.msra.mxu0 %v5045
        %5083 = vmatprep.subr.mxu0 0.0
        %5084 = vmatpush1.msra.mxu0 %v5046
        %5085 = vmatprep.subr.mxu0 0.0
        %5086 = vmatpush1.msra.mxu0 %v5047
        %5087 = vmatprep.subr.mxu0 0.0
        %5088 = vmatpush1.msra.mxu0 0.0
        %5089 = vmatprep.subr.mxu0 0.0
        %5090 = vmatpush1.msra.mxu0 0.0
        %5091 = vmatprep.subr.mxu0 0.0
        %5092 = vmatpush1.msra.mxu0 0.0
        %5093 = vmatprep.subr.mxu0 0.0
        %5094 = vmatpush1.msra.mxu0 0.0
        %5095 = vmatprep.subr.mxu0 0.0
        %5096 = vmatpush1.msra.mxu0 0.0
        %5097 = vmatprep.subr.mxu0 0.0
        %5098 = vmatpush1.msra.mxu0 0.0
        %5099 = vmatprep.subr.mxu0 0.0
        %5100 = vmatpush1.msra.mxu0 0.0
        %5101 = vmatprep.subr.mxu0 0.0
        %5102 = vmatpush1.msra.mxu0 0.0
        %5103 = vmatprep.subr.mxu0 0.0
        %5104 = vmatpush1.msra.mxu0 0.0
        %5105 = vmatprep.subr.mxu0 0.0
        %5106 = vmatpush1.msra.mxu0 0.0
        %5107 = vmatprep.subr.mxu0 0.0
        %5108 = vmatpush1.msra.mxu0 0.0
        %5109 = vmatprep.subr.mxu0 0.0
        %5110 = vmatpush1.msra.mxu0 0.0
        %5111 = vmatprep.subr.mxu0 0.0
        %5112 = vmatpush1.msra.mxu0 0.0
        %5113 = vmatprep.subr.mxu0 0.0
        %5114 = vmatpush1.msra.mxu0 0.0
        %5115 = vmatprep.subr.mxu0 0.0
        %5116 = vmatpush1.msra.mxu0 0.0
        %5117 = vmatprep.subr.mxu0 0.0
        %5118 = vmatpush1.msra.mxu0 0.0
        %5119 = vmatprep.mubr.f32.mxu0 0.0
        %5120 = vmatmul.mubr.f32.gmra.mrb[0].mxu0 %v3279
        %v5121 = vpop.f32.mrb[0].mxu0
        %v5122 = vadd.f32 0.0, %v5121
        %v5123 = vpop.f32.mrb[0].mxu0
        %5124 = vmatprep.mubr.f32.mxu0 0.0
        %5125 = vmatmul.mubr.f32.gmra.mrb[0].mxu0 %v3281
        %v5126 = vpop.f32.mrb[0].mxu0
        %v5127 = vadd.f32 0.0, %v5126
        %v5128 = vpop.f32.mrb[0].mxu0
        %5129 = vmatprep.mubr.f32.mxu0 0.0
        %5130 = vmatmul.mubr.f32.gmra.mrb[0].mxu0 %v3284
        %v5131 = vpop.f32.mrb[0].mxu0
        %v5132 = vadd.f32 0.0, %v5131
        %v5133 = vpop.f32.mrb[0].mxu0
        %5134 = vmatprep.mubr.f32.mxu0 0.0
        %5135 = vmatmul.mubr.f32.gmra.mrb[0].mxu0 %v3286
        %v5136 = vpop.f32.mrb[0].mxu0
        %v5137 = vadd.f32 0.0, %v5136
        %v5138 = vpop.f32.mrb[0].mxu0
        %5139 = vmatprep.mubr.f32.mxu0 0.0
        %5140 = vmatmul.mubr.f32.gmra.mrb[0].mxu0 %v3289
        %v5141 = vpop.f32.mrb[0].mxu0
        %v5142 = vadd.f32 0.0, %v5141
        %v5143 = vpop.f32.mrb[0].mxu0
        %5144 = vmatprep.mubr.f32.mxu0 0.0
        %5145 = vmatmul.mubr.f32.gmra.mrb[0].mxu0 %v3291
        %v5146 = vpop.f32.mrb[0].mxu0
        %v5147 = vadd.f32 0.0, %v5146
        %v5148 = vpop.f32.mrb[0].mxu0
        %5149 = vmatprep.mubr.f32.mxu0 0.0
        %5150 = vmatmul.mubr.f32.gmra.mrb[0].mxu0 %v3294
        %v5151 = vpop.f32.mrb[0].mxu0
        %v5152 = vadd.f32 0.0, %v5151
        %v5153 = vpop.f32.mrb[0].mxu0
        %5154 = vmatprep.mubr.f32.mxu0 0.0
        %5155 = vmatmul.mubr.f32.gmra.mrb[0].mxu0 %v3296
        %v5156 = vpop.f32.mrb[0].mxu0
        %v5157 = vadd.f32 0.0, %v5156
        %v5158 = vpop.f32.mrb[0].mxu0
        %5159 = vmatprep.mubr.f32.mxu0 0.0
        %5160 = vmatmul.mubr.f32.gmra.mrb[0].mxu0 %v3299
        %v5161 = vpop.f32.mrb[0].mxu0
        %v5162 = vadd.f32 0.0, %v5161
        %v5163 = vpop.f32.mrb[0].mxu0
        %5164 = vmatprep.mubr.f32.mxu0 0.0
        %5165 = vmatmul.mubr.f32.gmra.mrb[0].mxu0 %v3301
        %v5166 = vpop.f32.mrb[0].mxu0
        %v5167 = vadd.f32 0.0, %v5166
        %v5168 = vpop.f32.mrb[0].mxu0
        %5169 = vmatprep.mubr.f32.mxu0 0.0
        %5170 = vmatmul.mubr.f32.gmra.mrb[0].mxu0 %v3304
        %v5171 = vpop.f32.mrb[0].mxu0
        %v5172 = vadd.f32 0.0, %v5171
        %v5173 = vpop.f32.mrb[0].mxu0
        %5174 = vmatprep.mubr.f32.mxu0 0.0
        %5175 = vmatmul.mubr.f32.gmra.mrb[0].mxu0 %v3306
        %v5176 = vpop.f32.mrb[0].mxu0
        %v5177 = vadd.f32 0.0, %v5176
        %v5178 = vpop.f32.mrb[0].mxu0
        %5179 = vmatprep.mubr.f32.mxu0 0.0
        %5180 = vmatmul.mubr.f32.gmra.mrb[0].mxu0 %v3309
        %v5181 = vpop.f32.mrb[0].mxu0
        %v5182 = vadd.f32 0.0, %v5181
        %v5183 = vpop.f32.mrb[0].mxu0
        %5184 = vmatprep.mubr.f32.mxu0 0.0
        %5185 = vmatmul.mubr.f32.gmra.mrb[0].mxu0 %v3311
        %v5186 = vpop.f32.mrb[0].mxu0
        %v5187 = vadd.f32 0.0, %v5186
        %v5188 = vpop.f32.mrb[0].mxu0
        %5189 = vmatprep.mubr.f32.mxu0 0.0
        %5190 = vmatmul.mubr.f32.gmra.mrb[0].mxu0 %v3314
        %v5191 = vpop.f32.mrb[0].mxu0
        %v5192 = vadd.f32 0.0, %v5191
        %v5193 = vpop.f32.mrb[0].mxu0
        %5194 = vmatprep.mubr.f32.mxu0 0.0
        %5195 = vmatmul.mubr.f32.gmra.mrb[0].mxu0 %v3316
        %v5196 = vpop.f32.mrb[0].mxu0
        %v5197 = vadd.f32 0.0, %v5196
        %v5198 = vpop.f32.mrb[0].mxu0
        %5199 = vmatprep.mubr.f32.mxu0 0.0
        %5200 = vmatmul.mubr.f32.gmra.mrb[0].mxu0 %v3319
        %v5201 = vpop.f32.mrb[0].mxu0
        %v5202 = vadd.f32 0.0, %v5201
        %v5203 = vpop.f32.mrb[0].mxu0
        %5204 = vmatprep.mubr.f32.mxu0 0.0
        %5205 = vmatmul.mubr.f32.gmra.mrb[0].mxu0 %v3321
        %v5206 = vpop.f32.mrb[0].mxu0
        %v5207 = vadd.f32 0.0, %v5206
        %v5208 = vpop.f32.mrb[0].mxu0
        %5209 = vmatprep.mubr.f32.mxu0 0.0
        %5210 = vmatmul.mubr.f32.gmra.mrb[0].mxu0 %v3324
        %v5211 = vpop.f32.mrb[0].mxu0
        %v5212 = vadd.f32 0.0, %v5211
        %v5213 = vpop.f32.mrb[0].mxu0
        %5214 = vmatprep.mubr.f32.mxu0 0.0
        %5215 = vmatmul.mubr.f32.gmra.mrb[0].mxu0 %v3326
        %v5216 = vpop.f32.mrb[0].mxu0
        %v5217 = vadd.f32 0.0, %v5216
        %v5218 = vpop.f32.mrb[0].mxu0
        %5219 = vmatprep.mubr.f32.mxu0 0.0
        %5220 = vmatmul.mubr.f32.gmra.mrb[0].mxu0 %v3329
        %v5221 = vpop.f32.mrb[0].mxu0
        %v5222 = vadd.f32 0.0, %v5221
        %v5223 = vpop.f32.mrb[0].mxu0
        %5224 = vmatprep.mubr.f32.mxu0 0.0
        %5225 = vmatmul.mubr.f32.gmra.mrb[0].mxu0 %v3331
        %v5226 = vpop.f32.mrb[0].mxu0
        %v5227 = vadd.f32 0.0, %v5226
        %v5228 = vpop.f32.mrb[0].mxu0
        %5229 = vmatprep.mubr.f32.mxu0 0.0
        %5230 = vmatmul.mubr.f32.gmra.mrb[0].mxu0 %v3334
        %v5231 = vpop.f32.mrb[0].mxu0
        %v5232 = vadd.f32 0.0, %v5231
        %v5233 = vpop.f32.mrb[0].mxu0
        %5234 = vmatprep.mubr.f32.mxu0 0.0
        %5235 = vmatmul.mubr.f32.gmra.mrb[0].mxu0 %v3336
        %v5236 = vpop.f32.mrb[0].mxu0
        %v5237 = vadd.f32 0.0, %v5236
        %v5238 = vpop.f32.mrb[0].mxu0
        %5239 = vmatprep.mubr.f32.mxu0 0.0
        %5240 = vmatmul.mubr.f32.gmra.mrb[0].mxu0 %v3339
        %v5241 = vpop.f32.mrb[0].mxu0
        %v5242 = vadd.f32 0.0, %v5241
        %v5243 = vpop.f32.mrb[0].mxu0
        %5244 = vmatprep.mubr.f32.mxu0 0.0
        %5245 = vmatmul.mubr.f32.gmra.mrb[0].mxu0 %v3341
        %v5246 = vpop.f32.mrb[0].mxu0
        %v5247 = vadd.f32 0.0, %v5246
        %v5248 = vpop.f32.mrb[0].mxu0
        %5249 = vmatprep.mubr.f32.mxu0 0.0
        %5250 = vmatmul.mubr.f32.gmra.mrb[0].mxu0 %v3344
        %v5251 = vpop.f32.mrb[0].mxu0
        %v5252 = vadd.f32 0.0, %v5251
        %v5253 = vpop.f32.mrb[0].mxu0
        %5254 = vmatprep.mubr.f32.mxu0 0.0
        %5255 = vmatmul.mubr.f32.gmra.mrb[0].mxu0 %v3346
        %v5256 = vpop.f32.mrb[0].mxu0
        %v5257 = vadd.f32 0.0, %v5256
        %v5258 = vpop.f32.mrb[0].mxu0
        %5259 = vmatprep.mubr.f32.mxu0 0.0
        %5260 = vmatmul.mubr.f32.gmra.mrb[0].mxu0 %v4212
        %v5261 = vpop.f32.mrb[0].mxu0
        %v5262 = vadd.f32 0.0, %v5261
        %v5263 = vpop.f32.mrb[0].mxu0
        %5264 = vmatprep.mubr.f32.mxu0 0.0
        %5265 = vmatmul.mubr.f32.gmra.mrb[0].mxu0 %v4214
        %v5266 = vpop.f32.mrb[0].mxu0
        %v5267 = vadd.f32 0.0, %v5266
        %v5268 = vpop.f32.mrb[0].mxu0
        %5269 = vmatprep.mubr.f32.mxu0 0.0
        %5270 = vmatmul.mubr.f32.gmra.mrb[0].mxu0 %v5050
        %v5271 = vpop.f32.mrb[0].mxu0
        %v5272 = vadd.f32 0.0, %v5271
        %v5273 = vpop.f32.mrb[0].mxu0
        %5274 = vmatprep.mubr.f32.mxu0 0.0
        %5275 = vmatmul.mubr.f32.gmra.mrb[0].mxu0 %v5052
        %v5276 = vpop.f32.mrb[0].mxu0
        %v5277 = vadd.f32 0.0, %v5276
        %v5278 = vpop.f32.mrb[0].mxu0
        %5279 = vdwg.mxu0
        %v5280 = vadd.f32 %v4999, %v5122
        %v5281 = vadd.f32 %v5000, %v5127
        %v5282 = vadd.f32 %v5001, %v5132
        %v5283 = vadd.f32 %v5002, %v5137
        %v5284 = vadd.f32 %v5003, %v5142
        %v5285 = vadd.f32 %v5004, %v5147
        %v5286 = vadd.f32 %v5005, %v5152
        %v5287 = vadd.f32 %v5006, %v5157
        %v5288 = vadd.f32 %v5007, %v5162
        %v5289 = vadd.f32 %v5008, %v5167
        %v5290 = vadd.f32 %v5009, %v5172
        %v5291 = vadd.f32 %v5010, %v5177
        %v5292 = vadd.f32 %v5011, %v5182
        %v5293 = vadd.f32 %v5012, %v5187
        %v5294 = vadd.f32 %v5013, %v5192
        %v5295 = vadd.f32 %v5014, %v5197
        %v5296 = vadd.f32 %v5015, %v5202
        %v5297 = vadd.f32 %v5016, %v5207
        %v5298 = vadd.f32 %v5017, %v5212
        %v5299 = vadd.f32 %v5018, %v5217
        %v5300 = vadd.f32 %v5019, %v5222
        %v5301 = vadd.f32 %v5020, %v5227
        %v5302 = vadd.f32 %v5021, %v5232
        %v5303 = vadd.f32 %v5022, %v5237
        %v5304 = vadd.f32 %v5023, %v5242
        %v5305 = vadd.f32 %v5024, %v5247
        %v5306 = vadd.f32 %v5025, %v5252
        %v5307 = vadd.f32 %v5026, %v5257
        %v5308 = vadd.f32 %v5027, %v5262
        %v5309 = vadd.f32 %v5028, %v5267
        %v5310 = vadd.f32 %v5029, %v5272
        %v5311 = vadd.f32 %v5030, %v5277
        %v5313 = vlaneseq
        %v5314 = vshrl.u32 %v5313, 7
        %v5315 = vsub.s32 0, %v5314
        %v5316 = vrot.slane %v675, %v5315
        %v5318 = vadd.f32 %v5280, %v5316
        %v5319 = vadd.f32 %v5281, %v5316
        %v5320 = vadd.f32 %v5282, %v5316
        %v5321 = vadd.f32 %v5283, %v5316
        %v5322 = vadd.f32 %v5284, %v5316
        %v5323 = vadd.f32 %v5285, %v5316
        %v5324 = vadd.f32 %v5286, %v5316
        %v5325 = vadd.f32 %v5287, %v5316
        %v5326 = vadd.f32 %v5288, %v5316
        %v5327 = vadd.f32 %v5289, %v5316
        %v5328 = vadd.f32 %v5290, %v5316
        %v5329 = vadd.f32 %v5291, %v5316
        %v5330 = vadd.f32 %v5292, %v5316
        %v5331 = vadd.f32 %v5293, %v5316
        %v5332 = vadd.f32 %v5294, %v5316
        %v5333 = vadd.f32 %v5295, %v5316
        %v5334 = vadd.f32 %v5296, %v5316
        %v5335 = vadd.f32 %v5297, %v5316
        %v5336 = vadd.f32 %v5298, %v5316
        %v5337 = vadd.f32 %v5299, %v5316
        %v5338 = vadd.f32 %v5300, %v5316
        %v5339 = vadd.f32 %v5301, %v5316
        %v5340 = vadd.f32 %v5302, %v5316
        %v5341 = vadd.f32 %v5303, %v5316
        %v5342 = vadd.f32 %v5304, %v5316
        %v5343 = vadd.f32 %v5305, %v5316
        %v5344 = vadd.f32 %v5306, %v5316
        %v5345 = vadd.f32 %v5307, %v5316
        %v5346 = vadd.f32 %v5308, %v5316
        %v5347 = vadd.f32 %v5309, %v5316
        %v5348 = vadd.f32 %v5310, %v5316
        %v5349 = vadd.f32 %v5311, %v5316
        %5350 = vst [vmem:[%s581] sm:$0xff] %v5318
        %5351 = vst [vmem:[%s581 + $0x8] sm:$0xff] %v5319
        %5352 = vst [vmem:[%s581 + $0x10] sm:$0xff] %v5320
        %5353 = vst [vmem:[%s581 + $0x18] sm:$0xff] %v5321
        %5354 = vst [vmem:[%s581 + $0x20] sm:$0xff] %v5322
        %5355 = vst [vmem:[%s581 + $0x28] sm:$0xff] %v5323
        %5356 = vst [vmem:[%s581 + $0x30] sm:$0xff] %v5324
        %5357 = vst [vmem:[%s581 + $0x38] sm:$0xff] %v5325
        %5358 = vst [vmem:[%s581 + $0x40] sm:$0xff] %v5326
        %5359 = vst [vmem:[%s581 + $0x48] sm:$0xff] %v5327
        %5360 = vst [vmem:[%s581 + $0x50] sm:$0xff] %v5328
        %5361 = vst [vmem:[%s581 + $0x58] sm:$0xff] %v5329
        %5362 = vst [vmem:[%s581 + $0x60] sm:$0xff] %v5330
        %5363 = vst [vmem:[%s581 + $0x68] sm:$0xff] %v5331
        %5364 = vst [vmem:[%s581 + $0x70] sm:$0xff] %v5332
        %5365 = vst [vmem:[%s581 + $0x78] sm:$0xff] %v5333
        %5366 = vst [vmem:[%s581 + $0x80] sm:$0xff] %v5334
        %5367 = vst [vmem:[%s581 + $0x88] sm:$0xff] %v5335
        %5368 = vst [vmem:[%s581 + $0x90] sm:$0xff] %v5336
        %5369 = vst [vmem:[%s581 + $0x98] sm:$0xff] %v5337
        %5370 = vst [vmem:[%s581 + $0xa0] sm:$0xff] %v5338
        %5371 = vst [vmem:[%s581 + $0xa8] sm:$0xff] %v5339
        %5372 = vst [vmem:[%s581 + $0xb0] sm:$0xff] %v5340
        %5373 = vst [vmem:[%s581 + $0xb8] sm:$0xff] %v5341
        %5374 = vst [vmem:[%s581 + $0xc0] sm:$0xff] %v5342
        %5375 = vst [vmem:[%s581 + $0xc8] sm:$0xff] %v5343
        %5376 = vst [vmem:[%s581 + $0xd0] sm:$0xff] %v5344
        %5377 = vst [vmem:[%s581 + $0xd8] sm:$0xff] %v5345
        %5378 = vst [vmem:[%s581 + $0xe0] sm:$0xff] %v5346
        %5379 = vst [vmem:[%s581 + $0xe8] sm:$0xff] %v5347
        %5380 = vst [vmem:[%s581 + $0xf0] sm:$0xff] %v5348
        %5381 = vst [vmem:[%s581 + $0xf8] sm:$0xff] %v5349
        %s5382 = sand.u32 %s330, 1
        %s5383 = scalar_lea.sflag [#allocation3], %s5382
        %s5384 = sand.u32 %s330, 1
        %s5385 = smul.addr %s5384, 256
        %s5386 = scalar_lea.vmem [#allocation2], %s5385
        // Predicated region
        $region61: #{decoder_forward.5} parent=59 // pred_check
          %p5387 = pneg %p340
        $region62: #{decoder_forward.5} parent=59 // pred_check_branch
          %5389 = sbr.rel (%p5387) target = $region64
        $region63: #{decoder_forward.5} parent=59 // pred_region
          %s5390 = smul.u32 16, %s29
          %s5392 = ssub.s32 4096, 4096
          %5393 = vsyncadd %s5383, %s5392
          %s5394 = smul.addr %s5390, 2
          %s5395 = smul.addr %s28, 32
          %s5396 = sadd.s32 %s5394, %s5395
          %s5397 = smul.addr %s5396, 128
          %s5398 = scalar_lea.hbm %s10, %s5397
          %s5399 = sshll.u32 %s5386, 4
          %s5400 = int_to_ptr.vmem [resolvable:$true] %s5399
          %5405 = dma.vmem_to_hbm [thread:$0]  %s5400, 4096, %s5398, %s5383, 128, 128, 8
        $region64: #{decoder_forward.5} parent=59 // pred_fallthru
          _
      $region60: #{decoder_forward.5} parent=5 // pred_fallthru
        _
      %p5406 = scmp.le.s32.totalorder 2, %s19
      // Predicated region
      $region65: #{decoder_forward.5} parent=5 // pred_check
        %p5407 = pneg %p5406
      $region66: #{decoder_forward.5} parent=5 // pred_check_branch
        %5409 = sbr.rel (%p5407) target = $region68
      $region67: #{decoder_forward.5} parent=5 // pred_region
        %s5410 = ssub.s32 %s19, 2
        // Predicated region
        $region69: #{decoder_forward.5} parent=67 // pred_check
          %p5411 = pneg %p346
        $region70: #{decoder_forward.5} parent=67 // pred_check_branch
          %5413 = sbr.rel (%p5411) target = $region72
        $region71: #{decoder_forward.5} parent=67 // pred_region
          %s5414 = sand.u32 %s331, 1
          %s5415 = scalar_lea.sflag [#allocation3], %s5414
          %s5416 = sand.u32 %s331, 1
          %s5417 = smul.addr %s5416, 256
          %s5418 = scalar_lea.vmem [#allocation2], %s5417
          %5419 = dma.done %s5415, 4096
        $region72: #{decoder_forward.5} parent=67 // pred_fallthru
          _
      $region68: #{decoder_forward.5} parent=5 // pred_fallthru
        _
    $region6: #{decoder_forward.5} parent=1 // loop_footer
      %s23 = sadd.s32 1, %s19
    $region7: #{decoder_forward.5} parent=1 // loop_footer_branch
      %18 = sbr.rel target = $region3
    $region8: #{decoder_forward.5} parent=1 // loop_exit
      _
    %5420 = vsyncpa [#allocation3], 1
    %s5421 = scalar_lea.sflag [#allocation3], 1
    %5422 = vsyncpa %s5421, 1

</llo_original>
